<compile_context>
chip_gen: v5e
topology: v5e:2x2
jax: 0.10.0
libtpu: 0.0.40
codegen_flags: <defaults>
</compile_context>

<pallas_src>
import functools

import jax
import jax.numpy as jnp
import numpy as np
from jax.experimental import pallas as pl
from jax.experimental.pallas import tpu as pltpu

_NEG_SLOPE = 0.2
# Pool taps: (ph, pw, aw) parity/W-shift plane ids; kh = 2*ah + ph, kw = 2*aw + pw.
_POOL_TAPS = ((0, 0, 0), (0, 1, 0), (0, 0, 1), (1, 0, 0), (1, 1, 0), (1, 0, 1))


def _round_up(x, m):
    return (x + m - 1) // m * m


@functools.lru_cache(maxsize=None)
def _vmem_limit():
    """Scoped-VMEM budget: ~3/4 of physical, capped at 96 MiB.
    -> 96 MiB on v5e/v6e (128 MiB physical), 48 MiB on v7x (64 MiB physical)."""
    try:
        cap = pltpu.get_tpu_info().vmem_capacity_bytes
        return int(min(cap * 3 // 4, 96 * 1024 * 1024))
    except Exception:  # pragma: no cover - conservative fallback
        return 48 * 1024 * 1024


# ----------------------------------------------------------------------------
# Pallas kernels
# ----------------------------------------------------------------------------
def _fused_conv_kernel(p_ref, w_ref, b_ref, o_ref, *, neg_slope, Wo, M):
    """Fused im2col + conv(k=4, s=2) + bias + LeakyReLU for one image.

    p_ref: [8, 1, Cin, Hh*Wo] bf16 parity/W-shift planes (Hh = Ho+1).
    w_ref: [16, Cout, Cin]    bf16 per-tap weights (resident).
    b_ref: [Cout, 1]          f32 bias (resident).
    o_ref: [1, Cout, M]       bf16 output, M = Ho*Wo (lane-dense store).
    """
    acc = None
    for tp in range(8):                       # tp = ((ph*2)+pw)*2 + aw
        for ah in range(2):                   # H-shift handled as a lane offset
            rhs = p_ref[tp, 0, :, ah * Wo: ah * Wo + M]          # [Cin, M]
            d = jnp.dot(w_ref[2 * tp + ah], rhs,
                        preferred_element_type=jnp.float32)      # [Cout, M]
            acc = d if acc is None else acc + d
    acc = acc + b_ref[...]
    act = jnp.where(acc >= 0.0, acc, neg_slope * acc)
    o_ref[0, :, :] = act.astype(o_ref.dtype)


def _fused_conv_final_kernel(p_ref, w_ref, b_ref, fw_ref, fb_ref, o_ref,
                             *, neg_slope, Wo, M):
    """Last conv block of a scale fused with the trailing 1x1 conv.
    The [Cout, M] activation stays in VMEM; the 1x1 conv runs on the MXU."""
    acc = None
    for tp in range(8):
        for ah in range(2):
            rhs = p_ref[tp, 0, :, ah * Wo: ah * Wo + M]
            d = jnp.dot(w_ref[2 * tp + ah], rhs,
                        preferred_element_type=jnp.float32)
            acc = d if acc is None else acc + d
    acc = acc + b_ref[...]
    act = jnp.where(acc >= 0.0, acc, neg_slope * acc)            # [Cout, M] f32
    y = jnp.dot(fw_ref[...], act, preferred_element_type=jnp.float32)
    y = y + fb_ref[...]                                          # [1, M]
    o_ref[0, :, :] = y.astype(o_ref.dtype)


def _avgpool_kernel(p_ref, rcnt_ref, o_ref, *, Wo, M):
    """3x3/stride-2 avg-pool (count_include_pad=False).
    p_ref: [6, TB, Hh*Wo] parity/W-shift planes (lane-dense spatial axis),
    rcnt_ref: [1, M] reciprocal valid-count table, o_ref: [TB, M]."""
    acc = None
    for idx, (ph, _pw, _aw) in enumerate(_POOL_TAPS):
        for ah in ((0, 1) if ph == 0 else (0,)):
            t = p_ref[idx, :, ah * Wo: ah * Wo + M].astype(jnp.float32)
            acc = t if acc is None else acc + t
    o_ref[...] = (acc * rcnt_ref[...]).astype(o_ref.dtype)


# ----------------------------------------------------------------------------
# JAX glue: spectral norm + layer wrappers
# ----------------------------------------------------------------------------
def l2normalize(v, eps=1e-12):
    return v / (jnp.linalg.norm(v) + eps)


def spectral_normalize(w, u, v, power_iterations=1):
    """Mirror SpectralNorm._update_u_v: return w / sigma."""
    cout = w.shape[0]
    w2 = w.reshape(cout, -1)
    for _ in range(power_iterations):
        v = l2normalize(w2.T @ u)
        u = l2normalize(w2 @ v)
    sigma = jnp.dot(u, w2 @ v)
    return w / sigma


def conv2d_block(a, blk, final=None):
    """ReflectionPad(1) + SpectralNorm(Conv2d(k=4, s=2)) + LeakyReLU(0.2).

    a: [N, Cin, H, W].  Returns [N, Cout, Ho, Wo] bf16, or — if `final=(fw,fb)`
    is given — the fused 1x1-conv output [N, 1, Ho, Wo] f32."""
    N, Cin, H, W = a.shape
    assert H % 2 == 0 and W % 2 == 0, "even spatial dims expected"
    Ho, Wo = H // 2, W // 2
    Hh = Ho + 1
    M = Ho * Wo

    w_sn = spectral_normalize(blk["w"], blk["u"], blk["v"])
    Cout = w_sn.shape[0]

    ap = jnp.pad(a, ((0, 0), (0, 0), (1, 1), (1, 1)), mode="reflect")
    # Parity/W-shift planes (~2x activation bytes, vs 4x for full im2col):
    # plane[(ph,pw,aw)][n, c, r, j] = ap[n, c, 2r+ph, 2j+pw+2aw]
    planes = jnp.stack(
        [ap[:, :, ph::2, (pw + 2 * aw)::2][:, :, :Hh, :Wo]
         for ph in (0, 1) for pw in (0, 1) for aw in (0, 1)],
        axis=0)                                          # [8, N, Cin, Hh, Wo]
    planes = planes.reshape(8, N, Cin, Hh * Wo).astype(jnp.bfloat16)

    # Per-tap weights, ordered to match the kernel: index = tp*2 + ah.
    w_taps = jnp.stack(
        [w_sn[:, :, 2 * ah + ph, 2 * aw + pw]
         for ph in (0, 1) for pw in (0, 1) for aw in (0, 1) for ah in (0, 1)],
        axis=0).astype(jnp.bfloat16)                      # [16, Cout, Cin]
    b2 = blk["b"].reshape(Cout, 1).astype(jnp.float32)

    p_spec = pl.BlockSpec((8, 1, Cin, Hh * Wo), lambda n: (0, n, 0, 0))
    w_spec = pl.BlockSpec((16, Cout, Cin), lambda n: (0, 0, 0))   # resident
    b_spec = pl.BlockSpec((Cout, 1), lambda n: (0, 0))            # resident
    cparams = pltpu.CompilerParams(
        dimension_semantics=("parallel",), vmem_limit_bytes=_vmem_limit())

    flops = 2 * Cout * Cin * 16 * N * M
    in_bytes = planes.size * 2 + w_taps.size * 2 + Cout * 4

    if final is None:
        out = pl.pallas_call(
            functools.partial(_fused_conv_kernel,
                              neg_slope=_NEG_SLOPE, Wo=Wo, M=M),
            out_shape=jax.ShapeDtypeStruct((N, Cout, M), jnp.bfloat16),
            grid=(N,),
            in_specs=[p_spec, w_spec, b_spec],
            out_specs=pl.BlockSpec((1, Cout, M), lambda n: (n, 0, 0)),
            compiler_params=cparams,
            cost_estimate=pl.CostEstimate(
                flops=flops, transcendentals=0,
                bytes_accessed=in_bytes + N * Cout * M * 2),
        )(planes, w_taps, b2)
        return out.reshape(N, Cout, Ho, Wo)

    fw, fb = final
    fw2 = fw.reshape(1, Cout).astype(jnp.float32)
    fb2 = fb.reshape(1, 1).astype(jnp.float32)
    out = pl.pallas_call(
        functools.partial(_fused_conv_final_kernel,
                          neg_slope=_NEG_SLOPE, Wo=Wo, M=M),
        out_shape=jax.ShapeDtypeStruct((N, 1, M), jnp.float32),
        grid=(N,),
        in_specs=[p_spec, w_spec, b_spec,
                  pl.BlockSpec((1, Cout), lambda n: (0, 0)),
                  pl.BlockSpec((1, 1), lambda n: (0, 0))],
        out_specs=pl.BlockSpec((1, 1, M), lambda n: (n, 0, 0)),
        compiler_params=cparams,
        cost_estimate=pl.CostEstimate(
            flops=flops + 2 * Cout * N * M, transcendentals=0,
            bytes_accessed=in_bytes + Cout * 4 + 4 + N * M * 4),
    )(planes, w_taps, b2, fw2, fb2)
    return out.reshape(N, 1, Ho, Wo)


def avgpool_3x3_s2(x):
    """AvgPool2d(3, stride=2, padding=1, count_include_pad=False), x: [N,C,H,W].
    Requires even H/W (PyTorch also handles odd sizes)."""
    N, C, H, W = x.shape
    assert H % 2 == 0 and W % 2 == 0, "even spatial dims expected"
    Ho, Wo = H // 2, W // 2
    Hh = Ho + 1
    M = Ho * Wo
    B = N * C

    xp = jnp.pad(x.reshape(B, H, W), ((0, 0), (1, 1), (1, 1)))    # zero pad
    planes = jnp.stack(
        [xp[:, ph::2, (pw + 2 * aw)::2][:, :Hh, :Wo]
         for (ph, pw, aw) in _POOL_TAPS], axis=0)                 # [6, B, Hh, Wo]
    planes = planes.reshape(6, B, Hh * Wo).astype(jnp.bfloat16)

    # Static reciprocal valid-count table (count_include_pad=False), lane-wise.
    ones = np.pad(np.ones((H, W), np.float32), ((1, 1), (1, 1)))
    cnt = sum(ones[kh:kh + 2 * Ho:2, kw:kw + 2 * Wo:2]
              for kh in range(3) for kw in range(3))
    rcnt = jnp.asarray((1.0 / cnt).reshape(1, M), jnp.float32)

    # Tile over B (sublanes); planes' lane axis (Hh*Wo) stays whole & dense.
    hw_bytes = 6 * (Hh * Wo) * 2 * 2                 # per-row, double-buffered
    tb_cap = max(8, ((8 * 1024 * 1024) // hw_bytes) // 8 * 8)
    tb = max(8, min(_round_up(B, 8), 256, tb_cap))
    b_pad = _round_up(B, tb)
    if b_pad != B:
        planes = jnp.pad(planes, ((0, 0), (0, b_pad - B), (0, 0)))

    out = pl.pallas_call(
        functools.partial(_avgpool_kernel, Wo=Wo, M=M),
        out_shape=jax.ShapeDtypeStruct((b_pad, M), jnp.bfloat16),
        grid=(b_pad // tb,),
        in_specs=[pl.BlockSpec((6, tb, Hh * Wo), lambda i: (0, i, 0)),
                  pl.BlockSpec((1, M), lambda i: (0, 0))],
        out_specs=pl.BlockSpec((tb, M), lambda i: (i, 0)),
        compiler_params=pltpu.CompilerParams(
            dimension_semantics=("parallel",), vmem_limit_bytes=_vmem_limit()),
    )(planes, rcnt)
    out = out[:B] if b_pad != B else out
    return out.reshape(N, C, Ho, Wo)


def ms_image_discriminator(x, params):
    """x: [N, C, H, W] (NCHW).  Returns list of per-scale outputs [N,1,Ho,Wo]."""
    outputs = []
    a = x
    num_scales = len(params)
    for s, scale in enumerate(params):
        h = a
        blocks = scale["blocks"]
        for blk in blocks[:-1]:
            h = conv2d_block(h, blk)
        outputs.append(conv2d_block(h, blocks[-1], final=scale["final"]))
        if s + 1 < num_scales:                   # skip unused trailing pool
            a = avgpool_3x3_s2(a)
    return outputs


# ----------------------------------------------------------------------------
# Deterministic parameter init (synthetic; mirrors module shapes)
# ----------------------------------------------------------------------------
def init_params(key, input_dim, n_layer, dim, num_scales):
    params = []
    for _ in range(num_scales):
        blocks = []
        cin, cout = input_dim, dim
        for _ in range(n_layer):
            key, k1, k2, k3, k4 = jax.random.split(key, 5)
            w = jax.random.normal(k1, (cout, cin, 4, 4), jnp.float32) * 0.1
            b = jax.random.normal(k2, (cout,), jnp.float32) * 0.1
            u = l2normalize(jax.random.normal(k3, (cout,), jnp.float32))
            v = l2normalize(jax.random.normal(k4, (cin * 16,), jnp.float32))
            blocks.append(dict(w=w, b=b, u=u, v=v))
            cin, cout = cout, cout * 2
        key, k1, k2 = jax.random.split(key, 3)
        fw = jax.random.normal(k1, (1, cin, 1, 1), jnp.float32) * 0.1
        fb = jax.random.normal(k2, (1,), jnp.float32) * 0.1
        params.append(dict(blocks=blocks, final=(fw, fb)))
    return params


# ----------------------------------------------------------------------------
# Pure-JAX reference (independent code path) for correctness checking
# ----------------------------------------------------------------------------
def _ref_avgpool(x):
    xp = jnp.pad(x, ((0, 0), (0, 0), (1, 1), (1, 1)))
    s = jax.lax.reduce_window(xp, 0.0, jax.lax.add, (1, 1, 3, 3), (1, 1, 2, 2), "VALID")
    ones = jnp.pad(jnp.ones(x.shape[2:], jnp.float32), ((1, 1), (1, 1)))
    cnt = jax.lax.reduce_window(ones, 0.0, jax.lax.add, (3, 3), (2, 2), "VALID")
    return s / cnt[None, None]


def ref_forward(x, params):
    outs = []
    dn = ("NCHW", "OIHW", "NCHW")
    for scale in params:
        h = x
        for blk in scale["blocks"]:
            w_sn = spectral_normalize(blk["w"], blk["u"], blk["v"])
            hp = jnp.pad(h, ((0, 0), (0, 0), (1, 1), (1, 1)), mode="reflect")
            h = jax.lax.conv_general_dilated(
                hp, w_sn, (2, 2), "VALID", dimension_numbers=dn,
                precision=jax.lax.Precision.HIGHEST)
            h = h + blk["b"][None, :, None, None]
            h = jnp.where(h >= 0, h, 0.2 * h)
        fw, fb = scale["final"]
        h = jax.lax.conv_general_dilated(
            h, fw, (1, 1), "VALID", dimension_numbers=dn,
            precision=jax.lax.Precision.HIGHEST)
        outs.append(h + fb[None, :, None, None])
        x = _ref_avgpool(x)
    return outs


# ----------------------------------------------------------------------------
if __name__ == "__main__":
    # 32x32 input: per-image M = 256 on the first layer (lane-dense stores),
    # and N=2 gives a 2-tile "parallel" grid so both v7x TCs have work.
    N, CIN, H, W = 2, 4, 32, 32
    N_LAYER, DIM, NUM_SCALES = 2, 8, 3

    x = jax.random.normal(jax.random.PRNGKey(0), (N, CIN, H, W), jnp.float32)
    params = init_params(jax.random.PRNGKey(1), CIN, N_LAYER, DIM, NUM_SCALES)

    fwd = jax.jit(ms_image_discriminator)
    outs = fwd(x, params)
    for o in outs:
        jax.block_until_ready(o)

    refs = ref_forward(x, params)
    for o, r in zip(outs, refs):
        assert o.shape == r.shape, (o.shape, r.shape)
        # bf16 planes/weights/activations (f32 accumulation) -> loose tolerance.
        np.testing.assert_allclose(np.asarray(o), np.asarray(r), rtol=3e-2, atol=3e-2)

    print("KERNEL_OK")
</pallas_src>

<mosaic_0001>
module attributes {stable_mosaic.version = 11 : i64} {
  func.func @_fused_conv_kernel(%arg0: i32, %arg1: memref<8x1x4x272xbf16, #tpu.memory_space<vmem>>, %arg2: memref<16x8x4xbf16, #tpu.memory_space<vmem>>, %arg3: memref<8x1xf32, #tpu.memory_space<vmem>>, %arg4: memref<1x8x256xbf16, #tpu.memory_space<vmem>>) attributes {dimension_semantics = [#tpu.dimension_semantics<parallel>], iteration_bounds = array<i64: 2>, scalar_prefetch = 0 : i64, scratch_operands = 0 : i64, tpu.core_type = #tpu.core_type<tc>, window_params = [{transform_indices = @transform_0, window_bounds = array<i64: 8, 1, 4, 272>}, {pipeline_mode = #tpu.pipeline_mode<synchronous>, transform_indices = @transform_1, window_bounds = array<i64: 16, 8, 4>}, {pipeline_mode = #tpu.pipeline_mode<synchronous>, transform_indices = @transform_2, window_bounds = array<i64: 8, 1>}, {transform_indices = @transform_3, window_bounds = array<i64: 1, 8, 256>}]} {
    %c0 = arith.constant 0 : index
    %c0_0 = arith.constant 0 : index
    %c0_1 = arith.constant 0 : index
    %c0_2 = arith.constant 0 : index
    %0 = vector.load %arg1[%c0, %c0_0, %c0_1, %c0_2] : memref<8x1x4x272xbf16, #tpu.memory_space<vmem>>, vector<1x1x4x256xbf16>
    %1 = vector.shape_cast %0 : vector<1x1x4x256xbf16> to vector<4x256xbf16>
    %c0_3 = arith.constant 0 : index
    %c0_4 = arith.constant 0 : index
    %c0_5 = arith.constant 0 : index
    %2 = vector.load %arg2[%c0_3, %c0_4, %c0_5] : memref<16x8x4xbf16, #tpu.memory_space<vmem>>, vector<1x8x4xbf16>
    %3 = vector.shape_cast %2 : vector<1x8x4xbf16> to vector<8x4xbf16>
    %cst = arith.constant dense<0.000000e+00> : vector<8x256xf32>
    %4 = tpu.matmul %3, %1, %cst {dimension_numbers = #tpu.dot_dimension_numbers<[1], [0], [0], [1], [0, 0, 1, 1], [], []>} : vector<8x4xbf16>, vector<4x256xbf16>, vector<8x256xf32> -> vector<8x256xf32>
    %c0_6 = arith.constant 0 : index
    %c0_7 = arith.constant 0 : index
    %c0_8 = arith.constant 0 : index
    %c16 = arith.constant 16 : index
    %5 = vector.load %arg1[%c0_6, %c0_7, %c0_8, %c16] : memref<8x1x4x272xbf16, #tpu.memory_space<vmem>>, vector<1x1x4x256xbf16>
    %6 = vector.shape_cast %5 : vector<1x1x4x256xbf16> to vector<4x256xbf16>
    %c1 = arith.constant 1 : index
    %c0_9 = arith.constant 0 : index
    %c0_10 = arith.constant 0 : index
    %7 = vector.load %arg2[%c1, %c0_9, %c0_10] : memref<16x8x4xbf16, #tpu.memory_space<vmem>>, vector<1x8x4xbf16>
    %8 = vector.shape_cast %7 : vector<1x8x4xbf16> to vector<8x4xbf16>
    %cst_11 = arith.constant dense<0.000000e+00> : vector<8x256xf32>
    %9 = tpu.matmul %8, %6, %cst_11 {dimension_numbers = #tpu.dot_dimension_numbers<[1], [0], [0], [1], [0, 0, 1, 1], [], []>} : vector<8x4xbf16>, vector<4x256xbf16>, vector<8x256xf32> -> vector<8x256xf32>
    %10 = arith.addf %4, %9 : vector<8x256xf32>
    %c1_12 = arith.constant 1 : index
    %c0_13 = arith.constant 0 : index
    %c0_14 = arith.constant 0 : index
    %c0_15 = arith.constant 0 : index
    %11 = vector.load %arg1[%c1_12, %c0_13, %c0_14, %c0_15] : memref<8x1x4x272xbf16, #tpu.memory_space<vmem>>, vector<1x1x4x256xbf16>
    %12 = vector.shape_cast %11 : vector<1x1x4x256xbf16> to vector<4x256xbf16>
    %c2 = arith.constant 2 : index
    %c0_16 = arith.constant 0 : index
    %c0_17 = arith.constant 0 : index
    %13 = vector.load %arg2[%c2, %c0_16, %c0_17] : memref<16x8x4xbf16, #tpu.memory_space<vmem>>, vector<1x8x4xbf16>
    %14 = vector.shape_cast %13 : vector<1x8x4xbf16> to vector<8x4xbf16>
    %cst_18 = arith.constant dense<0.000000e+00> : vector<8x256xf32>
    %15 = tpu.matmul %14, %12, %cst_18 {dimension_numbers = #tpu.dot_dimension_numbers<[1], [0], [0], [1], [0, 0, 1, 1], [], []>} : vector<8x4xbf16>, vector<4x256xbf16>, vector<8x256xf32> -> vector<8x256xf32>
    %16 = arith.addf %10, %15 : vector<8x256xf32>
    %c1_19 = arith.constant 1 : index
    %c0_20 = arith.constant 0 : index
    %c0_21 = arith.constant 0 : index
    %c16_22 = arith.constant 16 : index
    %17 = vector.load %arg1[%c1_19, %c0_20, %c0_21, %c16_22] : memref<8x1x4x272xbf16, #tpu.memory_space<vmem>>, vector<1x1x4x256xbf16>
    %18 = vector.shape_cast %17 : vector<1x1x4x256xbf16> to vector<4x256xbf16>
    %c3 = arith.constant 3 : index
    %c0_23 = arith.constant 0 : index
    %c0_24 = arith.constant 0 : index
    %19 = vector.load %arg2[%c3, %c0_23, %c0_24] : memref<16x8x4xbf16, #tpu.memory_space<vmem>>, vector<1x8x4xbf16>
    %20 = vector.shape_cast %19 : vector<1x8x4xbf16> to vector<8x4xbf16>
    %cst_25 = arith.constant dense<0.000000e+00> : vector<8x256xf32>
    %21 = tpu.matmul %20, %18, %cst_25 {dimension_numbers = #tpu.dot_dimension_numbers<[1], [0], [0], [1], [0, 0, 1, 1], [], []>} : vector<8x4xbf16>, vector<4x256xbf16>, vector<8x256xf32> -> vector<8x256xf32>
    %22 = arith.addf %16, %21 : vector<8x256xf32>
    %c2_26 = arith.constant 2 : index
    %c0_27 = arith.constant 0 : index
    %c0_28 = arith.constant 0 : index
    %c0_29 = arith.constant 0 : index
    %23 = vector.load %arg1[%c2_26, %c0_27, %c0_28, %c0_29] : memref<8x1x4x272xbf16, #tpu.memory_space<vmem>>, vector<1x1x4x256xbf16>
    %24 = vector.shape_cast %23 : vector<1x1x4x256xbf16> to vector<4x256xbf16>
    %c4 = arith.constant 4 : index
    %c0_30 = arith.constant 0 : index
    %c0_31 = arith.constant 0 : index
    %25 = vector.load %arg2[%c4, %c0_30, %c0_31] : memref<16x8x4xbf16, #tpu.memory_space<vmem>>, vector<1x8x4xbf16>
    %26 = vector.shape_cast %25 : vector<1x8x4xbf16> to vector<8x4xbf16>
    %cst_32 = arith.constant dense<0.000000e+00> : vector<8x256xf32>
    %27 = tpu.matmul %26, %24, %cst_32 {dimension_numbers = #tpu.dot_dimension_numbers<[1], [0], [0], [1], [0, 0, 1, 1], [], []>} : vector<8x4xbf16>, vector<4x256xbf16>, vector<8x256xf32> -> vector<8x256xf32>
    %28 = arith.addf %22, %27 : vector<8x256xf32>
    %c2_33 = arith.constant 2 : index
    %c0_34 = arith.constant 0 : index
    %c0_35 = arith.constant 0 : index
    %c16_36 = arith.constant 16 : index
    %29 = vector.load %arg1[%c2_33, %c0_34, %c0_35, %c16_36] : memref<8x1x4x272xbf16, #tpu.memory_space<vmem>>, vector<1x1x4x256xbf16>
    %30 = vector.shape_cast %29 : vector<1x1x4x256xbf16> to vector<4x256xbf16>
    %c5 = arith.constant 5 : index
    %c0_37 = arith.constant 0 : index
    %c0_38 = arith.constant 0 : index
    %31 = vector.load %arg2[%c5, %c0_37, %c0_38] : memref<16x8x4xbf16, #tpu.memory_space<vmem>>, vector<1x8x4xbf16>
    %32 = vector.shape_cast %31 : vector<1x8x4xbf16> to vector<8x4xbf16>
    %cst_39 = arith.constant dense<0.000000e+00> : vector<8x256xf32>
    %33 = tpu.matmul %32, %30, %cst_39 {dimension_numbers = #tpu.dot_dimension_numbers<[1], [0], [0], [1], [0, 0, 1, 1], [], []>} : vector<8x4xbf16>, vector<4x256xbf16>, vector<8x256xf32> -> vector<8x256xf32>
    %34 = arith.addf %28, %33 : vector<8x256xf32>
    %c3_40 = arith.constant 3 : index
    %c0_41 = arith.constant 0 : index
    %c0_42 = arith.constant 0 : index
    %c0_43 = arith.constant 0 : index
    %35 = vector.load %arg1[%c3_40, %c0_41, %c0_42, %c0_43] : memref<8x1x4x272xbf16, #tpu.memory_space<vmem>>, vector<1x1x4x256xbf16>
    %36 = vector.shape_cast %35 : vector<1x1x4x256xbf16> to vector<4x256xbf16>
    %c6 = arith.constant 6 : index
    %c0_44 = arith.constant 0 : index
    %c0_45 = arith.constant 0 : index
    %37 = vector.load %arg2[%c6, %c0_44, %c0_45] : memref<16x8x4xbf16, #tpu.memory_space<vmem>>, vector<1x8x4xbf16>
    %38 = vector.shape_cast %37 : vector<1x8x4xbf16> to vector<8x4xbf16>
    %cst_46 = arith.constant dense<0.000000e+00> : vector<8x256xf32>
    %39 = tpu.matmul %38, %36, %cst_46 {dimension_numbers = #tpu.dot_dimension_numbers<[1], [0], [0], [1], [0, 0, 1, 1], [], []>} : vector<8x4xbf16>, vector<4x256xbf16>, vector<8x256xf32> -> vector<8x256xf32>
    %40 = arith.addf %34, %39 : vector<8x256xf32>
    %c3_47 = arith.constant 3 : index
    %c0_48 = arith.constant 0 : index
    %c0_49 = arith.constant 0 : index
    %c16_50 = arith.constant 16 : index
    %41 = vector.load %arg1[%c3_47, %c0_48, %c0_49, %c16_50] : memref<8x1x4x272xbf16, #tpu.memory_space<vmem>>, vector<1x1x4x256xbf16>
    %42 = vector.shape_cast %41 : vector<1x1x4x256xbf16> to vector<4x256xbf16>
    %c7 = arith.constant 7 : index
    %c0_51 = arith.constant 0 : index
    %c0_52 = arith.constant 0 : index
    %43 = vector.load %arg2[%c7, %c0_51, %c0_52] : memref<16x8x4xbf16, #tpu.memory_space<vmem>>, vector<1x8x4xbf16>
    %44 = vector.shape_cast %43 : vector<1x8x4xbf16> to vector<8x4xbf16>
    %cst_53 = arith.constant dense<0.000000e+00> : vector<8x256xf32>
    %45 = tpu.matmul %44, %42, %cst_53 {dimension_numbers = #tpu.dot_dimension_numbers<[1], [0], [0], [1], [0, 0, 1, 1], [], []>} : vector<8x4xbf16>, vector<4x256xbf16>, vector<8x256xf32> -> vector<8x256xf32>
    %46 = arith.addf %40, %45 : vector<8x256xf32>
    %c4_54 = arith.constant 4 : index
    %c0_55 = arith.constant 0 : index
    %c0_56 = arith.constant 0 : index
    %c0_57 = arith.constant 0 : index
    %47 = vector.load %arg1[%c4_54, %c0_55, %c0_56, %c0_57] : memref<8x1x4x272xbf16, #tpu.memory_space<vmem>>, vector<1x1x4x256xbf16>
    %48 = vector.shape_cast %47 : vector<1x1x4x256xbf16> to vector<4x256xbf16>
    %c8 = arith.constant 8 : index
    %c0_58 = arith.constant 0 : index
    %c0_59 = arith.constant 0 : index
    %49 = vector.load %arg2[%c8, %c0_58, %c0_59] : memref<16x8x4xbf16, #tpu.memory_space<vmem>>, vector<1x8x4xbf16>
    %50 = vector.shape_cast %49 : vector<1x8x4xbf16> to vector<8x4xbf16>
    %cst_60 = arith.constant dense<0.000000e+00> : vector<8x256xf32>
    %51 = tpu.matmul %50, %48, %cst_60 {dimension_numbers = #tpu.dot_dimension_numbers<[1], [0], [0], [1], [0, 0, 1, 1], [], []>} : vector<8x4xbf16>, vector<4x256xbf16>, vector<8x256xf32> -> vector<8x256xf32>
    %52 = arith.addf %46, %51 : vector<8x256xf32>
    %c4_61 = arith.constant 4 : index
    %c0_62 = arith.constant 0 : index
    %c0_63 = arith.constant 0 : index
    %c16_64 = arith.constant 16 : index
    %53 = vector.load %arg1[%c4_61, %c0_62, %c0_63, %c16_64] : memref<8x1x4x272xbf16, #tpu.memory_space<vmem>>, vector<1x1x4x256xbf16>
    %54 = vector.shape_cast %53 : vector<1x1x4x256xbf16> to vector<4x256xbf16>
    %c9 = arith.constant 9 : index
    %c0_65 = arith.constant 0 : index
    %c0_66 = arith.constant 0 : index
    %55 = vector.load %arg2[%c9, %c0_65, %c0_66] : memref<16x8x4xbf16, #tpu.memory_space<vmem>>, vector<1x8x4xbf16>
    %56 = vector.shape_cast %55 : vector<1x8x4xbf16> to vector<8x4xbf16>
    %cst_67 = arith.constant dense<0.000000e+00> : vector<8x256xf32>
    %57 = tpu.matmul %56, %54, %cst_67 {dimension_numbers = #tpu.dot_dimension_numbers<[1], [0], [0], [1], [0, 0, 1, 1], [], []>} : vector<8x4xbf16>, vector<4x256xbf16>, vector<8x256xf32> -> vector<8x256xf32>
    %58 = arith.addf %52, %57 : vector<8x256xf32>
    %c5_68 = arith.constant 5 : index
    %c0_69 = arith.constant 0 : index
    %c0_70 = arith.constant 0 : index
    %c0_71 = arith.constant 0 : index
    %59 = vector.load %arg1[%c5_68, %c0_69, %c0_70, %c0_71] : memref<8x1x4x272xbf16, #tpu.memory_space<vmem>>, vector<1x1x4x256xbf16>
    %60 = vector.shape_cast %59 : vector<1x1x4x256xbf16> to vector<4x256xbf16>
    %c10 = arith.constant 10 : index
    %c0_72 = arith.constant 0 : index
    %c0_73 = arith.constant 0 : index
    %61 = vector.load %arg2[%c10, %c0_72, %c0_73] : memref<16x8x4xbf16, #tpu.memory_space<vmem>>, vector<1x8x4xbf16>
    %62 = vector.shape_cast %61 : vector<1x8x4xbf16> to vector<8x4xbf16>
    %cst_74 = arith.constant dense<0.000000e+00> : vector<8x256xf32>
    %63 = tpu.matmul %62, %60, %cst_74 {dimension_numbers = #tpu.dot_dimension_numbers<[1], [0], [0], [1], [0, 0, 1, 1], [], []>} : vector<8x4xbf16>, vector<4x256xbf16>, vector<8x256xf32> -> vector<8x256xf32>
    %64 = arith.addf %58, %63 : vector<8x256xf32>
    %c5_75 = arith.constant 5 : index
    %c0_76 = arith.constant 0 : index
    %c0_77 = arith.constant 0 : index
    %c16_78 = arith.constant 16 : index
    %65 = vector.load %arg1[%c5_75, %c0_76, %c0_77, %c16_78] : memref<8x1x4x272xbf16, #tpu.memory_space<vmem>>, vector<1x1x4x256xbf16>
    %66 = vector.shape_cast %65 : vector<1x1x4x256xbf16> to vector<4x256xbf16>
    %c11 = arith.constant 11 : index
    %c0_79 = arith.constant 0 : index
    %c0_80 = arith.constant 0 : index
    %67 = vector.load %arg2[%c11, %c0_79, %c0_80] : memref<16x8x4xbf16, #tpu.memory_space<vmem>>, vector<1x8x4xbf16>
    %68 = vector.shape_cast %67 : vector<1x8x4xbf16> to vector<8x4xbf16>
    %cst_81 = arith.constant dense<0.000000e+00> : vector<8x256xf32>
    %69 = tpu.matmul %68, %66, %cst_81 {dimension_numbers = #tpu.dot_dimension_numbers<[1], [0], [0], [1], [0, 0, 1, 1], [], []>} : vector<8x4xbf16>, vector<4x256xbf16>, vector<8x256xf32> -> vector<8x256xf32>
    %70 = arith.addf %64, %69 : vector<8x256xf32>
    %c6_82 = arith.constant 6 : index
    %c0_83 = arith.constant 0 : index
    %c0_84 = arith.constant 0 : index
    %c0_85 = arith.constant 0 : index
    %71 = vector.load %arg1[%c6_82, %c0_83, %c0_84, %c0_85] : memref<8x1x4x272xbf16, #tpu.memory_space<vmem>>, vector<1x1x4x256xbf16>
    %72 = vector.shape_cast %71 : vector<1x1x4x256xbf16> to vector<4x256xbf16>
    %c12 = arith.constant 12 : index
    %c0_86 = arith.constant 0 : index
    %c0_87 = arith.constant 0 : index
    %73 = vector.load %arg2[%c12, %c0_86, %c0_87] : memref<16x8x4xbf16, #tpu.memory_space<vmem>>, vector<1x8x4xbf16>
    %74 = vector.shape_cast %73 : vector<1x8x4xbf16> to vector<8x4xbf16>
    %cst_88 = arith.constant dense<0.000000e+00> : vector<8x256xf32>
    %75 = tpu.matmul %74, %72, %cst_88 {dimension_numbers = #tpu.dot_dimension_numbers<[1], [0], [0], [1], [0, 0, 1, 1], [], []>} : vector<8x4xbf16>, vector<4x256xbf16>, vector<8x256xf32> -> vector<8x256xf32>
    %76 = arith.addf %70, %75 : vector<8x256xf32>
    %c6_89 = arith.constant 6 : index
    %c0_90 = arith.constant 0 : index
    %c0_91 = arith.constant 0 : index
    %c16_92 = arith.constant 16 : index
    %77 = vector.load %arg1[%c6_89, %c0_90, %c0_91, %c16_92] : memref<8x1x4x272xbf16, #tpu.memory_space<vmem>>, vector<1x1x4x256xbf16>
    %78 = vector.shape_cast %77 : vector<1x1x4x256xbf16> to vector<4x256xbf16>
    %c13 = arith.constant 13 : index
    %c0_93 = arith.constant 0 : index
    %c0_94 = arith.constant 0 : index
    %79 = vector.load %arg2[%c13, %c0_93, %c0_94] : memref<16x8x4xbf16, #tpu.memory_space<vmem>>, vector<1x8x4xbf16>
    %80 = vector.shape_cast %79 : vector<1x8x4xbf16> to vector<8x4xbf16>
    %cst_95 = arith.constant dense<0.000000e+00> : vector<8x256xf32>
    %81 = tpu.matmul %80, %78, %cst_95 {dimension_numbers = #tpu.dot_dimension_numbers<[1], [0], [0], [1], [0, 0, 1, 1], [], []>} : vector<8x4xbf16>, vector<4x256xbf16>, vector<8x256xf32> -> vector<8x256xf32>
    %82 = arith.addf %76, %81 : vector<8x256xf32>
    %c7_96 = arith.constant 7 : index
    %c0_97 = arith.constant 0 : index
    %c0_98 = arith.constant 0 : index
    %c0_99 = arith.constant 0 : index
    %83 = vector.load %arg1[%c7_96, %c0_97, %c0_98, %c0_99] : memref<8x1x4x272xbf16, #tpu.memory_space<vmem>>, vector<1x1x4x256xbf16>
    %84 = vector.shape_cast %83 : vector<1x1x4x256xbf16> to vector<4x256xbf16>
    %c14 = arith.constant 14 : index
    %c0_100 = arith.constant 0 : index
    %c0_101 = arith.constant 0 : index
    %85 = vector.load %arg2[%c14, %c0_100, %c0_101] : memref<16x8x4xbf16, #tpu.memory_space<vmem>>, vector<1x8x4xbf16>
    %86 = vector.shape_cast %85 : vector<1x8x4xbf16> to vector<8x4xbf16>
    %cst_102 = arith.constant dense<0.000000e+00> : vector<8x256xf32>
    %87 = tpu.matmul %86, %84, %cst_102 {dimension_numbers = #tpu.dot_dimension_numbers<[1], [0], [0], [1], [0, 0, 1, 1], [], []>} : vector<8x4xbf16>, vector<4x256xbf16>, vector<8x256xf32> -> vector<8x256xf32>
    %88 = arith.addf %82, %87 : vector<8x256xf32>
    %c7_103 = arith.constant 7 : index
    %c0_104 = arith.constant 0 : index
    %c0_105 = arith.constant 0 : index
    %c16_106 = arith.constant 16 : index
    %89 = vector.load %arg1[%c7_103, %c0_104, %c0_105, %c16_106] : memref<8x1x4x272xbf16, #tpu.memory_space<vmem>>, vector<1x1x4x256xbf16>
    %90 = vector.shape_cast %89 : vector<1x1x4x256xbf16> to vector<4x256xbf16>
    %c15 = arith.constant 15 : index
    %c0_107 = arith.constant 0 : index
    %c0_108 = arith.constant 0 : index
    %91 = vector.load %arg2[%c15, %c0_107, %c0_108] : memref<16x8x4xbf16, #tpu.memory_space<vmem>>, vector<1x8x4xbf16>
    %92 = vector.shape_cast %91 : vector<1x8x4xbf16> to vector<8x4xbf16>
    %cst_109 = arith.constant dense<0.000000e+00> : vector<8x256xf32>
    %93 = tpu.matmul %92, %90, %cst_109 {dimension_numbers = #tpu.dot_dimension_numbers<[1], [0], [0], [1], [0, 0, 1, 1], [], []>} : vector<8x4xbf16>, vector<4x256xbf16>, vector<8x256xf32> -> vector<8x256xf32>
    %94 = arith.addf %88, %93 : vector<8x256xf32>
    %c0_110 = arith.constant 0 : index
    %c0_111 = arith.constant 0 : index
    %95 = vector.load %arg3[%c0_110, %c0_111] : memref<8x1xf32, #tpu.memory_space<vmem>>, vector<8x1xf32>
    %96 = vector.broadcast %95 : vector<8x1xf32> to vector<8x256xf32>
    %97 = arith.addf %94, %96 : vector<8x256xf32>
    %cst_112 = arith.constant 0.000000e+00 : f32
    %98 = vector.broadcast %cst_112 : f32 to vector<8x256xf32>
    %99 = arith.cmpf oge, %97, %98 : vector<8x256xf32>
    %cst_113 = arith.constant 2.000000e-01 : f32
    %100 = vector.broadcast %cst_113 : f32 to vector<8x256xf32>
    %101 = arith.mulf %100, %97 : vector<8x256xf32>
    %102 = arith.select %99, %97, %101 : vector<8x256xi1>, vector<8x256xf32>
    %103 = arith.truncf %102 : vector<8x256xf32> to vector<8x256xbf16>
    %c0_114 = arith.constant 0 : index
    %c0_115 = arith.constant 0 : index
    %c0_116 = arith.constant 0 : index
    %104 = vector.load %arg4[%c0_114, %c0_115, %c0_116] : memref<1x8x256xbf16, #tpu.memory_space<vmem>>, vector<1x8x256xbf16>
    %105 = vector.shape_cast %104 : vector<1x8x256xbf16> to vector<8x256xbf16>
    %106 = vector.shape_cast %103 : vector<8x256xbf16> to vector<1x8x256xbf16>
    tpu.vector_store %arg4[%c0_114, %c0_115, %c0_116], %106 {strides = array<i32>} : memref<1x8x256xbf16, #tpu.memory_space<vmem>>, vector<1x8x256xbf16>,
    return
  }
  func.func @transform_0(%arg0: i32) -> (i32, i32, i32, i32) {
    %c0_i32 = arith.constant 0 : i32
    %c0_i32_0 = arith.constant 0 : i32
    %c0_i32_1 = arith.constant 0 : i32
    %c0_i32_2 = arith.constant 0 : i32
    return %c0_i32, %arg0, %c0_i32_0, %c0_i32_1 : i32, i32, i32, i32
  }
  func.func @transform_1(%arg0: i32) -> (i32, i32, i32) {
    %c0_i32 = arith.constant 0 : i32
    %c0_i32_0 = arith.constant 0 : i32
    %c0_i32_1 = arith.constant 0 : i32
    %c0_i32_2 = arith.constant 0 : i32
    return %c0_i32, %c0_i32_0, %c0_i32_1 : i32, i32, i32
  }
  func.func @transform_2(%arg0: i32) -> (i32, i32) {
    %c0_i32 = arith.constant 0 : i32
    %c0_i32_0 = arith.constant 0 : i32
    %c0_i32_1 = arith.constant 0 : i32
    return %c0_i32, %c0_i32_0 : i32, i32
  }
  func.func @transform_3(%arg0: i32) -> (i32, i32, i32) {
    %c0_i32 = arith.constant 0 : i32
    %c0_i32_0 = arith.constant 0 : i32
    %c0_i32_1 = arith.constant 0 : i32
    return %arg0, %c0_i32, %c0_i32_0 : i32, i32, i32
  }
}

module attributes {stable_mosaic.version = 11 : i64} {
  func.func @_fused_conv_final_kernel(%arg0: i32, %arg1: memref<8x1x8x72xbf16, #tpu.memory_space<vmem>>, %arg2: memref<16x16x8xbf16, #tpu.memory_space<vmem>>, %arg3: memref<16x1xf32, #tpu.memory_space<vmem>>, %arg4: memref<1x16xf32, #tpu.memory_space<vmem>>, %arg5: memref<1x1xf32, #tpu.memory_space<vmem>>, %arg6: memref<1x1x64xf32, #tpu.memory_space<vmem>>) attributes {dimension_semantics = [#tpu.dimension_semantics<parallel>], iteration_bounds = array<i64: 2>, scalar_prefetch = 0 : i64, scratch_operands = 0 : i64, tpu.core_type = #tpu.core_type<tc>, window_params = [{transform_indices = @transform_0, window_bounds = array<i64: 8, 1, 8, 72>}, {pipeline_mode = #tpu.pipeline_mode<synchronous>, transform_indices = @transform_1, window_bounds = array<i64: 16, 16, 8>}, {pipeline_mode = #tpu.pipeline_mode<synchronous>, transform_indices = @transform_2, window_bounds = array<i64: 16, 1>}, {pipeline_mode = #tpu.pipeline_mode<synchronous>, transform_indices = @transform_3, window_bounds = array<i64: 1, 16>}, {pipeline_mode = #tpu.pipeline_mode<synchronous>, transform_indices = @transform_4, window_bounds = array<i64: 1, 1>}, {transform_indices = @transform_5, window_bounds = array<i64: 1, 1, 64>}]} {
    %c0 = arith.constant 0 : index
    %c0_0 = arith.constant 0 : index
    %c0_1 = arith.constant 0 : index
    %c0_2 = arith.constant 0 : index
    %0 = vector.load %arg1[%c0, %c0_0, %c0_1, %c0_2] : memref<8x1x8x72xbf16, #tpu.memory_space<vmem>>, vector<1x1x8x64xbf16>
    %1 = vector.shape_cast %0 : vector<1x1x8x64xbf16> to vector<8x64xbf16>
    %c0_3 = arith.constant 0 : index
    %c0_4 = arith.constant 0 : index
    %c0_5 = arith.constant 0 : index
    %2 = vector.load %arg2[%c0_3, %c0_4, %c0_5] : memref<16x16x8xbf16, #tpu.memory_space<vmem>>, vector<1x16x8xbf16>
    %3 = vector.shape_cast %2 : vector<1x16x8xbf16> to vector<16x8xbf16>
    %cst = arith.constant dense<0.000000e+00> : vector<16x64xf32>
    %4 = tpu.matmul %3, %1, %cst {dimension_numbers = #tpu.dot_dimension_numbers<[1], [0], [0], [1], [0, 0, 1, 1], [], []>} : vector<16x8xbf16>, vector<8x64xbf16>, vector<16x64xf32> -> vector<16x64xf32>
    %c0_6 = arith.constant 0 : index
    %c0_7 = arith.constant 0 : index
    %c0_8 = arith.constant 0 : index
    %c8 = arith.constant 8 : index
    %5 = vector.load %arg1[%c0_6, %c0_7, %c0_8, %c8] : memref<8x1x8x72xbf16, #tpu.memory_space<vmem>>, vector<1x1x8x64xbf16>
    %6 = vector.shape_cast %5 : vector<1x1x8x64xbf16> to vector<8x64xbf16>
    %c1 = arith.constant 1 : index
    %c0_9 = arith.constant 0 : index
    %c0_10 = arith.constant 0 : index
    %7 = vector.load %arg2[%c1, %c0_9, %c0_10] : memref<16x16x8xbf16, #tpu.memory_space<vmem>>, vector<1x16x8xbf16>
    %8 = vector.shape_cast %7 : vector<1x16x8xbf16> to vector<16x8xbf16>
    %cst_11 = arith.constant dense<0.000000e+00> : vector<16x64xf32>
    %9 = tpu.matmul %8, %6, %cst_11 {dimension_numbers = #tpu.dot_dimension_numbers<[1], [0], [0], [1], [0, 0, 1, 1], [], []>} : vector<16x8xbf16>, vector<8x64xbf16>, vector<16x64xf32> -> vector<16x64xf32>
    %10 = arith.addf %4, %9 : vector<16x64xf32>
    %c1_12 = arith.constant 1 : index
    %c0_13 = arith.constant 0 : index
    %c0_14 = arith.constant 0 : index
    %c0_15 = arith.constant 0 : index
    %11 = vector.load %arg1[%c1_12, %c0_13, %c0_14, %c0_15] : memref<8x1x8x72xbf16, #tpu.memory_space<vmem>>, vector<1x1x8x64xbf16>
    %12 = vector.shape_cast %11 : vector<1x1x8x64xbf16> to vector<8x64xbf16>
    %c2 = arith.constant 2 : index
    %c0_16 = arith.constant 0 : index
    %c0_17 = arith.constant 0 : index
    %13 = vector.load %arg2[%c2, %c0_16, %c0_17] : memref<16x16x8xbf16, #tpu.memory_space<vmem>>, vector<1x16x8xbf16>
    %14 = vector.shape_cast %13 : vector<1x16x8xbf16> to vector<16x8xbf16>
    %cst_18 = arith.constant dense<0.000000e+00> : vector<16x64xf32>
    %15 = tpu.matmul %14, %12, %cst_18 {dimension_numbers = #tpu.dot_dimension_numbers<[1], [0], [0], [1], [0, 0, 1, 1], [], []>} : vector<16x8xbf16>, vector<8x64xbf16>, vector<16x64xf32> -> vector<16x64xf32>
    %16 = arith.addf %10, %15 : vector<16x64xf32>
    %c1_19 = arith.constant 1 : index
    %c0_20 = arith.constant 0 : index
    %c0_21 = arith.constant 0 : index
    %c8_22 = arith.constant 8 : index
    %17 = vector.load %arg1[%c1_19, %c0_20, %c0_21, %c8_22] : memref<8x1x8x72xbf16, #tpu.memory_space<vmem>>, vector<1x1x8x64xbf16>
    %18 = vector.shape_cast %17 : vector<1x1x8x64xbf16> to vector<8x64xbf16>
    %c3 = arith.constant 3 : index
    %c0_23 = arith.constant 0 : index
    %c0_24 = arith.constant 0 : index
    %19 = vector.load %arg2[%c3, %c0_23, %c0_24] : memref<16x16x8xbf16, #tpu.memory_space<vmem>>, vector<1x16x8xbf16>
    %20 = vector.shape_cast %19 : vector<1x16x8xbf16> to vector<16x8xbf16>
    %cst_25 = arith.constant dense<0.000000e+00> : vector<16x64xf32>
    %21 = tpu.matmul %20, %18, %cst_25 {dimension_numbers = #tpu.dot_dimension_numbers<[1], [0], [0], [1], [0, 0, 1, 1], [], []>} : vector<16x8xbf16>, vector<8x64xbf16>, vector<16x64xf32> -> vector<16x64xf32>
    %22 = arith.addf %16, %21 : vector<16x64xf32>
    %c2_26 = arith.constant 2 : index
    %c0_27 = arith.constant 0 : index
    %c0_28 = arith.constant 0 : index
    %c0_29 = arith.constant 0 : index
    %23 = vector.load %arg1[%c2_26, %c0_27, %c0_28, %c0_29] : memref<8x1x8x72xbf16, #tpu.memory_space<vmem>>, vector<1x1x8x64xbf16>
    %24 = vector.shape_cast %23 : vector<1x1x8x64xbf16> to vector<8x64xbf16>
    %c4 = arith.constant 4 : index
    %c0_30 = arith.constant 0 : index
    %c0_31 = arith.constant 0 : index
    %25 = vector.load %arg2[%c4, %c0_30, %c0_31] : memref<16x16x8xbf16, #tpu.memory_space<vmem>>, vector<1x16x8xbf16>
    %26 = vector.shape_cast %25 : vector<1x16x8xbf16> to vector<16x8xbf16>
    %cst_32 = arith.constant dense<0.000000e+00> : vector<16x64xf32>
    %27 = tpu.matmul %26, %24, %cst_32 {dimension_numbers = #tpu.dot_dimension_numbers<[1], [0], [0], [1], [0, 0, 1, 1], [], []>} : vector<16x8xbf16>, vector<8x64xbf16>, vector<16x64xf32> -> vector<16x64xf32>
    %28 = arith.addf %22, %27 : vector<16x64xf32>
    %c2_33 = arith.constant 2 : index
    %c0_34 = arith.constant 0 : index
    %c0_35 = arith.constant 0 : index
    %c8_36 = arith.constant 8 : index
    %29 = vector.load %arg1[%c2_33, %c0_34, %c0_35, %c8_36] : memref<8x1x8x72xbf16, #tpu.memory_space<vmem>>, vector<1x1x8x64xbf16>
    %30 = vector.shape_cast %29 : vector<1x1x8x64xbf16> to vector<8x64xbf16>
    %c5 = arith.constant 5 : index
    %c0_37 = arith.constant 0 : index
    %c0_38 = arith.constant 0 : index
    %31 = vector.load %arg2[%c5, %c0_37, %c0_38] : memref<16x16x8xbf16, #tpu.memory_space<vmem>>, vector<1x16x8xbf16>
    %32 = vector.shape_cast %31 : vector<1x16x8xbf16> to vector<16x8xbf16>
    %cst_39 = arith.constant dense<0.000000e+00> : vector<16x64xf32>
    %33 = tpu.matmul %32, %30, %cst_39 {dimension_numbers = #tpu.dot_dimension_numbers<[1], [0], [0], [1], [0, 0, 1, 1], [], []>} : vector<16x8xbf16>, vector<8x64xbf16>, vector<16x64xf32> -> vector<16x64xf32>
    %34 = arith.addf %28, %33 : vector<16x64xf32>
    %c3_40 = arith.constant 3 : index
    %c0_41 = arith.constant 0 : index
    %c0_42 = arith.constant 0 : index
    %c0_43 = arith.constant 0 : index
    %35 = vector.load %arg1[%c3_40, %c0_41, %c0_42, %c0_43] : memref<8x1x8x72xbf16, #tpu.memory_space<vmem>>, vector<1x1x8x64xbf16>
    %36 = vector.shape_cast %35 : vector<1x1x8x64xbf16> to vector<8x64xbf16>
    %c6 = arith.constant 6 : index
    %c0_44 = arith.constant 0 : index
    %c0_45 = arith.constant 0 : index
    %37 = vector.load %arg2[%c6, %c0_44, %c0_45] : memref<16x16x8xbf16, #tpu.memory_space<vmem>>, vector<1x16x8xbf16>
    %38 = vector.shape_cast %37 : vector<1x16x8xbf16> to vector<16x8xbf16>
    %cst_46 = arith.constant dense<0.000000e+00> : vector<16x64xf32>
    %39 = tpu.matmul %38, %36, %cst_46 {dimension_numbers = #tpu.dot_dimension_numbers<[1], [0], [0], [1], [0, 0, 1, 1], [], []>} : vector<16x8xbf16>, vector<8x64xbf16>, vector<16x64xf32> -> vector<16x64xf32>
    %40 = arith.addf %34, %39 : vector<16x64xf32>
    %c3_47 = arith.constant 3 : index
    %c0_48 = arith.constant 0 : index
    %c0_49 = arith.constant 0 : index
    %c8_50 = arith.constant 8 : index
    %41 = vector.load %arg1[%c3_47, %c0_48, %c0_49, %c8_50] : memref<8x1x8x72xbf16, #tpu.memory_space<vmem>>, vector<1x1x8x64xbf16>
    %42 = vector.shape_cast %41 : vector<1x1x8x64xbf16> to vector<8x64xbf16>
    %c7 = arith.constant 7 : index
    %c0_51 = arith.constant 0 : index
    %c0_52 = arith.constant 0 : index
    %43 = vector.load %arg2[%c7, %c0_51, %c0_52] : memref<16x16x8xbf16, #tpu.memory_space<vmem>>, vector<1x16x8xbf16>
    %44 = vector.shape_cast %43 : vector<1x16x8xbf16> to vector<16x8xbf16>
    %cst_53 = arith.constant dense<0.000000e+00> : vector<16x64xf32>
    %45 = tpu.matmul %44, %42, %cst_53 {dimension_numbers = #tpu.dot_dimension_numbers<[1], [0], [0], [1], [0, 0, 1, 1], [], []>} : vector<16x8xbf16>, vector<8x64xbf16>, vector<16x64xf32> -> vector<16x64xf32>
    %46 = arith.addf %40, %45 : vector<16x64xf32>
    %c4_54 = arith.constant 4 : index
    %c0_55 = arith.constant 0 : index
    %c0_56 = arith.constant 0 : index
    %c0_57 = arith.constant 0 : index
    %47 = vector.load %arg1[%c4_54, %c0_55, %c0_56, %c0_57] : memref<8x1x8x72xbf16, #tpu.memory_space<vmem>>, vector<1x1x8x64xbf16>
    %48 = vector.shape_cast %47 : vector<1x1x8x64xbf16> to vector<8x64xbf16>
    %c8_58 = arith.constant 8 : index
    %c0_59 = arith.constant 0 : index
    %c0_60 = arith.constant 0 : index
    %49 = vector.load %arg2[%c8_58, %c0_59, %c0_60] : memref<16x16x8xbf16, #tpu.memory_space<vmem>>, vector<1x16x8xbf16>
    %50 = vector.shape_cast %49 : vector<1x16x8xbf16> to vector<16x8xbf16>
    %cst_61 = arith.constant dense<0.000000e+00> : vector<16x64xf32>
    %51 = tpu.matmul %50, %48, %cst_61 {dimension_numbers = #tpu.dot_dimension_numbers<[1], [0], [0], [1], [0, 0, 1, 1], [], []>} : vector<16x8xbf16>, vector<8x64xbf16>, vector<16x64xf32> -> vector<16x64xf32>
    %52 = arith.addf %46, %51 : vector<16x64xf32>
    %c4_62 = arith.constant 4 : index
    %c0_63 = arith.constant 0 : index
    %c0_64 = arith.constant 0 : index
    %c8_65 = arith.constant 8 : index
    %53 = vector.load %arg1[%c4_62, %c0_63, %c0_64, %c8_65] : memref<8x1x8x72xbf16, #tpu.memory_space<vmem>>, vector<1x1x8x64xbf16>
    %54 = vector.shape_cast %53 : vector<1x1x8x64xbf16> to vector<8x64xbf16>
    %c9 = arith.constant 9 : index
    %c0_66 = arith.constant 0 : index
    %c0_67 = arith.constant 0 : index
    %55 = vector.load %arg2[%c9, %c0_66, %c0_67] : memref<16x16x8xbf16, #tpu.memory_space<vmem>>, vector<1x16x8xbf16>
    %56 = vector.shape_cast %55 : vector<1x16x8xbf16> to vector<16x8xbf16>
    %cst_68 = arith.constant dense<0.000000e+00> : vector<16x64xf32>
    %57 = tpu.matmul %56, %54, %cst_68 {dimension_numbers = #tpu.dot_dimension_numbers<[1], [0], [0], [1], [0, 0, 1, 1], [], []>} : vector<16x8xbf16>, vector<8x64xbf16>, vector<16x64xf32> -> vector<16x64xf32>
    %58 = arith.addf %52, %57 : vector<16x64xf32>
    %c5_69 = arith.constant 5 : index
    %c0_70 = arith.constant 0 : index
    %c0_71 = arith.constant 0 : index
    %c0_72 = arith.constant 0 : index
    %59 = vector.load %arg1[%c5_69, %c0_70, %c0_71, %c0_72] : memref<8x1x8x72xbf16, #tpu.memory_space<vmem>>, vector<1x1x8x64xbf16>
    %60 = vector.shape_cast %59 : vector<1x1x8x64xbf16> to vector<8x64xbf16>
    %c10 = arith.constant 10 : index
    %c0_73 = arith.constant 0 : index
    %c0_74 = arith.constant 0 : index
    %61 = vector.load %arg2[%c10, %c0_73, %c0_74] : memref<16x16x8xbf16, #tpu.memory_space<vmem>>, vector<1x16x8xbf16>
    %62 = vector.shape_cast %61 : vector<1x16x8xbf16> to vector<16x8xbf16>
    %cst_75 = arith.constant dense<0.000000e+00> : vector<16x64xf32>
    %63 = tpu.matmul %62, %60, %cst_75 {dimension_numbers = #tpu.dot_dimension_numbers<[1], [0], [0], [1], [0, 0, 1, 1], [], []>} : vector<16x8xbf16>, vector<8x64xbf16>, vector<16x64xf32> -> vector<16x64xf32>
    %64 = arith.addf %58, %63 : vector<16x64xf32>
    %c5_76 = arith.constant 5 : index
    %c0_77 = arith.constant 0 : index
    %c0_78 = arith.constant 0 : index
    %c8_79 = arith.constant 8 : index
    %65 = vector.load %arg1[%c5_76, %c0_77, %c0_78, %c8_79] : memref<8x1x8x72xbf16, #tpu.memory_space<vmem>>, vector<1x1x8x64xbf16>
    %66 = vector.shape_cast %65 : vector<1x1x8x64xbf16> to vector<8x64xbf16>
    %c11 = arith.constant 11 : index
    %c0_80 = arith.constant 0 : index
    %c0_81 = arith.constant 0 : index
    %67 = vector.load %arg2[%c11, %c0_80, %c0_81] : memref<16x16x8xbf16, #tpu.memory_space<vmem>>, vector<1x16x8xbf16>
    %68 = vector.shape_cast %67 : vector<1x16x8xbf16> to vector<16x8xbf16>
    %cst_82 = arith.constant dense<0.000000e+00> : vector<16x64xf32>
    %69 = tpu.matmul %68, %66, %cst_82 {dimension_numbers = #tpu.dot_dimension_numbers<[1], [0], [0], [1], [0, 0, 1, 1], [], []>} : vector<16x8xbf16>, vector<8x64xbf16>, vector<16x64xf32> -> vector<16x64xf32>
    %70 = arith.addf %64, %69 : vector<16x64xf32>
    %c6_83 = arith.constant 6 : index
    %c0_84 = arith.constant 0 : index
    %c0_85 = arith.constant 0 : index
    %c0_86 = arith.constant 0 : index
    %71 = vector.load %arg1[%c6_83, %c0_84, %c0_85, %c0_86] : memref<8x1x8x72xbf16, #tpu.memory_space<vmem>>, vector<1x1x8x64xbf16>
    %72 = vector.shape_cast %71 : vector<1x1x8x64xbf16> to vector<8x64xbf16>
    %c12 = arith.constant 12 : index
    %c0_87 = arith.constant 0 : index
    %c0_88 = arith.constant 0 : index
    %73 = vector.load %arg2[%c12, %c0_87, %c0_88] : memref<16x16x8xbf16, #tpu.memory_space<vmem>>, vector<1x16x8xbf16>
    %74 = vector.shape_cast %73 : vector<1x16x8xbf16> to vector<16x8xbf16>
    %cst_89 = arith.constant dense<0.000000e+00> : vector<16x64xf32>
    %75 = tpu.matmul %74, %72, %cst_89 {dimension_numbers = #tpu.dot_dimension_numbers<[1], [0], [0], [1], [0, 0, 1, 1], [], []>} : vector<16x8xbf16>, vector<8x64xbf16>, vector<16x64xf32> -> vector<16x64xf32>
    %76 = arith.addf %70, %75 : vector<16x64xf32>
    %c6_90 = arith.constant 6 : index
    %c0_91 = arith.constant 0 : index
    %c0_92 = arith.constant 0 : index
    %c8_93 = arith.constant 8 : index
    %77 = vector.load %arg1[%c6_90, %c0_91, %c0_92, %c8_93] : memref<8x1x8x72xbf16, #tpu.memory_space<vmem>>, vector<1x1x8x64xbf16>
    %78 = vector.shape_cast %77 : vector<1x1x8x64xbf16> to vector<8x64xbf16>
    %c13 = arith.constant 13 : index
    %c0_94 = arith.constant 0 : index
    %c0_95 = arith.constant 0 : index
    %79 = vector.load %arg2[%c13, %c0_94, %c0_95] : memref<16x16x8xbf16, #tpu.memory_space<vmem>>, vector<1x16x8xbf16>
    %80 = vector.shape_cast %79 : vector<1x16x8xbf16> to vector<16x8xbf16>
    %cst_96 = arith.constant dense<0.000000e+00> : vector<16x64xf32>
    %81 = tpu.matmul %80, %78, %cst_96 {dimension_numbers = #tpu.dot_dimension_numbers<[1], [0], [0], [1], [0, 0, 1, 1], [], []>} : vector<16x8xbf16>, vector<8x64xbf16>, vector<16x64xf32> -> vector<16x64xf32>
    %82 = arith.addf %76, %81 : vector<16x64xf32>
    %c7_97 = arith.constant 7 : index
    %c0_98 = arith.constant 0 : index
    %c0_99 = arith.constant 0 : index
    %c0_100 = arith.constant 0 : index
    %83 = vector.load %arg1[%c7_97, %c0_98, %c0_99, %c0_100] : memref<8x1x8x72xbf16, #tpu.memory_space<vmem>>, vector<1x1x8x64xbf16>
    %84 = vector.shape_cast %83 : vector<1x1x8x64xbf16> to vector<8x64xbf16>
    %c14 = arith.constant 14 : index
    %c0_101 = arith.constant 0 : index
    %c0_102 = arith.constant 0 : index
    %85 = vector.load %arg2[%c14, %c0_101, %c0_102] : memref<16x16x8xbf16, #tpu.memory_space<vmem>>, vector<1x16x8xbf16>
    %86 = vector.shape_cast %85 : vector<1x16x8xbf16> to vector<16x8xbf16>
    %cst_103 = arith.constant dense<0.000000e+00> : vector<16x64xf32>
    %87 = tpu.matmul %86, %84, %cst_103 {dimension_numbers = #tpu.dot_dimension_numbers<[1], [0], [0], [1], [0, 0, 1, 1], [], []>} : vector<16x8xbf16>, vector<8x64xbf16>, vector<16x64xf32> -> vector<16x64xf32>
    %88 = arith.addf %82, %87 : vector<16x64xf32>
    %c7_104 = arith.constant 7 : index
    %c0_105 = arith.constant 0 : index
    %c0_106 = arith.constant 0 : index
    %c8_107 = arith.constant 8 : index
    %89 = vector.load %arg1[%c7_104, %c0_105, %c0_106, %c8_107] : memref<8x1x8x72xbf16, #tpu.memory_space<vmem>>, vector<1x1x8x64xbf16>
    %90 = vector.shape_cast %89 : vector<1x1x8x64xbf16> to vector<8x64xbf16>
    %c15 = arith.constant 15 : index
    %c0_108 = arith.constant 0 : index
    %c0_109 = arith.constant 0 : index
    %91 = vector.load %arg2[%c15, %c0_108, %c0_109] : memref<16x16x8xbf16, #tpu.memory_space<vmem>>, vector<1x16x8xbf16>
    %92 = vector.shape_cast %91 : vector<1x16x8xbf16> to vector<16x8xbf16>
    %cst_110 = arith.constant dense<0.000000e+00> : vector<16x64xf32>
    %93 = tpu.matmul %92, %90, %cst_110 {dimension_numbers = #tpu.dot_dimension_numbers<[1], [0], [0], [1], [0, 0, 1, 1], [], []>} : vector<16x8xbf16>, vector<8x64xbf16>, vector<16x64xf32> -> vector<16x64xf32>
    %94 = arith.addf %88, %93 : vector<16x64xf32>
    %c0_111 = arith.constant 0 : index
    %c0_112 = arith.constant 0 : index
    %95 = vector.load %arg3[%c0_111, %c0_112] : memref<16x1xf32, #tpu.memory_space<vmem>>, vector<16x1xf32>
    %96 = vector.broadcast %95 : vector<16x1xf32> to vector<16x64xf32>
    %97 = arith.addf %94, %96 : vector<16x64xf32>
    %cst_113 = arith.constant 0.000000e+00 : f32
    %98 = vector.broadcast %cst_113 : f32 to vector<16x64xf32>
    %99 = arith.cmpf oge, %97, %98 : vector<16x64xf32>
    %cst_114 = arith.constant 2.000000e-01 : f32
    %100 = vector.broadcast %cst_114 : f32 to vector<16x64xf32>
    %101 = arith.mulf %100, %97 : vector<16x64xf32>
    %102 = arith.select %99, %97, %101 : vector<16x64xi1>, vector<16x64xf32>
    %c0_115 = arith.constant 0 : index
    %c0_116 = arith.constant 0 : index
    %103 = vector.load %arg4[%c0_115, %c0_116] : memref<1x16xf32, #tpu.memory_space<vmem>>, vector<1x16xf32>
    %cst_117 = arith.constant dense<0.000000e+00> : vector<1x64xf32>
    %104 = tpu.matmul %103, %102, %cst_117 {dimension_numbers = #tpu.dot_dimension_numbers<[1], [0], [0], [1], [0, 0, 1, 1], [], []>} : vector<1x16xf32>, vector<16x64xf32>, vector<1x64xf32> -> vector<1x64xf32>
    %c0_118 = arith.constant 0 : index
    %c0_119 = arith.constant 0 : index
    %105 = vector.load %arg5[%c0_118, %c0_119] : memref<1x1xf32, #tpu.memory_space<vmem>>, vector<1x1xf32>
    %106 = vector.broadcast %105 : vector<1x1xf32> to vector<1x64xf32>
    %107 = arith.addf %104, %106 : vector<1x64xf32>
    %c0_120 = arith.constant 0 : index
    %c0_121 = arith.constant 0 : index
    %c0_122 = arith.constant 0 : index
    %108 = vector.load %arg6[%c0_120, %c0_121, %c0_122] : memref<1x1x64xf32, #tpu.memory_space<vmem>>, vector<1x1x64xf32>
    %109 = vector.shape_cast %108 : vector<1x1x64xf32> to vector<1x64xf32>
    %110 = vector.shape_cast %107 : vector<1x64xf32> to vector<1x1x64xf32>
    tpu.vector_store %arg6[%c0_120, %c0_121, %c0_122], %110 {strides = array<i32>} : memref<1x1x64xf32, #tpu.memory_space<vmem>>, vector<1x1x64xf32>,
    return
  }
  func.func @transform_0(%arg0: i32) -> (i32, i32, i32, i32) {
    %c0_i32 = arith.constant 0 : i32
    %c0_i32_0 = arith.constant 0 : i32
    %c0_i32_1 = arith.constant 0 : i32
    %c0_i32_2 = arith.constant 0 : i32
    return %c0_i32, %arg0, %c0_i32_0, %c0_i32_1 : i32, i32, i32, i32
  }
  func.func @transform_1(%arg0: i32) -> (i32, i32, i32) {
    %c0_i32 = arith.constant 0 : i32
    %c0_i32_0 = arith.constant 0 : i32
    %c0_i32_1 = arith.constant 0 : i32
    %c0_i32_2 = arith.constant 0 : i32
    return %c0_i32, %c0_i32_0, %c0_i32_1 : i32, i32, i32
  }
  func.func @transform_2(%arg0: i32) -> (i32, i32) {
    %c0_i32 = arith.constant 0 : i32
    %c0_i32_0 = arith.constant 0 : i32
    %c0_i32_1 = arith.constant 0 : i32
    return %c0_i32, %c0_i32_0 : i32, i32
  }
  func.func @transform_3(%arg0: i32) -> (i32, i32) {
    %c0_i32 = arith.constant 0 : i32
    %c0_i32_0 = arith.constant 0 : i32
    %c0_i32_1 = arith.constant 0 : i32
    return %c0_i32, %c0_i32_0 : i32, i32
  }
  func.func @transform_4(%arg0: i32) -> (i32, i32) {
    %c0_i32 = arith.constant 0 : i32
    %c0_i32_0 = arith.constant 0 : i32
    %c0_i32_1 = arith.constant 0 : i32
    return %c0_i32, %c0_i32_0 : i32, i32
  }
  func.func @transform_5(%arg0: i32) -> (i32, i32, i32) {
    %c0_i32 = arith.constant 0 : i32
    %c0_i32_0 = arith.constant 0 : i32
    %c0_i32_1 = arith.constant 0 : i32
    return %arg0, %c0_i32, %c0_i32_0 : i32, i32, i32
  }
}

module attributes {stable_mosaic.version = 11 : i64} {
  func.func @_avgpool_kernel(%arg0: i32, %arg1: memref<6x8x272xbf16, #tpu.memory_space<vmem>>, %arg2: memref<1x256xf32, #tpu.memory_space<vmem>>, %arg3: memref<8x256xbf16, #tpu.memory_space<vmem>>) attributes {dimension_semantics = [#tpu.dimension_semantics<parallel>], iteration_bounds = array<i64: 1>, scalar_prefetch = 0 : i64, scratch_operands = 0 : i64, tpu.core_type = #tpu.core_type<tc>, window_params = [{transform_indices = @transform_0, window_bounds = array<i64: 6, 8, 272>}, {pipeline_mode = #tpu.pipeline_mode<synchronous>, transform_indices = @transform_1, window_bounds = array<i64: 1, 256>}, {transform_indices = @transform_2, window_bounds = array<i64: 8, 256>}]} {
    %c0 = arith.constant 0 : index
    %c0_0 = arith.constant 0 : index
    %c0_1 = arith.constant 0 : index
    %0 = vector.load %arg1[%c0, %c0_0, %c0_1] : memref<6x8x272xbf16, #tpu.memory_space<vmem>>, vector<1x8x256xbf16>
    %1 = vector.shape_cast %0 : vector<1x8x256xbf16> to vector<8x256xbf16>
    %2 = arith.extf %1 : vector<8x256xbf16> to vector<8x256xf32>
    %c0_2 = arith.constant 0 : index
    %c0_3 = arith.constant 0 : index
    %c16 = arith.constant 16 : index
    %3 = vector.load %arg1[%c0_2, %c0_3, %c16] : memref<6x8x272xbf16, #tpu.memory_space<vmem>>, vector<1x8x256xbf16>
    %4 = vector.shape_cast %3 : vector<1x8x256xbf16> to vector<8x256xbf16>
    %5 = arith.extf %4 : vector<8x256xbf16> to vector<8x256xf32>
    %6 = arith.addf %2, %5 : vector<8x256xf32>
    %c1 = arith.constant 1 : index
    %c0_4 = arith.constant 0 : index
    %c0_5 = arith.constant 0 : index
    %7 = vector.load %arg1[%c1, %c0_4, %c0_5] : memref<6x8x272xbf16, #tpu.memory_space<vmem>>, vector<1x8x256xbf16>
    %8 = vector.shape_cast %7 : vector<1x8x256xbf16> to vector<8x256xbf16>
    %9 = arith.extf %8 : vector<8x256xbf16> to vector<8x256xf32>
    %10 = arith.addf %6, %9 : vector<8x256xf32>
    %c1_6 = arith.constant 1 : index
    %c0_7 = arith.constant 0 : index
    %c16_8 = arith.constant 16 : index
    %11 = vector.load %arg1[%c1_6, %c0_7, %c16_8] : memref<6x8x272xbf16, #tpu.memory_space<vmem>>, vector<1x8x256xbf16>
    %12 = vector.shape_cast %11 : vector<1x8x256xbf16> to vector<8x256xbf16>
    %13 = arith.extf %12 : vector<8x256xbf16> to vector<8x256xf32>
    %14 = arith.addf %10, %13 : vector<8x256xf32>
    %c2 = arith.constant 2 : index
    %c0_9 = arith.constant 0 : index
    %c0_10 = arith.constant 0 : index
    %15 = vector.load %arg1[%c2, %c0_9, %c0_10] : memref<6x8x272xbf16, #tpu.memory_space<vmem>>, vector<1x8x256xbf16>
    %16 = vector.shape_cast %15 : vector<1x8x256xbf16> to vector<8x256xbf16>
    %17 = arith.extf %16 : vector<8x256xbf16> to vector<8x256xf32>
    %18 = arith.addf %14, %17 : vector<8x256xf32>
    %c2_11 = arith.constant 2 : index
    %c0_12 = arith.constant 0 : index
    %c16_13 = arith.constant 16 : index
    %19 = vector.load %arg1[%c2_11, %c0_12, %c16_13] : memref<6x8x272xbf16, #tpu.memory_space<vmem>>, vector<1x8x256xbf16>
    %20 = vector.shape_cast %19 : vector<1x8x256xbf16> to vector<8x256xbf16>
    %21 = arith.extf %20 : vector<8x256xbf16> to vector<8x256xf32>
    %22 = arith.addf %18, %21 : vector<8x256xf32>
    %c3 = arith.constant 3 : index
    %c0_14 = arith.constant 0 : index
    %c0_15 = arith.constant 0 : index
    %23 = vector.load %arg1[%c3, %c0_14, %c0_15] : memref<6x8x272xbf16, #tpu.memory_space<vmem>>, vector<1x8x256xbf16>
    %24 = vector.shape_cast %23 : vector<1x8x256xbf16> to vector<8x256xbf16>
    %25 = arith.extf %24 : vector<8x256xbf16> to vector<8x256xf32>
    %26 = arith.addf %22, %25 : vector<8x256xf32>
    %c4 = arith.constant 4 : index
    %c0_16 = arith.constant 0 : index
    %c0_17 = arith.constant 0 : index
    %27 = vector.load %arg1[%c4, %c0_16, %c0_17] : memref<6x8x272xbf16, #tpu.memory_space<vmem>>, vector<1x8x256xbf16>
    %28 = vector.shape_cast %27 : vector<1x8x256xbf16> to vector<8x256xbf16>
    %29 = arith.extf %28 : vector<8x256xbf16> to vector<8x256xf32>
    %30 = arith.addf %26, %29 : vector<8x256xf32>
    %c5 = arith.constant 5 : index
    %c0_18 = arith.constant 0 : index
    %c0_19 = arith.constant 0 : index
    %31 = vector.load %arg1[%c5, %c0_18, %c0_19] : memref<6x8x272xbf16, #tpu.memory_space<vmem>>, vector<1x8x256xbf16>
    %32 = vector.shape_cast %31 : vector<1x8x256xbf16> to vector<8x256xbf16>
    %33 = arith.extf %32 : vector<8x256xbf16> to vector<8x256xf32>
    %34 = arith.addf %30, %33 : vector<8x256xf32>
    %c0_20 = arith.constant 0 : index
    %c0_21 = arith.constant 0 : index
    %35 = vector.load %arg2[%c0_20, %c0_21] : memref<1x256xf32, #tpu.memory_space<vmem>>, vector<1x256xf32>
    %36 = vector.broadcast %35 : vector<1x256xf32> to vector<8x256xf32>
    %37 = arith.mulf %34, %36 : vector<8x256xf32>
    %38 = arith.truncf %37 : vector<8x256xf32> to vector<8x256xbf16>
    %c0_22 = arith.constant 0 : index
    %c0_23 = arith.constant 0 : index
    %39 = vector.load %arg3[%c0_22, %c0_23] : memref<8x256xbf16, #tpu.memory_space<vmem>>, vector<8x256xbf16>
    tpu.vector_store %arg3[%c0_22, %c0_23], %38 {strides = array<i32>} : memref<8x256xbf16, #tpu.memory_space<vmem>>, vector<8x256xbf16>,
    return
  }
  func.func @transform_0(%arg0: i32) -> (i32, i32, i32) {
    %c0_i32 = arith.constant 0 : i32
    %c0_i32_0 = arith.constant 0 : i32
    %c0_i32_1 = arith.constant 0 : i32
    return %c0_i32, %arg0, %c0_i32_0 : i32, i32, i32
  }
  func.func @transform_1(%arg0: i32) -> (i32, i32) {
    %c0_i32 = arith.constant 0 : i32
    %c0_i32_0 = arith.constant 0 : i32
    %c0_i32_1 = arith.constant 0 : i32
    return %c0_i32, %c0_i32_0 : i32, i32
  }
  func.func @transform_2(%arg0: i32) -> (i32, i32) {
    %c0_i32 = arith.constant 0 : i32
    %c0_i32_0 = arith.constant 0 : i32
    return %arg0, %c0_i32 : i32, i32
  }
}

module attributes {stable_mosaic.version = 11 : i64} {
  func.func @_fused_conv_kernel(%arg0: i32, %arg1: memref<8x1x4x72xbf16, #tpu.memory_space<vmem>>, %arg2: memref<16x8x4xbf16, #tpu.memory_space<vmem>>, %arg3: memref<8x1xf32, #tpu.memory_space<vmem>>, %arg4: memref<1x8x64xbf16, #tpu.memory_space<vmem>>) attributes {dimension_semantics = [#tpu.dimension_semantics<parallel>], iteration_bounds = array<i64: 2>, scalar_prefetch = 0 : i64, scratch_operands = 0 : i64, tpu.core_type = #tpu.core_type<tc>, window_params = [{transform_indices = @transform_0, window_bounds = array<i64: 8, 1, 4, 72>}, {pipeline_mode = #tpu.pipeline_mode<synchronous>, transform_indices = @transform_1, window_bounds = array<i64: 16, 8, 4>}, {pipeline_mode = #tpu.pipeline_mode<synchronous>, transform_indices = @transform_2, window_bounds = array<i64: 8, 1>}, {transform_indices = @transform_3, window_bounds = array<i64: 1, 8, 64>}]} {
    %c0 = arith.constant 0 : index
    %c0_0 = arith.constant 0 : index
    %c0_1 = arith.constant 0 : index
    %c0_2 = arith.constant 0 : index
    %0 = vector.load %arg1[%c0, %c0_0, %c0_1, %c0_2] : memref<8x1x4x72xbf16, #tpu.memory_space<vmem>>, vector<1x1x4x64xbf16>
    %1 = vector.shape_cast %0 : vector<1x1x4x64xbf16> to vector<4x64xbf16>
    %c0_3 = arith.constant 0 : index
    %c0_4 = arith.constant 0 : index
    %c0_5 = arith.constant 0 : index
    %2 = vector.load %arg2[%c0_3, %c0_4, %c0_5] : memref<16x8x4xbf16, #tpu.memory_space<vmem>>, vector<1x8x4xbf16>
    %3 = vector.shape_cast %2 : vector<1x8x4xbf16> to vector<8x4xbf16>
    %cst = arith.constant dense<0.000000e+00> : vector<8x64xf32>
    %4 = tpu.matmul %3, %1, %cst {dimension_numbers = #tpu.dot_dimension_numbers<[1], [0], [0], [1], [0, 0, 1, 1], [], []>} : vector<8x4xbf16>, vector<4x64xbf16>, vector<8x64xf32> -> vector<8x64xf32>
    %c0_6 = arith.constant 0 : index
    %c0_7 = arith.constant 0 : index
    %c0_8 = arith.constant 0 : index
    %c8 = arith.constant 8 : index
    %5 = vector.load %arg1[%c0_6, %c0_7, %c0_8, %c8] : memref<8x1x4x72xbf16, #tpu.memory_space<vmem>>, vector<1x1x4x64xbf16>
    %6 = vector.shape_cast %5 : vector<1x1x4x64xbf16> to vector<4x64xbf16>
    %c1 = arith.constant 1 : index
    %c0_9 = arith.constant 0 : index
    %c0_10 = arith.constant 0 : index
    %7 = vector.load %arg2[%c1, %c0_9, %c0_10] : memref<16x8x4xbf16, #tpu.memory_space<vmem>>, vector<1x8x4xbf16>
    %8 = vector.shape_cast %7 : vector<1x8x4xbf16> to vector<8x4xbf16>
    %cst_11 = arith.constant dense<0.000000e+00> : vector<8x64xf32>
    %9 = tpu.matmul %8, %6, %cst_11 {dimension_numbers = #tpu.dot_dimension_numbers<[1], [0], [0], [1], [0, 0, 1, 1], [], []>} : vector<8x4xbf16>, vector<4x64xbf16>, vector<8x64xf32> -> vector<8x64xf32>
    %10 = arith.addf %4, %9 : vector<8x64xf32>
    %c1_12 = arith.constant 1 : index
    %c0_13 = arith.constant 0 : index
    %c0_14 = arith.constant 0 : index
    %c0_15 = arith.constant 0 : index
    %11 = vector.load %arg1[%c1_12, %c0_13, %c0_14, %c0_15] : memref<8x1x4x72xbf16, #tpu.memory_space<vmem>>, vector<1x1x4x64xbf16>
    %12 = vector.shape_cast %11 : vector<1x1x4x64xbf16> to vector<4x64xbf16>
    %c2 = arith.constant 2 : index
    %c0_16 = arith.constant 0 : index
    %c0_17 = arith.constant 0 : index
    %13 = vector.load %arg2[%c2, %c0_16, %c0_17] : memref<16x8x4xbf16, #tpu.memory_space<vmem>>, vector<1x8x4xbf16>
    %14 = vector.shape_cast %13 : vector<1x8x4xbf16> to vector<8x4xbf16>
    %cst_18 = arith.constant dense<0.000000e+00> : vector<8x64xf32>
    %15 = tpu.matmul %14, %12, %cst_18 {dimension_numbers = #tpu.dot_dimension_numbers<[1], [0], [0], [1], [0, 0, 1, 1], [], []>} : vector<8x4xbf16>, vector<4x64xbf16>, vector<8x64xf32> -> vector<8x64xf32>
    %16 = arith.addf %10, %15 : vector<8x64xf32>
    %c1_19 = arith.constant 1 : index
    %c0_20 = arith.constant 0 : index
    %c0_21 = arith.constant 0 : index
    %c8_22 = arith.constant 8 : index
    %17 = vector.load %arg1[%c1_19, %c0_20, %c0_21, %c8_22] : memref<8x1x4x72xbf16, #tpu.memory_space<vmem>>, vector<1x1x4x64xbf16>
    %18 = vector.shape_cast %17 : vector<1x1x4x64xbf16> to vector<4x64xbf16>
    %c3 = arith.constant 3 : index
    %c0_23 = arith.constant 0 : index
    %c0_24 = arith.constant 0 : index
    %19 = vector.load %arg2[%c3, %c0_23, %c0_24] : memref<16x8x4xbf16, #tpu.memory_space<vmem>>, vector<1x8x4xbf16>
    %20 = vector.shape_cast %19 : vector<1x8x4xbf16> to vector<8x4xbf16>
    %cst_25 = arith.constant dense<0.000000e+00> : vector<8x64xf32>
    %21 = tpu.matmul %20, %18, %cst_25 {dimension_numbers = #tpu.dot_dimension_numbers<[1], [0], [0], [1], [0, 0, 1, 1], [], []>} : vector<8x4xbf16>, vector<4x64xbf16>, vector<8x64xf32> -> vector<8x64xf32>
    %22 = arith.addf %16, %21 : vector<8x64xf32>
    %c2_26 = arith.constant 2 : index
    %c0_27 = arith.constant 0 : index
    %c0_28 = arith.constant 0 : index
    %c0_29 = arith.constant 0 : index
    %23 = vector.load %arg1[%c2_26, %c0_27, %c0_28, %c0_29] : memref<8x1x4x72xbf16, #tpu.memory_space<vmem>>, vector<1x1x4x64xbf16>
    %24 = vector.shape_cast %23 : vector<1x1x4x64xbf16> to vector<4x64xbf16>
    %c4 = arith.constant 4 : index
    %c0_30 = arith.constant 0 : index
    %c0_31 = arith.constant 0 : index
    %25 = vector.load %arg2[%c4, %c0_30, %c0_31] : memref<16x8x4xbf16, #tpu.memory_space<vmem>>, vector<1x8x4xbf16>
    %26 = vector.shape_cast %25 : vector<1x8x4xbf16> to vector<8x4xbf16>
    %cst_32 = arith.constant dense<0.000000e+00> : vector<8x64xf32>
    %27 = tpu.matmul %26, %24, %cst_32 {dimension_numbers = #tpu.dot_dimension_numbers<[1], [0], [0], [1], [0, 0, 1, 1], [], []>} : vector<8x4xbf16>, vector<4x64xbf16>, vector<8x64xf32> -> vector<8x64xf32>
    %28 = arith.addf %22, %27 : vector<8x64xf32>
    %c2_33 = arith.constant 2 : index
    %c0_34 = arith.constant 0 : index
    %c0_35 = arith.constant 0 : index
    %c8_36 = arith.constant 8 : index
    %29 = vector.load %arg1[%c2_33, %c0_34, %c0_35, %c8_36] : memref<8x1x4x72xbf16, #tpu.memory_space<vmem>>, vector<1x1x4x64xbf16>
    %30 = vector.shape_cast %29 : vector<1x1x4x64xbf16> to vector<4x64xbf16>
    %c5 = arith.constant 5 : index
    %c0_37 = arith.constant 0 : index
    %c0_38 = arith.constant 0 : index
    %31 = vector.load %arg2[%c5, %c0_37, %c0_38] : memref<16x8x4xbf16, #tpu.memory_space<vmem>>, vector<1x8x4xbf16>
    %32 = vector.shape_cast %31 : vector<1x8x4xbf16> to vector<8x4xbf16>
    %cst_39 = arith.constant dense<0.000000e+00> : vector<8x64xf32>
    %33 = tpu.matmul %32, %30, %cst_39 {dimension_numbers = #tpu.dot_dimension_numbers<[1], [0], [0], [1], [0, 0, 1, 1], [], []>} : vector<8x4xbf16>, vector<4x64xbf16>, vector<8x64xf32> -> vector<8x64xf32>
    %34 = arith.addf %28, %33 : vector<8x64xf32>
    %c3_40 = arith.constant 3 : index
    %c0_41 = arith.constant 0 : index
    %c0_42 = arith.constant 0 : index
    %c0_43 = arith.constant 0 : index
    %35 = vector.load %arg1[%c3_40, %c0_41, %c0_42, %c0_43] : memref<8x1x4x72xbf16, #tpu.memory_space<vmem>>, vector<1x1x4x64xbf16>
    %36 = vector.shape_cast %35 : vector<1x1x4x64xbf16> to vector<4x64xbf16>
    %c6 = arith.constant 6 : index
    %c0_44 = arith.constant 0 : index
    %c0_45 = arith.constant 0 : index
    %37 = vector.load %arg2[%c6, %c0_44, %c0_45] : memref<16x8x4xbf16, #tpu.memory_space<vmem>>, vector<1x8x4xbf16>
    %38 = vector.shape_cast %37 : vector<1x8x4xbf16> to vector<8x4xbf16>
    %cst_46 = arith.constant dense<0.000000e+00> : vector<8x64xf32>
    %39 = tpu.matmul %38, %36, %cst_46 {dimension_numbers = #tpu.dot_dimension_numbers<[1], [0], [0], [1], [0, 0, 1, 1], [], []>} : vector<8x4xbf16>, vector<4x64xbf16>, vector<8x64xf32> -> vector<8x64xf32>
    %40 = arith.addf %34, %39 : vector<8x64xf32>
    %c3_47 = arith.constant 3 : index
    %c0_48 = arith.constant 0 : index
    %c0_49 = arith.constant 0 : index
    %c8_50 = arith.constant 8 : index
    %41 = vector.load %arg1[%c3_47, %c0_48, %c0_49, %c8_50] : memref<8x1x4x72xbf16, #tpu.memory_space<vmem>>, vector<1x1x4x64xbf16>
    %42 = vector.shape_cast %41 : vector<1x1x4x64xbf16> to vector<4x64xbf16>
    %c7 = arith.constant 7 : index
    %c0_51 = arith.constant 0 : index
    %c0_52 = arith.constant 0 : index
    %43 = vector.load %arg2[%c7, %c0_51, %c0_52] : memref<16x8x4xbf16, #tpu.memory_space<vmem>>, vector<1x8x4xbf16>
    %44 = vector.shape_cast %43 : vector<1x8x4xbf16> to vector<8x4xbf16>
    %cst_53 = arith.constant dense<0.000000e+00> : vector<8x64xf32>
    %45 = tpu.matmul %44, %42, %cst_53 {dimension_numbers = #tpu.dot_dimension_numbers<[1], [0], [0], [1], [0, 0, 1, 1], [], []>} : vector<8x4xbf16>, vector<4x64xbf16>, vector<8x64xf32> -> vector<8x64xf32>
    %46 = arith.addf %40, %45 : vector<8x64xf32>
    %c4_54 = arith.constant 4 : index
    %c0_55 = arith.constant 0 : index
    %c0_56 = arith.constant 0 : index
    %c0_57 = arith.constant 0 : index
    %47 = vector.load %arg1[%c4_54, %c0_55, %c0_56, %c0_57] : memref<8x1x4x72xbf16, #tpu.memory_space<vmem>>, vector<1x1x4x64xbf16>
    %48 = vector.shape_cast %47 : vector<1x1x4x64xbf16> to vector<4x64xbf16>
    %c8_58 = arith.constant 8 : index
    %c0_59 = arith.constant 0 : index
    %c0_60 = arith.constant 0 : index
    %49 = vector.load %arg2[%c8_58, %c0_59, %c0_60] : memref<16x8x4xbf16, #tpu.memory_space<vmem>>, vector<1x8x4xbf16>
    %50 = vector.shape_cast %49 : vector<1x8x4xbf16> to vector<8x4xbf16>
    %cst_61 = arith.constant dense<0.000000e+00> : vector<8x64xf32>
    %51 = tpu.matmul %50, %48, %cst_61 {dimension_numbers = #tpu.dot_dimension_numbers<[1], [0], [0], [1], [0, 0, 1, 1], [], []>} : vector<8x4xbf16>, vector<4x64xbf16>, vector<8x64xf32> -> vector<8x64xf32>
    %52 = arith.addf %46, %51 : vector<8x64xf32>
    %c4_62 = arith.constant 4 : index
    %c0_63 = arith.constant 0 : index
    %c0_64 = arith.constant 0 : index
    %c8_65 = arith.constant 8 : index
    %53 = vector.load %arg1[%c4_62, %c0_63, %c0_64, %c8_65] : memref<8x1x4x72xbf16, #tpu.memory_space<vmem>>, vector<1x1x4x64xbf16>
    %54 = vector.shape_cast %53 : vector<1x1x4x64xbf16> to vector<4x64xbf16>
    %c9 = arith.constant 9 : index
    %c0_66 = arith.constant 0 : index
    %c0_67 = arith.constant 0 : index
    %55 = vector.load %arg2[%c9, %c0_66, %c0_67] : memref<16x8x4xbf16, #tpu.memory_space<vmem>>, vector<1x8x4xbf16>
    %56 = vector.shape_cast %55 : vector<1x8x4xbf16> to vector<8x4xbf16>
    %cst_68 = arith.constant dense<0.000000e+00> : vector<8x64xf32>
    %57 = tpu.matmul %56, %54, %cst_68 {dimension_numbers = #tpu.dot_dimension_numbers<[1], [0], [0], [1], [0, 0, 1, 1], [], []>} : vector<8x4xbf16>, vector<4x64xbf16>, vector<8x64xf32> -> vector<8x64xf32>
    %58 = arith.addf %52, %57 : vector<8x64xf32>
    %c5_69 = arith.constant 5 : index
    %c0_70 = arith.constant 0 : index
    %c0_71 = arith.constant 0 : index
    %c0_72 = arith.constant 0 : index
    %59 = vector.load %arg1[%c5_69, %c0_70, %c0_71, %c0_72] : memref<8x1x4x72xbf16, #tpu.memory_space<vmem>>, vector<1x1x4x64xbf16>
    %60 = vector.shape_cast %59 : vector<1x1x4x64xbf16> to vector<4x64xbf16>
    %c10 = arith.constant 10 : index
    %c0_73 = arith.constant 0 : index
    %c0_74 = arith.constant 0 : index
    %61 = vector.load %arg2[%c10, %c0_73, %c0_74] : memref<16x8x4xbf16, #tpu.memory_space<vmem>>, vector<1x8x4xbf16>
    %62 = vector.shape_cast %61 : vector<1x8x4xbf16> to vector<8x4xbf16>
    %cst_75 = arith.constant dense<0.000000e+00> : vector<8x64xf32>
    %63 = tpu.matmul %62, %60, %cst_75 {dimension_numbers = #tpu.dot_dimension_numbers<[1], [0], [0], [1], [0, 0, 1, 1], [], []>} : vector<8x4xbf16>, vector<4x64xbf16>, vector<8x64xf32> -> vector<8x64xf32>
    %64 = arith.addf %58, %63 : vector<8x64xf32>
    %c5_76 = arith.constant 5 : index
    %c0_77 = arith.constant 0 : index
    %c0_78 = arith.constant 0 : index
    %c8_79 = arith.constant 8 : index
    %65 = vector.load %arg1[%c5_76, %c0_77, %c0_78, %c8_79] : memref<8x1x4x72xbf16, #tpu.memory_space<vmem>>, vector<1x1x4x64xbf16>
    %66 = vector.shape_cast %65 : vector<1x1x4x64xbf16> to vector<4x64xbf16>
    %c11 = arith.constant 11 : index
    %c0_80 = arith.constant 0 : index
    %c0_81 = arith.constant 0 : index
    %67 = vector.load %arg2[%c11, %c0_80, %c0_81] : memref<16x8x4xbf16, #tpu.memory_space<vmem>>, vector<1x8x4xbf16>
    %68 = vector.shape_cast %67 : vector<1x8x4xbf16> to vector<8x4xbf16>
    %cst_82 = arith.constant dense<0.000000e+00> : vector<8x64xf32>
    %69 = tpu.matmul %68, %66, %cst_82 {dimension_numbers = #tpu.dot_dimension_numbers<[1], [0], [0], [1], [0, 0, 1, 1], [], []>} : vector<8x4xbf16>, vector<4x64xbf16>, vector<8x64xf32> -> vector<8x64xf32>
    %70 = arith.addf %64, %69 : vector<8x64xf32>
    %c6_83 = arith.constant 6 : index
    %c0_84 = arith.constant 0 : index
    %c0_85 = arith.constant 0 : index
    %c0_86 = arith.constant 0 : index
    %71 = vector.load %arg1[%c6_83, %c0_84, %c0_85, %c0_86] : memref<8x1x4x72xbf16, #tpu.memory_space<vmem>>, vector<1x1x4x64xbf16>
    %72 = vector.shape_cast %71 : vector<1x1x4x64xbf16> to vector<4x64xbf16>
    %c12 = arith.constant 12 : index
    %c0_87 = arith.constant 0 : index
    %c0_88 = arith.constant 0 : index
    %73 = vector.load %arg2[%c12, %c0_87, %c0_88] : memref<16x8x4xbf16, #tpu.memory_space<vmem>>, vector<1x8x4xbf16>
    %74 = vector.shape_cast %73 : vector<1x8x4xbf16> to vector<8x4xbf16>
    %cst_89 = arith.constant dense<0.000000e+00> : vector<8x64xf32>
    %75 = tpu.matmul %74, %72, %cst_89 {dimension_numbers = #tpu.dot_dimension_numbers<[1], [0], [0], [1], [0, 0, 1, 1], [], []>} : vector<8x4xbf16>, vector<4x64xbf16>, vector<8x64xf32> -> vector<8x64xf32>
    %76 = arith.addf %70, %75 : vector<8x64xf32>
    %c6_90 = arith.constant 6 : index
    %c0_91 = arith.constant 0 : index
    %c0_92 = arith.constant 0 : index
    %c8_93 = arith.constant 8 : index
    %77 = vector.load %arg1[%c6_90, %c0_91, %c0_92, %c8_93] : memref<8x1x4x72xbf16, #tpu.memory_space<vmem>>, vector<1x1x4x64xbf16>
    %78 = vector.shape_cast %77 : vector<1x1x4x64xbf16> to vector<4x64xbf16>
    %c13 = arith.constant 13 : index
    %c0_94 = arith.constant 0 : index
    %c0_95 = arith.constant 0 : index
    %79 = vector.load %arg2[%c13, %c0_94, %c0_95] : memref<16x8x4xbf16, #tpu.memory_space<vmem>>, vector<1x8x4xbf16>
    %80 = vector.shape_cast %79 : vector<1x8x4xbf16> to vector<8x4xbf16>
    %cst_96 = arith.constant dense<0.000000e+00> : vector<8x64xf32>
    %81 = tpu.matmul %80, %78, %cst_96 {dimension_numbers = #tpu.dot_dimension_numbers<[1], [0], [0], [1], [0, 0, 1, 1], [], []>} : vector<8x4xbf16>, vector<4x64xbf16>, vector<8x64xf32> -> vector<8x64xf32>
    %82 = arith.addf %76, %81 : vector<8x64xf32>
    %c7_97 = arith.constant 7 : index
    %c0_98 = arith.constant 0 : index
    %c0_99 = arith.constant 0 : index
    %c0_100 = arith.constant 0 : index
    %83 = vector.load %arg1[%c7_97, %c0_98, %c0_99, %c0_100] : memref<8x1x4x72xbf16, #tpu.memory_space<vmem>>, vector<1x1x4x64xbf16>
    %84 = vector.shape_cast %83 : vector<1x1x4x64xbf16> to vector<4x64xbf16>
    %c14 = arith.constant 14 : index
    %c0_101 = arith.constant 0 : index
    %c0_102 = arith.constant 0 : index
    %85 = vector.load %arg2[%c14, %c0_101, %c0_102] : memref<16x8x4xbf16, #tpu.memory_space<vmem>>, vector<1x8x4xbf16>
    %86 = vector.shape_cast %85 : vector<1x8x4xbf16> to vector<8x4xbf16>
    %cst_103 = arith.constant dense<0.000000e+00> : vector<8x64xf32>
    %87 = tpu.matmul %86, %84, %cst_103 {dimension_numbers = #tpu.dot_dimension_numbers<[1], [0], [0], [1], [0, 0, 1, 1], [], []>} : vector<8x4xbf16>, vector<4x64xbf16>, vector<8x64xf32> -> vector<8x64xf32>
    %88 = arith.addf %82, %87 : vector<8x64xf32>
    %c7_104 = arith.constant 7 : index
    %c0_105 = arith.constant 0 : index
    %c0_106 = arith.constant 0 : index
    %c8_107 = arith.constant 8 : index
    %89 = vector.load %arg1[%c7_104, %c0_105, %c0_106, %c8_107] : memref<8x1x4x72xbf16, #tpu.memory_space<vmem>>, vector<1x1x4x64xbf16>
    %90 = vector.shape_cast %89 : vector<1x1x4x64xbf16> to vector<4x64xbf16>
    %c15 = arith.constant 15 : index
    %c0_108 = arith.constant 0 : index
    %c0_109 = arith.constant 0 : index
    %91 = vector.load %arg2[%c15, %c0_108, %c0_109] : memref<16x8x4xbf16, #tpu.memory_space<vmem>>, vector<1x8x4xbf16>
    %92 = vector.shape_cast %91 : vector<1x8x4xbf16> to vector<8x4xbf16>
    %cst_110 = arith.constant dense<0.000000e+00> : vector<8x64xf32>
    %93 = tpu.matmul %92, %90, %cst_110 {dimension_numbers = #tpu.dot_dimension_numbers<[1], [0], [0], [1], [0, 0, 1, 1], [], []>} : vector<8x4xbf16>, vector<4x64xbf16>, vector<8x64xf32> -> vector<8x64xf32>
    %94 = arith.addf %88, %93 : vector<8x64xf32>
    %c0_111 = arith.constant 0 : index
    %c0_112 = arith.constant 0 : index
    %95 = vector.load %arg3[%c0_111, %c0_112] : memref<8x1xf32, #tpu.memory_space<vmem>>, vector<8x1xf32>
    %96 = vector.broadcast %95 : vector<8x1xf32> to vector<8x64xf32>
    %97 = arith.addf %94, %96 : vector<8x64xf32>
    %cst_113 = arith.constant 0.000000e+00 : f32
    %98 = vector.broadcast %cst_113 : f32 to vector<8x64xf32>
    %99 = arith.cmpf oge, %97, %98 : vector<8x64xf32>
    %cst_114 = arith.constant 2.000000e-01 : f32
    %100 = vector.broadcast %cst_114 : f32 to vector<8x64xf32>
    %101 = arith.mulf %100, %97 : vector<8x64xf32>
    %102 = arith.select %99, %97, %101 : vector<8x64xi1>, vector<8x64xf32>
    %103 = arith.truncf %102 : vector<8x64xf32> to vector<8x64xbf16>
    %c0_115 = arith.constant 0 : index
    %c0_116 = arith.constant 0 : index
    %c0_117 = arith.constant 0 : index
    %104 = vector.load %arg4[%c0_115, %c0_116, %c0_117] : memref<1x8x64xbf16, #tpu.memory_space<vmem>>, vector<1x8x64xbf16>
    %105 = vector.shape_cast %104 : vector<1x8x64xbf16> to vector<8x64xbf16>
    %106 = vector.shape_cast %103 : vector<8x64xbf16> to vector<1x8x64xbf16>
    tpu.vector_store %arg4[%c0_115, %c0_116, %c0_117], %106 {strides = array<i32>} : memref<1x8x64xbf16, #tpu.memory_space<vmem>>, vector<1x8x64xbf16>,
    return
  }
  func.func @transform_0(%arg0: i32) -> (i32, i32, i32, i32) {
    %c0_i32 = arith.constant 0 : i32
    %c0_i32_0 = arith.constant 0 : i32
    %c0_i32_1 = arith.constant 0 : i32
    %c0_i32_2 = arith.constant 0 : i32
    return %c0_i32, %arg0, %c0_i32_0, %c0_i32_1 : i32, i32, i32, i32
  }
  func.func @transform_1(%arg0: i32) -> (i32, i32, i32) {
    %c0_i32 = arith.constant 0 : i32
    %c0_i32_0 = arith.constant 0 : i32
    %c0_i32_1 = arith.constant 0 : i32
    %c0_i32_2 = arith.constant 0 : i32
    return %c0_i32, %c0_i32_0, %c0_i32_1 : i32, i32, i32
  }
  func.func @transform_2(%arg0: i32) -> (i32, i32) {
    %c0_i32 = arith.constant 0 : i32
    %c0_i32_0 = arith.constant 0 : i32
    %c0_i32_1 = arith.constant 0 : i32
    return %c0_i32, %c0_i32_0 : i32, i32
  }
  func.func @transform_3(%arg0: i32) -> (i32, i32, i32) {
    %c0_i32 = arith.constant 0 : i32
    %c0_i32_0 = arith.constant 0 : i32
    %c0_i32_1 = arith.constant 0 : i32
    return %arg0, %c0_i32, %c0_i32_0 : i32, i32, i32
  }
}

module attributes {stable_mosaic.version = 11 : i64} {
  func.func @_fused_conv_final_kernel(%arg0: i32, %arg1: memref<8x1x8x20xbf16, #tpu.memory_space<vmem>>, %arg2: memref<16x16x8xbf16, #tpu.memory_space<vmem>>, %arg3: memref<16x1xf32, #tpu.memory_space<vmem>>, %arg4: memref<1x16xf32, #tpu.memory_space<vmem>>, %arg5: memref<1x1xf32, #tpu.memory_space<vmem>>, %arg6: memref<1x1x16xf32, #tpu.memory_space<vmem>>) attributes {dimension_semantics = [#tpu.dimension_semantics<parallel>], iteration_bounds = array<i64: 2>, scalar_prefetch = 0 : i64, scratch_operands = 0 : i64, tpu.core_type = #tpu.core_type<tc>, window_params = [{transform_indices = @transform_0, window_bounds = array<i64: 8, 1, 8, 20>}, {pipeline_mode = #tpu.pipeline_mode<synchronous>, transform_indices = @transform_1, window_bounds = array<i64: 16, 16, 8>}, {pipeline_mode = #tpu.pipeline_mode<synchronous>, transform_indices = @transform_2, window_bounds = array<i64: 16, 1>}, {pipeline_mode = #tpu.pipeline_mode<synchronous>, transform_indices = @transform_3, window_bounds = array<i64: 1, 16>}, {pipeline_mode = #tpu.pipeline_mode<synchronous>, transform_indices = @transform_4, window_bounds = array<i64: 1, 1>}, {transform_indices = @transform_5, window_bounds = array<i64: 1, 1, 16>}]} {
    %c0 = arith.constant 0 : index
    %c0_0 = arith.constant 0 : index
    %c0_1 = arith.constant 0 : index
    %c0_2 = arith.constant 0 : index
    %0 = vector.load %arg1[%c0, %c0_0, %c0_1, %c0_2] : memref<8x1x8x20xbf16, #tpu.memory_space<vmem>>, vector<1x1x8x16xbf16>
    %1 = vector.shape_cast %0 : vector<1x1x8x16xbf16> to vector<8x16xbf16>
    %c0_3 = arith.constant 0 : index
    %c0_4 = arith.constant 0 : index
    %c0_5 = arith.constant 0 : index
    %2 = vector.load %arg2[%c0_3, %c0_4, %c0_5] : memref<16x16x8xbf16, #tpu.memory_space<vmem>>, vector<1x16x8xbf16>
    %3 = vector.shape_cast %2 : vector<1x16x8xbf16> to vector<16x8xbf16>
    %cst = arith.constant dense<0.000000e+00> : vector<16x16xf32>
    %4 = tpu.matmul %3, %1, %cst {dimension_numbers = #tpu.dot_dimension_numbers<[1], [0], [0], [1], [0, 0, 1, 1], [], []>} : vector<16x8xbf16>, vector<8x16xbf16>, vector<16x16xf32> -> vector<16x16xf32>
    %c0_6 = arith.constant 0 : index
    %c0_7 = arith.constant 0 : index
    %c0_8 = arith.constant 0 : index
    %c4 = arith.constant 4 : index
    %5 = vector.load %arg1[%c0_6, %c0_7, %c0_8, %c4] : memref<8x1x8x20xbf16, #tpu.memory_space<vmem>>, vector<1x1x8x16xbf16>
    %6 = vector.shape_cast %5 : vector<1x1x8x16xbf16> to vector<8x16xbf16>
    %c1 = arith.constant 1 : index
    %c0_9 = arith.constant 0 : index
    %c0_10 = arith.constant 0 : index
    %7 = vector.load %arg2[%c1, %c0_9, %c0_10] : memref<16x16x8xbf16, #tpu.memory_space<vmem>>, vector<1x16x8xbf16>
    %8 = vector.shape_cast %7 : vector<1x16x8xbf16> to vector<16x8xbf16>
    %cst_11 = arith.constant dense<0.000000e+00> : vector<16x16xf32>
    %9 = tpu.matmul %8, %6, %cst_11 {dimension_numbers = #tpu.dot_dimension_numbers<[1], [0], [0], [1], [0, 0, 1, 1], [], []>} : vector<16x8xbf16>, vector<8x16xbf16>, vector<16x16xf32> -> vector<16x16xf32>
    %10 = arith.addf %4, %9 : vector<16x16xf32>
    %c1_12 = arith.constant 1 : index
    %c0_13 = arith.constant 0 : index
    %c0_14 = arith.constant 0 : index
    %c0_15 = arith.constant 0 : index
    %11 = vector.load %arg1[%c1_12, %c0_13, %c0_14, %c0_15] : memref<8x1x8x20xbf16, #tpu.memory_space<vmem>>, vector<1x1x8x16xbf16>
    %12 = vector.shape_cast %11 : vector<1x1x8x16xbf16> to vector<8x16xbf16>
    %c2 = arith.constant 2 : index
    %c0_16 = arith.constant 0 : index
    %c0_17 = arith.constant 0 : index
    %13 = vector.load %arg2[%c2, %c0_16, %c0_17] : memref<16x16x8xbf16, #tpu.memory_space<vmem>>, vector<1x16x8xbf16>
    %14 = vector.shape_cast %13 : vector<1x16x8xbf16> to vector<16x8xbf16>
    %cst_18 = arith.constant dense<0.000000e+00> : vector<16x16xf32>
    %15 = tpu.matmul %14, %12, %cst_18 {dimension_numbers = #tpu.dot_dimension_numbers<[1], [0], [0], [1], [0, 0, 1, 1], [], []>} : vector<16x8xbf16>, vector<8x16xbf16>, vector<16x16xf32> -> vector<16x16xf32>
    %16 = arith.addf %10, %15 : vector<16x16xf32>
    %c1_19 = arith.constant 1 : index
    %c0_20 = arith.constant 0 : index
    %c0_21 = arith.constant 0 : index
    %c4_22 = arith.constant 4 : index
    %17 = vector.load %arg1[%c1_19, %c0_20, %c0_21, %c4_22] : memref<8x1x8x20xbf16, #tpu.memory_space<vmem>>, vector<1x1x8x16xbf16>
    %18 = vector.shape_cast %17 : vector<1x1x8x16xbf16> to vector<8x16xbf16>
    %c3 = arith.constant 3 : index
    %c0_23 = arith.constant 0 : index
    %c0_24 = arith.constant 0 : index
    %19 = vector.load %arg2[%c3, %c0_23, %c0_24] : memref<16x16x8xbf16, #tpu.memory_space<vmem>>, vector<1x16x8xbf16>
    %20 = vector.shape_cast %19 : vector<1x16x8xbf16> to vector<16x8xbf16>
    %cst_25 = arith.constant dense<0.000000e+00> : vector<16x16xf32>
    %21 = tpu.matmul %20, %18, %cst_25 {dimension_numbers = #tpu.dot_dimension_numbers<[1], [0], [0], [1], [0, 0, 1, 1], [], []>} : vector<16x8xbf16>, vector<8x16xbf16>, vector<16x16xf32> -> vector<16x16xf32>
    %22 = arith.addf %16, %21 : vector<16x16xf32>
    %c2_26 = arith.constant 2 : index
    %c0_27 = arith.constant 0 : index
    %c0_28 = arith.constant 0 : index
    %c0_29 = arith.constant 0 : index
    %23 = vector.load %arg1[%c2_26, %c0_27, %c0_28, %c0_29] : memref<8x1x8x20xbf16, #tpu.memory_space<vmem>>, vector<1x1x8x16xbf16>
    %24 = vector.shape_cast %23 : vector<1x1x8x16xbf16> to vector<8x16xbf16>
    %c4_30 = arith.constant 4 : index
    %c0_31 = arith.constant 0 : index
    %c0_32 = arith.constant 0 : index
    %25 = vector.load %arg2[%c4_30, %c0_31, %c0_32] : memref<16x16x8xbf16, #tpu.memory_space<vmem>>, vector<1x16x8xbf16>
    %26 = vector.shape_cast %25 : vector<1x16x8xbf16> to vector<16x8xbf16>
    %cst_33 = arith.constant dense<0.000000e+00> : vector<16x16xf32>
    %27 = tpu.matmul %26, %24, %cst_33 {dimension_numbers = #tpu.dot_dimension_numbers<[1], [0], [0], [1], [0, 0, 1, 1], [], []>} : vector<16x8xbf16>, vector<8x16xbf16>, vector<16x16xf32> -> vector<16x16xf32>
    %28 = arith.addf %22, %27 : vector<16x16xf32>
    %c2_34 = arith.constant 2 : index
    %c0_35 = arith.constant 0 : index
    %c0_36 = arith.constant 0 : index
    %c4_37 = arith.constant 4 : index
    %29 = vector.load %arg1[%c2_34, %c0_35, %c0_36, %c4_37] : memref<8x1x8x20xbf16, #tpu.memory_space<vmem>>, vector<1x1x8x16xbf16>
    %30 = vector.shape_cast %29 : vector<1x1x8x16xbf16> to vector<8x16xbf16>
    %c5 = arith.constant 5 : index
    %c0_38 = arith.constant 0 : index
    %c0_39 = arith.constant 0 : index
    %31 = vector.load %arg2[%c5, %c0_38, %c0_39] : memref<16x16x8xbf16, #tpu.memory_space<vmem>>, vector<1x16x8xbf16>
    %32 = vector.shape_cast %31 : vector<1x16x8xbf16> to vector<16x8xbf16>
    %cst_40 = arith.constant dense<0.000000e+00> : vector<16x16xf32>
    %33 = tpu.matmul %32, %30, %cst_40 {dimension_numbers = #tpu.dot_dimension_numbers<[1], [0], [0], [1], [0, 0, 1, 1], [], []>} : vector<16x8xbf16>, vector<8x16xbf16>, vector<16x16xf32> -> vector<16x16xf32>
    %34 = arith.addf %28, %33 : vector<16x16xf32>
    %c3_41 = arith.constant 3 : index
    %c0_42 = arith.constant 0 : index
    %c0_43 = arith.constant 0 : index
    %c0_44 = arith.constant 0 : index
    %35 = vector.load %arg1[%c3_41, %c0_42, %c0_43, %c0_44] : memref<8x1x8x20xbf16, #tpu.memory_space<vmem>>, vector<1x1x8x16xbf16>
    %36 = vector.shape_cast %35 : vector<1x1x8x16xbf16> to vector<8x16xbf16>
    %c6 = arith.constant 6 : index
    %c0_45 = arith.constant 0 : index
    %c0_46 = arith.constant 0 : index
    %37 = vector.load %arg2[%c6, %c0_45, %c0_46] : memref<16x16x8xbf16, #tpu.memory_space<vmem>>, vector<1x16x8xbf16>
    %38 = vector.shape_cast %37 : vector<1x16x8xbf16> to vector<16x8xbf16>
    %cst_47 = arith.constant dense<0.000000e+00> : vector<16x16xf32>
    %39 = tpu.matmul %38, %36, %cst_47 {dimension_numbers = #tpu.dot_dimension_numbers<[1], [0], [0], [1], [0, 0, 1, 1], [], []>} : vector<16x8xbf16>, vector<8x16xbf16>, vector<16x16xf32> -> vector<16x16xf32>
    %40 = arith.addf %34, %39 : vector<16x16xf32>
    %c3_48 = arith.constant 3 : index
    %c0_49 = arith.constant 0 : index
    %c0_50 = arith.constant 0 : index
    %c4_51 = arith.constant 4 : index
    %41 = vector.load %arg1[%c3_48, %c0_49, %c0_50, %c4_51] : memref<8x1x8x20xbf16, #tpu.memory_space<vmem>>, vector<1x1x8x16xbf16>
    %42 = vector.shape_cast %41 : vector<1x1x8x16xbf16> to vector<8x16xbf16>
    %c7 = arith.constant 7 : index
    %c0_52 = arith.constant 0 : index
    %c0_53 = arith.constant 0 : index
    %43 = vector.load %arg2[%c7, %c0_52, %c0_53] : memref<16x16x8xbf16, #tpu.memory_space<vmem>>, vector<1x16x8xbf16>
    %44 = vector.shape_cast %43 : vector<1x16x8xbf16> to vector<16x8xbf16>
    %cst_54 = arith.constant dense<0.000000e+00> : vector<16x16xf32>
    %45 = tpu.matmul %44, %42, %cst_54 {dimension_numbers = #tpu.dot_dimension_numbers<[1], [0], [0], [1], [0, 0, 1, 1], [], []>} : vector<16x8xbf16>, vector<8x16xbf16>, vector<16x16xf32> -> vector<16x16xf32>
    %46 = arith.addf %40, %45 : vector<16x16xf32>
    %c4_55 = arith.constant 4 : index
    %c0_56 = arith.constant 0 : index
    %c0_57 = arith.constant 0 : index
    %c0_58 = arith.constant 0 : index
    %47 = vector.load %arg1[%c4_55, %c0_56, %c0_57, %c0_58] : memref<8x1x8x20xbf16, #tpu.memory_space<vmem>>, vector<1x1x8x16xbf16>
    %48 = vector.shape_cast %47 : vector<1x1x8x16xbf16> to vector<8x16xbf16>
    %c8 = arith.constant 8 : index
    %c0_59 = arith.constant 0 : index
    %c0_60 = arith.constant 0 : index
    %49 = vector.load %arg2[%c8, %c0_59, %c0_60] : memref<16x16x8xbf16, #tpu.memory_space<vmem>>, vector<1x16x8xbf16>
    %50 = vector.shape_cast %49 : vector<1x16x8xbf16> to vector<16x8xbf16>
    %cst_61 = arith.constant dense<0.000000e+00> : vector<16x16xf32>
    %51 = tpu.matmul %50, %48, %cst_61 {dimension_numbers = #tpu.dot_dimension_numbers<[1], [0], [0], [1], [0, 0, 1, 1], [], []>} : vector<16x8xbf16>, vector<8x16xbf16>, vector<16x16xf32> -> vector<16x16xf32>
    %52 = arith.addf %46, %51 : vector<16x16xf32>
    %c4_62 = arith.constant 4 : index
    %c0_63 = arith.constant 0 : index
    %c0_64 = arith.constant 0 : index
    %c4_65 = arith.constant 4 : index
    %53 = vector.load %arg1[%c4_62, %c0_63, %c0_64, %c4_65] : memref<8x1x8x20xbf16, #tpu.memory_space<vmem>>, vector<1x1x8x16xbf16>
    %54 = vector.shape_cast %53 : vector<1x1x8x16xbf16> to vector<8x16xbf16>
    %c9 = arith.constant 9 : index
    %c0_66 = arith.constant 0 : index
    %c0_67 = arith.constant 0 : index
    %55 = vector.load %arg2[%c9, %c0_66, %c0_67] : memref<16x16x8xbf16, #tpu.memory_space<vmem>>, vector<1x16x8xbf16>
    %56 = vector.shape_cast %55 : vector<1x16x8xbf16> to vector<16x8xbf16>
    %cst_68 = arith.constant dense<0.000000e+00> : vector<16x16xf32>
    %57 = tpu.matmul %56, %54, %cst_68 {dimension_numbers = #tpu.dot_dimension_numbers<[1], [0], [0], [1], [0, 0, 1, 1], [], []>} : vector<16x8xbf16>, vector<8x16xbf16>, vector<16x16xf32> -> vector<16x16xf32>
    %58 = arith.addf %52, %57 : vector<16x16xf32>
    %c5_69 = arith.constant 5 : index
    %c0_70 = arith.constant 0 : index
    %c0_71 = arith.constant 0 : index
    %c0_72 = arith.constant 0 : index
    %59 = vector.load %arg1[%c5_69, %c0_70, %c0_71, %c0_72] : memref<8x1x8x20xbf16, #tpu.memory_space<vmem>>, vector<1x1x8x16xbf16>
    %60 = vector.shape_cast %59 : vector<1x1x8x16xbf16> to vector<8x16xbf16>
    %c10 = arith.constant 10 : index
    %c0_73 = arith.constant 0 : index
    %c0_74 = arith.constant 0 : index
    %61 = vector.load %arg2[%c10, %c0_73, %c0_74] : memref<16x16x8xbf16, #tpu.memory_space<vmem>>, vector<1x16x8xbf16>
    %62 = vector.shape_cast %61 : vector<1x16x8xbf16> to vector<16x8xbf16>
    %cst_75 = arith.constant dense<0.000000e+00> : vector<16x16xf32>
    %63 = tpu.matmul %62, %60, %cst_75 {dimension_numbers = #tpu.dot_dimension_numbers<[1], [0], [0], [1], [0, 0, 1, 1], [], []>} : vector<16x8xbf16>, vector<8x16xbf16>, vector<16x16xf32> -> vector<16x16xf32>
    %64 = arith.addf %58, %63 : vector<16x16xf32>
    %c5_76 = arith.constant 5 : index
    %c0_77 = arith.constant 0 : index
    %c0_78 = arith.constant 0 : index
    %c4_79 = arith.constant 4 : index
    %65 = vector.load %arg1[%c5_76, %c0_77, %c0_78, %c4_79] : memref<8x1x8x20xbf16, #tpu.memory_space<vmem>>, vector<1x1x8x16xbf16>
    %66 = vector.shape_cast %65 : vector<1x1x8x16xbf16> to vector<8x16xbf16>
    %c11 = arith.constant 11 : index
    %c0_80 = arith.constant 0 : index
    %c0_81 = arith.constant 0 : index
    %67 = vector.load %arg2[%c11, %c0_80, %c0_81] : memref<16x16x8xbf16, #tpu.memory_space<vmem>>, vector<1x16x8xbf16>
    %68 = vector.shape_cast %67 : vector<1x16x8xbf16> to vector<16x8xbf16>
    %cst_82 = arith.constant dense<0.000000e+00> : vector<16x16xf32>
    %69 = tpu.matmul %68, %66, %cst_82 {dimension_numbers = #tpu.dot_dimension_numbers<[1], [0], [0], [1], [0, 0, 1, 1], [], []>} : vector<16x8xbf16>, vector<8x16xbf16>, vector<16x16xf32> -> vector<16x16xf32>
    %70 = arith.addf %64, %69 : vector<16x16xf32>
    %c6_83 = arith.constant 6 : index
    %c0_84 = arith.constant 0 : index
    %c0_85 = arith.constant 0 : index
    %c0_86 = arith.constant 0 : index
    %71 = vector.load %arg1[%c6_83, %c0_84, %c0_85, %c0_86] : memref<8x1x8x20xbf16, #tpu.memory_space<vmem>>, vector<1x1x8x16xbf16>
    %72 = vector.shape_cast %71 : vector<1x1x8x16xbf16> to vector<8x16xbf16>
    %c12 = arith.constant 12 : index
    %c0_87 = arith.constant 0 : index
    %c0_88 = arith.constant 0 : index
    %73 = vector.load %arg2[%c12, %c0_87, %c0_88] : memref<16x16x8xbf16, #tpu.memory_space<vmem>>, vector<1x16x8xbf16>
    %74 = vector.shape_cast %73 : vector<1x16x8xbf16> to vector<16x8xbf16>
    %cst_89 = arith.constant dense<0.000000e+00> : vector<16x16xf32>
    %75 = tpu.matmul %74, %72, %cst_89 {dimension_numbers = #tpu.dot_dimension_numbers<[1], [0], [0], [1], [0, 0, 1, 1], [], []>} : vector<16x8xbf16>, vector<8x16xbf16>, vector<16x16xf32> -> vector<16x16xf32>
    %76 = arith.addf %70, %75 : vector<16x16xf32>
    %c6_90 = arith.constant 6 : index
    %c0_91 = arith.constant 0 : index
    %c0_92 = arith.constant 0 : index
    %c4_93 = arith.constant 4 : index
    %77 = vector.load %arg1[%c6_90, %c0_91, %c0_92, %c4_93] : memref<8x1x8x20xbf16, #tpu.memory_space<vmem>>, vector<1x1x8x16xbf16>
    %78 = vector.shape_cast %77 : vector<1x1x8x16xbf16> to vector<8x16xbf16>
    %c13 = arith.constant 13 : index
    %c0_94 = arith.constant 0 : index
    %c0_95 = arith.constant 0 : index
    %79 = vector.load %arg2[%c13, %c0_94, %c0_95] : memref<16x16x8xbf16, #tpu.memory_space<vmem>>, vector<1x16x8xbf16>
    %80 = vector.shape_cast %79 : vector<1x16x8xbf16> to vector<16x8xbf16>
    %cst_96 = arith.constant dense<0.000000e+00> : vector<16x16xf32>
    %81 = tpu.matmul %80, %78, %cst_96 {dimension_numbers = #tpu.dot_dimension_numbers<[1], [0], [0], [1], [0, 0, 1, 1], [], []>} : vector<16x8xbf16>, vector<8x16xbf16>, vector<16x16xf32> -> vector<16x16xf32>
    %82 = arith.addf %76, %81 : vector<16x16xf32>
    %c7_97 = arith.constant 7 : index
    %c0_98 = arith.constant 0 : index
    %c0_99 = arith.constant 0 : index
    %c0_100 = arith.constant 0 : index
    %83 = vector.load %arg1[%c7_97, %c0_98, %c0_99, %c0_100] : memref<8x1x8x20xbf16, #tpu.memory_space<vmem>>, vector<1x1x8x16xbf16>
    %84 = vector.shape_cast %83 : vector<1x1x8x16xbf16> to vector<8x16xbf16>
    %c14 = arith.constant 14 : index
    %c0_101 = arith.constant 0 : index
    %c0_102 = arith.constant 0 : index
    %85 = vector.load %arg2[%c14, %c0_101, %c0_102] : memref<16x16x8xbf16, #tpu.memory_space<vmem>>, vector<1x16x8xbf16>
    %86 = vector.shape_cast %85 : vector<1x16x8xbf16> to vector<16x8xbf16>
    %cst_103 = arith.constant dense<0.000000e+00> : vector<16x16xf32>
    %87 = tpu.matmul %86, %84, %cst_103 {dimension_numbers = #tpu.dot_dimension_numbers<[1], [0], [0], [1], [0, 0, 1, 1], [], []>} : vector<16x8xbf16>, vector<8x16xbf16>, vector<16x16xf32> -> vector<16x16xf32>
    %88 = arith.addf %82, %87 : vector<16x16xf32>
    %c7_104 = arith.constant 7 : index
    %c0_105 = arith.constant 0 : index
    %c0_106 = arith.constant 0 : index
    %c4_107 = arith.constant 4 : index
    %89 = vector.load %arg1[%c7_104, %c0_105, %c0_106, %c4_107] : memref<8x1x8x20xbf16, #tpu.memory_space<vmem>>, vector<1x1x8x16xbf16>
    %90 = vector.shape_cast %89 : vector<1x1x8x16xbf16> to vector<8x16xbf16>
    %c15 = arith.constant 15 : index
    %c0_108 = arith.constant 0 : index
    %c0_109 = arith.constant 0 : index
    %91 = vector.load %arg2[%c15, %c0_108, %c0_109] : memref<16x16x8xbf16, #tpu.memory_space<vmem>>, vector<1x16x8xbf16>
    %92 = vector.shape_cast %91 : vector<1x16x8xbf16> to vector<16x8xbf16>
    %cst_110 = arith.constant dense<0.000000e+00> : vector<16x16xf32>
    %93 = tpu.matmul %92, %90, %cst_110 {dimension_numbers = #tpu.dot_dimension_numbers<[1], [0], [0], [1], [0, 0, 1, 1], [], []>} : vector<16x8xbf16>, vector<8x16xbf16>, vector<16x16xf32> -> vector<16x16xf32>
    %94 = arith.addf %88, %93 : vector<16x16xf32>
    %c0_111 = arith.constant 0 : index
    %c0_112 = arith.constant 0 : index
    %95 = vector.load %arg3[%c0_111, %c0_112] : memref<16x1xf32, #tpu.memory_space<vmem>>, vector<16x1xf32>
    %96 = vector.broadcast %95 : vector<16x1xf32> to vector<16x16xf32>
    %97 = arith.addf %94, %96 : vector<16x16xf32>
    %cst_113 = arith.constant 0.000000e+00 : f32
    %98 = vector.broadcast %cst_113 : f32 to vector<16x16xf32>
    %99 = arith.cmpf oge, %97, %98 : vector<16x16xf32>
    %cst_114 = arith.constant 2.000000e-01 : f32
    %100 = vector.broadcast %cst_114 : f32 to vector<16x16xf32>
    %101 = arith.mulf %100, %97 : vector<16x16xf32>
    %102 = arith.select %99, %97, %101 : vector<16x16xi1>, vector<16x16xf32>
    %c0_115 = arith.constant 0 : index
    %c0_116 = arith.constant 0 : index
    %103 = vector.load %arg4[%c0_115, %c0_116] : memref<1x16xf32, #tpu.memory_space<vmem>>, vector<1x16xf32>
    %cst_117 = arith.constant dense<0.000000e+00> : vector<1x16xf32>
    %104 = tpu.matmul %103, %102, %cst_117 {dimension_numbers = #tpu.dot_dimension_numbers<[1], [0], [0], [1], [0, 0, 1, 1], [], []>} : vector<1x16xf32>, vector<16x16xf32>, vector<1x16xf32> -> vector<1x16xf32>
    %c0_118 = arith.constant 0 : index
    %c0_119 = arith.constant 0 : index
    %105 = vector.load %arg5[%c0_118, %c0_119] : memref<1x1xf32, #tpu.memory_space<vmem>>, vector<1x1xf32>
    %106 = vector.broadcast %105 : vector<1x1xf32> to vector<1x16xf32>
    %107 = arith.addf %104, %106 : vector<1x16xf32>
    %c0_120 = arith.constant 0 : index
    %c0_121 = arith.constant 0 : index
    %c0_122 = arith.constant 0 : index
    %108 = vector.load %arg6[%c0_120, %c0_121, %c0_122] : memref<1x1x16xf32, #tpu.memory_space<vmem>>, vector<1x1x16xf32>
    %109 = vector.shape_cast %108 : vector<1x1x16xf32> to vector<1x16xf32>
    %110 = vector.shape_cast %107 : vector<1x16xf32> to vector<1x1x16xf32>
    tpu.vector_store %arg6[%c0_120, %c0_121, %c0_122], %110 {strides = array<i32>} : memref<1x1x16xf32, #tpu.memory_space<vmem>>, vector<1x1x16xf32>,
    return
  }
  func.func @transform_0(%arg0: i32) -> (i32, i32, i32, i32) {
    %c0_i32 = arith.constant 0 : i32
    %c0_i32_0 = arith.constant 0 : i32
    %c0_i32_1 = arith.constant 0 : i32
    %c0_i32_2 = arith.constant 0 : i32
    return %c0_i32, %arg0, %c0_i32_0, %c0_i32_1 : i32, i32, i32, i32
  }
  func.func @transform_1(%arg0: i32) -> (i32, i32, i32) {
    %c0_i32 = arith.constant 0 : i32
    %c0_i32_0 = arith.constant 0 : i32
    %c0_i32_1 = arith.constant 0 : i32
    %c0_i32_2 = arith.constant 0 : i32
    return %c0_i32, %c0_i32_0, %c0_i32_1 : i32, i32, i32
  }
  func.func @transform_2(%arg0: i32) -> (i32, i32) {
    %c0_i32 = arith.constant 0 : i32
    %c0_i32_0 = arith.constant 0 : i32
    %c0_i32_1 = arith.constant 0 : i32
    return %c0_i32, %c0_i32_0 : i32, i32
  }
  func.func @transform_3(%arg0: i32) -> (i32, i32) {
    %c0_i32 = arith.constant 0 : i32
    %c0_i32_0 = arith.constant 0 : i32
    %c0_i32_1 = arith.constant 0 : i32
    return %c0_i32, %c0_i32_0 : i32, i32
  }
  func.func @transform_4(%arg0: i32) -> (i32, i32) {
    %c0_i32 = arith.constant 0 : i32
    %c0_i32_0 = arith.constant 0 : i32
    %c0_i32_1 = arith.constant 0 : i32
    return %c0_i32, %c0_i32_0 : i32, i32
  }
  func.func @transform_5(%arg0: i32) -> (i32, i32, i32) {
    %c0_i32 = arith.constant 0 : i32
    %c0_i32_0 = arith.constant 0 : i32
    %c0_i32_1 = arith.constant 0 : i32
    return %arg0, %c0_i32, %c0_i32_0 : i32, i32, i32
  }
}

module attributes {stable_mosaic.version = 11 : i64} {
  func.func @_avgpool_kernel(%arg0: i32, %arg1: memref<6x8x72xbf16, #tpu.memory_space<vmem>>, %arg2: memref<1x64xf32, #tpu.memory_space<vmem>>, %arg3: memref<8x64xbf16, #tpu.memory_space<vmem>>) attributes {dimension_semantics = [#tpu.dimension_semantics<parallel>], iteration_bounds = array<i64: 1>, scalar_prefetch = 0 : i64, scratch_operands = 0 : i64, tpu.core_type = #tpu.core_type<tc>, window_params = [{transform_indices = @transform_0, window_bounds = array<i64: 6, 8, 72>}, {pipeline_mode = #tpu.pipeline_mode<synchronous>, transform_indices = @transform_1, window_bounds = array<i64: 1, 64>}, {transform_indices = @transform_2, window_bounds = array<i64: 8, 64>}]} {
    %c0 = arith.constant 0 : index
    %c0_0 = arith.constant 0 : index
    %c0_1 = arith.constant 0 : index
    %0 = vector.load %arg1[%c0, %c0_0, %c0_1] : memref<6x8x72xbf16, #tpu.memory_space<vmem>>, vector<1x8x64xbf16>
    %1 = vector.shape_cast %0 : vector<1x8x64xbf16> to vector<8x64xbf16>
    %2 = arith.extf %1 : vector<8x64xbf16> to vector<8x64xf32>
    %c0_2 = arith.constant 0 : index
    %c0_3 = arith.constant 0 : index
    %c8 = arith.constant 8 : index
    %3 = vector.load %arg1[%c0_2, %c0_3, %c8] : memref<6x8x72xbf16, #tpu.memory_space<vmem>>, vector<1x8x64xbf16>
    %4 = vector.shape_cast %3 : vector<1x8x64xbf16> to vector<8x64xbf16>
    %5 = arith.extf %4 : vector<8x64xbf16> to vector<8x64xf32>
    %6 = arith.addf %2, %5 : vector<8x64xf32>
    %c1 = arith.constant 1 : index
    %c0_4 = arith.constant 0 : index
    %c0_5 = arith.constant 0 : index
    %7 = vector.load %arg1[%c1, %c0_4, %c0_5] : memref<6x8x72xbf16, #tpu.memory_space<vmem>>, vector<1x8x64xbf16>
    %8 = vector.shape_cast %7 : vector<1x8x64xbf16> to vector<8x64xbf16>
    %9 = arith.extf %8 : vector<8x64xbf16> to vector<8x64xf32>
    %10 = arith.addf %6, %9 : vector<8x64xf32>
    %c1_6 = arith.constant 1 : index
    %c0_7 = arith.constant 0 : index
    %c8_8 = arith.constant 8 : index
    %11 = vector.load %arg1[%c1_6, %c0_7, %c8_8] : memref<6x8x72xbf16, #tpu.memory_space<vmem>>, vector<1x8x64xbf16>
    %12 = vector.shape_cast %11 : vector<1x8x64xbf16> to vector<8x64xbf16>
    %13 = arith.extf %12 : vector<8x64xbf16> to vector<8x64xf32>
    %14 = arith.addf %10, %13 : vector<8x64xf32>
    %c2 = arith.constant 2 : index
    %c0_9 = arith.constant 0 : index
    %c0_10 = arith.constant 0 : index
    %15 = vector.load %arg1[%c2, %c0_9, %c0_10] : memref<6x8x72xbf16, #tpu.memory_space<vmem>>, vector<1x8x64xbf16>
    %16 = vector.shape_cast %15 : vector<1x8x64xbf16> to vector<8x64xbf16>
    %17 = arith.extf %16 : vector<8x64xbf16> to vector<8x64xf32>
    %18 = arith.addf %14, %17 : vector<8x64xf32>
    %c2_11 = arith.constant 2 : index
    %c0_12 = arith.constant 0 : index
    %c8_13 = arith.constant 8 : index
    %19 = vector.load %arg1[%c2_11, %c0_12, %c8_13] : memref<6x8x72xbf16, #tpu.memory_space<vmem>>, vector<1x8x64xbf16>
    %20 = vector.shape_cast %19 : vector<1x8x64xbf16> to vector<8x64xbf16>
    %21 = arith.extf %20 : vector<8x64xbf16> to vector<8x64xf32>
    %22 = arith.addf %18, %21 : vector<8x64xf32>
    %c3 = arith.constant 3 : index
    %c0_14 = arith.constant 0 : index
    %c0_15 = arith.constant 0 : index
    %23 = vector.load %arg1[%c3, %c0_14, %c0_15] : memref<6x8x72xbf16, #tpu.memory_space<vmem>>, vector<1x8x64xbf16>
    %24 = vector.shape_cast %23 : vector<1x8x64xbf16> to vector<8x64xbf16>
    %25 = arith.extf %24 : vector<8x64xbf16> to vector<8x64xf32>
    %26 = arith.addf %22, %25 : vector<8x64xf32>
    %c4 = arith.constant 4 : index
    %c0_16 = arith.constant 0 : index
    %c0_17 = arith.constant 0 : index
    %27 = vector.load %arg1[%c4, %c0_16, %c0_17] : memref<6x8x72xbf16, #tpu.memory_space<vmem>>, vector<1x8x64xbf16>
    %28 = vector.shape_cast %27 : vector<1x8x64xbf16> to vector<8x64xbf16>
    %29 = arith.extf %28 : vector<8x64xbf16> to vector<8x64xf32>
    %30 = arith.addf %26, %29 : vector<8x64xf32>
    %c5 = arith.constant 5 : index
    %c0_18 = arith.constant 0 : index
    %c0_19 = arith.constant 0 : index
    %31 = vector.load %arg1[%c5, %c0_18, %c0_19] : memref<6x8x72xbf16, #tpu.memory_space<vmem>>, vector<1x8x64xbf16>
    %32 = vector.shape_cast %31 : vector<1x8x64xbf16> to vector<8x64xbf16>
    %33 = arith.extf %32 : vector<8x64xbf16> to vector<8x64xf32>
    %34 = arith.addf %30, %33 : vector<8x64xf32>
    %c0_20 = arith.constant 0 : index
    %c0_21 = arith.constant 0 : index
    %35 = vector.load %arg2[%c0_20, %c0_21] : memref<1x64xf32, #tpu.memory_space<vmem>>, vector<1x64xf32>
    %36 = vector.broadcast %35 : vector<1x64xf32> to vector<8x64xf32>
    %37 = arith.mulf %34, %36 : vector<8x64xf32>
    %38 = arith.truncf %37 : vector<8x64xf32> to vector<8x64xbf16>
    %c0_22 = arith.constant 0 : index
    %c0_23 = arith.constant 0 : index
    %39 = vector.load %arg3[%c0_22, %c0_23] : memref<8x64xbf16, #tpu.memory_space<vmem>>, vector<8x64xbf16>
    tpu.vector_store %arg3[%c0_22, %c0_23], %38 {strides = array<i32>} : memref<8x64xbf16, #tpu.memory_space<vmem>>, vector<8x64xbf16>,
    return
  }
  func.func @transform_0(%arg0: i32) -> (i32, i32, i32) {
    %c0_i32 = arith.constant 0 : i32
    %c0_i32_0 = arith.constant 0 : i32
    %c0_i32_1 = arith.constant 0 : i32
    return %c0_i32, %arg0, %c0_i32_0 : i32, i32, i32
  }
  func.func @transform_1(%arg0: i32) -> (i32, i32) {
    %c0_i32 = arith.constant 0 : i32
    %c0_i32_0 = arith.constant 0 : i32
    %c0_i32_1 = arith.constant 0 : i32
    return %c0_i32, %c0_i32_0 : i32, i32
  }
  func.func @transform_2(%arg0: i32) -> (i32, i32) {
    %c0_i32 = arith.constant 0 : i32
    %c0_i32_0 = arith.constant 0 : i32
    return %arg0, %c0_i32 : i32, i32
  }
}

module attributes {stable_mosaic.version = 11 : i64} {
  func.func @_fused_conv_kernel(%arg0: i32, %arg1: memref<8x1x4x20xbf16, #tpu.memory_space<vmem>>, %arg2: memref<16x8x4xbf16, #tpu.memory_space<vmem>>, %arg3: memref<8x1xf32, #tpu.memory_space<vmem>>, %arg4: memref<1x8x16xbf16, #tpu.memory_space<vmem>>) attributes {dimension_semantics = [#tpu.dimension_semantics<parallel>], iteration_bounds = array<i64: 2>, scalar_prefetch = 0 : i64, scratch_operands = 0 : i64, tpu.core_type = #tpu.core_type<tc>, window_params = [{transform_indices = @transform_0, window_bounds = array<i64: 8, 1, 4, 20>}, {pipeline_mode = #tpu.pipeline_mode<synchronous>, transform_indices = @transform_1, window_bounds = array<i64: 16, 8, 4>}, {pipeline_mode = #tpu.pipeline_mode<synchronous>, transform_indices = @transform_2, window_bounds = array<i64: 8, 1>}, {transform_indices = @transform_3, window_bounds = array<i64: 1, 8, 16>}]} {
    %c0 = arith.constant 0 : index
    %c0_0 = arith.constant 0 : index
    %c0_1 = arith.constant 0 : index
    %c0_2 = arith.constant 0 : index
    %0 = vector.load %arg1[%c0, %c0_0, %c0_1, %c0_2] : memref<8x1x4x20xbf16, #tpu.memory_space<vmem>>, vector<1x1x4x16xbf16>
    %1 = vector.shape_cast %0 : vector<1x1x4x16xbf16> to vector<4x16xbf16>
    %c0_3 = arith.constant 0 : index
    %c0_4 = arith.constant 0 : index
    %c0_5 = arith.constant 0 : index
    %2 = vector.load %arg2[%c0_3, %c0_4, %c0_5] : memref<16x8x4xbf16, #tpu.memory_space<vmem>>, vector<1x8x4xbf16>
    %3 = vector.shape_cast %2 : vector<1x8x4xbf16> to vector<8x4xbf16>
    %cst = arith.constant dense<0.000000e+00> : vector<8x16xf32>
    %4 = tpu.matmul %3, %1, %cst {dimension_numbers = #tpu.dot_dimension_numbers<[1], [0], [0], [1], [0, 0, 1, 1], [], []>} : vector<8x4xbf16>, vector<4x16xbf16>, vector<8x16xf32> -> vector<8x16xf32>
    %c0_6 = arith.constant 0 : index
    %c0_7 = arith.constant 0 : index
    %c0_8 = arith.constant 0 : index
    %c4 = arith.constant 4 : index
    %5 = vector.load %arg1[%c0_6, %c0_7, %c0_8, %c4] : memref<8x1x4x20xbf16, #tpu.memory_space<vmem>>, vector<1x1x4x16xbf16>
    %6 = vector.shape_cast %5 : vector<1x1x4x16xbf16> to vector<4x16xbf16>
    %c1 = arith.constant 1 : index
    %c0_9 = arith.constant 0 : index
    %c0_10 = arith.constant 0 : index
    %7 = vector.load %arg2[%c1, %c0_9, %c0_10] : memref<16x8x4xbf16, #tpu.memory_space<vmem>>, vector<1x8x4xbf16>
    %8 = vector.shape_cast %7 : vector<1x8x4xbf16> to vector<8x4xbf16>
    %cst_11 = arith.constant dense<0.000000e+00> : vector<8x16xf32>
    %9 = tpu.matmul %8, %6, %cst_11 {dimension_numbers = #tpu.dot_dimension_numbers<[1], [0], [0], [1], [0, 0, 1, 1], [], []>} : vector<8x4xbf16>, vector<4x16xbf16>, vector<8x16xf32> -> vector<8x16xf32>
    %10 = arith.addf %4, %9 : vector<8x16xf32>
    %c1_12 = arith.constant 1 : index
    %c0_13 = arith.constant 0 : index
    %c0_14 = arith.constant 0 : index
    %c0_15 = arith.constant 0 : index
    %11 = vector.load %arg1[%c1_12, %c0_13, %c0_14, %c0_15] : memref<8x1x4x20xbf16, #tpu.memory_space<vmem>>, vector<1x1x4x16xbf16>
    %12 = vector.shape_cast %11 : vector<1x1x4x16xbf16> to vector<4x16xbf16>
    %c2 = arith.constant 2 : index
    %c0_16 = arith.constant 0 : index
    %c0_17 = arith.constant 0 : index
    %13 = vector.load %arg2[%c2, %c0_16, %c0_17] : memref<16x8x4xbf16, #tpu.memory_space<vmem>>, vector<1x8x4xbf16>
    %14 = vector.shape_cast %13 : vector<1x8x4xbf16> to vector<8x4xbf16>
    %cst_18 = arith.constant dense<0.000000e+00> : vector<8x16xf32>
    %15 = tpu.matmul %14, %12, %cst_18 {dimension_numbers = #tpu.dot_dimension_numbers<[1], [0], [0], [1], [0, 0, 1, 1], [], []>} : vector<8x4xbf16>, vector<4x16xbf16>, vector<8x16xf32> -> vector<8x16xf32>
    %16 = arith.addf %10, %15 : vector<8x16xf32>
    %c1_19 = arith.constant 1 : index
    %c0_20 = arith.constant 0 : index
    %c0_21 = arith.constant 0 : index
    %c4_22 = arith.constant 4 : index
    %17 = vector.load %arg1[%c1_19, %c0_20, %c0_21, %c4_22] : memref<8x1x4x20xbf16, #tpu.memory_space<vmem>>, vector<1x1x4x16xbf16>
    %18 = vector.shape_cast %17 : vector<1x1x4x16xbf16> to vector<4x16xbf16>
    %c3 = arith.constant 3 : index
    %c0_23 = arith.constant 0 : index
    %c0_24 = arith.constant 0 : index
    %19 = vector.load %arg2[%c3, %c0_23, %c0_24] : memref<16x8x4xbf16, #tpu.memory_space<vmem>>, vector<1x8x4xbf16>
    %20 = vector.shape_cast %19 : vector<1x8x4xbf16> to vector<8x4xbf16>
    %cst_25 = arith.constant dense<0.000000e+00> : vector<8x16xf32>
    %21 = tpu.matmul %20, %18, %cst_25 {dimension_numbers = #tpu.dot_dimension_numbers<[1], [0], [0], [1], [0, 0, 1, 1], [], []>} : vector<8x4xbf16>, vector<4x16xbf16>, vector<8x16xf32> -> vector<8x16xf32>
    %22 = arith.addf %16, %21 : vector<8x16xf32>
    %c2_26 = arith.constant 2 : index
    %c0_27 = arith.constant 0 : index
    %c0_28 = arith.constant 0 : index
    %c0_29 = arith.constant 0 : index
    %23 = vector.load %arg1[%c2_26, %c0_27, %c0_28, %c0_29] : memref<8x1x4x20xbf16, #tpu.memory_space<vmem>>, vector<1x1x4x16xbf16>
    %24 = vector.shape_cast %23 : vector<1x1x4x16xbf16> to vector<4x16xbf16>
    %c4_30 = arith.constant 4 : index
    %c0_31 = arith.constant 0 : index
    %c0_32 = arith.constant 0 : index
    %25 = vector.load %arg2[%c4_30, %c0_31, %c0_32] : memref<16x8x4xbf16, #tpu.memory_space<vmem>>, vector<1x8x4xbf16>
    %26 = vector.shape_cast %25 : vector<1x8x4xbf16> to vector<8x4xbf16>
    %cst_33 = arith.constant dense<0.000000e+00> : vector<8x16xf32>
    %27 = tpu.matmul %26, %24, %cst_33 {dimension_numbers = #tpu.dot_dimension_numbers<[1], [0], [0], [1], [0, 0, 1, 1], [], []>} : vector<8x4xbf16>, vector<4x16xbf16>, vector<8x16xf32> -> vector<8x16xf32>
    %28 = arith.addf %22, %27 : vector<8x16xf32>
    %c2_34 = arith.constant 2 : index
    %c0_35 = arith.constant 0 : index
    %c0_36 = arith.constant 0 : index
    %c4_37 = arith.constant 4 : index
    %29 = vector.load %arg1[%c2_34, %c0_35, %c0_36, %c4_37] : memref<8x1x4x20xbf16, #tpu.memory_space<vmem>>, vector<1x1x4x16xbf16>
    %30 = vector.shape_cast %29 : vector<1x1x4x16xbf16> to vector<4x16xbf16>
    %c5 = arith.constant 5 : index
    %c0_38 = arith.constant 0 : index
    %c0_39 = arith.constant 0 : index
    %31 = vector.load %arg2[%c5, %c0_38, %c0_39] : memref<16x8x4xbf16, #tpu.memory_space<vmem>>, vector<1x8x4xbf16>
    %32 = vector.shape_cast %31 : vector<1x8x4xbf16> to vector<8x4xbf16>
    %cst_40 = arith.constant dense<0.000000e+00> : vector<8x16xf32>
    %33 = tpu.matmul %32, %30, %cst_40 {dimension_numbers = #tpu.dot_dimension_numbers<[1], [0], [0], [1], [0, 0, 1, 1], [], []>} : vector<8x4xbf16>, vector<4x16xbf16>, vector<8x16xf32> -> vector<8x16xf32>
    %34 = arith.addf %28, %33 : vector<8x16xf32>
    %c3_41 = arith.constant 3 : index
    %c0_42 = arith.constant 0 : index
    %c0_43 = arith.constant 0 : index
    %c0_44 = arith.constant 0 : index
    %35 = vector.load %arg1[%c3_41, %c0_42, %c0_43, %c0_44] : memref<8x1x4x20xbf16, #tpu.memory_space<vmem>>, vector<1x1x4x16xbf16>
    %36 = vector.shape_cast %35 : vector<1x1x4x16xbf16> to vector<4x16xbf16>
    %c6 = arith.constant 6 : index
    %c0_45 = arith.constant 0 : index
    %c0_46 = arith.constant 0 : index
    %37 = vector.load %arg2[%c6, %c0_45, %c0_46] : memref<16x8x4xbf16, #tpu.memory_space<vmem>>, vector<1x8x4xbf16>
    %38 = vector.shape_cast %37 : vector<1x8x4xbf16> to vector<8x4xbf16>
    %cst_47 = arith.constant dense<0.000000e+00> : vector<8x16xf32>
    %39 = tpu.matmul %38, %36, %cst_47 {dimension_numbers = #tpu.dot_dimension_numbers<[1], [0], [0], [1], [0, 0, 1, 1], [], []>} : vector<8x4xbf16>, vector<4x16xbf16>, vector<8x16xf32> -> vector<8x16xf32>
    %40 = arith.addf %34, %39 : vector<8x16xf32>
    %c3_48 = arith.constant 3 : index
    %c0_49 = arith.constant 0 : index
    %c0_50 = arith.constant 0 : index
    %c4_51 = arith.constant 4 : index
    %41 = vector.load %arg1[%c3_48, %c0_49, %c0_50, %c4_51] : memref<8x1x4x20xbf16, #tpu.memory_space<vmem>>, vector<1x1x4x16xbf16>
    %42 = vector.shape_cast %41 : vector<1x1x4x16xbf16> to vector<4x16xbf16>
    %c7 = arith.constant 7 : index
    %c0_52 = arith.constant 0 : index
    %c0_53 = arith.constant 0 : index
    %43 = vector.load %arg2[%c7, %c0_52, %c0_53] : memref<16x8x4xbf16, #tpu.memory_space<vmem>>, vector<1x8x4xbf16>
    %44 = vector.shape_cast %43 : vector<1x8x4xbf16> to vector<8x4xbf16>
    %cst_54 = arith.constant dense<0.000000e+00> : vector<8x16xf32>
    %45 = tpu.matmul %44, %42, %cst_54 {dimension_numbers = #tpu.dot_dimension_numbers<[1], [0], [0], [1], [0, 0, 1, 1], [], []>} : vector<8x4xbf16>, vector<4x16xbf16>, vector<8x16xf32> -> vector<8x16xf32>
    %46 = arith.addf %40, %45 : vector<8x16xf32>
    %c4_55 = arith.constant 4 : index
    %c0_56 = arith.constant 0 : index
    %c0_57 = arith.constant 0 : index
    %c0_58 = arith.constant 0 : index
    %47 = vector.load %arg1[%c4_55, %c0_56, %c0_57, %c0_58] : memref<8x1x4x20xbf16, #tpu.memory_space<vmem>>, vector<1x1x4x16xbf16>
    %48 = vector.shape_cast %47 : vector<1x1x4x16xbf16> to vector<4x16xbf16>
    %c8 = arith.constant 8 : index
    %c0_59 = arith.constant 0 : index
    %c0_60 = arith.constant 0 : index
    %49 = vector.load %arg2[%c8, %c0_59, %c0_60] : memref<16x8x4xbf16, #tpu.memory_space<vmem>>, vector<1x8x4xbf16>
    %50 = vector.shape_cast %49 : vector<1x8x4xbf16> to vector<8x4xbf16>
    %cst_61 = arith.constant dense<0.000000e+00> : vector<8x16xf32>
    %51 = tpu.matmul %50, %48, %cst_61 {dimension_numbers = #tpu.dot_dimension_numbers<[1], [0], [0], [1], [0, 0, 1, 1], [], []>} : vector<8x4xbf16>, vector<4x16xbf16>, vector<8x16xf32> -> vector<8x16xf32>
    %52 = arith.addf %46, %51 : vector<8x16xf32>
    %c4_62 = arith.constant 4 : index
    %c0_63 = arith.constant 0 : index
    %c0_64 = arith.constant 0 : index
    %c4_65 = arith.constant 4 : index
    %53 = vector.load %arg1[%c4_62, %c0_63, %c0_64, %c4_65] : memref<8x1x4x20xbf16, #tpu.memory_space<vmem>>, vector<1x1x4x16xbf16>
    %54 = vector.shape_cast %53 : vector<1x1x4x16xbf16> to vector<4x16xbf16>
    %c9 = arith.constant 9 : index
    %c0_66 = arith.constant 0 : index
    %c0_67 = arith.constant 0 : index
    %55 = vector.load %arg2[%c9, %c0_66, %c0_67] : memref<16x8x4xbf16, #tpu.memory_space<vmem>>, vector<1x8x4xbf16>
    %56 = vector.shape_cast %55 : vector<1x8x4xbf16> to vector<8x4xbf16>
    %cst_68 = arith.constant dense<0.000000e+00> : vector<8x16xf32>
    %57 = tpu.matmul %56, %54, %cst_68 {dimension_numbers = #tpu.dot_dimension_numbers<[1], [0], [0], [1], [0, 0, 1, 1], [], []>} : vector<8x4xbf16>, vector<4x16xbf16>, vector<8x16xf32> -> vector<8x16xf32>
    %58 = arith.addf %52, %57 : vector<8x16xf32>
    %c5_69 = arith.constant 5 : index
    %c0_70 = arith.constant 0 : index
    %c0_71 = arith.constant 0 : index
    %c0_72 = arith.constant 0 : index
    %59 = vector.load %arg1[%c5_69, %c0_70, %c0_71, %c0_72] : memref<8x1x4x20xbf16, #tpu.memory_space<vmem>>, vector<1x1x4x16xbf16>
    %60 = vector.shape_cast %59 : vector<1x1x4x16xbf16> to vector<4x16xbf16>
    %c10 = arith.constant 10 : index
    %c0_73 = arith.constant 0 : index
    %c0_74 = arith.constant 0 : index
    %61 = vector.load %arg2[%c10, %c0_73, %c0_74] : memref<16x8x4xbf16, #tpu.memory_space<vmem>>, vector<1x8x4xbf16>
    %62 = vector.shape_cast %61 : vector<1x8x4xbf16> to vector<8x4xbf16>
    %cst_75 = arith.constant dense<0.000000e+00> : vector<8x16xf32>
    %63 = tpu.matmul %62, %60, %cst_75 {dimension_numbers = #tpu.dot_dimension_numbers<[1], [0], [0], [1], [0, 0, 1, 1], [], []>} : vector<8x4xbf16>, vector<4x16xbf16>, vector<8x16xf32> -> vector<8x16xf32>
    %64 = arith.addf %58, %63 : vector<8x16xf32>
    %c5_76 = arith.constant 5 : index
    %c0_77 = arith.constant 0 : index
    %c0_78 = arith.constant 0 : index
    %c4_79 = arith.constant 4 : index
    %65 = vector.load %arg1[%c5_76, %c0_77, %c0_78, %c4_79] : memref<8x1x4x20xbf16, #tpu.memory_space<vmem>>, vector<1x1x4x16xbf16>
    %66 = vector.shape_cast %65 : vector<1x1x4x16xbf16> to vector<4x16xbf16>
    %c11 = arith.constant 11 : index
    %c0_80 = arith.constant 0 : index
    %c0_81 = arith.constant 0 : index
    %67 = vector.load %arg2[%c11, %c0_80, %c0_81] : memref<16x8x4xbf16, #tpu.memory_space<vmem>>, vector<1x8x4xbf16>
    %68 = vector.shape_cast %67 : vector<1x8x4xbf16> to vector<8x4xbf16>
    %cst_82 = arith.constant dense<0.000000e+00> : vector<8x16xf32>
    %69 = tpu.matmul %68, %66, %cst_82 {dimension_numbers = #tpu.dot_dimension_numbers<[1], [0], [0], [1], [0, 0, 1, 1], [], []>} : vector<8x4xbf16>, vector<4x16xbf16>, vector<8x16xf32> -> vector<8x16xf32>
    %70 = arith.addf %64, %69 : vector<8x16xf32>
    %c6_83 = arith.constant 6 : index
    %c0_84 = arith.constant 0 : index
    %c0_85 = arith.constant 0 : index
    %c0_86 = arith.constant 0 : index
    %71 = vector.load %arg1[%c6_83, %c0_84, %c0_85, %c0_86] : memref<8x1x4x20xbf16, #tpu.memory_space<vmem>>, vector<1x1x4x16xbf16>
    %72 = vector.shape_cast %71 : vector<1x1x4x16xbf16> to vector<4x16xbf16>
    %c12 = arith.constant 12 : index
    %c0_87 = arith.constant 0 : index
    %c0_88 = arith.constant 0 : index
    %73 = vector.load %arg2[%c12, %c0_87, %c0_88] : memref<16x8x4xbf16, #tpu.memory_space<vmem>>, vector<1x8x4xbf16>
    %74 = vector.shape_cast %73 : vector<1x8x4xbf16> to vector<8x4xbf16>
    %cst_89 = arith.constant dense<0.000000e+00> : vector<8x16xf32>
    %75 = tpu.matmul %74, %72, %cst_89 {dimension_numbers = #tpu.dot_dimension_numbers<[1], [0], [0], [1], [0, 0, 1, 1], [], []>} : vector<8x4xbf16>, vector<4x16xbf16>, vector<8x16xf32> -> vector<8x16xf32>
    %76 = arith.addf %70, %75 : vector<8x16xf32>
    %c6_90 = arith.constant 6 : index
    %c0_91 = arith.constant 0 : index
    %c0_92 = arith.constant 0 : index
    %c4_93 = arith.constant 4 : index
    %77 = vector.load %arg1[%c6_90, %c0_91, %c0_92, %c4_93] : memref<8x1x4x20xbf16, #tpu.memory_space<vmem>>, vector<1x1x4x16xbf16>
    %78 = vector.shape_cast %77 : vector<1x1x4x16xbf16> to vector<4x16xbf16>
    %c13 = arith.constant 13 : index
    %c0_94 = arith.constant 0 : index
    %c0_95 = arith.constant 0 : index
    %79 = vector.load %arg2[%c13, %c0_94, %c0_95] : memref<16x8x4xbf16, #tpu.memory_space<vmem>>, vector<1x8x4xbf16>
    %80 = vector.shape_cast %79 : vector<1x8x4xbf16> to vector<8x4xbf16>
    %cst_96 = arith.constant dense<0.000000e+00> : vector<8x16xf32>
    %81 = tpu.matmul %80, %78, %cst_96 {dimension_numbers = #tpu.dot_dimension_numbers<[1], [0], [0], [1], [0, 0, 1, 1], [], []>} : vector<8x4xbf16>, vector<4x16xbf16>, vector<8x16xf32> -> vector<8x16xf32>
    %82 = arith.addf %76, %81 : vector<8x16xf32>
    %c7_97 = arith.constant 7 : index
    %c0_98 = arith.constant 0 : index
    %c0_99 = arith.constant 0 : index
    %c0_100 = arith.constant 0 : index
    %83 = vector.load %arg1[%c7_97, %c0_98, %c0_99, %c0_100] : memref<8x1x4x20xbf16, #tpu.memory_space<vmem>>, vector<1x1x4x16xbf16>
    %84 = vector.shape_cast %83 : vector<1x1x4x16xbf16> to vector<4x16xbf16>
    %c14 = arith.constant 14 : index
    %c0_101 = arith.constant 0 : index
    %c0_102 = arith.constant 0 : index
    %85 = vector.load %arg2[%c14, %c0_101, %c0_102] : memref<16x8x4xbf16, #tpu.memory_space<vmem>>, vector<1x8x4xbf16>
    %86 = vector.shape_cast %85 : vector<1x8x4xbf16> to vector<8x4xbf16>
    %cst_103 = arith.constant dense<0.000000e+00> : vector<8x16xf32>
    %87 = tpu.matmul %86, %84, %cst_103 {dimension_numbers = #tpu.dot_dimension_numbers<[1], [0], [0], [1], [0, 0, 1, 1], [], []>} : vector<8x4xbf16>, vector<4x16xbf16>, vector<8x16xf32> -> vector<8x16xf32>
    %88 = arith.addf %82, %87 : vector<8x16xf32>
    %c7_104 = arith.constant 7 : index
    %c0_105 = arith.constant 0 : index
    %c0_106 = arith.constant 0 : index
    %c4_107 = arith.constant 4 : index
    %89 = vector.load %arg1[%c7_104, %c0_105, %c0_106, %c4_107] : memref<8x1x4x20xbf16, #tpu.memory_space<vmem>>, vector<1x1x4x16xbf16>
    %90 = vector.shape_cast %89 : vector<1x1x4x16xbf16> to vector<4x16xbf16>
    %c15 = arith.constant 15 : index
    %c0_108 = arith.constant 0 : index
    %c0_109 = arith.constant 0 : index
    %91 = vector.load %arg2[%c15, %c0_108, %c0_109] : memref<16x8x4xbf16, #tpu.memory_space<vmem>>, vector<1x8x4xbf16>
    %92 = vector.shape_cast %91 : vector<1x8x4xbf16> to vector<8x4xbf16>
    %cst_110 = arith.constant dense<0.000000e+00> : vector<8x16xf32>
    %93 = tpu.matmul %92, %90, %cst_110 {dimension_numbers = #tpu.dot_dimension_numbers<[1], [0], [0], [1], [0, 0, 1, 1], [], []>} : vector<8x4xbf16>, vector<4x16xbf16>, vector<8x16xf32> -> vector<8x16xf32>
    %94 = arith.addf %88, %93 : vector<8x16xf32>
    %c0_111 = arith.constant 0 : index
    %c0_112 = arith.constant 0 : index
    %95 = vector.load %arg3[%c0_111, %c0_112] : memref<8x1xf32, #tpu.memory_space<vmem>>, vector<8x1xf32>
    %96 = vector.broadcast %95 : vector<8x1xf32> to vector<8x16xf32>
    %97 = arith.addf %94, %96 : vector<8x16xf32>
    %cst_113 = arith.constant 0.000000e+00 : f32
    %98 = vector.broadcast %cst_113 : f32 to vector<8x16xf32>
    %99 = arith.cmpf oge, %97, %98 : vector<8x16xf32>
    %cst_114 = arith.constant 2.000000e-01 : f32
    %100 = vector.broadcast %cst_114 : f32 to vector<8x16xf32>
    %101 = arith.mulf %100, %97 : vector<8x16xf32>
    %102 = arith.select %99, %97, %101 : vector<8x16xi1>, vector<8x16xf32>
    %103 = arith.truncf %102 : vector<8x16xf32> to vector<8x16xbf16>
    %c0_115 = arith.constant 0 : index
    %c0_116 = arith.constant 0 : index
    %c0_117 = arith.constant 0 : index
    %104 = vector.load %arg4[%c0_115, %c0_116, %c0_117] : memref<1x8x16xbf16, #tpu.memory_space<vmem>>, vector<1x8x16xbf16>
    %105 = vector.shape_cast %104 : vector<1x8x16xbf16> to vector<8x16xbf16>
    %106 = vector.shape_cast %103 : vector<8x16xbf16> to vector<1x8x16xbf16>
    tpu.vector_store %arg4[%c0_115, %c0_116, %c0_117], %106 {strides = array<i32>} : memref<1x8x16xbf16, #tpu.memory_space<vmem>>, vector<1x8x16xbf16>,
    return
  }
  func.func @transform_0(%arg0: i32) -> (i32, i32, i32, i32) {
    %c0_i32 = arith.constant 0 : i32
    %c0_i32_0 = arith.constant 0 : i32
    %c0_i32_1 = arith.constant 0 : i32
    %c0_i32_2 = arith.constant 0 : i32
    return %c0_i32, %arg0, %c0_i32_0, %c0_i32_1 : i32, i32, i32, i32
  }
  func.func @transform_1(%arg0: i32) -> (i32, i32, i32) {
    %c0_i32 = arith.constant 0 : i32
    %c0_i32_0 = arith.constant 0 : i32
    %c0_i32_1 = arith.constant 0 : i32
    %c0_i32_2 = arith.constant 0 : i32
    return %c0_i32, %c0_i32_0, %c0_i32_1 : i32, i32, i32
  }
  func.func @transform_2(%arg0: i32) -> (i32, i32) {
    %c0_i32 = arith.constant 0 : i32
    %c0_i32_0 = arith.constant 0 : i32
    %c0_i32_1 = arith.constant 0 : i32
    return %c0_i32, %c0_i32_0 : i32, i32
  }
  func.func @transform_3(%arg0: i32) -> (i32, i32, i32) {
    %c0_i32 = arith.constant 0 : i32
    %c0_i32_0 = arith.constant 0 : i32
    %c0_i32_1 = arith.constant 0 : i32
    return %arg0, %c0_i32, %c0_i32_0 : i32, i32, i32
  }
}

module attributes {stable_mosaic.version = 11 : i64} {
  func.func @_fused_conv_final_kernel(%arg0: i32, %arg1: memref<8x1x8x6xbf16, #tpu.memory_space<vmem>>, %arg2: memref<16x16x8xbf16, #tpu.memory_space<vmem>>, %arg3: memref<16x1xf32, #tpu.memory_space<vmem>>, %arg4: memref<1x16xf32, #tpu.memory_space<vmem>>, %arg5: memref<1x1xf32, #tpu.memory_space<vmem>>, %arg6: memref<1x1x4xf32, #tpu.memory_space<vmem>>) attributes {dimension_semantics = [#tpu.dimension_semantics<parallel>], iteration_bounds = array<i64: 2>, scalar_prefetch = 0 : i64, scratch_operands = 0 : i64, tpu.core_type = #tpu.core_type<tc>, window_params = [{transform_indices = @transform_0, window_bounds = array<i64: 8, 1, 8, 6>}, {pipeline_mode = #tpu.pipeline_mode<synchronous>, transform_indices = @transform_1, window_bounds = array<i64: 16, 16, 8>}, {pipeline_mode = #tpu.pipeline_mode<synchronous>, transform_indices = @transform_2, window_bounds = array<i64: 16, 1>}, {pipeline_mode = #tpu.pipeline_mode<synchronous>, transform_indices = @transform_3, window_bounds = array<i64: 1, 16>}, {pipeline_mode = #tpu.pipeline_mode<synchronous>, transform_indices = @transform_4, window_bounds = array<i64: 1, 1>}, {transform_indices = @transform_5, window_bounds = array<i64: 1, 1, 4>}]} {
    %c0 = arith.constant 0 : index
    %c0_0 = arith.constant 0 : index
    %c0_1 = arith.constant 0 : index
    %c0_2 = arith.constant 0 : index
    %0 = vector.load %arg1[%c0, %c0_0, %c0_1, %c0_2] : memref<8x1x8x6xbf16, #tpu.memory_space<vmem>>, vector<1x1x8x4xbf16>
    %1 = vector.shape_cast %0 : vector<1x1x8x4xbf16> to vector<8x4xbf16>
    %c0_3 = arith.constant 0 : index
    %c0_4 = arith.constant 0 : index
    %c0_5 = arith.constant 0 : index
    %2 = vector.load %arg2[%c0_3, %c0_4, %c0_5] : memref<16x16x8xbf16, #tpu.memory_space<vmem>>, vector<1x16x8xbf16>
    %3 = vector.shape_cast %2 : vector<1x16x8xbf16> to vector<16x8xbf16>
    %cst = arith.constant dense<0.000000e+00> : vector<16x4xf32>
    %4 = tpu.matmul %3, %1, %cst {dimension_numbers = #tpu.dot_dimension_numbers<[1], [0], [0], [1], [0, 0, 1, 1], [], []>} : vector<16x8xbf16>, vector<8x4xbf16>, vector<16x4xf32> -> vector<16x4xf32>
    %c0_6 = arith.constant 0 : index
    %c0_7 = arith.constant 0 : index
    %c0_8 = arith.constant 0 : index
    %c2 = arith.constant 2 : index
    %5 = vector.load %arg1[%c0_6, %c0_7, %c0_8, %c2] : memref<8x1x8x6xbf16, #tpu.memory_space<vmem>>, vector<1x1x8x4xbf16>
    %6 = vector.shape_cast %5 : vector<1x1x8x4xbf16> to vector<8x4xbf16>
    %c1 = arith.constant 1 : index
    %c0_9 = arith.constant 0 : index
    %c0_10 = arith.constant 0 : index
    %7 = vector.load %arg2[%c1, %c0_9, %c0_10] : memref<16x16x8xbf16, #tpu.memory_space<vmem>>, vector<1x16x8xbf16>
    %8 = vector.shape_cast %7 : vector<1x16x8xbf16> to vector<16x8xbf16>
    %cst_11 = arith.constant dense<0.000000e+00> : vector<16x4xf32>
    %9 = tpu.matmul %8, %6, %cst_11 {dimension_numbers = #tpu.dot_dimension_numbers<[1], [0], [0], [1], [0, 0, 1, 1], [], []>} : vector<16x8xbf16>, vector<8x4xbf16>, vector<16x4xf32> -> vector<16x4xf32>
    %10 = arith.addf %4, %9 : vector<16x4xf32>
    %c1_12 = arith.constant 1 : index
    %c0_13 = arith.constant 0 : index
    %c0_14 = arith.constant 0 : index
    %c0_15 = arith.constant 0 : index
    %11 = vector.load %arg1[%c1_12, %c0_13, %c0_14, %c0_15] : memref<8x1x8x6xbf16, #tpu.memory_space<vmem>>, vector<1x1x8x4xbf16>
    %12 = vector.shape_cast %11 : vector<1x1x8x4xbf16> to vector<8x4xbf16>
    %c2_16 = arith.constant 2 : index
    %c0_17 = arith.constant 0 : index
    %c0_18 = arith.constant 0 : index
    %13 = vector.load %arg2[%c2_16, %c0_17, %c0_18] : memref<16x16x8xbf16, #tpu.memory_space<vmem>>, vector<1x16x8xbf16>
    %14 = vector.shape_cast %13 : vector<1x16x8xbf16> to vector<16x8xbf16>
    %cst_19 = arith.constant dense<0.000000e+00> : vector<16x4xf32>
    %15 = tpu.matmul %14, %12, %cst_19 {dimension_numbers = #tpu.dot_dimension_numbers<[1], [0], [0], [1], [0, 0, 1, 1], [], []>} : vector<16x8xbf16>, vector<8x4xbf16>, vector<16x4xf32> -> vector<16x4xf32>
    %16 = arith.addf %10, %15 : vector<16x4xf32>
    %c1_20 = arith.constant 1 : index
    %c0_21 = arith.constant 0 : index
    %c0_22 = arith.constant 0 : index
    %c2_23 = arith.constant 2 : index
    %17 = vector.load %arg1[%c1_20, %c0_21, %c0_22, %c2_23] : memref<8x1x8x6xbf16, #tpu.memory_space<vmem>>, vector<1x1x8x4xbf16>
    %18 = vector.shape_cast %17 : vector<1x1x8x4xbf16> to vector<8x4xbf16>
    %c3 = arith.constant 3 : index
    %c0_24 = arith.constant 0 : index
    %c0_25 = arith.constant 0 : index
    %19 = vector.load %arg2[%c3, %c0_24, %c0_25] : memref<16x16x8xbf16, #tpu.memory_space<vmem>>, vector<1x16x8xbf16>
    %20 = vector.shape_cast %19 : vector<1x16x8xbf16> to vector<16x8xbf16>
    %cst_26 = arith.constant dense<0.000000e+00> : vector<16x4xf32>
    %21 = tpu.matmul %20, %18, %cst_26 {dimension_numbers = #tpu.dot_dimension_numbers<[1], [0], [0], [1], [0, 0, 1, 1], [], []>} : vector<16x8xbf16>, vector<8x4xbf16>, vector<16x4xf32> -> vector<16x4xf32>
    %22 = arith.addf %16, %21 : vector<16x4xf32>
    %c2_27 = arith.constant 2 : index
    %c0_28 = arith.constant 0 : index
    %c0_29 = arith.constant 0 : index
    %c0_30 = arith.constant 0 : index
    %23 = vector.load %arg1[%c2_27, %c0_28, %c0_29, %c0_30] : memref<8x1x8x6xbf16, #tpu.memory_space<vmem>>, vector<1x1x8x4xbf16>
    %24 = vector.shape_cast %23 : vector<1x1x8x4xbf16> to vector<8x4xbf16>
    %c4 = arith.constant 4 : index
    %c0_31 = arith.constant 0 : index
    %c0_32 = arith.constant 0 : index
    %25 = vector.load %arg2[%c4, %c0_31, %c0_32] : memref<16x16x8xbf16, #tpu.memory_space<vmem>>, vector<1x16x8xbf16>
    %26 = vector.shape_cast %25 : vector<1x16x8xbf16> to vector<16x8xbf16>
    %cst_33 = arith.constant dense<0.000000e+00> : vector<16x4xf32>
    %27 = tpu.matmul %26, %24, %cst_33 {dimension_numbers = #tpu.dot_dimension_numbers<[1], [0], [0], [1], [0, 0, 1, 1], [], []>} : vector<16x8xbf16>, vector<8x4xbf16>, vector<16x4xf32> -> vector<16x4xf32>
    %28 = arith.addf %22, %27 : vector<16x4xf32>
    %c2_34 = arith.constant 2 : index
    %c0_35 = arith.constant 0 : index
    %c0_36 = arith.constant 0 : index
    %c2_37 = arith.constant 2 : index
    %29 = vector.load %arg1[%c2_34, %c0_35, %c0_36, %c2_37] : memref<8x1x8x6xbf16, #tpu.memory_space<vmem>>, vector<1x1x8x4xbf16>
    %30 = vector.shape_cast %29 : vector<1x1x8x4xbf16> to vector<8x4xbf16>
    %c5 = arith.constant 5 : index
    %c0_38 = arith.constant 0 : index
    %c0_39 = arith.constant 0 : index
    %31 = vector.load %arg2[%c5, %c0_38, %c0_39] : memref<16x16x8xbf16, #tpu.memory_space<vmem>>, vector<1x16x8xbf16>
    %32 = vector.shape_cast %31 : vector<1x16x8xbf16> to vector<16x8xbf16>
    %cst_40 = arith.constant dense<0.000000e+00> : vector<16x4xf32>
    %33 = tpu.matmul %32, %30, %cst_40 {dimension_numbers = #tpu.dot_dimension_numbers<[1], [0], [0], [1], [0, 0, 1, 1], [], []>} : vector<16x8xbf16>, vector<8x4xbf16>, vector<16x4xf32> -> vector<16x4xf32>
    %34 = arith.addf %28, %33 : vector<16x4xf32>
    %c3_41 = arith.constant 3 : index
    %c0_42 = arith.constant 0 : index
    %c0_43 = arith.constant 0 : index
    %c0_44 = arith.constant 0 : index
    %35 = vector.load %arg1[%c3_41, %c0_42, %c0_43, %c0_44] : memref<8x1x8x6xbf16, #tpu.memory_space<vmem>>, vector<1x1x8x4xbf16>
    %36 = vector.shape_cast %35 : vector<1x1x8x4xbf16> to vector<8x4xbf16>
    %c6 = arith.constant 6 : index
    %c0_45 = arith.constant 0 : index
    %c0_46 = arith.constant 0 : index
    %37 = vector.load %arg2[%c6, %c0_45, %c0_46] : memref<16x16x8xbf16, #tpu.memory_space<vmem>>, vector<1x16x8xbf16>
    %38 = vector.shape_cast %37 : vector<1x16x8xbf16> to vector<16x8xbf16>
    %cst_47 = arith.constant dense<0.000000e+00> : vector<16x4xf32>
    %39 = tpu.matmul %38, %36, %cst_47 {dimension_numbers = #tpu.dot_dimension_numbers<[1], [0], [0], [1], [0, 0, 1, 1], [], []>} : vector<16x8xbf16>, vector<8x4xbf16>, vector<16x4xf32> -> vector<16x4xf32>
    %40 = arith.addf %34, %39 : vector<16x4xf32>
    %c3_48 = arith.constant 3 : index
    %c0_49 = arith.constant 0 : index
    %c0_50 = arith.constant 0 : index
    %c2_51 = arith.constant 2 : index
    %41 = vector.load %arg1[%c3_48, %c0_49, %c0_50, %c2_51] : memref<8x1x8x6xbf16, #tpu.memory_space<vmem>>, vector<1x1x8x4xbf16>
    %42 = vector.shape_cast %41 : vector<1x1x8x4xbf16> to vector<8x4xbf16>
    %c7 = arith.constant 7 : index
    %c0_52 = arith.constant 0 : index
    %c0_53 = arith.constant 0 : index
    %43 = vector.load %arg2[%c7, %c0_52, %c0_53] : memref<16x16x8xbf16, #tpu.memory_space<vmem>>, vector<1x16x8xbf16>
    %44 = vector.shape_cast %43 : vector<1x16x8xbf16> to vector<16x8xbf16>
    %cst_54 = arith.constant dense<0.000000e+00> : vector<16x4xf32>
    %45 = tpu.matmul %44, %42, %cst_54 {dimension_numbers = #tpu.dot_dimension_numbers<[1], [0], [0], [1], [0, 0, 1, 1], [], []>} : vector<16x8xbf16>, vector<8x4xbf16>, vector<16x4xf32> -> vector<16x4xf32>
    %46 = arith.addf %40, %45 : vector<16x4xf32>
    %c4_55 = arith.constant 4 : index
    %c0_56 = arith.constant 0 : index
    %c0_57 = arith.constant 0 : index
    %c0_58 = arith.constant 0 : index
    %47 = vector.load %arg1[%c4_55, %c0_56, %c0_57, %c0_58] : memref<8x1x8x6xbf16, #tpu.memory_space<vmem>>, vector<1x1x8x4xbf16>
    %48 = vector.shape_cast %47 : vector<1x1x8x4xbf16> to vector<8x4xbf16>
    %c8 = arith.constant 8 : index
    %c0_59 = arith.constant 0 : index
    %c0_60 = arith.constant 0 : index
    %49 = vector.load %arg2[%c8, %c0_59, %c0_60] : memref<16x16x8xbf16, #tpu.memory_space<vmem>>, vector<1x16x8xbf16>
    %50 = vector.shape_cast %49 : vector<1x16x8xbf16> to vector<16x8xbf16>
    %cst_61 = arith.constant dense<0.000000e+00> : vector<16x4xf32>
    %51 = tpu.matmul %50, %48, %cst_61 {dimension_numbers = #tpu.dot_dimension_numbers<[1], [0], [0], [1], [0, 0, 1, 1], [], []>} : vector<16x8xbf16>, vector<8x4xbf16>, vector<16x4xf32> -> vector<16x4xf32>
    %52 = arith.addf %46, %51 : vector<16x4xf32>
    %c4_62 = arith.constant 4 : index
    %c0_63 = arith.constant 0 : index
    %c0_64 = arith.constant 0 : index
    %c2_65 = arith.constant 2 : index
    %53 = vector.load %arg1[%c4_62, %c0_63, %c0_64, %c2_65] : memref<8x1x8x6xbf16, #tpu.memory_space<vmem>>, vector<1x1x8x4xbf16>
    %54 = vector.shape_cast %53 : vector<1x1x8x4xbf16> to vector<8x4xbf16>
    %c9 = arith.constant 9 : index
    %c0_66 = arith.constant 0 : index
    %c0_67 = arith.constant 0 : index
    %55 = vector.load %arg2[%c9, %c0_66, %c0_67] : memref<16x16x8xbf16, #tpu.memory_space<vmem>>, vector<1x16x8xbf16>
    %56 = vector.shape_cast %55 : vector<1x16x8xbf16> to vector<16x8xbf16>
    %cst_68 = arith.constant dense<0.000000e+00> : vector<16x4xf32>
    %57 = tpu.matmul %56, %54, %cst_68 {dimension_numbers = #tpu.dot_dimension_numbers<[1], [0], [0], [1], [0, 0, 1, 1], [], []>} : vector<16x8xbf16>, vector<8x4xbf16>, vector<16x4xf32> -> vector<16x4xf32>
    %58 = arith.addf %52, %57 : vector<16x4xf32>
    %c5_69 = arith.constant 5 : index
    %c0_70 = arith.constant 0 : index
    %c0_71 = arith.constant 0 : index
    %c0_72 = arith.constant 0 : index
    %59 = vector.load %arg1[%c5_69, %c0_70, %c0_71, %c0_72] : memref<8x1x8x6xbf16, #tpu.memory_space<vmem>>, vector<1x1x8x4xbf16>
    %60 = vector.shape_cast %59 : vector<1x1x8x4xbf16> to vector<8x4xbf16>
    %c10 = arith.constant 10 : index
    %c0_73 = arith.constant 0 : index
    %c0_74 = arith.constant 0 : index
    %61 = vector.load %arg2[%c10, %c0_73, %c0_74] : memref<16x16x8xbf16, #tpu.memory_space<vmem>>, vector<1x16x8xbf16>
    %62 = vector.shape_cast %61 : vector<1x16x8xbf16> to vector<16x8xbf16>
    %cst_75 = arith.constant dense<0.000000e+00> : vector<16x4xf32>
    %63 = tpu.matmul %62, %60, %cst_75 {dimension_numbers = #tpu.dot_dimension_numbers<[1], [0], [0], [1], [0, 0, 1, 1], [], []>} : vector<16x8xbf16>, vector<8x4xbf16>, vector<16x4xf32> -> vector<16x4xf32>
    %64 = arith.addf %58, %63 : vector<16x4xf32>
    %c5_76 = arith.constant 5 : index
    %c0_77 = arith.constant 0 : index
    %c0_78 = arith.constant 0 : index
    %c2_79 = arith.constant 2 : index
    %65 = vector.load %arg1[%c5_76, %c0_77, %c0_78, %c2_79] : memref<8x1x8x6xbf16, #tpu.memory_space<vmem>>, vector<1x1x8x4xbf16>
    %66 = vector.shape_cast %65 : vector<1x1x8x4xbf16> to vector<8x4xbf16>
    %c11 = arith.constant 11 : index
    %c0_80 = arith.constant 0 : index
    %c0_81 = arith.constant 0 : index
    %67 = vector.load %arg2[%c11, %c0_80, %c0_81] : memref<16x16x8xbf16, #tpu.memory_space<vmem>>, vector<1x16x8xbf16>
    %68 = vector.shape_cast %67 : vector<1x16x8xbf16> to vector<16x8xbf16>
    %cst_82 = arith.constant dense<0.000000e+00> : vector<16x4xf32>
    %69 = tpu.matmul %68, %66, %cst_82 {dimension_numbers = #tpu.dot_dimension_numbers<[1], [0], [0], [1], [0, 0, 1, 1], [], []>} : vector<16x8xbf16>, vector<8x4xbf16>, vector<16x4xf32> -> vector<16x4xf32>
    %70 = arith.addf %64, %69 : vector<16x4xf32>
    %c6_83 = arith.constant 6 : index
    %c0_84 = arith.constant 0 : index
    %c0_85 = arith.constant 0 : index
    %c0_86 = arith.constant 0 : index
    %71 = vector.load %arg1[%c6_83, %c0_84, %c0_85, %c0_86] : memref<8x1x8x6xbf16, #tpu.memory_space<vmem>>, vector<1x1x8x4xbf16>
    %72 = vector.shape_cast %71 : vector<1x1x8x4xbf16> to vector<8x4xbf16>
    %c12 = arith.constant 12 : index
    %c0_87 = arith.constant 0 : index
    %c0_88 = arith.constant 0 : index
    %73 = vector.load %arg2[%c12, %c0_87, %c0_88] : memref<16x16x8xbf16, #tpu.memory_space<vmem>>, vector<1x16x8xbf16>
    %74 = vector.shape_cast %73 : vector<1x16x8xbf16> to vector<16x8xbf16>
    %cst_89 = arith.constant dense<0.000000e+00> : vector<16x4xf32>
    %75 = tpu.matmul %74, %72, %cst_89 {dimension_numbers = #tpu.dot_dimension_numbers<[1], [0], [0], [1], [0, 0, 1, 1], [], []>} : vector<16x8xbf16>, vector<8x4xbf16>, vector<16x4xf32> -> vector<16x4xf32>
    %76 = arith.addf %70, %75 : vector<16x4xf32>
    %c6_90 = arith.constant 6 : index
    %c0_91 = arith.constant 0 : index
    %c0_92 = arith.constant 0 : index
    %c2_93 = arith.constant 2 : index
    %77 = vector.load %arg1[%c6_90, %c0_91, %c0_92, %c2_93] : memref<8x1x8x6xbf16, #tpu.memory_space<vmem>>, vector<1x1x8x4xbf16>
    %78 = vector.shape_cast %77 : vector<1x1x8x4xbf16> to vector<8x4xbf16>
    %c13 = arith.constant 13 : index
    %c0_94 = arith.constant 0 : index
    %c0_95 = arith.constant 0 : index
    %79 = vector.load %arg2[%c13, %c0_94, %c0_95] : memref<16x16x8xbf16, #tpu.memory_space<vmem>>, vector<1x16x8xbf16>
    %80 = vector.shape_cast %79 : vector<1x16x8xbf16> to vector<16x8xbf16>
    %cst_96 = arith.constant dense<0.000000e+00> : vector<16x4xf32>
    %81 = tpu.matmul %80, %78, %cst_96 {dimension_numbers = #tpu.dot_dimension_numbers<[1], [0], [0], [1], [0, 0, 1, 1], [], []>} : vector<16x8xbf16>, vector<8x4xbf16>, vector<16x4xf32> -> vector<16x4xf32>
    %82 = arith.addf %76, %81 : vector<16x4xf32>
    %c7_97 = arith.constant 7 : index
    %c0_98 = arith.constant 0 : index
    %c0_99 = arith.constant 0 : index
    %c0_100 = arith.constant 0 : index
    %83 = vector.load %arg1[%c7_97, %c0_98, %c0_99, %c0_100] : memref<8x1x8x6xbf16, #tpu.memory_space<vmem>>, vector<1x1x8x4xbf16>
    %84 = vector.shape_cast %83 : vector<1x1x8x4xbf16> to vector<8x4xbf16>
    %c14 = arith.constant 14 : index
    %c0_101 = arith.constant 0 : index
    %c0_102 = arith.constant 0 : index
    %85 = vector.load %arg2[%c14, %c0_101, %c0_102] : memref<16x16x8xbf16, #tpu.memory_space<vmem>>, vector<1x16x8xbf16>
    %86 = vector.shape_cast %85 : vector<1x16x8xbf16> to vector<16x8xbf16>
    %cst_103 = arith.constant dense<0.000000e+00> : vector<16x4xf32>
    %87 = tpu.matmul %86, %84, %cst_103 {dimension_numbers = #tpu.dot_dimension_numbers<[1], [0], [0], [1], [0, 0, 1, 1], [], []>} : vector<16x8xbf16>, vector<8x4xbf16>, vector<16x4xf32> -> vector<16x4xf32>
    %88 = arith.addf %82, %87 : vector<16x4xf32>
    %c7_104 = arith.constant 7 : index
    %c0_105 = arith.constant 0 : index
    %c0_106 = arith.constant 0 : index
    %c2_107 = arith.constant 2 : index
    %89 = vector.load %arg1[%c7_104, %c0_105, %c0_106, %c2_107] : memref<8x1x8x6xbf16, #tpu.memory_space<vmem>>, vector<1x1x8x4xbf16>
    %90 = vector.shape_cast %89 : vector<1x1x8x4xbf16> to vector<8x4xbf16>
    %c15 = arith.constant 15 : index
    %c0_108 = arith.constant 0 : index
    %c0_109 = arith.constant 0 : index
    %91 = vector.load %arg2[%c15, %c0_108, %c0_109] : memref<16x16x8xbf16, #tpu.memory_space<vmem>>, vector<1x16x8xbf16>
    %92 = vector.shape_cast %91 : vector<1x16x8xbf16> to vector<16x8xbf16>
    %cst_110 = arith.constant dense<0.000000e+00> : vector<16x4xf32>
    %93 = tpu.matmul %92, %90, %cst_110 {dimension_numbers = #tpu.dot_dimension_numbers<[1], [0], [0], [1], [0, 0, 1, 1], [], []>} : vector<16x8xbf16>, vector<8x4xbf16>, vector<16x4xf32> -> vector<16x4xf32>
    %94 = arith.addf %88, %93 : vector<16x4xf32>
    %c0_111 = arith.constant 0 : index
    %c0_112 = arith.constant 0 : index
    %95 = vector.load %arg3[%c0_111, %c0_112] : memref<16x1xf32, #tpu.memory_space<vmem>>, vector<16x1xf32>
    %96 = vector.broadcast %95 : vector<16x1xf32> to vector<16x4xf32>
    %97 = arith.addf %94, %96 : vector<16x4xf32>
    %cst_113 = arith.constant 0.000000e+00 : f32
    %98 = vector.broadcast %cst_113 : f32 to vector<16x4xf32>
    %99 = arith.cmpf oge, %97, %98 : vector<16x4xf32>
    %cst_114 = arith.constant 2.000000e-01 : f32
    %100 = vector.broadcast %cst_114 : f32 to vector<16x4xf32>
    %101 = arith.mulf %100, %97 : vector<16x4xf32>
    %102 = arith.select %99, %97, %101 : vector<16x4xi1>, vector<16x4xf32>
    %c0_115 = arith.constant 0 : index
    %c0_116 = arith.constant 0 : index
    %103 = vector.load %arg4[%c0_115, %c0_116] : memref<1x16xf32, #tpu.memory_space<vmem>>, vector<1x16xf32>
    %cst_117 = arith.constant dense<0.000000e+00> : vector<1x4xf32>
    %104 = tpu.matmul %103, %102, %cst_117 {dimension_numbers = #tpu.dot_dimension_numbers<[1], [0], [0], [1], [0, 0, 1, 1], [], []>} : vector<1x16xf32>, vector<16x4xf32>, vector<1x4xf32> -> vector<1x4xf32>
    %c0_118 = arith.constant 0 : index
    %c0_119 = arith.constant 0 : index
    %105 = vector.load %arg5[%c0_118, %c0_119] : memref<1x1xf32, #tpu.memory_space<vmem>>, vector<1x1xf32>
    %106 = vector.broadcast %105 : vector<1x1xf32> to vector<1x4xf32>
    %107 = arith.addf %104, %106 : vector<1x4xf32>
    %c0_120 = arith.constant 0 : index
    %c0_121 = arith.constant 0 : index
    %c0_122 = arith.constant 0 : index
    %108 = vector.load %arg6[%c0_120, %c0_121, %c0_122] : memref<1x1x4xf32, #tpu.memory_space<vmem>>, vector<1x1x4xf32>
    %109 = vector.shape_cast %108 : vector<1x1x4xf32> to vector<1x4xf32>
    %110 = vector.shape_cast %107 : vector<1x4xf32> to vector<1x1x4xf32>
    tpu.vector_store %arg6[%c0_120, %c0_121, %c0_122], %110 {strides = array<i32>} : memref<1x1x4xf32, #tpu.memory_space<vmem>>, vector<1x1x4xf32>,
    return
  }
  func.func @transform_0(%arg0: i32) -> (i32, i32, i32, i32) {
    %c0_i32 = arith.constant 0 : i32
    %c0_i32_0 = arith.constant 0 : i32
    %c0_i32_1 = arith.constant 0 : i32
    %c0_i32_2 = arith.constant 0 : i32
    return %c0_i32, %arg0, %c0_i32_0, %c0_i32_1 : i32, i32, i32, i32
  }
  func.func @transform_1(%arg0: i32) -> (i32, i32, i32) {
    %c0_i32 = arith.constant 0 : i32
    %c0_i32_0 = arith.constant 0 : i32
    %c0_i32_1 = arith.constant 0 : i32
    %c0_i32_2 = arith.constant 0 : i32
    return %c0_i32, %c0_i32_0, %c0_i32_1 : i32, i32, i32
  }
  func.func @transform_2(%arg0: i32) -> (i32, i32) {
    %c0_i32 = arith.constant 0 : i32
    %c0_i32_0 = arith.constant 0 : i32
    %c0_i32_1 = arith.constant 0 : i32
    return %c0_i32, %c0_i32_0 : i32, i32
  }
  func.func @transform_3(%arg0: i32) -> (i32, i32) {
    %c0_i32 = arith.constant 0 : i32
    %c0_i32_0 = arith.constant 0 : i32
    %c0_i32_1 = arith.constant 0 : i32
    return %c0_i32, %c0_i32_0 : i32, i32
  }
  func.func @transform_4(%arg0: i32) -> (i32, i32) {
    %c0_i32 = arith.constant 0 : i32
    %c0_i32_0 = arith.constant 0 : i32
    %c0_i32_1 = arith.constant 0 : i32
    return %c0_i32, %c0_i32_0 : i32, i32
  }
  func.func @transform_5(%arg0: i32) -> (i32, i32, i32) {
    %c0_i32 = arith.constant 0 : i32
    %c0_i32_0 = arith.constant 0 : i32
    %c0_i32_1 = arith.constant 0 : i32
    return %arg0, %c0_i32, %c0_i32_0 : i32, i32, i32
  }
}

</mosaic_0001>

<llo_original>
// kernel: ms_image_discriminator.8
$region0: #{ms_image_discriminator.8}
  #allocation0 [shape = 'u32[]', space=smem, size = 0x4, offset = 0x4, fixed_abs, tag = 'smem constant byte address 0x4 - core index']
  #allocation1 [shape = 'u32[72,128]{1,0:T(1,128)}', space=vmem, size = 0x9000, scoped, tag = 'internal scratch']
  %s0 = inlined_call_operand.vmem [shape: bf16[8,2,4,272], index: 0, kind: input, shape index: {}]
  %s1 = inlined_call_operand.vmem [shape: bf16[16,8,4], index: 1, kind: input, shape index: {}]
  %s2 = inlined_call_operand.vmem [shape: f32[8,1], index: 2, kind: input, shape index: {}]
  %s3 = inlined_call_operand.vmem [shape: bf16[2,8,256], index: 3, kind: output, shape index: {}]
  %s4 = sld [smem:[#allocation0]]
  $region86: #{ms_image_discriminator.8} parent=0
    _
  %s6 = ssub.s32 1, %s4
  %s7 = scalar_select 0, %s6, %s4
  $region1: #{ms_image_discriminator.8} parent=0
    #allocation2 [shape = 'u8[49152]{0}', space=vmem, size = 0xc000, scoped, tag = 'input window, operand 0']
    loop: start=0, step=1, limit=4
    $region2: #{ms_image_discriminator.8} parent=1 // loop_pre_header
      _
    $region3: #{ms_image_discriminator.8} parent=1 // loop_header
      %s9 = sphi 0, %s13
      %p10 = scmp.ge.s32.totalorder %s9, 4
      %s19 = sphi 0, %s21
      %s22 = sphi 0, %s19
      %s23 = sphi 0, %s22
      %s39 = sphi 0, %s23
      %s43 = sphi 0, %s43
      %s45 = sphi 0, %s43
      %s46 = sphi 0, %s45
      %s60 = sphi 0, %s46
      %s64 = sphi 0, %s64
      %s66 = sphi 0, %s64
      %s67 = sphi 0, %s66
      %s81 = sphi 0, %s67
      %s87 = sphi 0, %s89
      %s90 = sphi 0, %s87
      %s91 = sphi 0, %s90
      %s107 = sphi 0, %s91
    $region4: #{ms_image_discriminator.8} parent=1 // loop_header_branch
      %12 = sbr.rel (%p10) target = $region8
    $region5: #{ms_image_discriminator.8} parent=1 // loop_body
      %s14 = ssub.s32 %s9, 1
      %s15 = ssub.s32 %s9, 2
      %s16 = sadd.s32 %s9, 1
      %s17 = ssub.s32 %s9, %s16
      %p18 = scmp.eq.s32.totalorder %s17, 0
      %s20 = sadd.s32 %s19, 1
      %s21 = scalar_select %p18, %s19, %s20
      %p24 = pneg %p18
      %p25 = scmp.eq.s32.totalorder %s9, 1
      %p26 = por %p24, %p25
      %p27 = scmp.ne.s32.totalorder %s19, %s22
      %p28 = scmp.eq.s32.totalorder %s9, 0
      %p29 = por %p27, %p28
      %p30 = scmp.ne.s32.totalorder %s19, %s22
      %p31 = scmp.eq.s32.totalorder %s14, 1
      %p32 = por %p30, %p31
      %p33 = scmp.ne.s32.totalorder %s22, %s23
      %p34 = scmp.eq.s32.totalorder %s14, 0
      %p35 = por %p33, %p34
      %p36 = scmp.ne.s32.totalorder %s22, %s23
      %p37 = scmp.eq.s32.totalorder %s15, 1
      %p38 = por %p36, %p37
      %p40 = scmp.ne.s32.totalorder %s23, %s39
      %p41 = scmp.eq.s32.totalorder %s15, 0
      %p42 = por %p40, %p41
      %s44 = sadd.s32 %s43, 1
      %p47 = scmp.eq.s32.totalorder %s9, 1
      %p48 = scmp.ne.s32.totalorder %s43, %s45
      %p49 = scmp.eq.s32.totalorder %s9, 0
      %p50 = por %p48, %p49
      %p51 = scmp.ne.s32.totalorder %s43, %s45
      %p52 = scmp.eq.s32.totalorder %s14, 1
      %p53 = por %p51, %p52
      %p54 = scmp.ne.s32.totalorder %s45, %s46
      %p55 = scmp.eq.s32.totalorder %s14, 0
      %p56 = por %p54, %p55
      %p57 = scmp.ne.s32.totalorder %s45, %s46
      %p58 = scmp.eq.s32.totalorder %s15, 1
      %p59 = por %p57, %p58
      %p61 = scmp.ne.s32.totalorder %s46, %s60
      %p62 = scmp.eq.s32.totalorder %s15, 0
      %p63 = por %p61, %p62
      %s65 = sadd.s32 %s64, 1
      %p68 = scmp.eq.s32.totalorder %s9, 1
      %p69 = scmp.ne.s32.totalorder %s64, %s66
      %p70 = scmp.eq.s32.totalorder %s9, 0
      %p71 = por %p69, %p70
      %p72 = scmp.ne.s32.totalorder %s64, %s66
      %p73 = scmp.eq.s32.totalorder %s14, 1
      %p74 = por %p72, %p73
      %p75 = scmp.ne.s32.totalorder %s66, %s67
      %p76 = scmp.eq.s32.totalorder %s14, 0
      %p77 = por %p75, %p76
      %p78 = scmp.ne.s32.totalorder %s66, %s67
      %p79 = scmp.eq.s32.totalorder %s15, 1
      %p80 = por %p78, %p79
      %p82 = scmp.ne.s32.totalorder %s67, %s81
      %p83 = scmp.eq.s32.totalorder %s15, 0
      %p84 = por %p82, %p83
      %s85 = ssub.s32 %s9, %s16
      %p86 = scmp.eq.s32.totalorder %s85, 0
      %s88 = sadd.s32 %s87, 1
      %s89 = scalar_select %p86, %s87, %s88
      %p92 = pneg %p86
      %p93 = scmp.eq.s32.totalorder %s9, 1
      %p94 = por %p92, %p93
      %p95 = scmp.ne.s32.totalorder %s87, %s90
      %p96 = scmp.eq.s32.totalorder %s9, 0
      %p97 = por %p95, %p96
      %p98 = scmp.ne.s32.totalorder %s87, %s90
      %p99 = scmp.eq.s32.totalorder %s14, 1
      %p100 = por %p98, %p99
      %p101 = scmp.ne.s32.totalorder %s90, %s91
      %p102 = scmp.eq.s32.totalorder %s14, 0
      %p103 = por %p101, %p102
      %p104 = scmp.ne.s32.totalorder %s90, %s91
      %p105 = scmp.eq.s32.totalorder %s15, 1
      %p106 = por %p104, %p105
      %p108 = scmp.ne.s32.totalorder %s91, %s107
      %p109 = scmp.eq.s32.totalorder %s15, 0
      %p110 = por %p108, %p109
      %p111 = scmp.le.s32.totalorder 1, %s9
      %p112 = scmp.lt.s32.totalorder %s9, 3
      %p113 = pnand %p111, %p112
      %p114 = pneg %p113
      // Predicated region
      $region9: #{ms_image_discriminator.8} parent=5 // pred_check
        _
      $region10: #{ms_image_discriminator.8} parent=5 // pred_check_branch
        %116 = sbr.rel (%p113) target = $region12
      $region11: #{ms_image_discriminator.8} parent=5 // pred_region
        %s117 = ssub.s32 %s9, 1
        // Predicated region
        $region13: #{ms_image_discriminator.8} parent=11 // pred_check
          %p118 = pneg %p56
        $region14: #{ms_image_discriminator.8} parent=11 // pred_check_branch
          %120 = sbr.rel (%p118) target = $region16
        $region15: #{ms_image_discriminator.8} parent=11 // pred_region
          _
        $region16: #{ms_image_discriminator.8} parent=11 // pred_fallthru
          _
        // Predicated region
        $region17: #{ms_image_discriminator.8} parent=11 // pred_check
          %p121 = pneg %p77
        $region18: #{ms_image_discriminator.8} parent=11 // pred_check_branch
          %123 = sbr.rel (%p121) target = $region20
        $region19: #{ms_image_discriminator.8} parent=11 // pred_region
          _
        $region20: #{ms_image_discriminator.8} parent=11 // pred_fallthru
          _
      $region12: #{ms_image_discriminator.8} parent=5 // pred_fallthru
        _
      %p124 = scmp.lt.s32.totalorder %s9, 2
      // Predicated region
      $region21: #{ms_image_discriminator.8} parent=5 // pred_check
        %p125 = pneg %p124
      $region22: #{ms_image_discriminator.8} parent=5 // pred_check_branch
        %127 = sbr.rel (%p125) target = $region24
      $region23: #{ms_image_discriminator.8} parent=5 // pred_region
        // Predicated region
        $region25: #{ms_image_discriminator.8} parent=23 // pred_check
          %p128 = pneg %p29
        $region26: #{ms_image_discriminator.8} parent=23 // pred_check_branch
          %130 = sbr.rel (%p128) target = $region28
        $region27: #{ms_image_discriminator.8} parent=23 // pred_region
          %s131 = sand.u32 %s19, 1
          %s132 = sand.u32 %s19, 1
          %s133 = smul.addr %s132, 48
          %s134 = scalar_lea.vmem [#allocation2], %s133
          %s135 = smul.addr %s9, 3
          %s136 = smul.addr %s135, 2
          %s137 = scalar_lea.vmem %s0, %s136
          // Predicated region
          $region29: #{ms_image_discriminator.8} parent=27 // pred_check
            _
          $region30: #{ms_image_discriminator.8} parent=27 // pred_check_branch
            %139 = sbr.rel (0) target = $region32
          $region31: #{ms_image_discriminator.8} parent=27 // pred_region
            // Predicated region
            $region33: #{ms_image_discriminator.8} parent=31 // pred_check
              _
            $region34: #{ms_image_discriminator.8} parent=31 // pred_check_branch
              %141 = sbr.rel target = $region36
            $region35: #{ms_image_discriminator.8} parent=31 // pred_region
              // Predicated region
              $region48: #{ms_image_discriminator.8} parent=35 // pred_check
                _
              $region49: #{ms_image_discriminator.8} parent=35 // pred_check_branch
                %171 = sbr.rel (0) target = $region51
              $region50: #{ms_image_discriminator.8} parent=35 // pred_region
                loop: start=0, step=1, limit=1
                $region52: #{ms_image_discriminator.8} parent=50 // loop_pre_header
                  _
                $region53: #{ms_image_discriminator.8} parent=50 // loop_header
                  %s173 = sphi 0, %s177
                  %p174 = scmp.ge.s32.totalorder %s173, 1
                  %s178 = sphi %s137, %s137
                  %s179 = sphi %s134, %s134
                $region54: #{ms_image_discriminator.8} parent=50 // loop_header_branch
                  %176 = sbr.rel (%p174) target = $region58
                $region55: #{ms_image_discriminator.8} parent=50 // loop_body
                  _
                $region56: #{ms_image_discriminator.8} parent=50 // loop_footer
                  %s177 = sadd.s32 1, %s173
                $region57: #{ms_image_discriminator.8} parent=50 // loop_footer_branch
                  %172 = sbr.rel target = $region53
                $region58: #{ms_image_discriminator.8} parent=50 // loop_exit
                  _
                %s181 = ssub.s32 64, 1
                loop: start=0, step=1, limit=1
                $region59: #{ms_image_discriminator.8} parent=50 // loop_pre_header
                  _
                $region60: #{ms_image_discriminator.8} parent=50 // loop_header
                  %s183 = sphi 0, %s187
                  %p184 = scmp.ge.s32.totalorder %s183, 1
                  %s188 = sphi %s137, %s137
                  %s189 = sphi %s134, %s134
                $region61: #{ms_image_discriminator.8} parent=50 // loop_header_branch
                  %186 = sbr.rel (%p184) target = $region65
                $region62: #{ms_image_discriminator.8} parent=50 // loop_body
                  %v190 = vld [vmem:[%s188] sm:%s181]
                  %191 = vst [vmem:[%s189] sm:%s181] %v190
                  %v192 = vld [vmem:[%s188 + $0xc] sm:%s181]
                  %193 = vst [vmem:[%s189 + $0x6] sm:%s181] %v192
                  %v194 = vld [vmem:[%s188 + $0x18] sm:%s181]
                  %195 = vst [vmem:[%s189 + $0xc] sm:%s181] %v194
                  %v196 = vld [vmem:[%s188 + $0x24] sm:%s181]
                  %197 = vst [vmem:[%s189 + $0x12] sm:%s181] %v196
                  %v198 = vld [vmem:[%s188 + $0x30] sm:%s181]
                  %199 = vst [vmem:[%s189 + $0x18] sm:%s181] %v198
                  %v200 = vld [vmem:[%s188 + $0x3c] sm:%s181]
                  %201 = vst [vmem:[%s189 + $0x1e] sm:%s181] %v200
                  %v202 = vld [vmem:[%s188 + $0x48] sm:%s181]
                  %203 = vst [vmem:[%s189 + $0x24] sm:%s181] %v202
                  %v204 = vld [vmem:[%s188 + $0x54] sm:%s181]
                  %205 = vst [vmem:[%s189 + $0x2a] sm:%s181] %v204
                $region63: #{ms_image_discriminator.8} parent=50 // loop_footer
                  %s187 = sadd.s32 1, %s183
                $region64: #{ms_image_discriminator.8} parent=50 // loop_footer_branch
                  %182 = sbr.rel target = $region60
                $region65: #{ms_image_discriminator.8} parent=50 // loop_exit
                  _
              $region51: #{ms_image_discriminator.8} parent=35 // pred_fallthru
                _
            $region36: #{ms_image_discriminator.8} parent=31 // pred_fallthru
              _
            // Predicated region
            $region37: #{ms_image_discriminator.8} parent=31 // pred_check
              _
            $region38: #{ms_image_discriminator.8} parent=31 // pred_check_branch
              %143 = sbr.rel (0) target = $region40
            $region39: #{ms_image_discriminator.8} parent=31 // pred_region
              %s145 = ssub.s32 64, 1
              loop: start=0, step=1, limit=1
              $region41: #{ms_image_discriminator.8} parent=39 // loop_pre_header
                _
              $region42: #{ms_image_discriminator.8} parent=39 // loop_header
                %s147 = sphi 0, %s151
                %p148 = scmp.ge.s32.totalorder %s147, 1
                %s152 = sphi %s137, %s137
                %s153 = sphi %s134, %s134
              $region43: #{ms_image_discriminator.8} parent=39 // loop_header_branch
                %150 = sbr.rel (%p148) target = $region47
              $region44: #{ms_image_discriminator.8} parent=39 // loop_body
                %v154 = vld [vmem:[%s152] sm:%s145]
                %155 = vst [vmem:[%s153] sm:%s145] %v154
                %v156 = vld [vmem:[%s152 + $0xc] sm:%s145]
                %157 = vst [vmem:[%s153 + $0x6] sm:%s145] %v156
                %v158 = vld [vmem:[%s152 + $0x18] sm:%s145]
                %159 = vst [vmem:[%s153 + $0xc] sm:%s145] %v158
                %v160 = vld [vmem:[%s152 + $0x24] sm:%s145]
                %161 = vst [vmem:[%s153 + $0x12] sm:%s145] %v160
                %v162 = vld [vmem:[%s152 + $0x30] sm:%s145]
                %163 = vst [vmem:[%s153 + $0x18] sm:%s145] %v162
                %v164 = vld [vmem:[%s152 + $0x3c] sm:%s145]
                %165 = vst [vmem:[%s153 + $0x1e] sm:%s145] %v164
                %v166 = vld [vmem:[%s152 + $0x48] sm:%s145]
                %167 = vst [vmem:[%s153 + $0x24] sm:%s145] %v166
                %v168 = vld [vmem:[%s152 + $0x54] sm:%s145]
                %169 = vst [vmem:[%s153 + $0x2a] sm:%s145] %v168
              $region45: #{ms_image_discriminator.8} parent=39 // loop_footer
                %s151 = sadd.s32 1, %s147
              $region46: #{ms_image_discriminator.8} parent=39 // loop_footer_branch
                %146 = sbr.rel target = $region42
              $region47: #{ms_image_discriminator.8} parent=39 // loop_exit
                _
            $region40: #{ms_image_discriminator.8} parent=31 // pred_fallthru
              _
          $region32: #{ms_image_discriminator.8} parent=27 // pred_fallthru
            _
          %206 = vnop
        $region28: #{ms_image_discriminator.8} parent=23 // pred_fallthru
          _
      $region24: #{ms_image_discriminator.8} parent=5 // pred_fallthru
        _
      %p207 = scmp.le.s32.totalorder 1, %s9
      %p208 = scmp.lt.s32.totalorder %s9, 3
      %p209 = pnand %p207, %p208
      %p210 = pneg %p209
      // Predicated region
      $region66: #{ms_image_discriminator.8} parent=5 // pred_check
        _
      $region67: #{ms_image_discriminator.8} parent=5 // pred_check_branch
        %212 = sbr.rel (%p209) target = $region69
      $region68: #{ms_image_discriminator.8} parent=5 // pred_region
        %s213 = ssub.s32 %s9, 1
        %s214 = sand.u32 %s22, 1
        %s215 = sand.u32 %s22, 1
        %s216 = smul.addr %s215, 48
        %s217 = scalar_lea.vmem [#allocation2], %s216
        // Predicated region
        $region70: #{ms_image_discriminator.8} parent=68 // pred_check
          %p218 = pneg %p35
        $region71: #{ms_image_discriminator.8} parent=68 // pred_check_branch
          %220 = sbr.rel (%p218) target = $region73
        $region72: #{ms_image_discriminator.8} parent=68 // pred_region
          _
        $region73: #{ms_image_discriminator.8} parent=68 // pred_fallthru
          _
        %s221 = sand.u32 %s22, 1
        %s222 = sand.u32 %s22, 1
        %s223 = smul.addr %s222, 48
        %s224 = scalar_lea.vmem [#allocation2], %s223
        %p225 = pneg %p35
        %p226 = pneg %p32
        %p227 = pneg %p56
        %p228 = pneg %p53
        %p229 = pneg %p77
        %p230 = pneg %p74
        %p231 = pneg %p103
        %p232 = pneg %p100
        %p233 = scmp.lt.s32.totalorder %s14, 1
        %s234 = scalar_select %p233, %s14, 1
        %s235 = smul.addr %s234, 2
        %s236 = smul.addr %s235, 4
        %s237 = scalar_lea.vmem %s3, %s236
        %p238 = scmp.lt.s32.totalorder %s14, 1
        %s239 = scalar_select %p238, %s14, 1
        %s240 = smul.addr %s239, 2
        %s241 = smul.addr %s240, 4
        %s242 = scalar_lea.vmem %s3, %s241
        %v244 = vld [vmem:[%s217] sm:$0xf]
        %v245 = vld [vmem:[%s1] sm:$0xf]
        %v246 = vld [vmem:[%s217] sm:$0x3f]
        %s247 = scalar_lea.vmem %s1, 4
        %v248 = vld [vmem:[%s247] sm:$0xf]
        %250 = vst [vmem:[#allocation1] ss:$4 sm:$0xff] %v246
        %v251 = vld.sshfl [vmem:[#allocation1] sm:$0xff pattern:$0x73625140]
        %v253 = vld.sshfl [vmem:[#allocation1 + $0x8] sm:$0xff pattern:$0x73625140]
        %v255 = vld.sshfl [vmem:[#allocation1 + $0x10] sm:$0xff pattern:$0x73625140]
        %257 = vrot.lane.b32.xlu0 %v251, 112
        %v258 = vpop.permute.xlu0 %257
        %259 = vrot.lane.b32.xlu0 %v253, 112
        %v260 = vpop.permute.xlu0 %259
        %261 = vrot.lane.b32.xlu0 %v255, 112
        %v262 = vpop.permute.xlu0 %261
        %vm263 = vcmask 916480
        %v264 = vsel %vm263, %v258, %v260
        %v265 = vsel %vm263, %v260, %v262
        %vm266 = vcmask 31744
        %v268 = vsel %vm266, %v248, 0
        %vm270 = vcmask 1041408
        %v272 = vsel %vm270, %v264, 0
        %v275 = vsel %vm270, %v265, 0
        %277 = vmatpush.bf16.msra.mxu0 0
        %278 = vmatpush.bf16.msra.mxu0 0
        %279 = vmatpush.bf16.msra.mxu0 0
        %280 = vmatpush.bf16.msra.mxu0 0
        %281 = vmatpush.bf16.msra.mxu0 0
        %282 = vmatpush.bf16.msra.mxu0 0
        %283 = vmatpush.bf16.msra.mxu0 0
        %284 = vmatpush.bf16.msra.mxu0 %v272
        %285 = vmatmul.bf16.gmra.mxu0 %v268
        %v286 = vpop.f32.mrf.mxu0
        %v287 = vadd.f32 0.0, %v286
        %v288 = vpop.f32.mrf.mxu0
        %289 = vdwg.mxu0
        %290 = vmatpush.bf16.msra.mxu0 0
        %291 = vmatpush.bf16.msra.mxu0 0
        %292 = vmatpush.bf16.msra.mxu0 0
        %293 = vmatpush.bf16.msra.mxu0 0
        %294 = vmatpush.bf16.msra.mxu0 0
        %295 = vmatpush.bf16.msra.mxu0 0
        %296 = vmatpush.bf16.msra.mxu0 0
        %297 = vmatpush.bf16.msra.mxu0 %v275
        %298 = vmatmul.bf16.gmra.mxu0 %v268
        %v299 = vpop.f32.mrf.mxu0
        %v300 = vadd.f32 0.0, %v299
        %v301 = vpop.f32.mrf.mxu0
        %302 = vdwg.mxu0
        %304 = vst [vmem:[#allocation1] ss:$4 sm:$0xff] %v244
        %v305 = vld.sshfl [vmem:[#allocation1] sm:$0xff pattern:$0x73625140]
        %v306 = vld.sshfl [vmem:[#allocation1 + $0x8] sm:$0xff pattern:$0x73625140]
        %v308 = vsel %vm266, %v245, 0
        %v310 = vsel %vm270, %v305, 0
        %v312 = vsel %vm270, %v306, 0
        %314 = vmatpush.bf16.msra.mxu0 0
        %315 = vmatpush.bf16.msra.mxu0 0
        %316 = vmatpush.bf16.msra.mxu0 0
        %317 = vmatpush.bf16.msra.mxu0 0
        %318 = vmatpush.bf16.msra.mxu0 0
        %319 = vmatpush.bf16.msra.mxu0 0
        %320 = vmatpush.bf16.msra.mxu0 0
        %321 = vmatpush.bf16.msra.mxu0 %v310
        %322 = vmatmul.bf16.gmra.mxu0 %v308
        %v323 = vpop.f32.mrf.mxu0
        %v324 = vadd.f32 %v287, %v323
        %v325 = vpop.f32.mrf.mxu0
        %326 = vdwg.mxu0
        %327 = vmatpush.bf16.msra.mxu0 0
        %328 = vmatpush.bf16.msra.mxu0 0
        %329 = vmatpush.bf16.msra.mxu0 0
        %330 = vmatpush.bf16.msra.mxu0 0
        %331 = vmatpush.bf16.msra.mxu0 0
        %332 = vmatpush.bf16.msra.mxu0 0
        %333 = vmatpush.bf16.msra.mxu0 0
        %334 = vmatpush.bf16.msra.mxu0 %v312
        %335 = vmatmul.bf16.gmra.mxu0 %v308
        %v336 = vpop.f32.mrf.mxu0
        %v337 = vadd.f32 %v300, %v336
        %v338 = vpop.f32.mrf.mxu0
        %339 = vdwg.mxu0
        %s340 = scalar_lea.vmem %s217, 6 [#allocation2]
        %v341 = vld [vmem:[%s340] sm:$0xf]
        %s342 = scalar_lea.vmem %s1, 8
        %v343 = vld [vmem:[%s342] sm:$0xf]
        %345 = vst [vmem:[#allocation1] ss:$4 sm:$0xff] %v341
        %v346 = vld.sshfl [vmem:[#allocation1] sm:$0xff pattern:$0x73625140]
        %v347 = vld.sshfl [vmem:[#allocation1 + $0x8] sm:$0xff pattern:$0x73625140]
        %v349 = vsel %vm266, %v343, 0
        %v351 = vsel %vm270, %v346, 0
        %v353 = vsel %vm270, %v347, 0
        %355 = vmatpush.bf16.msra.mxu0 0
        %356 = vmatpush.bf16.msra.mxu0 0
        %357 = vmatpush.bf16.msra.mxu0 0
        %358 = vmatpush.bf16.msra.mxu0 0
        %359 = vmatpush.bf16.msra.mxu0 0
        %360 = vmatpush.bf16.msra.mxu0 0
        %361 = vmatpush.bf16.msra.mxu0 0
        %362 = vmatpush.bf16.msra.mxu0 %v351
        %363 = vmatmul.bf16.gmra.mxu0 %v349
        %v364 = vpop.f32.mrf.mxu0
        %v365 = vadd.f32 0.0, %v364
        %v366 = vpop.f32.mrf.mxu0
        %367 = vdwg.mxu0
        %368 = vmatpush.bf16.msra.mxu0 0
        %369 = vmatpush.bf16.msra.mxu0 0
        %370 = vmatpush.bf16.msra.mxu0 0
        %371 = vmatpush.bf16.msra.mxu0 0
        %372 = vmatpush.bf16.msra.mxu0 0
        %373 = vmatpush.bf16.msra.mxu0 0
        %374 = vmatpush.bf16.msra.mxu0 0
        %375 = vmatpush.bf16.msra.mxu0 %v353
        %376 = vmatmul.bf16.gmra.mxu0 %v349
        %v377 = vpop.f32.mrf.mxu0
        %v378 = vadd.f32 0.0, %v377
        %v379 = vpop.f32.mrf.mxu0
        %380 = vdwg.mxu0
        %v381 = vadd.f32 %v324, %v365
        %v382 = vadd.f32 %v337, %v378
        %v383 = vld [vmem:[%s340] sm:$0x3f]
        %s384 = scalar_lea.vmem %s1, 12
        %v385 = vld [vmem:[%s384] sm:$0xf]
        %387 = vst [vmem:[#allocation1] ss:$4 sm:$0xff] %v383
        %v388 = vld.sshfl [vmem:[#allocation1] sm:$0xff pattern:$0x73625140]
        %v390 = vld.sshfl [vmem:[#allocation1 + $0x8] sm:$0xff pattern:$0x73625140]
        %v392 = vld.sshfl [vmem:[#allocation1 + $0x10] sm:$0xff pattern:$0x73625140]
        %394 = vrot.lane.b32.xlu0 %v388, 112
        %v395 = vpop.permute.xlu0 %394
        %396 = vrot.lane.b32.xlu0 %v390, 112
        %v397 = vpop.permute.xlu0 %396
        %398 = vrot.lane.b32.xlu0 %v392, 112
        %v399 = vpop.permute.xlu0 %398
        %v400 = vsel %vm263, %v395, %v397
        %v401 = vsel %vm263, %v397, %v399
        %v403 = vsel %vm266, %v385, 0
        %v406 = vsel %vm270, %v400, 0
        %v409 = vsel %vm270, %v401, 0
        %411 = vmatpush.bf16.msra.mxu0 0
        %412 = vmatpush.bf16.msra.mxu0 0
        %413 = vmatpush.bf16.msra.mxu0 0
        %414 = vmatpush.bf16.msra.mxu0 0
        %415 = vmatpush.bf16.msra.mxu0 0
        %416 = vmatpush.bf16.msra.mxu0 0
        %417 = vmatpush.bf16.msra.mxu0 0
        %418 = vmatpush.bf16.msra.mxu0 %v406
        %419 = vmatmul.bf16.gmra.mxu0 %v403
        %v420 = vpop.f32.mrf.mxu0
        %v421 = vadd.f32 0.0, %v420
        %v422 = vpop.f32.mrf.mxu0
        %423 = vdwg.mxu0
        %424 = vmatpush.bf16.msra.mxu0 0
        %425 = vmatpush.bf16.msra.mxu0 0
        %426 = vmatpush.bf16.msra.mxu0 0
        %427 = vmatpush.bf16.msra.mxu0 0
        %428 = vmatpush.bf16.msra.mxu0 0
        %429 = vmatpush.bf16.msra.mxu0 0
        %430 = vmatpush.bf16.msra.mxu0 0
        %431 = vmatpush.bf16.msra.mxu0 %v409
        %432 = vmatmul.bf16.gmra.mxu0 %v403
        %v433 = vpop.f32.mrf.mxu0
        %v434 = vadd.f32 0.0, %v433
        %v435 = vpop.f32.mrf.mxu0
        %436 = vdwg.mxu0
        %v437 = vadd.f32 %v381, %v421
        %v438 = vadd.f32 %v382, %v434
        %s439 = scalar_lea.vmem %s217, 12 [#allocation2]
        %v440 = vld [vmem:[%s439] sm:$0xf]
        %s441 = scalar_lea.vmem %s1, 16
        %v442 = vld [vmem:[%s441] sm:$0xf]
        %444 = vst [vmem:[#allocation1] ss:$4 sm:$0xff] %v440
        %v445 = vld.sshfl [vmem:[#allocation1] sm:$0xff pattern:$0x73625140]
        %v446 = vld.sshfl [vmem:[#allocation1 + $0x8] sm:$0xff pattern:$0x73625140]
        %v448 = vsel %vm266, %v442, 0
        %v450 = vsel %vm270, %v445, 0
        %v452 = vsel %vm270, %v446, 0
        %454 = vmatpush.bf16.msra.mxu0 0
        %455 = vmatpush.bf16.msra.mxu0 0
        %456 = vmatpush.bf16.msra.mxu0 0
        %457 = vmatpush.bf16.msra.mxu0 0
        %458 = vmatpush.bf16.msra.mxu0 0
        %459 = vmatpush.bf16.msra.mxu0 0
        %460 = vmatpush.bf16.msra.mxu0 0
        %461 = vmatpush.bf16.msra.mxu0 %v450
        %462 = vmatmul.bf16.gmra.mxu0 %v448
        %v463 = vpop.f32.mrf.mxu0
        %v464 = vadd.f32 0.0, %v463
        %v465 = vpop.f32.mrf.mxu0
        %466 = vdwg.mxu0
        %467 = vmatpush.bf16.msra.mxu0 0
        %468 = vmatpush.bf16.msra.mxu0 0
        %469 = vmatpush.bf16.msra.mxu0 0
        %470 = vmatpush.bf16.msra.mxu0 0
        %471 = vmatpush.bf16.msra.mxu0 0
        %472 = vmatpush.bf16.msra.mxu0 0
        %473 = vmatpush.bf16.msra.mxu0 0
        %474 = vmatpush.bf16.msra.mxu0 %v452
        %475 = vmatmul.bf16.gmra.mxu0 %v448
        %v476 = vpop.f32.mrf.mxu0
        %v477 = vadd.f32 0.0, %v476
        %v478 = vpop.f32.mrf.mxu0
        %479 = vdwg.mxu0
        %v480 = vadd.f32 %v437, %v464
        %v481 = vadd.f32 %v438, %v477
        %v482 = vld [vmem:[%s439] sm:$0x3f]
        %s483 = scalar_lea.vmem %s1, 20
        %v484 = vld [vmem:[%s483] sm:$0xf]
        %486 = vst [vmem:[#allocation1] ss:$4 sm:$0xff] %v482
        %v487 = vld.sshfl [vmem:[#allocation1] sm:$0xff pattern:$0x73625140]
        %v489 = vld.sshfl [vmem:[#allocation1 + $0x8] sm:$0xff pattern:$0x73625140]
        %v491 = vld.sshfl [vmem:[#allocation1 + $0x10] sm:$0xff pattern:$0x73625140]
        %493 = vrot.lane.b32.xlu0 %v487, 112
        %v494 = vpop.permute.xlu0 %493
        %495 = vrot.lane.b32.xlu0 %v489, 112
        %v496 = vpop.permute.xlu0 %495
        %497 = vrot.lane.b32.xlu0 %v491, 112
        %v498 = vpop.permute.xlu0 %497
        %v499 = vsel %vm263, %v494, %v496
        %v500 = vsel %vm263, %v496, %v498
        %v502 = vsel %vm266, %v484, 0
        %v505 = vsel %vm270, %v499, 0
        %v508 = vsel %vm270, %v500, 0
        %510 = vmatpush.bf16.msra.mxu0 0
        %511 = vmatpush.bf16.msra.mxu0 0
        %512 = vmatpush.bf16.msra.mxu0 0
        %513 = vmatpush.bf16.msra.mxu0 0
        %514 = vmatpush.bf16.msra.mxu0 0
        %515 = vmatpush.bf16.msra.mxu0 0
        %516 = vmatpush.bf16.msra.mxu0 0
        %517 = vmatpush.bf16.msra.mxu0 %v505
        %518 = vmatmul.bf16.gmra.mxu0 %v502
        %v519 = vpop.f32.mrf.mxu0
        %v520 = vadd.f32 0.0, %v519
        %v521 = vpop.f32.mrf.mxu0
        %522 = vdwg.mxu0
        %523 = vmatpush.bf16.msra.mxu0 0
        %524 = vmatpush.bf16.msra.mxu0 0
        %525 = vmatpush.bf16.msra.mxu0 0
        %526 = vmatpush.bf16.msra.mxu0 0
        %527 = vmatpush.bf16.msra.mxu0 0
        %528 = vmatpush.bf16.msra.mxu0 0
        %529 = vmatpush.bf16.msra.mxu0 0
        %530 = vmatpush.bf16.msra.mxu0 %v508
        %531 = vmatmul.bf16.gmra.mxu0 %v502
        %v532 = vpop.f32.mrf.mxu0
        %v533 = vadd.f32 0.0, %v532
        %v534 = vpop.f32.mrf.mxu0
        %535 = vdwg.mxu0
        %v536 = vadd.f32 %v480, %v520
        %v537 = vadd.f32 %v481, %v533
        %s538 = scalar_lea.vmem %s217, 18 [#allocation2]
        %v539 = vld [vmem:[%s538] sm:$0xf]
        %s540 = scalar_lea.vmem %s1, 24
        %v541 = vld [vmem:[%s540] sm:$0xf]
        %543 = vst [vmem:[#allocation1] ss:$4 sm:$0xff] %v539
        %v544 = vld.sshfl [vmem:[#allocation1] sm:$0xff pattern:$0x73625140]
        %v545 = vld.sshfl [vmem:[#allocation1 + $0x8] sm:$0xff pattern:$0x73625140]
        %v547 = vsel %vm266, %v541, 0
        %v549 = vsel %vm270, %v544, 0
        %v551 = vsel %vm270, %v545, 0
        %553 = vmatpush.bf16.msra.mxu0 0
        %554 = vmatpush.bf16.msra.mxu0 0
        %555 = vmatpush.bf16.msra.mxu0 0
        %556 = vmatpush.bf16.msra.mxu0 0
        %557 = vmatpush.bf16.msra.mxu0 0
        %558 = vmatpush.bf16.msra.mxu0 0
        %559 = vmatpush.bf16.msra.mxu0 0
        %560 = vmatpush.bf16.msra.mxu0 %v549
        %561 = vmatmul.bf16.gmra.mxu0 %v547
        %v562 = vpop.f32.mrf.mxu0
        %v563 = vadd.f32 0.0, %v562
        %v564 = vpop.f32.mrf.mxu0
        %565 = vdwg.mxu0
        %566 = vmatpush.bf16.msra.mxu0 0
        %567 = vmatpush.bf16.msra.mxu0 0
        %568 = vmatpush.bf16.msra.mxu0 0
        %569 = vmatpush.bf16.msra.mxu0 0
        %570 = vmatpush.bf16.msra.mxu0 0
        %571 = vmatpush.bf16.msra.mxu0 0
        %572 = vmatpush.bf16.msra.mxu0 0
        %573 = vmatpush.bf16.msra.mxu0 %v551
        %574 = vmatmul.bf16.gmra.mxu0 %v547
        %v575 = vpop.f32.mrf.mxu0
        %v576 = vadd.f32 0.0, %v575
        %v577 = vpop.f32.mrf.mxu0
        %578 = vdwg.mxu0
        %v579 = vadd.f32 %v536, %v563
        %v580 = vadd.f32 %v537, %v576
        %v581 = vld [vmem:[%s538] sm:$0x3f]
        %s582 = scalar_lea.vmem %s1, 28
        %v583 = vld [vmem:[%s582] sm:$0xf]
        %585 = vst [vmem:[#allocation1] ss:$4 sm:$0xff] %v581
        %v586 = vld.sshfl [vmem:[#allocation1] sm:$0xff pattern:$0x73625140]
        %v588 = vld.sshfl [vmem:[#allocation1 + $0x8] sm:$0xff pattern:$0x73625140]
        %v590 = vld.sshfl [vmem:[#allocation1 + $0x10] sm:$0xff pattern:$0x73625140]
        %592 = vrot.lane.b32.xlu0 %v586, 112
        %v593 = vpop.permute.xlu0 %592
        %594 = vrot.lane.b32.xlu0 %v588, 112
        %v595 = vpop.permute.xlu0 %594
        %596 = vrot.lane.b32.xlu0 %v590, 112
        %v597 = vpop.permute.xlu0 %596
        %v598 = vsel %vm263, %v593, %v595
        %v599 = vsel %vm263, %v595, %v597
        %v601 = vsel %vm266, %v583, 0
        %v604 = vsel %vm270, %v598, 0
        %v607 = vsel %vm270, %v599, 0
        %609 = vmatpush.bf16.msra.mxu0 0
        %610 = vmatpush.bf16.msra.mxu0 0
        %611 = vmatpush.bf16.msra.mxu0 0
        %612 = vmatpush.bf16.msra.mxu0 0
        %613 = vmatpush.bf16.msra.mxu0 0
        %614 = vmatpush.bf16.msra.mxu0 0
        %615 = vmatpush.bf16.msra.mxu0 0
        %616 = vmatpush.bf16.msra.mxu0 %v604
        %617 = vmatmul.bf16.gmra.mxu0 %v601
        %v618 = vpop.f32.mrf.mxu0
        %v619 = vadd.f32 0.0, %v618
        %v620 = vpop.f32.mrf.mxu0
        %621 = vdwg.mxu0
        %622 = vmatpush.bf16.msra.mxu0 0
        %623 = vmatpush.bf16.msra.mxu0 0
        %624 = vmatpush.bf16.msra.mxu0 0
        %625 = vmatpush.bf16.msra.mxu0 0
        %626 = vmatpush.bf16.msra.mxu0 0
        %627 = vmatpush.bf16.msra.mxu0 0
        %628 = vmatpush.bf16.msra.mxu0 0
        %629 = vmatpush.bf16.msra.mxu0 %v607
        %630 = vmatmul.bf16.gmra.mxu0 %v601
        %v631 = vpop.f32.mrf.mxu0
        %v632 = vadd.f32 0.0, %v631
        %v633 = vpop.f32.mrf.mxu0
        %634 = vdwg.mxu0
        %v635 = vadd.f32 %v579, %v619
        %v636 = vadd.f32 %v580, %v632
        %s637 = scalar_lea.vmem %s217, 24 [#allocation2]
        %v638 = vld [vmem:[%s637] sm:$0xf]
        %s639 = scalar_lea.vmem %s1, 32
        %v640 = vld [vmem:[%s639] sm:$0xf]
        %642 = vst [vmem:[#allocation1] ss:$4 sm:$0xff] %v638
        %v643 = vld.sshfl [vmem:[#allocation1] sm:$0xff pattern:$0x73625140]
        %v644 = vld.sshfl [vmem:[#allocation1 + $0x8] sm:$0xff pattern:$0x73625140]
        %v646 = vsel %vm266, %v640, 0
        %v648 = vsel %vm270, %v643, 0
        %v650 = vsel %vm270, %v644, 0
        %652 = vmatpush.bf16.msra.mxu0 0
        %653 = vmatpush.bf16.msra.mxu0 0
        %654 = vmatpush.bf16.msra.mxu0 0
        %655 = vmatpush.bf16.msra.mxu0 0
        %656 = vmatpush.bf16.msra.mxu0 0
        %657 = vmatpush.bf16.msra.mxu0 0
        %658 = vmatpush.bf16.msra.mxu0 0
        %659 = vmatpush.bf16.msra.mxu0 %v648
        %660 = vmatmul.bf16.gmra.mxu0 %v646
        %v661 = vpop.f32.mrf.mxu0
        %v662 = vadd.f32 0.0, %v661
        %v663 = vpop.f32.mrf.mxu0
        %664 = vdwg.mxu0
        %665 = vmatpush.bf16.msra.mxu0 0
        %666 = vmatpush.bf16.msra.mxu0 0
        %667 = vmatpush.bf16.msra.mxu0 0
        %668 = vmatpush.bf16.msra.mxu0 0
        %669 = vmatpush.bf16.msra.mxu0 0
        %670 = vmatpush.bf16.msra.mxu0 0
        %671 = vmatpush.bf16.msra.mxu0 0
        %672 = vmatpush.bf16.msra.mxu0 %v650
        %673 = vmatmul.bf16.gmra.mxu0 %v646
        %v674 = vpop.f32.mrf.mxu0
        %v675 = vadd.f32 0.0, %v674
        %v676 = vpop.f32.mrf.mxu0
        %677 = vdwg.mxu0
        %v678 = vadd.f32 %v635, %v662
        %v679 = vadd.f32 %v636, %v675
        %v680 = vld [vmem:[%s637] sm:$0x3f]
        %s681 = scalar_lea.vmem %s1, 36
        %v682 = vld [vmem:[%s681] sm:$0xf]
        %684 = vst [vmem:[#allocation1] ss:$4 sm:$0xff] %v680
        %v685 = vld.sshfl [vmem:[#allocation1] sm:$0xff pattern:$0x73625140]
        %v687 = vld.sshfl [vmem:[#allocation1 + $0x8] sm:$0xff pattern:$0x73625140]
        %v689 = vld.sshfl [vmem:[#allocation1 + $0x10] sm:$0xff pattern:$0x73625140]
        %691 = vrot.lane.b32.xlu0 %v685, 112
        %v692 = vpop.permute.xlu0 %691
        %693 = vrot.lane.b32.xlu0 %v687, 112
        %v694 = vpop.permute.xlu0 %693
        %695 = vrot.lane.b32.xlu0 %v689, 112
        %v696 = vpop.permute.xlu0 %695
        %v697 = vsel %vm263, %v692, %v694
        %v698 = vsel %vm263, %v694, %v696
        %v700 = vsel %vm266, %v682, 0
        %v703 = vsel %vm270, %v697, 0
        %v706 = vsel %vm270, %v698, 0
        %708 = vmatpush.bf16.msra.mxu0 0
        %709 = vmatpush.bf16.msra.mxu0 0
        %710 = vmatpush.bf16.msra.mxu0 0
        %711 = vmatpush.bf16.msra.mxu0 0
        %712 = vmatpush.bf16.msra.mxu0 0
        %713 = vmatpush.bf16.msra.mxu0 0
        %714 = vmatpush.bf16.msra.mxu0 0
        %715 = vmatpush.bf16.msra.mxu0 %v703
        %716 = vmatmul.bf16.gmra.mxu0 %v700
        %v717 = vpop.f32.mrf.mxu0
        %v718 = vadd.f32 0.0, %v717
        %v719 = vpop.f32.mrf.mxu0
        %720 = vdwg.mxu0
        %721 = vmatpush.bf16.msra.mxu0 0
        %722 = vmatpush.bf16.msra.mxu0 0
        %723 = vmatpush.bf16.msra.mxu0 0
        %724 = vmatpush.bf16.msra.mxu0 0
        %725 = vmatpush.bf16.msra.mxu0 0
        %726 = vmatpush.bf16.msra.mxu0 0
        %727 = vmatpush.bf16.msra.mxu0 0
        %728 = vmatpush.bf16.msra.mxu0 %v706
        %729 = vmatmul.bf16.gmra.mxu0 %v700
        %v730 = vpop.f32.mrf.mxu0
        %v731 = vadd.f32 0.0, %v730
        %v732 = vpop.f32.mrf.mxu0
        %733 = vdwg.mxu0
        %v734 = vadd.f32 %v678, %v718
        %v735 = vadd.f32 %v679, %v731
        %s736 = scalar_lea.vmem %s217, 30 [#allocation2]
        %v737 = vld [vmem:[%s736] sm:$0xf]
        %s738 = scalar_lea.vmem %s1, 40
        %v739 = vld [vmem:[%s738] sm:$0xf]
        %741 = vst [vmem:[#allocation1] ss:$4 sm:$0xff] %v737
        %v742 = vld.sshfl [vmem:[#allocation1] sm:$0xff pattern:$0x73625140]
        %v743 = vld.sshfl [vmem:[#allocation1 + $0x8] sm:$0xff pattern:$0x73625140]
        %v745 = vsel %vm266, %v739, 0
        %v747 = vsel %vm270, %v742, 0
        %v749 = vsel %vm270, %v743, 0
        %751 = vmatpush.bf16.msra.mxu0 0
        %752 = vmatpush.bf16.msra.mxu0 0
        %753 = vmatpush.bf16.msra.mxu0 0
        %754 = vmatpush.bf16.msra.mxu0 0
        %755 = vmatpush.bf16.msra.mxu0 0
        %756 = vmatpush.bf16.msra.mxu0 0
        %757 = vmatpush.bf16.msra.mxu0 0
        %758 = vmatpush.bf16.msra.mxu0 %v747
        %759 = vmatmul.bf16.gmra.mxu0 %v745
        %v760 = vpop.f32.mrf.mxu0
        %v761 = vadd.f32 0.0, %v760
        %v762 = vpop.f32.mrf.mxu0
        %763 = vdwg.mxu0
        %764 = vmatpush.bf16.msra.mxu0 0
        %765 = vmatpush.bf16.msra.mxu0 0
        %766 = vmatpush.bf16.msra.mxu0 0
        %767 = vmatpush.bf16.msra.mxu0 0
        %768 = vmatpush.bf16.msra.mxu0 0
        %769 = vmatpush.bf16.msra.mxu0 0
        %770 = vmatpush.bf16.msra.mxu0 0
        %771 = vmatpush.bf16.msra.mxu0 %v749
        %772 = vmatmul.bf16.gmra.mxu0 %v745
        %v773 = vpop.f32.mrf.mxu0
        %v774 = vadd.f32 0.0, %v773
        %v775 = vpop.f32.mrf.mxu0
        %776 = vdwg.mxu0
        %v777 = vadd.f32 %v734, %v761
        %v778 = vadd.f32 %v735, %v774
        %v779 = vld [vmem:[%s736] sm:$0x3f]
        %s780 = scalar_lea.vmem %s1, 44
        %v781 = vld [vmem:[%s780] sm:$0xf]
        %783 = vst [vmem:[#allocation1] ss:$4 sm:$0xff] %v779
        %v784 = vld.sshfl [vmem:[#allocation1] sm:$0xff pattern:$0x73625140]
        %v786 = vld.sshfl [vmem:[#allocation1 + $0x8] sm:$0xff pattern:$0x73625140]
        %v788 = vld.sshfl [vmem:[#allocation1 + $0x10] sm:$0xff pattern:$0x73625140]
        %790 = vrot.lane.b32.xlu0 %v784, 112
        %v791 = vpop.permute.xlu0 %790
        %792 = vrot.lane.b32.xlu0 %v786, 112
        %v793 = vpop.permute.xlu0 %792
        %794 = vrot.lane.b32.xlu0 %v788, 112
        %v795 = vpop.permute.xlu0 %794
        %v796 = vsel %vm263, %v791, %v793
        %v797 = vsel %vm263, %v793, %v795
        %v799 = vsel %vm266, %v781, 0
        %v802 = vsel %vm270, %v796, 0
        %v805 = vsel %vm270, %v797, 0
        %807 = vmatpush.bf16.msra.mxu0 0
        %808 = vmatpush.bf16.msra.mxu0 0
        %809 = vmatpush.bf16.msra.mxu0 0
        %810 = vmatpush.bf16.msra.mxu0 0
        %811 = vmatpush.bf16.msra.mxu0 0
        %812 = vmatpush.bf16.msra.mxu0 0
        %813 = vmatpush.bf16.msra.mxu0 0
        %814 = vmatpush.bf16.msra.mxu0 %v802
        %815 = vmatmul.bf16.gmra.mxu0 %v799
        %v816 = vpop.f32.mrf.mxu0
        %v817 = vadd.f32 0.0, %v816
        %v818 = vpop.f32.mrf.mxu0
        %819 = vdwg.mxu0
        %820 = vmatpush.bf16.msra.mxu0 0
        %821 = vmatpush.bf16.msra.mxu0 0
        %822 = vmatpush.bf16.msra.mxu0 0
        %823 = vmatpush.bf16.msra.mxu0 0
        %824 = vmatpush.bf16.msra.mxu0 0
        %825 = vmatpush.bf16.msra.mxu0 0
        %826 = vmatpush.bf16.msra.mxu0 0
        %827 = vmatpush.bf16.msra.mxu0 %v805
        %828 = vmatmul.bf16.gmra.mxu0 %v799
        %v829 = vpop.f32.mrf.mxu0
        %v830 = vadd.f32 0.0, %v829
        %v831 = vpop.f32.mrf.mxu0
        %832 = vdwg.mxu0
        %v833 = vadd.f32 %v777, %v817
        %v834 = vadd.f32 %v778, %v830
        %s835 = scalar_lea.vmem %s217, 36 [#allocation2]
        %v836 = vld [vmem:[%s835] sm:$0xf]
        %s837 = scalar_lea.vmem %s1, 48
        %v838 = vld [vmem:[%s837] sm:$0xf]
        %840 = vst [vmem:[#allocation1] ss:$4 sm:$0xff] %v836
        %v841 = vld.sshfl [vmem:[#allocation1] sm:$0xff pattern:$0x73625140]
        %v842 = vld.sshfl [vmem:[#allocation1 + $0x8] sm:$0xff pattern:$0x73625140]
        %v844 = vsel %vm266, %v838, 0
        %v846 = vsel %vm270, %v841, 0
        %v848 = vsel %vm270, %v842, 0
        %850 = vmatpush.bf16.msra.mxu0 0
        %851 = vmatpush.bf16.msra.mxu0 0
        %852 = vmatpush.bf16.msra.mxu0 0
        %853 = vmatpush.bf16.msra.mxu0 0
        %854 = vmatpush.bf16.msra.mxu0 0
        %855 = vmatpush.bf16.msra.mxu0 0
        %856 = vmatpush.bf16.msra.mxu0 0
        %857 = vmatpush.bf16.msra.mxu0 %v846
        %858 = vmatmul.bf16.gmra.mxu0 %v844
        %v859 = vpop.f32.mrf.mxu0
        %v860 = vadd.f32 0.0, %v859
        %v861 = vpop.f32.mrf.mxu0
        %862 = vdwg.mxu0
        %863 = vmatpush.bf16.msra.mxu0 0
        %864 = vmatpush.bf16.msra.mxu0 0
        %865 = vmatpush.bf16.msra.mxu0 0
        %866 = vmatpush.bf16.msra.mxu0 0
        %867 = vmatpush.bf16.msra.mxu0 0
        %868 = vmatpush.bf16.msra.mxu0 0
        %869 = vmatpush.bf16.msra.mxu0 0
        %870 = vmatpush.bf16.msra.mxu0 %v848
        %871 = vmatmul.bf16.gmra.mxu0 %v844
        %v872 = vpop.f32.mrf.mxu0
        %v873 = vadd.f32 0.0, %v872
        %v874 = vpop.f32.mrf.mxu0
        %875 = vdwg.mxu0
        %v876 = vadd.f32 %v833, %v860
        %v877 = vadd.f32 %v834, %v873
        %v878 = vld [vmem:[%s835] sm:$0x3f]
        %s879 = scalar_lea.vmem %s1, 52
        %v880 = vld [vmem:[%s879] sm:$0xf]
        %882 = vst [vmem:[#allocation1] ss:$4 sm:$0xff] %v878
        %v883 = vld.sshfl [vmem:[#allocation1] sm:$0xff pattern:$0x73625140]
        %v885 = vld.sshfl [vmem:[#allocation1 + $0x8] sm:$0xff pattern:$0x73625140]
        %v887 = vld.sshfl [vmem:[#allocation1 + $0x10] sm:$0xff pattern:$0x73625140]
        %889 = vrot.lane.b32.xlu0 %v883, 112
        %v890 = vpop.permute.xlu0 %889
        %891 = vrot.lane.b32.xlu0 %v885, 112
        %v892 = vpop.permute.xlu0 %891
        %893 = vrot.lane.b32.xlu0 %v887, 112
        %v894 = vpop.permute.xlu0 %893
        %v895 = vsel %vm263, %v890, %v892
        %v896 = vsel %vm263, %v892, %v894
        %v898 = vsel %vm266, %v880, 0
        %v901 = vsel %vm270, %v895, 0
        %v904 = vsel %vm270, %v896, 0
        %906 = vmatpush.bf16.msra.mxu0 0
        %907 = vmatpush.bf16.msra.mxu0 0
        %908 = vmatpush.bf16.msra.mxu0 0
        %909 = vmatpush.bf16.msra.mxu0 0
        %910 = vmatpush.bf16.msra.mxu0 0
        %911 = vmatpush.bf16.msra.mxu0 0
        %912 = vmatpush.bf16.msra.mxu0 0
        %913 = vmatpush.bf16.msra.mxu0 %v901
        %914 = vmatmul.bf16.gmra.mxu0 %v898
        %v915 = vpop.f32.mrf.mxu0
        %v916 = vadd.f32 0.0, %v915
        %v917 = vpop.f32.mrf.mxu0
        %918 = vdwg.mxu0
        %919 = vmatpush.bf16.msra.mxu0 0
        %920 = vmatpush.bf16.msra.mxu0 0
        %921 = vmatpush.bf16.msra.mxu0 0
        %922 = vmatpush.bf16.msra.mxu0 0
        %923 = vmatpush.bf16.msra.mxu0 0
        %924 = vmatpush.bf16.msra.mxu0 0
        %925 = vmatpush.bf16.msra.mxu0 0
        %926 = vmatpush.bf16.msra.mxu0 %v904
        %927 = vmatmul.bf16.gmra.mxu0 %v898
        %v928 = vpop.f32.mrf.mxu0
        %v929 = vadd.f32 0.0, %v928
        %v930 = vpop.f32.mrf.mxu0
        %931 = vdwg.mxu0
        %v932 = vadd.f32 %v876, %v916
        %v933 = vadd.f32 %v877, %v929
        %s934 = scalar_lea.vmem %s217, 42 [#allocation2]
        %v935 = vld [vmem:[%s934] sm:$0xf]
        %s936 = scalar_lea.vmem %s1, 56
        %v937 = vld [vmem:[%s936] sm:$0xf]
        %939 = vst [vmem:[#allocation1] ss:$4 sm:$0xff] %v935
        %v940 = vld.sshfl [vmem:[#allocation1] sm:$0xff pattern:$0x73625140]
        %v941 = vld.sshfl [vmem:[#allocation1 + $0x8] sm:$0xff pattern:$0x73625140]
        %v943 = vsel %vm266, %v937, 0
        %v945 = vsel %vm270, %v940, 0
        %v947 = vsel %vm270, %v941, 0
        %949 = vmatpush.bf16.msra.mxu0 0
        %950 = vmatpush.bf16.msra.mxu0 0
        %951 = vmatpush.bf16.msra.mxu0 0
        %952 = vmatpush.bf16.msra.mxu0 0
        %953 = vmatpush.bf16.msra.mxu0 0
        %954 = vmatpush.bf16.msra.mxu0 0
        %955 = vmatpush.bf16.msra.mxu0 0
        %956 = vmatpush.bf16.msra.mxu0 %v945
        %957 = vmatmul.bf16.gmra.mxu0 %v943
        %v958 = vpop.f32.mrf.mxu0
        %v959 = vadd.f32 0.0, %v958
        %v960 = vpop.f32.mrf.mxu0
        %961 = vdwg.mxu0
        %962 = vmatpush.bf16.msra.mxu0 0
        %963 = vmatpush.bf16.msra.mxu0 0
        %964 = vmatpush.bf16.msra.mxu0 0
        %965 = vmatpush.bf16.msra.mxu0 0
        %966 = vmatpush.bf16.msra.mxu0 0
        %967 = vmatpush.bf16.msra.mxu0 0
        %968 = vmatpush.bf16.msra.mxu0 0
        %969 = vmatpush.bf16.msra.mxu0 %v947
        %970 = vmatmul.bf16.gmra.mxu0 %v943
        %v971 = vpop.f32.mrf.mxu0
        %v972 = vadd.f32 0.0, %v971
        %v973 = vpop.f32.mrf.mxu0
        %974 = vdwg.mxu0
        %v975 = vadd.f32 %v932, %v959
        %v976 = vadd.f32 %v933, %v972
        %v977 = vld [vmem:[%s934] sm:$0x3f]
        %s978 = scalar_lea.vmem %s1, 60
        %v979 = vld [vmem:[%s978] sm:$0xf]
        %981 = vst [vmem:[#allocation1] ss:$4 sm:$0xff] %v977
        %v982 = vld.sshfl [vmem:[#allocation1] sm:$0xff pattern:$0x73625140]
        %v984 = vld.sshfl [vmem:[#allocation1 + $0x8] sm:$0xff pattern:$0x73625140]
        %v986 = vld.sshfl [vmem:[#allocation1 + $0x10] sm:$0xff pattern:$0x73625140]
        %988 = vrot.lane.b32.xlu0 %v982, 112
        %v989 = vpop.permute.xlu0 %988
        %990 = vrot.lane.b32.xlu0 %v984, 112
        %v991 = vpop.permute.xlu0 %990
        %992 = vrot.lane.b32.xlu0 %v986, 112
        %v993 = vpop.permute.xlu0 %992
        %v994 = vsel %vm263, %v989, %v991
        %v995 = vsel %vm263, %v991, %v993
        %v997 = vsel %vm266, %v979, 0
        %v1000 = vsel %vm270, %v994, 0
        %v1003 = vsel %vm270, %v995, 0
        %1005 = vmatpush.bf16.msra.mxu0 0
        %1006 = vmatpush.bf16.msra.mxu0 0
        %1007 = vmatpush.bf16.msra.mxu0 0
        %1008 = vmatpush.bf16.msra.mxu0 0
        %1009 = vmatpush.bf16.msra.mxu0 0
        %1010 = vmatpush.bf16.msra.mxu0 0
        %1011 = vmatpush.bf16.msra.mxu0 0
        %1012 = vmatpush.bf16.msra.mxu0 %v1000
        %1013 = vmatmul.bf16.gmra.mxu0 %v997
        %v1014 = vpop.f32.mrf.mxu0
        %v1015 = vadd.f32 0.0, %v1014
        %v1016 = vpop.f32.mrf.mxu0
        %1017 = vdwg.mxu0
        %1018 = vmatpush.bf16.msra.mxu0 0
        %1019 = vmatpush.bf16.msra.mxu0 0
        %1020 = vmatpush.bf16.msra.mxu0 0
        %1021 = vmatpush.bf16.msra.mxu0 0
        %1022 = vmatpush.bf16.msra.mxu0 0
        %1023 = vmatpush.bf16.msra.mxu0 0
        %1024 = vmatpush.bf16.msra.mxu0 0
        %1025 = vmatpush.bf16.msra.mxu0 %v1003
        %1026 = vmatmul.bf16.gmra.mxu0 %v997
        %v1027 = vpop.f32.mrf.mxu0
        %v1028 = vadd.f32 0.0, %v1027
        %v1029 = vpop.f32.mrf.mxu0
        %1030 = vdwg.mxu0
        %v1031 = vadd.f32 %v975, %v1015
        %v1032 = vadd.f32 %v976, %v1028
        %v1033 = vld [vmem:[%s2] sm:$0xff]
        %1035 = vset.pattern.permute.xlu0 0
        %1036 = vperm.xlu0 %1035, %v1033
        %v1037 = vpop.permute.xlu0 %1036
        %v1039 = vadd.f32 %v1031, %v1037
        %v1040 = vadd.f32 %v1032, %v1037
        %vm1041 = vcmp.ge.f32.partialorder %v1039, 0.0
        %vm1042 = vcmp.ge.f32.partialorder %v1040, 0.0
        %v1043 = vmul.f32 %v1039, 0.2
        %v1044 = vmul.f32 %v1040, 0.2
        %v1045 = vsel %vm1041, %v1039, %v1043
        %v1046 = vsel %vm1042, %v1040, %v1044
        %v1047 = vpack.c.bf16 %v1046, %v1045
        %1048 = vst [vmem:[%s242] sm:$0xff] %v1047
        %p1049 = scmp.lt.s32.totalorder %s14, 1
        %s1050 = scalar_select %p1049, %s14, 1
        %s1051 = smul.addr %s1050, 2
        %s1052 = smul.addr %s1051, 4
        %s1053 = scalar_lea.vmem %s3, %s1052
        // Predicated region
        $region74: #{ms_image_discriminator.8} parent=68 // pred_check
          %p1054 = pneg %p100
        $region75: #{ms_image_discriminator.8} parent=68 // pred_check_branch
          %1056 = sbr.rel (%p1054) target = $region77
        $region76: #{ms_image_discriminator.8} parent=68 // pred_region
          _
        $region77: #{ms_image_discriminator.8} parent=68 // pred_fallthru
          _
      $region69: #{ms_image_discriminator.8} parent=5 // pred_fallthru
        _
      %p1057 = scmp.le.s32.totalorder 2, %s9
      // Predicated region
      $region78: #{ms_image_discriminator.8} parent=5 // pred_check
        %p1058 = pneg %p1057
      $region79: #{ms_image_discriminator.8} parent=5 // pred_check_branch
        %1060 = sbr.rel (%p1058) target = $region81
      $region80: #{ms_image_discriminator.8} parent=5 // pred_region
        %s1061 = ssub.s32 %s9, 2
        // Predicated region
        $region82: #{ms_image_discriminator.8} parent=80 // pred_check
          %p1062 = pneg %p106
        $region83: #{ms_image_discriminator.8} parent=80 // pred_check_branch
          %1064 = sbr.rel (%p1062) target = $region85
        $region84: #{ms_image_discriminator.8} parent=80 // pred_region
          %p1065 = scmp.lt.s32.totalorder %s15, 1
          %s1066 = scalar_select %p1065, %s15, 1
          %s1067 = smul.addr %s1066, 2
          %s1068 = smul.addr %s1067, 4
          %s1069 = scalar_lea.vmem %s3, %s1068
        $region85: #{ms_image_discriminator.8} parent=80 // pred_fallthru
          _
      $region81: #{ms_image_discriminator.8} parent=5 // pred_fallthru
        _
    $region6: #{ms_image_discriminator.8} parent=1 // loop_footer
      %s13 = sadd.s32 1, %s9
    $region7: #{ms_image_discriminator.8} parent=1 // loop_footer_branch
      %8 = sbr.rel target = $region3
    $region8: #{ms_image_discriminator.8} parent=1 // loop_exit
      _

// kernel: ms_image_discriminator.9
$region0: #{ms_image_discriminator.9}
  #allocation0 [shape = 'u32[]', space=smem, size = 0x4, offset = 0x4, fixed_abs, tag = 'smem constant byte address 0x4 - core index']
  #allocation1 [shape = 'u32[72,128]{1,0:T(1,128)}', space=vmem, size = 0x9000, scoped, tag = 'internal scratch']
  #allocation2 [shape = 'f32[1,1]{1,0:T(1,128)S(1)}', space=vmem, size = 0x200, scoped, tag = 'scoped memory for ms_image_discriminator.9']
  %s0 = inlined_call_operand.vmem [shape: bf16[8,2,8,72], index: 0, kind: input, shape index: {}]
  %s1 = inlined_call_operand.vmem [shape: bf16[16,16,8], index: 1, kind: input, shape index: {}]
  %s2 = inlined_call_operand.vmem [shape: f32[16,1], index: 2, kind: input, shape index: {}]
  %s3 = inlined_call_operand.vmem [shape: f32[1,16], index: 3, kind: input, shape index: {}]
  %s4 = inlined_call_operand.<no memory space> [shape: f32[1,1], index: 4, kind: input, shape index: {}]
  %s5 = inlined_call_operand.vmem [shape: f32[2,1,64], index: 5, kind: output, shape index: {}]
  %s6 = sld [smem:[#allocation0]]
  $region94: #{ms_image_discriminator.9} parent=0
    _
  %s8 = ssub.s32 1, %s6
  %s9 = scalar_select 0, %s8, %s6
  %v10 = vstv %s4
  %11 = vst [vmem:[#allocation2] sm:$0x1] %v10
  $region1: #{ms_image_discriminator.9} parent=0
    #allocation3 [shape = 'u8[32768]{0}', space=vmem, size = 0x8000, scoped, tag = 'input window, operand 0']
    loop: start=0, step=1, limit=4
    $region2: #{ms_image_discriminator.9} parent=1 // loop_pre_header
      _
    $region3: #{ms_image_discriminator.9} parent=1 // loop_header
      %s13 = sphi 0, %s17
      %p14 = scmp.ge.s32.totalorder %s13, 4
      %s23 = sphi 0, %s25
      %s26 = sphi 0, %s23
      %s27 = sphi 0, %s26
      %s43 = sphi 0, %s27
      %s47 = sphi 0, %s47
      %s49 = sphi 0, %s47
      %s50 = sphi 0, %s49
      %s64 = sphi 0, %s50
      %s68 = sphi 0, %s68
      %s70 = sphi 0, %s68
      %s71 = sphi 0, %s70
      %s85 = sphi 0, %s71
      %s89 = sphi 0, %s89
      %s91 = sphi 0, %s89
      %s92 = sphi 0, %s91
      %s106 = sphi 0, %s92
      %s110 = sphi 0, %s110
      %s112 = sphi 0, %s110
      %s113 = sphi 0, %s112
      %s127 = sphi 0, %s113
      %s133 = sphi 0, %s135
      %s136 = sphi 0, %s133
      %s137 = sphi 0, %s136
      %s153 = sphi 0, %s137
    $region4: #{ms_image_discriminator.9} parent=1 // loop_header_branch
      %16 = sbr.rel (%p14) target = $region8
    $region5: #{ms_image_discriminator.9} parent=1 // loop_body
      %s18 = ssub.s32 %s13, 1
      %s19 = ssub.s32 %s13, 2
      %s20 = sadd.s32 %s13, 1
      %s21 = ssub.s32 %s13, %s20
      %p22 = scmp.eq.s32.totalorder %s21, 0
      %s24 = sadd.s32 %s23, 1
      %s25 = scalar_select %p22, %s23, %s24
      %p28 = pneg %p22
      %p29 = scmp.eq.s32.totalorder %s13, 1
      %p30 = por %p28, %p29
      %p31 = scmp.ne.s32.totalorder %s23, %s26
      %p32 = scmp.eq.s32.totalorder %s13, 0
      %p33 = por %p31, %p32
      %p34 = scmp.ne.s32.totalorder %s23, %s26
      %p35 = scmp.eq.s32.totalorder %s18, 1
      %p36 = por %p34, %p35
      %p37 = scmp.ne.s32.totalorder %s26, %s27
      %p38 = scmp.eq.s32.totalorder %s18, 0
      %p39 = por %p37, %p38
      %p40 = scmp.ne.s32.totalorder %s26, %s27
      %p41 = scmp.eq.s32.totalorder %s19, 1
      %p42 = por %p40, %p41
      %p44 = scmp.ne.s32.totalorder %s27, %s43
      %p45 = scmp.eq.s32.totalorder %s19, 0
      %p46 = por %p44, %p45
      %s48 = sadd.s32 %s47, 1
      %p51 = scmp.eq.s32.totalorder %s13, 1
      %p52 = scmp.ne.s32.totalorder %s47, %s49
      %p53 = scmp.eq.s32.totalorder %s13, 0
      %p54 = por %p52, %p53
      %p55 = scmp.ne.s32.totalorder %s47, %s49
      %p56 = scmp.eq.s32.totalorder %s18, 1
      %p57 = por %p55, %p56
      %p58 = scmp.ne.s32.totalorder %s49, %s50
      %p59 = scmp.eq.s32.totalorder %s18, 0
      %p60 = por %p58, %p59
      %p61 = scmp.ne.s32.totalorder %s49, %s50
      %p62 = scmp.eq.s32.totalorder %s19, 1
      %p63 = por %p61, %p62
      %p65 = scmp.ne.s32.totalorder %s50, %s64
      %p66 = scmp.eq.s32.totalorder %s19, 0
      %p67 = por %p65, %p66
      %s69 = sadd.s32 %s68, 1
      %p72 = scmp.eq.s32.totalorder %s13, 1
      %p73 = scmp.ne.s32.totalorder %s68, %s70
      %p74 = scmp.eq.s32.totalorder %s13, 0
      %p75 = por %p73, %p74
      %p76 = scmp.ne.s32.totalorder %s68, %s70
      %p77 = scmp.eq.s32.totalorder %s18, 1
      %p78 = por %p76, %p77
      %p79 = scmp.ne.s32.totalorder %s70, %s71
      %p80 = scmp.eq.s32.totalorder %s18, 0
      %p81 = por %p79, %p80
      %p82 = scmp.ne.s32.totalorder %s70, %s71
      %p83 = scmp.eq.s32.totalorder %s19, 1
      %p84 = por %p82, %p83
      %p86 = scmp.ne.s32.totalorder %s71, %s85
      %p87 = scmp.eq.s32.totalorder %s19, 0
      %p88 = por %p86, %p87
      %s90 = sadd.s32 %s89, 1
      %p93 = scmp.eq.s32.totalorder %s13, 1
      %p94 = scmp.ne.s32.totalorder %s89, %s91
      %p95 = scmp.eq.s32.totalorder %s13, 0
      %p96 = por %p94, %p95
      %p97 = scmp.ne.s32.totalorder %s89, %s91
      %p98 = scmp.eq.s32.totalorder %s18, 1
      %p99 = por %p97, %p98
      %p100 = scmp.ne.s32.totalorder %s91, %s92
      %p101 = scmp.eq.s32.totalorder %s18, 0
      %p102 = por %p100, %p101
      %p103 = scmp.ne.s32.totalorder %s91, %s92
      %p104 = scmp.eq.s32.totalorder %s19, 1
      %p105 = por %p103, %p104
      %p107 = scmp.ne.s32.totalorder %s92, %s106
      %p108 = scmp.eq.s32.totalorder %s19, 0
      %p109 = por %p107, %p108
      %s111 = sadd.s32 %s110, 1
      %p114 = scmp.eq.s32.totalorder %s13, 1
      %p115 = scmp.ne.s32.totalorder %s110, %s112
      %p116 = scmp.eq.s32.totalorder %s13, 0
      %p117 = por %p115, %p116
      %p118 = scmp.ne.s32.totalorder %s110, %s112
      %p119 = scmp.eq.s32.totalorder %s18, 1
      %p120 = por %p118, %p119
      %p121 = scmp.ne.s32.totalorder %s112, %s113
      %p122 = scmp.eq.s32.totalorder %s18, 0
      %p123 = por %p121, %p122
      %p124 = scmp.ne.s32.totalorder %s112, %s113
      %p125 = scmp.eq.s32.totalorder %s19, 1
      %p126 = por %p124, %p125
      %p128 = scmp.ne.s32.totalorder %s113, %s127
      %p129 = scmp.eq.s32.totalorder %s19, 0
      %p130 = por %p128, %p129
      %s131 = ssub.s32 %s13, %s20
      %p132 = scmp.eq.s32.totalorder %s131, 0
      %s134 = sadd.s32 %s133, 1
      %s135 = scalar_select %p132, %s133, %s134
      %p138 = pneg %p132
      %p139 = scmp.eq.s32.totalorder %s13, 1
      %p140 = por %p138, %p139
      %p141 = scmp.ne.s32.totalorder %s133, %s136
      %p142 = scmp.eq.s32.totalorder %s13, 0
      %p143 = por %p141, %p142
      %p144 = scmp.ne.s32.totalorder %s133, %s136
      %p145 = scmp.eq.s32.totalorder %s18, 1
      %p146 = por %p144, %p145
      %p147 = scmp.ne.s32.totalorder %s136, %s137
      %p148 = scmp.eq.s32.totalorder %s18, 0
      %p149 = por %p147, %p148
      %p150 = scmp.ne.s32.totalorder %s136, %s137
      %p151 = scmp.eq.s32.totalorder %s19, 1
      %p152 = por %p150, %p151
      %p154 = scmp.ne.s32.totalorder %s137, %s153
      %p155 = scmp.eq.s32.totalorder %s19, 0
      %p156 = por %p154, %p155
      %p157 = scmp.le.s32.totalorder 1, %s13
      %p158 = scmp.lt.s32.totalorder %s13, 3
      %p159 = pnand %p157, %p158
      %p160 = pneg %p159
      // Predicated region
      $region9: #{ms_image_discriminator.9} parent=5 // pred_check
        _
      $region10: #{ms_image_discriminator.9} parent=5 // pred_check_branch
        %162 = sbr.rel (%p159) target = $region12
      $region11: #{ms_image_discriminator.9} parent=5 // pred_region
        %s163 = ssub.s32 %s13, 1
        // Predicated region
        $region13: #{ms_image_discriminator.9} parent=11 // pred_check
          %p164 = pneg %p60
        $region14: #{ms_image_discriminator.9} parent=11 // pred_check_branch
          %166 = sbr.rel (%p164) target = $region16
        $region15: #{ms_image_discriminator.9} parent=11 // pred_region
          _
        $region16: #{ms_image_discriminator.9} parent=11 // pred_fallthru
          _
        // Predicated region
        $region17: #{ms_image_discriminator.9} parent=11 // pred_check
          %p167 = pneg %p81
        $region18: #{ms_image_discriminator.9} parent=11 // pred_check_branch
          %169 = sbr.rel (%p167) target = $region20
        $region19: #{ms_image_discriminator.9} parent=11 // pred_region
          _
        $region20: #{ms_image_discriminator.9} parent=11 // pred_fallthru
          _
        // Predicated region
        $region21: #{ms_image_discriminator.9} parent=11 // pred_check
          %p170 = pneg %p102
        $region22: #{ms_image_discriminator.9} parent=11 // pred_check_branch
          %172 = sbr.rel (%p170) target = $region24
        $region23: #{ms_image_discriminator.9} parent=11 // pred_region
          _
        $region24: #{ms_image_discriminator.9} parent=11 // pred_fallthru
          _
        // Predicated region
        $region25: #{ms_image_discriminator.9} parent=11 // pred_check
          %p173 = pneg %p123
        $region26: #{ms_image_discriminator.9} parent=11 // pred_check_branch
          %175 = sbr.rel (%p173) target = $region28
        $region27: #{ms_image_discriminator.9} parent=11 // pred_region
          _
        $region28: #{ms_image_discriminator.9} parent=11 // pred_fallthru
          _
      $region12: #{ms_image_discriminator.9} parent=5 // pred_fallthru
        _
      %p176 = scmp.lt.s32.totalorder %s13, 2
      // Predicated region
      $region29: #{ms_image_discriminator.9} parent=5 // pred_check
        %p177 = pneg %p176
      $region30: #{ms_image_discriminator.9} parent=5 // pred_check_branch
        %179 = sbr.rel (%p177) target = $region32
      $region31: #{ms_image_discriminator.9} parent=5 // pred_region
        // Predicated region
        $region33: #{ms_image_discriminator.9} parent=31 // pred_check
          %p180 = pneg %p33
        $region34: #{ms_image_discriminator.9} parent=31 // pred_check_branch
          %182 = sbr.rel (%p180) target = $region36
        $region35: #{ms_image_discriminator.9} parent=31 // pred_region
          %s183 = sand.u32 %s23, 1
          %s184 = sand.u32 %s23, 1
          %s185 = smul.addr %s184, 32
          %s186 = scalar_lea.vmem [#allocation3], %s185
          %s187 = smul.addr %s13, 4
          %s188 = scalar_lea.vmem %s0, %s187
          // Predicated region
          $region37: #{ms_image_discriminator.9} parent=35 // pred_check
            _
          $region38: #{ms_image_discriminator.9} parent=35 // pred_check_branch
            %190 = sbr.rel (0) target = $region40
          $region39: #{ms_image_discriminator.9} parent=35 // pred_region
            // Predicated region
            $region41: #{ms_image_discriminator.9} parent=39 // pred_check
              _
            $region42: #{ms_image_discriminator.9} parent=39 // pred_check_branch
              %192 = sbr.rel target = $region44
            $region43: #{ms_image_discriminator.9} parent=39 // pred_region
              // Predicated region
              $region56: #{ms_image_discriminator.9} parent=43 // pred_check
                _
              $region57: #{ms_image_discriminator.9} parent=43 // pred_check_branch
                %222 = sbr.rel (0) target = $region59
              $region58: #{ms_image_discriminator.9} parent=43 // pred_region
                loop: start=0, step=1, limit=1
                $region60: #{ms_image_discriminator.9} parent=58 // loop_pre_header
                  _
                $region61: #{ms_image_discriminator.9} parent=58 // loop_header
                  %s224 = sphi 0, %s228
                  %p225 = scmp.ge.s32.totalorder %s224, 1
                  %s229 = sphi %s188, %s188
                  %s230 = sphi %s186, %s186
                $region62: #{ms_image_discriminator.9} parent=58 // loop_header_branch
                  %227 = sbr.rel (%p225) target = $region66
                $region63: #{ms_image_discriminator.9} parent=58 // loop_body
                  _
                $region64: #{ms_image_discriminator.9} parent=58 // loop_footer
                  %s228 = sadd.s32 1, %s224
                $region65: #{ms_image_discriminator.9} parent=58 // loop_footer_branch
                  %223 = sbr.rel target = $region61
                $region66: #{ms_image_discriminator.9} parent=58 // loop_exit
                  _
                %s232 = ssub.s32 16, 1
                loop: start=0, step=1, limit=1
                $region67: #{ms_image_discriminator.9} parent=58 // loop_pre_header
                  _
                $region68: #{ms_image_discriminator.9} parent=58 // loop_header
                  %s234 = sphi 0, %s238
                  %p235 = scmp.ge.s32.totalorder %s234, 1
                  %s239 = sphi %s188, %s188
                  %s240 = sphi %s186, %s186
                $region69: #{ms_image_discriminator.9} parent=58 // loop_header_branch
                  %237 = sbr.rel (%p235) target = $region73
                $region70: #{ms_image_discriminator.9} parent=58 // loop_body
                  %v241 = vld [vmem:[%s239] sm:%s232]
                  %242 = vst [vmem:[%s240] sm:%s232] %v241
                  %v243 = vld [vmem:[%s239 + $0x8] sm:%s232]
                  %244 = vst [vmem:[%s240 + $0x4] sm:%s232] %v243
                  %v245 = vld [vmem:[%s239 + $0x10] sm:%s232]
                  %246 = vst [vmem:[%s240 + $0x8] sm:%s232] %v245
                  %v247 = vld [vmem:[%s239 + $0x18] sm:%s232]
                  %248 = vst [vmem:[%s240 + $0xc] sm:%s232] %v247
                  %v249 = vld [vmem:[%s239 + $0x20] sm:%s232]
                  %250 = vst [vmem:[%s240 + $0x10] sm:%s232] %v249
                  %v251 = vld [vmem:[%s239 + $0x28] sm:%s232]
                  %252 = vst [vmem:[%s240 + $0x14] sm:%s232] %v251
                  %v253 = vld [vmem:[%s239 + $0x30] sm:%s232]
                  %254 = vst [vmem:[%s240 + $0x18] sm:%s232] %v253
                  %v255 = vld [vmem:[%s239 + $0x38] sm:%s232]
                  %256 = vst [vmem:[%s240 + $0x1c] sm:%s232] %v255
                $region71: #{ms_image_discriminator.9} parent=58 // loop_footer
                  %s238 = sadd.s32 1, %s234
                $region72: #{ms_image_discriminator.9} parent=58 // loop_footer_branch
                  %233 = sbr.rel target = $region68
                $region73: #{ms_image_discriminator.9} parent=58 // loop_exit
                  _
              $region59: #{ms_image_discriminator.9} parent=43 // pred_fallthru
                _
            $region44: #{ms_image_discriminator.9} parent=39 // pred_fallthru
              _
            // Predicated region
            $region45: #{ms_image_discriminator.9} parent=39 // pred_check
              _
            $region46: #{ms_image_discriminator.9} parent=39 // pred_check_branch
              %194 = sbr.rel (0) target = $region48
            $region47: #{ms_image_discriminator.9} parent=39 // pred_region
              %s196 = ssub.s32 16, 1
              loop: start=0, step=1, limit=1
              $region49: #{ms_image_discriminator.9} parent=47 // loop_pre_header
                _
              $region50: #{ms_image_discriminator.9} parent=47 // loop_header
                %s198 = sphi 0, %s202
                %p199 = scmp.ge.s32.totalorder %s198, 1
                %s203 = sphi %s188, %s188
                %s204 = sphi %s186, %s186
              $region51: #{ms_image_discriminator.9} parent=47 // loop_header_branch
                %201 = sbr.rel (%p199) target = $region55
              $region52: #{ms_image_discriminator.9} parent=47 // loop_body
                %v205 = vld [vmem:[%s203] sm:%s196]
                %206 = vst [vmem:[%s204] sm:%s196] %v205
                %v207 = vld [vmem:[%s203 + $0x8] sm:%s196]
                %208 = vst [vmem:[%s204 + $0x4] sm:%s196] %v207
                %v209 = vld [vmem:[%s203 + $0x10] sm:%s196]
                %210 = vst [vmem:[%s204 + $0x8] sm:%s196] %v209
                %v211 = vld [vmem:[%s203 + $0x18] sm:%s196]
                %212 = vst [vmem:[%s204 + $0xc] sm:%s196] %v211
                %v213 = vld [vmem:[%s203 + $0x20] sm:%s196]
                %214 = vst [vmem:[%s204 + $0x10] sm:%s196] %v213
                %v215 = vld [vmem:[%s203 + $0x28] sm:%s196]
                %216 = vst [vmem:[%s204 + $0x14] sm:%s196] %v215
                %v217 = vld [vmem:[%s203 + $0x30] sm:%s196]
                %218 = vst [vmem:[%s204 + $0x18] sm:%s196] %v217
                %v219 = vld [vmem:[%s203 + $0x38] sm:%s196]
                %220 = vst [vmem:[%s204 + $0x1c] sm:%s196] %v219
              $region53: #{ms_image_discriminator.9} parent=47 // loop_footer
                %s202 = sadd.s32 1, %s198
              $region54: #{ms_image_discriminator.9} parent=47 // loop_footer_branch
                %197 = sbr.rel target = $region50
              $region55: #{ms_image_discriminator.9} parent=47 // loop_exit
                _
            $region48: #{ms_image_discriminator.9} parent=39 // pred_fallthru
              _
          $region40: #{ms_image_discriminator.9} parent=35 // pred_fallthru
            _
          %257 = vnop
        $region36: #{ms_image_discriminator.9} parent=31 // pred_fallthru
          _
      $region32: #{ms_image_discriminator.9} parent=5 // pred_fallthru
        _
      %p258 = scmp.le.s32.totalorder 1, %s13
      %p259 = scmp.lt.s32.totalorder %s13, 3
      %p260 = pnand %p258, %p259
      %p261 = pneg %p260
      // Predicated region
      $region74: #{ms_image_discriminator.9} parent=5 // pred_check
        _
      $region75: #{ms_image_discriminator.9} parent=5 // pred_check_branch
        %263 = sbr.rel (%p260) target = $region77
      $region76: #{ms_image_discriminator.9} parent=5 // pred_region
        %s264 = ssub.s32 %s13, 1
        %s265 = sand.u32 %s26, 1
        %s266 = sand.u32 %s26, 1
        %s267 = smul.addr %s266, 32
        %s268 = scalar_lea.vmem [#allocation3], %s267
        // Predicated region
        $region78: #{ms_image_discriminator.9} parent=76 // pred_check
          %p269 = pneg %p39
        $region79: #{ms_image_discriminator.9} parent=76 // pred_check_branch
          %271 = sbr.rel (%p269) target = $region81
        $region80: #{ms_image_discriminator.9} parent=76 // pred_region
          _
        $region81: #{ms_image_discriminator.9} parent=76 // pred_fallthru
          _
        %s272 = sand.u32 %s26, 1
        %s273 = sand.u32 %s26, 1
        %s274 = smul.addr %s273, 32
        %s275 = scalar_lea.vmem [#allocation3], %s274
        %p276 = pneg %p39
        %p277 = pneg %p36
        %p278 = pneg %p60
        %p279 = pneg %p57
        %p280 = pneg %p81
        %p281 = pneg %p78
        %p282 = pneg %p102
        %p283 = pneg %p99
        %p284 = pneg %p123
        %p285 = pneg %p120
        %p286 = pneg %p149
        %p287 = pneg %p146
        %p288 = scmp.lt.s32.totalorder %s18, 1
        %s289 = scalar_select %p288, %s18, 1
        %s290 = scalar_lea.vmem %s5, %s289
        %p291 = scmp.lt.s32.totalorder %s18, 1
        %s292 = scalar_select %p291, %s18, 1
        %s293 = scalar_lea.vmem %s5, %s292
        %v295 = vld [vmem:[%s268] sm:$0xf]
        %v296 = vld [vmem:[%s1] sm:$0xf]
        %v297 = vld [vmem:[%s1 + $0x4] sm:$0xf]
        %s298 = scalar_lea.vmem %s1, 8
        %v299 = vld [vmem:[%s298] sm:$0xf]
        %v300 = vld [vmem:[%s298 + $0x4] sm:$0xf]
        %v303 = vunpack.c.l.b16 %v299
        %v304 = vunpack.c.l.b16 %v300
        %v305 = vpack.c.b16 %v304, %v303
        %v307 = vunpack.c.l.b16 %v295
        %v308 = vpack.c.b16 %v307, %v307
        %309 = vrot.lane.b32.xlu0 %v308, 120
        %v310 = vpop.permute.xlu0 %309
        %vm311 = vcmask 64512
        %v313 = vsel %vm311, %v305, 0
        %vm315 = vcmask 1043456
        %v317 = vsel %vm315, %v310, 0
        %319 = vmatpush.bf16.msra.mxu0 0
        %320 = vmatpush.bf16.msra.mxu0 0
        %321 = vmatpush.bf16.msra.mxu0 0
        %322 = vmatpush.bf16.msra.mxu0 0
        %323 = vmatpush.bf16.msra.mxu0 0
        %324 = vmatpush.bf16.msra.mxu0 0
        %325 = vmatpush.bf16.msra.mxu0 0
        %326 = vmatpush.bf16.msra.mxu0 %v317
        %327 = vmatmul.bf16.gmra.mxu0 %v313
        %v328 = vpop.f32.mrf.mxu0
        %v329 = vadd.f32 0.0, %v328
        %v330 = vpop.f32.mrf.mxu0
        %v331 = vadd.f32 0.0, %v330
        %332 = vdwg.mxu0
        %v335 = vunpack.c.l.b16 %v296
        %v336 = vunpack.c.l.b16 %v297
        %v337 = vpack.c.b16 %v336, %v335
        %v339 = vsel %vm311, %v337, 0
        %v342 = vsel %vm315, %v295, 0
        %344 = vmatpush.bf16.msra.mxu0 0
        %345 = vmatpush.bf16.msra.mxu0 0
        %346 = vmatpush.bf16.msra.mxu0 0
        %347 = vmatpush.bf16.msra.mxu0 0
        %348 = vmatpush.bf16.msra.mxu0 0
        %349 = vmatpush.bf16.msra.mxu0 0
        %350 = vmatpush.bf16.msra.mxu0 0
        %351 = vmatpush.bf16.msra.mxu0 %v342
        %352 = vmatmul.bf16.gmra.mxu0 %v339
        %v353 = vpop.f32.mrf.mxu0
        %v354 = vadd.f32 %v329, %v353
        %v355 = vpop.f32.mrf.mxu0
        %v356 = vadd.f32 %v331, %v355
        %357 = vdwg.mxu0
        %s358 = scalar_lea.vmem %s268, 4 [#allocation3]
        %v359 = vld [vmem:[%s358] sm:$0xf]
        %s360 = scalar_lea.vmem %s1, 16
        %v361 = vld [vmem:[%s360] sm:$0xf]
        %v362 = vld [vmem:[%s360 + $0x4] sm:$0xf]
        %v365 = vunpack.c.l.b16 %v361
        %v366 = vunpack.c.l.b16 %v362
        %v367 = vpack.c.b16 %v366, %v365
        %v369 = vsel %vm311, %v367, 0
        %v372 = vsel %vm315, %v359, 0
        %374 = vmatpush.bf16.msra.mxu0 0
        %375 = vmatpush.bf16.msra.mxu0 0
        %376 = vmatpush.bf16.msra.mxu0 0
        %377 = vmatpush.bf16.msra.mxu0 0
        %378 = vmatpush.bf16.msra.mxu0 0
        %379 = vmatpush.bf16.msra.mxu0 0
        %380 = vmatpush.bf16.msra.mxu0 0
        %381 = vmatpush.bf16.msra.mxu0 %v372
        %382 = vmatmul.bf16.gmra.mxu0 %v369
        %v383 = vpop.f32.mrf.mxu0
        %v384 = vadd.f32 0.0, %v383
        %v385 = vpop.f32.mrf.mxu0
        %v386 = vadd.f32 0.0, %v385
        %387 = vdwg.mxu0
        %v388 = vadd.f32 %v354, %v384
        %v389 = vadd.f32 %v356, %v386
        %s390 = scalar_lea.vmem %s1, 24
        %v391 = vld [vmem:[%s390] sm:$0xf]
        %v392 = vld [vmem:[%s390 + $0x4] sm:$0xf]
        %v395 = vunpack.c.l.b16 %v391
        %v396 = vunpack.c.l.b16 %v392
        %v397 = vpack.c.b16 %v396, %v395
        %v399 = vunpack.c.l.b16 %v359
        %v400 = vpack.c.b16 %v399, %v399
        %401 = vrot.lane.b32.xlu0 %v400, 120
        %v402 = vpop.permute.xlu0 %401
        %v404 = vsel %vm311, %v397, 0
        %v407 = vsel %vm315, %v402, 0
        %409 = vmatpush.bf16.msra.mxu0 0
        %410 = vmatpush.bf16.msra.mxu0 0
        %411 = vmatpush.bf16.msra.mxu0 0
        %412 = vmatpush.bf16.msra.mxu0 0
        %413 = vmatpush.bf16.msra.mxu0 0
        %414 = vmatpush.bf16.msra.mxu0 0
        %415 = vmatpush.bf16.msra.mxu0 0
        %416 = vmatpush.bf16.msra.mxu0 %v407
        %417 = vmatmul.bf16.gmra.mxu0 %v404
        %v418 = vpop.f32.mrf.mxu0
        %v419 = vadd.f32 0.0, %v418
        %v420 = vpop.f32.mrf.mxu0
        %v421 = vadd.f32 0.0, %v420
        %422 = vdwg.mxu0
        %v423 = vadd.f32 %v388, %v419
        %v424 = vadd.f32 %v389, %v421
        %s425 = scalar_lea.vmem %s268, 8 [#allocation3]
        %v426 = vld [vmem:[%s425] sm:$0xf]
        %s427 = scalar_lea.vmem %s1, 32
        %v428 = vld [vmem:[%s427] sm:$0xf]
        %v429 = vld [vmem:[%s427 + $0x4] sm:$0xf]
        %v432 = vunpack.c.l.b16 %v428
        %v433 = vunpack.c.l.b16 %v429
        %v434 = vpack.c.b16 %v433, %v432
        %v436 = vsel %vm311, %v434, 0
        %v439 = vsel %vm315, %v426, 0
        %441 = vmatpush.bf16.msra.mxu0 0
        %442 = vmatpush.bf16.msra.mxu0 0
        %443 = vmatpush.bf16.msra.mxu0 0
        %444 = vmatpush.bf16.msra.mxu0 0
        %445 = vmatpush.bf16.msra.mxu0 0
        %446 = vmatpush.bf16.msra.mxu0 0
        %447 = vmatpush.bf16.msra.mxu0 0
        %448 = vmatpush.bf16.msra.mxu0 %v439
        %449 = vmatmul.bf16.gmra.mxu0 %v436
        %v450 = vpop.f32.mrf.mxu0
        %v451 = vadd.f32 0.0, %v450
        %v452 = vpop.f32.mrf.mxu0
        %v453 = vadd.f32 0.0, %v452
        %454 = vdwg.mxu0
        %v455 = vadd.f32 %v423, %v451
        %v456 = vadd.f32 %v424, %v453
        %s457 = scalar_lea.vmem %s1, 40
        %v458 = vld [vmem:[%s457] sm:$0xf]
        %v459 = vld [vmem:[%s457 + $0x4] sm:$0xf]
        %v462 = vunpack.c.l.b16 %v458
        %v463 = vunpack.c.l.b16 %v459
        %v464 = vpack.c.b16 %v463, %v462
        %v466 = vunpack.c.l.b16 %v426
        %v467 = vpack.c.b16 %v466, %v466
        %468 = vrot.lane.b32.xlu0 %v467, 120
        %v469 = vpop.permute.xlu0 %468
        %v471 = vsel %vm311, %v464, 0
        %v474 = vsel %vm315, %v469, 0
        %476 = vmatpush.bf16.msra.mxu0 0
        %477 = vmatpush.bf16.msra.mxu0 0
        %478 = vmatpush.bf16.msra.mxu0 0
        %479 = vmatpush.bf16.msra.mxu0 0
        %480 = vmatpush.bf16.msra.mxu0 0
        %481 = vmatpush.bf16.msra.mxu0 0
        %482 = vmatpush.bf16.msra.mxu0 0
        %483 = vmatpush.bf16.msra.mxu0 %v474
        %484 = vmatmul.bf16.gmra.mxu0 %v471
        %v485 = vpop.f32.mrf.mxu0
        %v486 = vadd.f32 0.0, %v485
        %v487 = vpop.f32.mrf.mxu0
        %v488 = vadd.f32 0.0, %v487
        %489 = vdwg.mxu0
        %v490 = vadd.f32 %v455, %v486
        %v491 = vadd.f32 %v456, %v488
        %s492 = scalar_lea.vmem %s268, 12 [#allocation3]
        %v493 = vld [vmem:[%s492] sm:$0xf]
        %s494 = scalar_lea.vmem %s1, 48
        %v495 = vld [vmem:[%s494] sm:$0xf]
        %v496 = vld [vmem:[%s494 + $0x4] sm:$0xf]
        %v499 = vunpack.c.l.b16 %v495
        %v500 = vunpack.c.l.b16 %v496
        %v501 = vpack.c.b16 %v500, %v499
        %v503 = vsel %vm311, %v501, 0
        %v506 = vsel %vm315, %v493, 0
        %508 = vmatpush.bf16.msra.mxu0 0
        %509 = vmatpush.bf16.msra.mxu0 0
        %510 = vmatpush.bf16.msra.mxu0 0
        %511 = vmatpush.bf16.msra.mxu0 0
        %512 = vmatpush.bf16.msra.mxu0 0
        %513 = vmatpush.bf16.msra.mxu0 0
        %514 = vmatpush.bf16.msra.mxu0 0
        %515 = vmatpush.bf16.msra.mxu0 %v506
        %516 = vmatmul.bf16.gmra.mxu0 %v503
        %v517 = vpop.f32.mrf.mxu0
        %v518 = vadd.f32 0.0, %v517
        %v519 = vpop.f32.mrf.mxu0
        %v520 = vadd.f32 0.0, %v519
        %521 = vdwg.mxu0
        %v522 = vadd.f32 %v490, %v518
        %v523 = vadd.f32 %v491, %v520
        %s524 = scalar_lea.vmem %s1, 56
        %v525 = vld [vmem:[%s524] sm:$0xf]
        %v526 = vld [vmem:[%s524 + $0x4] sm:$0xf]
        %v529 = vunpack.c.l.b16 %v525
        %v530 = vunpack.c.l.b16 %v526
        %v531 = vpack.c.b16 %v530, %v529
        %v533 = vunpack.c.l.b16 %v493
        %v534 = vpack.c.b16 %v533, %v533
        %535 = vrot.lane.b32.xlu0 %v534, 120
        %v536 = vpop.permute.xlu0 %535
        %v538 = vsel %vm311, %v531, 0
        %v541 = vsel %vm315, %v536, 0
        %543 = vmatpush.bf16.msra.mxu0 0
        %544 = vmatpush.bf16.msra.mxu0 0
        %545 = vmatpush.bf16.msra.mxu0 0
        %546 = vmatpush.bf16.msra.mxu0 0
        %547 = vmatpush.bf16.msra.mxu0 0
        %548 = vmatpush.bf16.msra.mxu0 0
        %549 = vmatpush.bf16.msra.mxu0 0
        %550 = vmatpush.bf16.msra.mxu0 %v541
        %551 = vmatmul.bf16.gmra.mxu0 %v538
        %v552 = vpop.f32.mrf.mxu0
        %v553 = vadd.f32 0.0, %v552
        %v554 = vpop.f32.mrf.mxu0
        %v555 = vadd.f32 0.0, %v554
        %556 = vdwg.mxu0
        %v557 = vadd.f32 %v522, %v553
        %v558 = vadd.f32 %v523, %v555
        %s559 = scalar_lea.vmem %s268, 16 [#allocation3]
        %v560 = vld [vmem:[%s559] sm:$0xf]
        %s561 = scalar_lea.vmem %s1, 64
        %v562 = vld [vmem:[%s561] sm:$0xf]
        %v563 = vld [vmem:[%s561 + $0x4] sm:$0xf]
        %v566 = vunpack.c.l.b16 %v562
        %v567 = vunpack.c.l.b16 %v563
        %v568 = vpack.c.b16 %v567, %v566
        %v570 = vsel %vm311, %v568, 0
        %v573 = vsel %vm315, %v560, 0
        %575 = vmatpush.bf16.msra.mxu0 0
        %576 = vmatpush.bf16.msra.mxu0 0
        %577 = vmatpush.bf16.msra.mxu0 0
        %578 = vmatpush.bf16.msra.mxu0 0
        %579 = vmatpush.bf16.msra.mxu0 0
        %580 = vmatpush.bf16.msra.mxu0 0
        %581 = vmatpush.bf16.msra.mxu0 0
        %582 = vmatpush.bf16.msra.mxu0 %v573
        %583 = vmatmul.bf16.gmra.mxu0 %v570
        %v584 = vpop.f32.mrf.mxu0
        %v585 = vadd.f32 0.0, %v584
        %v586 = vpop.f32.mrf.mxu0
        %v587 = vadd.f32 0.0, %v586
        %588 = vdwg.mxu0
        %v589 = vadd.f32 %v557, %v585
        %v590 = vadd.f32 %v558, %v587
        %s591 = scalar_lea.vmem %s1, 72
        %v592 = vld [vmem:[%s591] sm:$0xf]
        %v593 = vld [vmem:[%s591 + $0x4] sm:$0xf]
        %v596 = vunpack.c.l.b16 %v592
        %v597 = vunpack.c.l.b16 %v593
        %v598 = vpack.c.b16 %v597, %v596
        %v600 = vunpack.c.l.b16 %v560
        %v601 = vpack.c.b16 %v600, %v600
        %602 = vrot.lane.b32.xlu0 %v601, 120
        %v603 = vpop.permute.xlu0 %602
        %v605 = vsel %vm311, %v598, 0
        %v608 = vsel %vm315, %v603, 0
        %610 = vmatpush.bf16.msra.mxu0 0
        %611 = vmatpush.bf16.msra.mxu0 0
        %612 = vmatpush.bf16.msra.mxu0 0
        %613 = vmatpush.bf16.msra.mxu0 0
        %614 = vmatpush.bf16.msra.mxu0 0
        %615 = vmatpush.bf16.msra.mxu0 0
        %616 = vmatpush.bf16.msra.mxu0 0
        %617 = vmatpush.bf16.msra.mxu0 %v608
        %618 = vmatmul.bf16.gmra.mxu0 %v605
        %v619 = vpop.f32.mrf.mxu0
        %v620 = vadd.f32 0.0, %v619
        %v621 = vpop.f32.mrf.mxu0
        %v622 = vadd.f32 0.0, %v621
        %623 = vdwg.mxu0
        %v624 = vadd.f32 %v589, %v620
        %v625 = vadd.f32 %v590, %v622
        %s626 = scalar_lea.vmem %s268, 20 [#allocation3]
        %v627 = vld [vmem:[%s626] sm:$0xf]
        %s628 = scalar_lea.vmem %s1, 80
        %v629 = vld [vmem:[%s628] sm:$0xf]
        %v630 = vld [vmem:[%s628 + $0x4] sm:$0xf]
        %v633 = vunpack.c.l.b16 %v629
        %v634 = vunpack.c.l.b16 %v630
        %v635 = vpack.c.b16 %v634, %v633
        %v637 = vsel %vm311, %v635, 0
        %v640 = vsel %vm315, %v627, 0
        %642 = vmatpush.bf16.msra.mxu0 0
        %643 = vmatpush.bf16.msra.mxu0 0
        %644 = vmatpush.bf16.msra.mxu0 0
        %645 = vmatpush.bf16.msra.mxu0 0
        %646 = vmatpush.bf16.msra.mxu0 0
        %647 = vmatpush.bf16.msra.mxu0 0
        %648 = vmatpush.bf16.msra.mxu0 0
        %649 = vmatpush.bf16.msra.mxu0 %v640
        %650 = vmatmul.bf16.gmra.mxu0 %v637
        %v651 = vpop.f32.mrf.mxu0
        %v652 = vadd.f32 0.0, %v651
        %v653 = vpop.f32.mrf.mxu0
        %v654 = vadd.f32 0.0, %v653
        %655 = vdwg.mxu0
        %v656 = vadd.f32 %v624, %v652
        %v657 = vadd.f32 %v625, %v654
        %s658 = scalar_lea.vmem %s1, 88
        %v659 = vld [vmem:[%s658] sm:$0xf]
        %v660 = vld [vmem:[%s658 + $0x4] sm:$0xf]
        %v663 = vunpack.c.l.b16 %v659
        %v664 = vunpack.c.l.b16 %v660
        %v665 = vpack.c.b16 %v664, %v663
        %v667 = vunpack.c.l.b16 %v627
        %v668 = vpack.c.b16 %v667, %v667
        %669 = vrot.lane.b32.xlu0 %v668, 120
        %v670 = vpop.permute.xlu0 %669
        %v672 = vsel %vm311, %v665, 0
        %v675 = vsel %vm315, %v670, 0
        %677 = vmatpush.bf16.msra.mxu0 0
        %678 = vmatpush.bf16.msra.mxu0 0
        %679 = vmatpush.bf16.msra.mxu0 0
        %680 = vmatpush.bf16.msra.mxu0 0
        %681 = vmatpush.bf16.msra.mxu0 0
        %682 = vmatpush.bf16.msra.mxu0 0
        %683 = vmatpush.bf16.msra.mxu0 0
        %684 = vmatpush.bf16.msra.mxu0 %v675
        %685 = vmatmul.bf16.gmra.mxu0 %v672
        %v686 = vpop.f32.mrf.mxu0
        %v687 = vadd.f32 0.0, %v686
        %v688 = vpop.f32.mrf.mxu0
        %v689 = vadd.f32 0.0, %v688
        %690 = vdwg.mxu0
        %v691 = vadd.f32 %v656, %v687
        %v692 = vadd.f32 %v657, %v689
        %s693 = scalar_lea.vmem %s268, 24 [#allocation3]
        %v694 = vld [vmem:[%s693] sm:$0xf]
        %s695 = scalar_lea.vmem %s1, 96
        %v696 = vld [vmem:[%s695] sm:$0xf]
        %v697 = vld [vmem:[%s695 + $0x4] sm:$0xf]
        %v700 = vunpack.c.l.b16 %v696
        %v701 = vunpack.c.l.b16 %v697
        %v702 = vpack.c.b16 %v701, %v700
        %v704 = vsel %vm311, %v702, 0
        %v707 = vsel %vm315, %v694, 0
        %709 = vmatpush.bf16.msra.mxu0 0
        %710 = vmatpush.bf16.msra.mxu0 0
        %711 = vmatpush.bf16.msra.mxu0 0
        %712 = vmatpush.bf16.msra.mxu0 0
        %713 = vmatpush.bf16.msra.mxu0 0
        %714 = vmatpush.bf16.msra.mxu0 0
        %715 = vmatpush.bf16.msra.mxu0 0
        %716 = vmatpush.bf16.msra.mxu0 %v707
        %717 = vmatmul.bf16.gmra.mxu0 %v704
        %v718 = vpop.f32.mrf.mxu0
        %v719 = vadd.f32 0.0, %v718
        %v720 = vpop.f32.mrf.mxu0
        %v721 = vadd.f32 0.0, %v720
        %722 = vdwg.mxu0
        %v723 = vadd.f32 %v691, %v719
        %v724 = vadd.f32 %v692, %v721
        %s725 = scalar_lea.vmem %s1, 104
        %v726 = vld [vmem:[%s725] sm:$0xf]
        %v727 = vld [vmem:[%s725 + $0x4] sm:$0xf]
        %v730 = vunpack.c.l.b16 %v726
        %v731 = vunpack.c.l.b16 %v727
        %v732 = vpack.c.b16 %v731, %v730
        %v734 = vunpack.c.l.b16 %v694
        %v735 = vpack.c.b16 %v734, %v734
        %736 = vrot.lane.b32.xlu0 %v735, 120
        %v737 = vpop.permute.xlu0 %736
        %v739 = vsel %vm311, %v732, 0
        %v742 = vsel %vm315, %v737, 0
        %744 = vmatpush.bf16.msra.mxu0 0
        %745 = vmatpush.bf16.msra.mxu0 0
        %746 = vmatpush.bf16.msra.mxu0 0
        %747 = vmatpush.bf16.msra.mxu0 0
        %748 = vmatpush.bf16.msra.mxu0 0
        %749 = vmatpush.bf16.msra.mxu0 0
        %750 = vmatpush.bf16.msra.mxu0 0
        %751 = vmatpush.bf16.msra.mxu0 %v742
        %752 = vmatmul.bf16.gmra.mxu0 %v739
        %v753 = vpop.f32.mrf.mxu0
        %v754 = vadd.f32 0.0, %v753
        %v755 = vpop.f32.mrf.mxu0
        %v756 = vadd.f32 0.0, %v755
        %757 = vdwg.mxu0
        %v758 = vadd.f32 %v723, %v754
        %v759 = vadd.f32 %v724, %v756
        %s760 = scalar_lea.vmem %s268, 28 [#allocation3]
        %v761 = vld [vmem:[%s760] sm:$0xf]
        %s762 = scalar_lea.vmem %s1, 112
        %v763 = vld [vmem:[%s762] sm:$0xf]
        %v764 = vld [vmem:[%s762 + $0x4] sm:$0xf]
        %v767 = vunpack.c.l.b16 %v763
        %v768 = vunpack.c.l.b16 %v764
        %v769 = vpack.c.b16 %v768, %v767
        %v771 = vsel %vm311, %v769, 0
        %v774 = vsel %vm315, %v761, 0
        %776 = vmatpush.bf16.msra.mxu0 0
        %777 = vmatpush.bf16.msra.mxu0 0
        %778 = vmatpush.bf16.msra.mxu0 0
        %779 = vmatpush.bf16.msra.mxu0 0
        %780 = vmatpush.bf16.msra.mxu0 0
        %781 = vmatpush.bf16.msra.mxu0 0
        %782 = vmatpush.bf16.msra.mxu0 0
        %783 = vmatpush.bf16.msra.mxu0 %v774
        %784 = vmatmul.bf16.gmra.mxu0 %v771
        %v785 = vpop.f32.mrf.mxu0
        %v786 = vadd.f32 0.0, %v785
        %v787 = vpop.f32.mrf.mxu0
        %v788 = vadd.f32 0.0, %v787
        %789 = vdwg.mxu0
        %v790 = vadd.f32 %v758, %v786
        %v791 = vadd.f32 %v759, %v788
        %s792 = scalar_lea.vmem %s1, 120
        %v793 = vld [vmem:[%s792] sm:$0xf]
        %v794 = vld [vmem:[%s792 + $0x4] sm:$0xf]
        %v797 = vunpack.c.l.b16 %v793
        %v798 = vunpack.c.l.b16 %v794
        %v799 = vpack.c.b16 %v798, %v797
        %v801 = vunpack.c.l.b16 %v761
        %v802 = vpack.c.b16 %v801, %v801
        %803 = vrot.lane.b32.xlu0 %v802, 120
        %v804 = vpop.permute.xlu0 %803
        %v806 = vsel %vm311, %v799, 0
        %v809 = vsel %vm315, %v804, 0
        %811 = vmatpush.bf16.msra.mxu0 0
        %812 = vmatpush.bf16.msra.mxu0 0
        %813 = vmatpush.bf16.msra.mxu0 0
        %814 = vmatpush.bf16.msra.mxu0 0
        %815 = vmatpush.bf16.msra.mxu0 0
        %816 = vmatpush.bf16.msra.mxu0 0
        %817 = vmatpush.bf16.msra.mxu0 0
        %818 = vmatpush.bf16.msra.mxu0 %v809
        %819 = vmatmul.bf16.gmra.mxu0 %v806
        %v820 = vpop.f32.mrf.mxu0
        %v821 = vadd.f32 0.0, %v820
        %v822 = vpop.f32.mrf.mxu0
        %v823 = vadd.f32 0.0, %v822
        %824 = vdwg.mxu0
        %v825 = vadd.f32 %v790, %v821
        %v826 = vadd.f32 %v791, %v823
        %v827 = vld [vmem:[%s2] sm:$0xff]
        %v828 = vld [vmem:[%s2 + $0x8] sm:$0xff]
        %830 = vset.pattern.permute.xlu0 0
        %831 = vperm.xlu0 %830, %v827
        %v832 = vpop.permute.xlu0 %831
        %835 = vset.pattern.permute.xlu0 0
        %836 = vperm.xlu0 %835, %v828
        %v837 = vpop.permute.xlu0 %836
        %v839 = vadd.f32 %v825, %v832
        %v840 = vadd.f32 %v826, %v837
        %vm841 = vcmp.ge.f32.partialorder %v839, 0.0
        %vm842 = vcmp.ge.f32.partialorder %v840, 0.0
        %v843 = vmul.f32 %v839, 0.2
        %v844 = vmul.f32 %v840, 0.2
        %v845 = vsel %vm841, %v839, %v843
        %v846 = vsel %vm842, %v840, %v844
        %v847 = vld [vmem:[%s3] sm:$0x1]
        %v848 = vld [vmem:[#allocation2] sm:$0x1]
        %850 = vset.pattern.permute.xlu0 0
        %851 = vperm.xlu0 %850, %v848
        %v852 = vpop.permute.xlu0 %851
        %v854 = vperm.slane %v852, 0
        %vm855 = vcmask 130048
        %v857 = vsel %vm855, %v847, 0
        %859 = vmatpush.msra.mxu0 0.0
        %860 = vmatpush.msra.mxu0 0.0
        %861 = vmatpush.msra.mxu0 0.0
        %862 = vmatpush.msra.mxu0 0.0
        %863 = vmatpush.msra.mxu0 0.0
        %864 = vmatpush.msra.mxu0 0.0
        %865 = vmatpush.msra.mxu0 0.0
        %866 = vmatpush.msra.mxu0 0.0
        %867 = vmatpush.msra.mxu0 0.0
        %868 = vmatpush.msra.mxu0 0.0
        %869 = vmatpush.msra.mxu0 0.0
        %870 = vmatpush.msra.mxu0 0.0
        %871 = vmatpush.msra.mxu0 0.0
        %872 = vmatpush.msra.mxu0 0.0
        %873 = vmatpush.msra.mxu0 %v846
        %874 = vmatpush.msra.mxu0 %v845
        %875 = vmatmul.f32.gmra.mxu0 %v857
        %v876 = vpop.f32.mrf.mxu0
        %v877 = vadd.f32 %v854, %v876
        %878 = vdwg.mxu0
        %vm879 = vcmask 516096
        %880 = vst.msk [vmem:[%s293] sm:$0x1] %vm879, %v877
        %p881 = scmp.lt.s32.totalorder %s18, 1
        %s882 = scalar_select %p881, %s18, 1
        %s883 = scalar_lea.vmem %s5, %s882
        // Predicated region
        $region82: #{ms_image_discriminator.9} parent=76 // pred_check
          %p884 = pneg %p146
        $region83: #{ms_image_discriminator.9} parent=76 // pred_check_branch
          %886 = sbr.rel (%p884) target = $region85
        $region84: #{ms_image_discriminator.9} parent=76 // pred_region
          _
        $region85: #{ms_image_discriminator.9} parent=76 // pred_fallthru
          _
      $region77: #{ms_image_discriminator.9} parent=5 // pred_fallthru
        _
      %p887 = scmp.le.s32.totalorder 2, %s13
      // Predicated region
      $region86: #{ms_image_discriminator.9} parent=5 // pred_check
        %p888 = pneg %p887
      $region87: #{ms_image_discriminator.9} parent=5 // pred_check_branch
        %890 = sbr.rel (%p888) target = $region89
      $region88: #{ms_image_discriminator.9} parent=5 // pred_region
        %s891 = ssub.s32 %s13, 2
        // Predicated region
        $region90: #{ms_image_discriminator.9} parent=88 // pred_check
          %p892 = pneg %p152
        $region91: #{ms_image_discriminator.9} parent=88 // pred_check_branch
          %894 = sbr.rel (%p892) target = $region93
        $region92: #{ms_image_discriminator.9} parent=88 // pred_region
          %p895 = scmp.lt.s32.totalorder %s19, 1
          %s896 = scalar_select %p895, %s19, 1
          %s897 = scalar_lea.vmem %s5, %s896
        $region93: #{ms_image_discriminator.9} parent=88 // pred_fallthru
          _
      $region89: #{ms_image_discriminator.9} parent=5 // pred_fallthru
        _
    $region6: #{ms_image_discriminator.9} parent=1 // loop_footer
      %s17 = sadd.s32 1, %s13
    $region7: #{ms_image_discriminator.9} parent=1 // loop_footer_branch
      %12 = sbr.rel target = $region3
    $region8: #{ms_image_discriminator.9} parent=1 // loop_exit
      _

// kernel: ms_image_discriminator.10
$region0: #{ms_image_discriminator.10}
  #allocation0 [shape = 'u32[]', space=smem, size = 0x4, offset = 0x4, fixed_abs, tag = 'smem constant byte address 0x4 - core index']
  #allocation1 [shape = 'u32[72,128]{1,0:T(1,128)}', space=vmem, size = 0x9000, scoped, tag = 'internal scratch']
  %s0 = inlined_call_operand.vmem [shape: bf16[6,8,272], index: 0, kind: input, shape index: {}]
  %s1 = inlined_call_operand.vmem [shape: f32[1,256], index: 1, kind: input, shape index: {}]
  %s2 = inlined_call_operand.vmem [shape: bf16[8,256], index: 2, kind: output, shape index: {}]
  %s3 = sld [smem:[#allocation0]]
  $region18: #{ms_image_discriminator.10} parent=0
    _
  %s5 = ssub.s32 1, %s3
  %s6 = scalar_select 0, %s5, %s3
  // Predicated region
  $region2: #{ms_image_discriminator.10} parent=0 // pred_check
    _
  $region3: #{ms_image_discriminator.10} parent=0 // pred_check_branch
    %8 = sbr.rel (0) target = $region5
  $region4: #{ms_image_discriminator.10} parent=0 // pred_region
    _
  $region5: #{ms_image_discriminator.10} parent=0 // pred_fallthru
    _
  // Predicated region
  $region6: #{ms_image_discriminator.10} parent=0 // pred_check
    _
  $region7: #{ms_image_discriminator.10} parent=0 // pred_check_branch
    %10 = sbr.rel (0) target = $region9
  $region8: #{ms_image_discriminator.10} parent=0 // pred_region
    _
  $region9: #{ms_image_discriminator.10} parent=0 // pred_fallthru
    _
  %v11 = vld [vmem:[%s0] sm:$0xff]
  %v12 = vunpack.c.l.bf16 %v11
  %v13 = vunpack.c.h.bf16 %v11
  %v14 = vld [vmem:[%s0 + $0x8] sm:$0xf]
  %v15 = vunpack.c.l.bf16 %v14
  %19 = vrot.lane.b32.xlu0 %v12, 112
  %v20 = vpop.permute.xlu0 %19
  %21 = vrot.lane.b32.xlu0 %v13, 112
  %v22 = vpop.permute.xlu0 %21
  %23 = vrot.lane.b32.xlu0 %v15, 112
  %v24 = vpop.permute.xlu0 %23
  %vm25 = vcmask 916480
  %v26 = vsel %vm25, %v20, %v22
  %v27 = vsel %vm25, %v22, %v24
  %v30 = vadd.f32 %v12, %v26
  %v31 = vadd.f32 %v13, %v27
  %s32 = scalar_lea.vmem %s0, 12
  %v33 = vld [vmem:[%s32] sm:$0xff]
  %v34 = vunpack.c.l.bf16 %v33
  %v35 = vunpack.c.h.bf16 %v33
  %v36 = vadd.f32 %v30, %v34
  %v37 = vadd.f32 %v31, %v35
  %v38 = vld [vmem:[%s32 + $0x8] sm:$0xf]
  %v39 = vunpack.c.l.bf16 %v38
  %43 = vrot.lane.b32.xlu0 %v34, 112
  %v44 = vpop.permute.xlu0 %43
  %45 = vrot.lane.b32.xlu0 %v35, 112
  %v46 = vpop.permute.xlu0 %45
  %47 = vrot.lane.b32.xlu0 %v39, 112
  %v48 = vpop.permute.xlu0 %47
  %v49 = vsel %vm25, %v44, %v46
  %v50 = vsel %vm25, %v46, %v48
  %v53 = vadd.f32 %v36, %v49
  %v54 = vadd.f32 %v37, %v50
  %s55 = scalar_lea.vmem %s0, 24
  %v56 = vld [vmem:[%s55] sm:$0xff]
  %v57 = vunpack.c.l.bf16 %v56
  %v58 = vunpack.c.h.bf16 %v56
  %v59 = vadd.f32 %v53, %v57
  %v60 = vadd.f32 %v54, %v58
  %v61 = vld [vmem:[%s55 + $0x8] sm:$0xf]
  %v62 = vunpack.c.l.bf16 %v61
  %66 = vrot.lane.b32.xlu0 %v57, 112
  %v67 = vpop.permute.xlu0 %66
  %68 = vrot.lane.b32.xlu0 %v58, 112
  %v69 = vpop.permute.xlu0 %68
  %70 = vrot.lane.b32.xlu0 %v62, 112
  %v71 = vpop.permute.xlu0 %70
  %v72 = vsel %vm25, %v67, %v69
  %v73 = vsel %vm25, %v69, %v71
  %v76 = vadd.f32 %v59, %v72
  %v77 = vadd.f32 %v60, %v73
  %s78 = scalar_lea.vmem %s0, 36
  %v79 = vld [vmem:[%s78] sm:$0xff]
  %v80 = vunpack.c.l.bf16 %v79
  %v81 = vunpack.c.h.bf16 %v79
  %v82 = vadd.f32 %v76, %v80
  %v83 = vadd.f32 %v77, %v81
  %s84 = scalar_lea.vmem %s0, 48
  %v85 = vld [vmem:[%s84] sm:$0xff]
  %v86 = vunpack.c.l.bf16 %v85
  %v87 = vunpack.c.h.bf16 %v85
  %v88 = vadd.f32 %v82, %v86
  %v89 = vadd.f32 %v83, %v87
  %s90 = scalar_lea.vmem %s0, 60
  %v91 = vld [vmem:[%s90] sm:$0xff]
  %v92 = vunpack.c.l.bf16 %v91
  %v93 = vunpack.c.h.bf16 %v91
  %v94 = vadd.f32 %v88, %v92
  %v95 = vadd.f32 %v89, %v93
  %v96 = vld [vmem:[%s1] sm:$0x3]
  %v98 = vperm.slane %v96, 0
  %v99 = vperm.slane %v96, 1
  %v102 = vmul.f32 %v94, %v98
  %v103 = vmul.f32 %v95, %v99
  %v104 = vpack.c.bf16 %v103, %v102
  %105 = vst [vmem:[%s2] sm:$0xff] %v104
  // Predicated region
  $region10: #{ms_image_discriminator.10} parent=0 // pred_check
    _
  $region11: #{ms_image_discriminator.10} parent=0 // pred_check_branch
    %107 = sbr.rel (0) target = $region13
  $region12: #{ms_image_discriminator.10} parent=0 // pred_region
    _
  $region13: #{ms_image_discriminator.10} parent=0 // pred_fallthru
    _
  // Predicated region
  $region14: #{ms_image_discriminator.10} parent=0 // pred_check
    _
  $region15: #{ms_image_discriminator.10} parent=0 // pred_check_branch
    %109 = sbr.rel (0) target = $region17
  $region16: #{ms_image_discriminator.10} parent=0 // pred_region
    _
  $region17: #{ms_image_discriminator.10} parent=0 // pred_fallthru
    _

// kernel: ms_image_discriminator.11
$region0: #{ms_image_discriminator.11}
  #allocation0 [shape = 'u32[]', space=smem, size = 0x4, offset = 0x4, fixed_abs, tag = 'smem constant byte address 0x4 - core index']
  #allocation1 [shape = 'u32[72,128]{1,0:T(1,128)}', space=vmem, size = 0x9000, scoped, tag = 'internal scratch']
  %s0 = inlined_call_operand.vmem [shape: bf16[8,2,4,72], index: 0, kind: input, shape index: {}]
  %s1 = inlined_call_operand.vmem [shape: bf16[16,8,4], index: 1, kind: input, shape index: {}]
  %s2 = inlined_call_operand.vmem [shape: f32[8,1], index: 2, kind: input, shape index: {}]
  %s3 = inlined_call_operand.vmem [shape: bf16[2,8,64], index: 3, kind: output, shape index: {}]
  %s4 = sld [smem:[#allocation0]]
  $region86: #{ms_image_discriminator.11} parent=0
    _
  %s6 = ssub.s32 1, %s4
  %s7 = scalar_select 0, %s6, %s4
  $region1: #{ms_image_discriminator.11} parent=0
    #allocation2 [shape = 'u8[16384]{0}', space=vmem, size = 0x4000, scoped, tag = 'input window, operand 0']
    loop: start=0, step=1, limit=4
    $region2: #{ms_image_discriminator.11} parent=1 // loop_pre_header
      _
    $region3: #{ms_image_discriminator.11} parent=1 // loop_header
      %s9 = sphi 0, %s13
      %p10 = scmp.ge.s32.totalorder %s9, 4
      %s19 = sphi 0, %s21
      %s22 = sphi 0, %s19
      %s23 = sphi 0, %s22
      %s39 = sphi 0, %s23
      %s43 = sphi 0, %s43
      %s45 = sphi 0, %s43
      %s46 = sphi 0, %s45
      %s60 = sphi 0, %s46
      %s64 = sphi 0, %s64
      %s66 = sphi 0, %s64
      %s67 = sphi 0, %s66
      %s81 = sphi 0, %s67
      %s87 = sphi 0, %s89
      %s90 = sphi 0, %s87
      %s91 = sphi 0, %s90
      %s107 = sphi 0, %s91
    $region4: #{ms_image_discriminator.11} parent=1 // loop_header_branch
      %12 = sbr.rel (%p10) target = $region8
    $region5: #{ms_image_discriminator.11} parent=1 // loop_body
      %s14 = ssub.s32 %s9, 1
      %s15 = ssub.s32 %s9, 2
      %s16 = sadd.s32 %s9, 1
      %s17 = ssub.s32 %s9, %s16
      %p18 = scmp.eq.s32.totalorder %s17, 0
      %s20 = sadd.s32 %s19, 1
      %s21 = scalar_select %p18, %s19, %s20
      %p24 = pneg %p18
      %p25 = scmp.eq.s32.totalorder %s9, 1
      %p26 = por %p24, %p25
      %p27 = scmp.ne.s32.totalorder %s19, %s22
      %p28 = scmp.eq.s32.totalorder %s9, 0
      %p29 = por %p27, %p28
      %p30 = scmp.ne.s32.totalorder %s19, %s22
      %p31 = scmp.eq.s32.totalorder %s14, 1
      %p32 = por %p30, %p31
      %p33 = scmp.ne.s32.totalorder %s22, %s23
      %p34 = scmp.eq.s32.totalorder %s14, 0
      %p35 = por %p33, %p34
      %p36 = scmp.ne.s32.totalorder %s22, %s23
      %p37 = scmp.eq.s32.totalorder %s15, 1
      %p38 = por %p36, %p37
      %p40 = scmp.ne.s32.totalorder %s23, %s39
      %p41 = scmp.eq.s32.totalorder %s15, 0
      %p42 = por %p40, %p41
      %s44 = sadd.s32 %s43, 1
      %p47 = scmp.eq.s32.totalorder %s9, 1
      %p48 = scmp.ne.s32.totalorder %s43, %s45
      %p49 = scmp.eq.s32.totalorder %s9, 0
      %p50 = por %p48, %p49
      %p51 = scmp.ne.s32.totalorder %s43, %s45
      %p52 = scmp.eq.s32.totalorder %s14, 1
      %p53 = por %p51, %p52
      %p54 = scmp.ne.s32.totalorder %s45, %s46
      %p55 = scmp.eq.s32.totalorder %s14, 0
      %p56 = por %p54, %p55
      %p57 = scmp.ne.s32.totalorder %s45, %s46
      %p58 = scmp.eq.s32.totalorder %s15, 1
      %p59 = por %p57, %p58
      %p61 = scmp.ne.s32.totalorder %s46, %s60
      %p62 = scmp.eq.s32.totalorder %s15, 0
      %p63 = por %p61, %p62
      %s65 = sadd.s32 %s64, 1
      %p68 = scmp.eq.s32.totalorder %s9, 1
      %p69 = scmp.ne.s32.totalorder %s64, %s66
      %p70 = scmp.eq.s32.totalorder %s9, 0
      %p71 = por %p69, %p70
      %p72 = scmp.ne.s32.totalorder %s64, %s66
      %p73 = scmp.eq.s32.totalorder %s14, 1
      %p74 = por %p72, %p73
      %p75 = scmp.ne.s32.totalorder %s66, %s67
      %p76 = scmp.eq.s32.totalorder %s14, 0
      %p77 = por %p75, %p76
      %p78 = scmp.ne.s32.totalorder %s66, %s67
      %p79 = scmp.eq.s32.totalorder %s15, 1
      %p80 = por %p78, %p79
      %p82 = scmp.ne.s32.totalorder %s67, %s81
      %p83 = scmp.eq.s32.totalorder %s15, 0
      %p84 = por %p82, %p83
      %s85 = ssub.s32 %s9, %s16
      %p86 = scmp.eq.s32.totalorder %s85, 0
      %s88 = sadd.s32 %s87, 1
      %s89 = scalar_select %p86, %s87, %s88
      %p92 = pneg %p86
      %p93 = scmp.eq.s32.totalorder %s9, 1
      %p94 = por %p92, %p93
      %p95 = scmp.ne.s32.totalorder %s87, %s90
      %p96 = scmp.eq.s32.totalorder %s9, 0
      %p97 = por %p95, %p96
      %p98 = scmp.ne.s32.totalorder %s87, %s90
      %p99 = scmp.eq.s32.totalorder %s14, 1
      %p100 = por %p98, %p99
      %p101 = scmp.ne.s32.totalorder %s90, %s91
      %p102 = scmp.eq.s32.totalorder %s14, 0
      %p103 = por %p101, %p102
      %p104 = scmp.ne.s32.totalorder %s90, %s91
      %p105 = scmp.eq.s32.totalorder %s15, 1
      %p106 = por %p104, %p105
      %p108 = scmp.ne.s32.totalorder %s91, %s107
      %p109 = scmp.eq.s32.totalorder %s15, 0
      %p110 = por %p108, %p109
      %p111 = scmp.le.s32.totalorder 1, %s9
      %p112 = scmp.lt.s32.totalorder %s9, 3
      %p113 = pnand %p111, %p112
      %p114 = pneg %p113
      // Predicated region
      $region9: #{ms_image_discriminator.11} parent=5 // pred_check
        _
      $region10: #{ms_image_discriminator.11} parent=5 // pred_check_branch
        %116 = sbr.rel (%p113) target = $region12
      $region11: #{ms_image_discriminator.11} parent=5 // pred_region
        %s117 = ssub.s32 %s9, 1
        // Predicated region
        $region13: #{ms_image_discriminator.11} parent=11 // pred_check
          %p118 = pneg %p56
        $region14: #{ms_image_discriminator.11} parent=11 // pred_check_branch
          %120 = sbr.rel (%p118) target = $region16
        $region15: #{ms_image_discriminator.11} parent=11 // pred_region
          _
        $region16: #{ms_image_discriminator.11} parent=11 // pred_fallthru
          _
        // Predicated region
        $region17: #{ms_image_discriminator.11} parent=11 // pred_check
          %p121 = pneg %p77
        $region18: #{ms_image_discriminator.11} parent=11 // pred_check_branch
          %123 = sbr.rel (%p121) target = $region20
        $region19: #{ms_image_discriminator.11} parent=11 // pred_region
          _
        $region20: #{ms_image_discriminator.11} parent=11 // pred_fallthru
          _
      $region12: #{ms_image_discriminator.11} parent=5 // pred_fallthru
        _
      %p124 = scmp.lt.s32.totalorder %s9, 2
      // Predicated region
      $region21: #{ms_image_discriminator.11} parent=5 // pred_check
        %p125 = pneg %p124
      $region22: #{ms_image_discriminator.11} parent=5 // pred_check_branch
        %127 = sbr.rel (%p125) target = $region24
      $region23: #{ms_image_discriminator.11} parent=5 // pred_region
        // Predicated region
        $region25: #{ms_image_discriminator.11} parent=23 // pred_check
          %p128 = pneg %p29
        $region26: #{ms_image_discriminator.11} parent=23 // pred_check_branch
          %130 = sbr.rel (%p128) target = $region28
        $region27: #{ms_image_discriminator.11} parent=23 // pred_region
          %s131 = sand.u32 %s19, 1
          %s132 = sand.u32 %s19, 1
          %s133 = smul.addr %s132, 16
          %s134 = scalar_lea.vmem [#allocation2], %s133
          %s135 = smul.addr %s9, 2
          %s136 = scalar_lea.vmem %s0, %s135
          // Predicated region
          $region29: #{ms_image_discriminator.11} parent=27 // pred_check
            _
          $region30: #{ms_image_discriminator.11} parent=27 // pred_check_branch
            %138 = sbr.rel (0) target = $region32
          $region31: #{ms_image_discriminator.11} parent=27 // pred_region
            // Predicated region
            $region33: #{ms_image_discriminator.11} parent=31 // pred_check
              _
            $region34: #{ms_image_discriminator.11} parent=31 // pred_check_branch
              %140 = sbr.rel target = $region36
            $region35: #{ms_image_discriminator.11} parent=31 // pred_region
              // Predicated region
              $region48: #{ms_image_discriminator.11} parent=35 // pred_check
                _
              $region49: #{ms_image_discriminator.11} parent=35 // pred_check_branch
                %170 = sbr.rel (0) target = $region51
              $region50: #{ms_image_discriminator.11} parent=35 // pred_region
                loop: start=0, step=1, limit=1
                $region52: #{ms_image_discriminator.11} parent=50 // loop_pre_header
                  _
                $region53: #{ms_image_discriminator.11} parent=50 // loop_header
                  %s172 = sphi 0, %s176
                  %p173 = scmp.ge.s32.totalorder %s172, 1
                  %s177 = sphi %s136, %s136
                  %s178 = sphi %s134, %s134
                $region54: #{ms_image_discriminator.11} parent=50 // loop_header_branch
                  %175 = sbr.rel (%p173) target = $region58
                $region55: #{ms_image_discriminator.11} parent=50 // loop_body
                  _
                $region56: #{ms_image_discriminator.11} parent=50 // loop_footer
                  %s176 = sadd.s32 1, %s172
                $region57: #{ms_image_discriminator.11} parent=50 // loop_footer_branch
                  %171 = sbr.rel target = $region53
                $region58: #{ms_image_discriminator.11} parent=50 // loop_exit
                  _
                %s180 = ssub.s32 4, 1
                loop: start=0, step=1, limit=1
                $region59: #{ms_image_discriminator.11} parent=50 // loop_pre_header
                  _
                $region60: #{ms_image_discriminator.11} parent=50 // loop_header
                  %s182 = sphi 0, %s186
                  %p183 = scmp.ge.s32.totalorder %s182, 1
                  %s187 = sphi %s136, %s136
                  %s188 = sphi %s134, %s134
                $region61: #{ms_image_discriminator.11} parent=50 // loop_header_branch
                  %185 = sbr.rel (%p183) target = $region65
                $region62: #{ms_image_discriminator.11} parent=50 // loop_body
                  %v189 = vld [vmem:[%s187] sm:%s180]
                  %190 = vst [vmem:[%s188] sm:%s180] %v189
                  %v191 = vld [vmem:[%s187 + $0x4] sm:%s180]
                  %192 = vst [vmem:[%s188 + $0x2] sm:%s180] %v191
                  %v193 = vld [vmem:[%s187 + $0x8] sm:%s180]
                  %194 = vst [vmem:[%s188 + $0x4] sm:%s180] %v193
                  %v195 = vld [vmem:[%s187 + $0xc] sm:%s180]
                  %196 = vst [vmem:[%s188 + $0x6] sm:%s180] %v195
                  %v197 = vld [vmem:[%s187 + $0x10] sm:%s180]
                  %198 = vst [vmem:[%s188 + $0x8] sm:%s180] %v197
                  %v199 = vld [vmem:[%s187 + $0x14] sm:%s180]
                  %200 = vst [vmem:[%s188 + $0xa] sm:%s180] %v199
                  %v201 = vld [vmem:[%s187 + $0x18] sm:%s180]
                  %202 = vst [vmem:[%s188 + $0xc] sm:%s180] %v201
                  %v203 = vld [vmem:[%s187 + $0x1c] sm:%s180]
                  %204 = vst [vmem:[%s188 + $0xe] sm:%s180] %v203
                $region63: #{ms_image_discriminator.11} parent=50 // loop_footer
                  %s186 = sadd.s32 1, %s182
                $region64: #{ms_image_discriminator.11} parent=50 // loop_footer_branch
                  %181 = sbr.rel target = $region60
                $region65: #{ms_image_discriminator.11} parent=50 // loop_exit
                  _
              $region51: #{ms_image_discriminator.11} parent=35 // pred_fallthru
                _
            $region36: #{ms_image_discriminator.11} parent=31 // pred_fallthru
              _
            // Predicated region
            $region37: #{ms_image_discriminator.11} parent=31 // pred_check
              _
            $region38: #{ms_image_discriminator.11} parent=31 // pred_check_branch
              %142 = sbr.rel (0) target = $region40
            $region39: #{ms_image_discriminator.11} parent=31 // pred_region
              %s144 = ssub.s32 4, 1
              loop: start=0, step=1, limit=1
              $region41: #{ms_image_discriminator.11} parent=39 // loop_pre_header
                _
              $region42: #{ms_image_discriminator.11} parent=39 // loop_header
                %s146 = sphi 0, %s150
                %p147 = scmp.ge.s32.totalorder %s146, 1
                %s151 = sphi %s136, %s136
                %s152 = sphi %s134, %s134
              $region43: #{ms_image_discriminator.11} parent=39 // loop_header_branch
                %149 = sbr.rel (%p147) target = $region47
              $region44: #{ms_image_discriminator.11} parent=39 // loop_body
                %v153 = vld [vmem:[%s151] sm:%s144]
                %154 = vst [vmem:[%s152] sm:%s144] %v153
                %v155 = vld [vmem:[%s151 + $0x4] sm:%s144]
                %156 = vst [vmem:[%s152 + $0x2] sm:%s144] %v155
                %v157 = vld [vmem:[%s151 + $0x8] sm:%s144]
                %158 = vst [vmem:[%s152 + $0x4] sm:%s144] %v157
                %v159 = vld [vmem:[%s151 + $0xc] sm:%s144]
                %160 = vst [vmem:[%s152 + $0x6] sm:%s144] %v159
                %v161 = vld [vmem:[%s151 + $0x10] sm:%s144]
                %162 = vst [vmem:[%s152 + $0x8] sm:%s144] %v161
                %v163 = vld [vmem:[%s151 + $0x14] sm:%s144]
                %164 = vst [vmem:[%s152 + $0xa] sm:%s144] %v163
                %v165 = vld [vmem:[%s151 + $0x18] sm:%s144]
                %166 = vst [vmem:[%s152 + $0xc] sm:%s144] %v165
                %v167 = vld [vmem:[%s151 + $0x1c] sm:%s144]
                %168 = vst [vmem:[%s152 + $0xe] sm:%s144] %v167
              $region45: #{ms_image_discriminator.11} parent=39 // loop_footer
                %s150 = sadd.s32 1, %s146
              $region46: #{ms_image_discriminator.11} parent=39 // loop_footer_branch
                %145 = sbr.rel target = $region42
              $region47: #{ms_image_discriminator.11} parent=39 // loop_exit
                _
            $region40: #{ms_image_discriminator.11} parent=31 // pred_fallthru
              _
          $region32: #{ms_image_discriminator.11} parent=27 // pred_fallthru
            _
          %205 = vnop
        $region28: #{ms_image_discriminator.11} parent=23 // pred_fallthru
          _
      $region24: #{ms_image_discriminator.11} parent=5 // pred_fallthru
        _
      %p206 = scmp.le.s32.totalorder 1, %s9
      %p207 = scmp.lt.s32.totalorder %s9, 3
      %p208 = pnand %p206, %p207
      %p209 = pneg %p208
      // Predicated region
      $region66: #{ms_image_discriminator.11} parent=5 // pred_check
        _
      $region67: #{ms_image_discriminator.11} parent=5 // pred_check_branch
        %211 = sbr.rel (%p208) target = $region69
      $region68: #{ms_image_discriminator.11} parent=5 // pred_region
        %s212 = ssub.s32 %s9, 1
        %s213 = sand.u32 %s22, 1
        %s214 = sand.u32 %s22, 1
        %s215 = smul.addr %s214, 16
        %s216 = scalar_lea.vmem [#allocation2], %s215
        // Predicated region
        $region70: #{ms_image_discriminator.11} parent=68 // pred_check
          %p217 = pneg %p35
        $region71: #{ms_image_discriminator.11} parent=68 // pred_check_branch
          %219 = sbr.rel (%p217) target = $region73
        $region72: #{ms_image_discriminator.11} parent=68 // pred_region
          _
        $region73: #{ms_image_discriminator.11} parent=68 // pred_fallthru
          _
        %s220 = sand.u32 %s22, 1
        %s221 = sand.u32 %s22, 1
        %s222 = smul.addr %s221, 16
        %s223 = scalar_lea.vmem [#allocation2], %s222
        %p224 = pneg %p35
        %p225 = pneg %p32
        %p226 = pneg %p56
        %p227 = pneg %p53
        %p228 = pneg %p77
        %p229 = pneg %p74
        %p230 = pneg %p103
        %p231 = pneg %p100
        %p232 = scmp.lt.s32.totalorder %s14, 1
        %s233 = scalar_select %p232, %s14, 1
        %s234 = smul.addr %s233, 4
        %s235 = scalar_lea.vmem %s3, %s234
        %p236 = scmp.lt.s32.totalorder %s14, 1
        %s237 = scalar_select %p236, %s14, 1
        %s238 = smul.addr %s237, 4
        %s239 = scalar_lea.vmem %s3, %s238
        %v241 = vld [vmem:[%s216] sm:$0x3]
        %v242 = vld [vmem:[%s1] sm:$0xf]
        %s243 = scalar_lea.vmem %s1, 4
        %v244 = vld [vmem:[%s243] sm:$0xf]
        %246 = vst [vmem:[#allocation1] ss:$4 sm:$0xff] %v241
        %v247 = vld.sshfl [vmem:[#allocation1] sm:$0xff pattern:$0x73625140]
        %249 = vrot.lane.b32.xlu0 %v247, 120
        %v250 = vpop.permute.xlu0 %249
        %vm251 = vcmask 31744
        %v253 = vsel %vm251, %v244, 0
        %vm255 = vcmask 1041408
        %v257 = vsel %vm255, %v250, 0
        %259 = vmatpush.bf16.msra.mxu0 0
        %260 = vmatpush.bf16.msra.mxu0 0
        %261 = vmatpush.bf16.msra.mxu0 0
        %262 = vmatpush.bf16.msra.mxu0 0
        %263 = vmatpush.bf16.msra.mxu0 0
        %264 = vmatpush.bf16.msra.mxu0 0
        %265 = vmatpush.bf16.msra.mxu0 0
        %266 = vmatpush.bf16.msra.mxu0 %v257
        %267 = vmatmul.bf16.gmra.mxu0 %v253
        %v268 = vpop.f32.mrf.mxu0
        %v269 = vadd.f32 0.0, %v268
        %v270 = vpop.f32.mrf.mxu0
        %271 = vdwg.mxu0
        %v273 = vsel %vm251, %v242, 0
        %v275 = vsel %vm255, %v241, 0
        %277 = vmatpush.bf16.msra.mxu0 0
        %278 = vmatpush.bf16.msra.mxu0 0
        %279 = vmatpush.bf16.msra.mxu0 0
        %280 = vmatpush.bf16.msra.mxu0 0
        %281 = vmatpush.bf16.msra.mxu0 0
        %282 = vmatpush.bf16.msra.mxu0 0
        %283 = vmatpush.bf16.msra.mxu0 0
        %284 = vmatpush.bf16.msra.mxu0 %v275
        %285 = vmatmul.bf16.gmra.mxu0 %v273
        %v286 = vpop.f32.mrf.mxu0
        %v287 = vadd.f32 %v269, %v286
        %v288 = vpop.f32.mrf.mxu0
        %289 = vdwg.mxu0
        %s290 = scalar_lea.vmem %s216, 2 [#allocation2]
        %v291 = vld [vmem:[%s290] sm:$0x3]
        %s292 = scalar_lea.vmem %s1, 8
        %v293 = vld [vmem:[%s292] sm:$0xf]
        %v295 = vsel %vm251, %v293, 0
        %v298 = vsel %vm255, %v291, 0
        %300 = vmatpush.bf16.msra.mxu0 0
        %301 = vmatpush.bf16.msra.mxu0 0
        %302 = vmatpush.bf16.msra.mxu0 0
        %303 = vmatpush.bf16.msra.mxu0 0
        %304 = vmatpush.bf16.msra.mxu0 0
        %305 = vmatpush.bf16.msra.mxu0 0
        %306 = vmatpush.bf16.msra.mxu0 0
        %307 = vmatpush.bf16.msra.mxu0 %v298
        %308 = vmatmul.bf16.gmra.mxu0 %v295
        %v309 = vpop.f32.mrf.mxu0
        %v310 = vadd.f32 0.0, %v309
        %v311 = vpop.f32.mrf.mxu0
        %312 = vdwg.mxu0
        %v313 = vadd.f32 %v287, %v310
        %s314 = scalar_lea.vmem %s1, 12
        %v315 = vld [vmem:[%s314] sm:$0xf]
        %316 = vst [vmem:[#allocation1] ss:$4 sm:$0xff] %v291
        %v317 = vld.sshfl [vmem:[#allocation1] sm:$0xff pattern:$0x73625140]
        %319 = vrot.lane.b32.xlu0 %v317, 120
        %v320 = vpop.permute.xlu0 %319
        %v322 = vsel %vm251, %v315, 0
        %v325 = vsel %vm255, %v320, 0
        %327 = vmatpush.bf16.msra.mxu0 0
        %328 = vmatpush.bf16.msra.mxu0 0
        %329 = vmatpush.bf16.msra.mxu0 0
        %330 = vmatpush.bf16.msra.mxu0 0
        %331 = vmatpush.bf16.msra.mxu0 0
        %332 = vmatpush.bf16.msra.mxu0 0
        %333 = vmatpush.bf16.msra.mxu0 0
        %334 = vmatpush.bf16.msra.mxu0 %v325
        %335 = vmatmul.bf16.gmra.mxu0 %v322
        %v336 = vpop.f32.mrf.mxu0
        %v337 = vadd.f32 0.0, %v336
        %v338 = vpop.f32.mrf.mxu0
        %339 = vdwg.mxu0
        %v340 = vadd.f32 %v313, %v337
        %s341 = scalar_lea.vmem %s216, 4 [#allocation2]
        %v342 = vld [vmem:[%s341] sm:$0x3]
        %s343 = scalar_lea.vmem %s1, 16
        %v344 = vld [vmem:[%s343] sm:$0xf]
        %v346 = vsel %vm251, %v344, 0
        %v349 = vsel %vm255, %v342, 0
        %351 = vmatpush.bf16.msra.mxu0 0
        %352 = vmatpush.bf16.msra.mxu0 0
        %353 = vmatpush.bf16.msra.mxu0 0
        %354 = vmatpush.bf16.msra.mxu0 0
        %355 = vmatpush.bf16.msra.mxu0 0
        %356 = vmatpush.bf16.msra.mxu0 0
        %357 = vmatpush.bf16.msra.mxu0 0
        %358 = vmatpush.bf16.msra.mxu0 %v349
        %359 = vmatmul.bf16.gmra.mxu0 %v346
        %v360 = vpop.f32.mrf.mxu0
        %v361 = vadd.f32 0.0, %v360
        %v362 = vpop.f32.mrf.mxu0
        %363 = vdwg.mxu0
        %v364 = vadd.f32 %v340, %v361
        %s365 = scalar_lea.vmem %s1, 20
        %v366 = vld [vmem:[%s365] sm:$0xf]
        %367 = vst [vmem:[#allocation1] ss:$4 sm:$0xff] %v342
        %v368 = vld.sshfl [vmem:[#allocation1] sm:$0xff pattern:$0x73625140]
        %370 = vrot.lane.b32.xlu0 %v368, 120
        %v371 = vpop.permute.xlu0 %370
        %v373 = vsel %vm251, %v366, 0
        %v376 = vsel %vm255, %v371, 0
        %378 = vmatpush.bf16.msra.mxu0 0
        %379 = vmatpush.bf16.msra.mxu0 0
        %380 = vmatpush.bf16.msra.mxu0 0
        %381 = vmatpush.bf16.msra.mxu0 0
        %382 = vmatpush.bf16.msra.mxu0 0
        %383 = vmatpush.bf16.msra.mxu0 0
        %384 = vmatpush.bf16.msra.mxu0 0
        %385 = vmatpush.bf16.msra.mxu0 %v376
        %386 = vmatmul.bf16.gmra.mxu0 %v373
        %v387 = vpop.f32.mrf.mxu0
        %v388 = vadd.f32 0.0, %v387
        %v389 = vpop.f32.mrf.mxu0
        %390 = vdwg.mxu0
        %v391 = vadd.f32 %v364, %v388
        %s392 = scalar_lea.vmem %s216, 6 [#allocation2]
        %v393 = vld [vmem:[%s392] sm:$0x3]
        %s394 = scalar_lea.vmem %s1, 24
        %v395 = vld [vmem:[%s394] sm:$0xf]
        %v397 = vsel %vm251, %v395, 0
        %v400 = vsel %vm255, %v393, 0
        %402 = vmatpush.bf16.msra.mxu0 0
        %403 = vmatpush.bf16.msra.mxu0 0
        %404 = vmatpush.bf16.msra.mxu0 0
        %405 = vmatpush.bf16.msra.mxu0 0
        %406 = vmatpush.bf16.msra.mxu0 0
        %407 = vmatpush.bf16.msra.mxu0 0
        %408 = vmatpush.bf16.msra.mxu0 0
        %409 = vmatpush.bf16.msra.mxu0 %v400
        %410 = vmatmul.bf16.gmra.mxu0 %v397
        %v411 = vpop.f32.mrf.mxu0
        %v412 = vadd.f32 0.0, %v411
        %v413 = vpop.f32.mrf.mxu0
        %414 = vdwg.mxu0
        %v415 = vadd.f32 %v391, %v412
        %s416 = scalar_lea.vmem %s1, 28
        %v417 = vld [vmem:[%s416] sm:$0xf]
        %418 = vst [vmem:[#allocation1] ss:$4 sm:$0xff] %v393
        %v419 = vld.sshfl [vmem:[#allocation1] sm:$0xff pattern:$0x73625140]
        %421 = vrot.lane.b32.xlu0 %v419, 120
        %v422 = vpop.permute.xlu0 %421
        %v424 = vsel %vm251, %v417, 0
        %v427 = vsel %vm255, %v422, 0
        %429 = vmatpush.bf16.msra.mxu0 0
        %430 = vmatpush.bf16.msra.mxu0 0
        %431 = vmatpush.bf16.msra.mxu0 0
        %432 = vmatpush.bf16.msra.mxu0 0
        %433 = vmatpush.bf16.msra.mxu0 0
        %434 = vmatpush.bf16.msra.mxu0 0
        %435 = vmatpush.bf16.msra.mxu0 0
        %436 = vmatpush.bf16.msra.mxu0 %v427
        %437 = vmatmul.bf16.gmra.mxu0 %v424
        %v438 = vpop.f32.mrf.mxu0
        %v439 = vadd.f32 0.0, %v438
        %v440 = vpop.f32.mrf.mxu0
        %441 = vdwg.mxu0
        %v442 = vadd.f32 %v415, %v439
        %s443 = scalar_lea.vmem %s216, 8 [#allocation2]
        %v444 = vld [vmem:[%s443] sm:$0x3]
        %s445 = scalar_lea.vmem %s1, 32
        %v446 = vld [vmem:[%s445] sm:$0xf]
        %v448 = vsel %vm251, %v446, 0
        %v451 = vsel %vm255, %v444, 0
        %453 = vmatpush.bf16.msra.mxu0 0
        %454 = vmatpush.bf16.msra.mxu0 0
        %455 = vmatpush.bf16.msra.mxu0 0
        %456 = vmatpush.bf16.msra.mxu0 0
        %457 = vmatpush.bf16.msra.mxu0 0
        %458 = vmatpush.bf16.msra.mxu0 0
        %459 = vmatpush.bf16.msra.mxu0 0
        %460 = vmatpush.bf16.msra.mxu0 %v451
        %461 = vmatmul.bf16.gmra.mxu0 %v448
        %v462 = vpop.f32.mrf.mxu0
        %v463 = vadd.f32 0.0, %v462
        %v464 = vpop.f32.mrf.mxu0
        %465 = vdwg.mxu0
        %v466 = vadd.f32 %v442, %v463
        %s467 = scalar_lea.vmem %s1, 36
        %v468 = vld [vmem:[%s467] sm:$0xf]
        %469 = vst [vmem:[#allocation1] ss:$4 sm:$0xff] %v444
        %v470 = vld.sshfl [vmem:[#allocation1] sm:$0xff pattern:$0x73625140]
        %472 = vrot.lane.b32.xlu0 %v470, 120
        %v473 = vpop.permute.xlu0 %472
        %v475 = vsel %vm251, %v468, 0
        %v478 = vsel %vm255, %v473, 0
        %480 = vmatpush.bf16.msra.mxu0 0
        %481 = vmatpush.bf16.msra.mxu0 0
        %482 = vmatpush.bf16.msra.mxu0 0
        %483 = vmatpush.bf16.msra.mxu0 0
        %484 = vmatpush.bf16.msra.mxu0 0
        %485 = vmatpush.bf16.msra.mxu0 0
        %486 = vmatpush.bf16.msra.mxu0 0
        %487 = vmatpush.bf16.msra.mxu0 %v478
        %488 = vmatmul.bf16.gmra.mxu0 %v475
        %v489 = vpop.f32.mrf.mxu0
        %v490 = vadd.f32 0.0, %v489
        %v491 = vpop.f32.mrf.mxu0
        %492 = vdwg.mxu0
        %v493 = vadd.f32 %v466, %v490
        %s494 = scalar_lea.vmem %s216, 10 [#allocation2]
        %v495 = vld [vmem:[%s494] sm:$0x3]
        %s496 = scalar_lea.vmem %s1, 40
        %v497 = vld [vmem:[%s496] sm:$0xf]
        %v499 = vsel %vm251, %v497, 0
        %v502 = vsel %vm255, %v495, 0
        %504 = vmatpush.bf16.msra.mxu0 0
        %505 = vmatpush.bf16.msra.mxu0 0
        %506 = vmatpush.bf16.msra.mxu0 0
        %507 = vmatpush.bf16.msra.mxu0 0
        %508 = vmatpush.bf16.msra.mxu0 0
        %509 = vmatpush.bf16.msra.mxu0 0
        %510 = vmatpush.bf16.msra.mxu0 0
        %511 = vmatpush.bf16.msra.mxu0 %v502
        %512 = vmatmul.bf16.gmra.mxu0 %v499
        %v513 = vpop.f32.mrf.mxu0
        %v514 = vadd.f32 0.0, %v513
        %v515 = vpop.f32.mrf.mxu0
        %516 = vdwg.mxu0
        %v517 = vadd.f32 %v493, %v514
        %s518 = scalar_lea.vmem %s1, 44
        %v519 = vld [vmem:[%s518] sm:$0xf]
        %520 = vst [vmem:[#allocation1] ss:$4 sm:$0xff] %v495
        %v521 = vld.sshfl [vmem:[#allocation1] sm:$0xff pattern:$0x73625140]
        %523 = vrot.lane.b32.xlu0 %v521, 120
        %v524 = vpop.permute.xlu0 %523
        %v526 = vsel %vm251, %v519, 0
        %v529 = vsel %vm255, %v524, 0
        %531 = vmatpush.bf16.msra.mxu0 0
        %532 = vmatpush.bf16.msra.mxu0 0
        %533 = vmatpush.bf16.msra.mxu0 0
        %534 = vmatpush.bf16.msra.mxu0 0
        %535 = vmatpush.bf16.msra.mxu0 0
        %536 = vmatpush.bf16.msra.mxu0 0
        %537 = vmatpush.bf16.msra.mxu0 0
        %538 = vmatpush.bf16.msra.mxu0 %v529
        %539 = vmatmul.bf16.gmra.mxu0 %v526
        %v540 = vpop.f32.mrf.mxu0
        %v541 = vadd.f32 0.0, %v540
        %v542 = vpop.f32.mrf.mxu0
        %543 = vdwg.mxu0
        %v544 = vadd.f32 %v517, %v541
        %s545 = scalar_lea.vmem %s216, 12 [#allocation2]
        %v546 = vld [vmem:[%s545] sm:$0x3]
        %s547 = scalar_lea.vmem %s1, 48
        %v548 = vld [vmem:[%s547] sm:$0xf]
        %v550 = vsel %vm251, %v548, 0
        %v553 = vsel %vm255, %v546, 0
        %555 = vmatpush.bf16.msra.mxu0 0
        %556 = vmatpush.bf16.msra.mxu0 0
        %557 = vmatpush.bf16.msra.mxu0 0
        %558 = vmatpush.bf16.msra.mxu0 0
        %559 = vmatpush.bf16.msra.mxu0 0
        %560 = vmatpush.bf16.msra.mxu0 0
        %561 = vmatpush.bf16.msra.mxu0 0
        %562 = vmatpush.bf16.msra.mxu0 %v553
        %563 = vmatmul.bf16.gmra.mxu0 %v550
        %v564 = vpop.f32.mrf.mxu0
        %v565 = vadd.f32 0.0, %v564
        %v566 = vpop.f32.mrf.mxu0
        %567 = vdwg.mxu0
        %v568 = vadd.f32 %v544, %v565
        %s569 = scalar_lea.vmem %s1, 52
        %v570 = vld [vmem:[%s569] sm:$0xf]
        %571 = vst [vmem:[#allocation1] ss:$4 sm:$0xff] %v546
        %v572 = vld.sshfl [vmem:[#allocation1] sm:$0xff pattern:$0x73625140]
        %574 = vrot.lane.b32.xlu0 %v572, 120
        %v575 = vpop.permute.xlu0 %574
        %v577 = vsel %vm251, %v570, 0
        %v580 = vsel %vm255, %v575, 0
        %582 = vmatpush.bf16.msra.mxu0 0
        %583 = vmatpush.bf16.msra.mxu0 0
        %584 = vmatpush.bf16.msra.mxu0 0
        %585 = vmatpush.bf16.msra.mxu0 0
        %586 = vmatpush.bf16.msra.mxu0 0
        %587 = vmatpush.bf16.msra.mxu0 0
        %588 = vmatpush.bf16.msra.mxu0 0
        %589 = vmatpush.bf16.msra.mxu0 %v580
        %590 = vmatmul.bf16.gmra.mxu0 %v577
        %v591 = vpop.f32.mrf.mxu0
        %v592 = vadd.f32 0.0, %v591
        %v593 = vpop.f32.mrf.mxu0
        %594 = vdwg.mxu0
        %v595 = vadd.f32 %v568, %v592
        %s596 = scalar_lea.vmem %s216, 14 [#allocation2]
        %v597 = vld [vmem:[%s596] sm:$0x3]
        %s598 = scalar_lea.vmem %s1, 56
        %v599 = vld [vmem:[%s598] sm:$0xf]
        %v601 = vsel %vm251, %v599, 0
        %v604 = vsel %vm255, %v597, 0
        %606 = vmatpush.bf16.msra.mxu0 0
        %607 = vmatpush.bf16.msra.mxu0 0
        %608 = vmatpush.bf16.msra.mxu0 0
        %609 = vmatpush.bf16.msra.mxu0 0
        %610 = vmatpush.bf16.msra.mxu0 0
        %611 = vmatpush.bf16.msra.mxu0 0
        %612 = vmatpush.bf16.msra.mxu0 0
        %613 = vmatpush.bf16.msra.mxu0 %v604
        %614 = vmatmul.bf16.gmra.mxu0 %v601
        %v615 = vpop.f32.mrf.mxu0
        %v616 = vadd.f32 0.0, %v615
        %v617 = vpop.f32.mrf.mxu0
        %618 = vdwg.mxu0
        %v619 = vadd.f32 %v595, %v616
        %s620 = scalar_lea.vmem %s1, 60
        %v621 = vld [vmem:[%s620] sm:$0xf]
        %622 = vst [vmem:[#allocation1] ss:$4 sm:$0xff] %v597
        %v623 = vld.sshfl [vmem:[#allocation1] sm:$0xff pattern:$0x73625140]
        %625 = vrot.lane.b32.xlu0 %v623, 120
        %v626 = vpop.permute.xlu0 %625
        %v628 = vsel %vm251, %v621, 0
        %v631 = vsel %vm255, %v626, 0
        %633 = vmatpush.bf16.msra.mxu0 0
        %634 = vmatpush.bf16.msra.mxu0 0
        %635 = vmatpush.bf16.msra.mxu0 0
        %636 = vmatpush.bf16.msra.mxu0 0
        %637 = vmatpush.bf16.msra.mxu0 0
        %638 = vmatpush.bf16.msra.mxu0 0
        %639 = vmatpush.bf16.msra.mxu0 0
        %640 = vmatpush.bf16.msra.mxu0 %v631
        %641 = vmatmul.bf16.gmra.mxu0 %v628
        %v642 = vpop.f32.mrf.mxu0
        %v643 = vadd.f32 0.0, %v642
        %v644 = vpop.f32.mrf.mxu0
        %645 = vdwg.mxu0
        %v646 = vadd.f32 %v619, %v643
        %v647 = vld [vmem:[%s2] sm:$0xff]
        %649 = vset.pattern.permute.xlu0 0
        %650 = vperm.xlu0 %649, %v647
        %v651 = vpop.permute.xlu0 %650
        %v653 = vadd.f32 %v646, %v651
        %vm654 = vcmp.ge.f32.partialorder %v653, 0.0
        %v655 = vmul.f32 %v653, 0.2
        %v656 = vsel %vm654, %v653, %v655
        %v657 = vpack.c.bf16 %v656, %v656
        %vm658 = vcmask 519168
        %659 = vst.msk [vmem:[%s239] sm:$0xf] %vm658, %v657
        %p660 = scmp.lt.s32.totalorder %s14, 1
        %s661 = scalar_select %p660, %s14, 1
        %s662 = smul.addr %s661, 4
        %s663 = scalar_lea.vmem %s3, %s662
        // Predicated region
        $region74: #{ms_image_discriminator.11} parent=68 // pred_check
          %p664 = pneg %p100
        $region75: #{ms_image_discriminator.11} parent=68 // pred_check_branch
          %666 = sbr.rel (%p664) target = $region77
        $region76: #{ms_image_discriminator.11} parent=68 // pred_region
          _
        $region77: #{ms_image_discriminator.11} parent=68 // pred_fallthru
          _
      $region69: #{ms_image_discriminator.11} parent=5 // pred_fallthru
        _
      %p667 = scmp.le.s32.totalorder 2, %s9
      // Predicated region
      $region78: #{ms_image_discriminator.11} parent=5 // pred_check
        %p668 = pneg %p667
      $region79: #{ms_image_discriminator.11} parent=5 // pred_check_branch
        %670 = sbr.rel (%p668) target = $region81
      $region80: #{ms_image_discriminator.11} parent=5 // pred_region
        %s671 = ssub.s32 %s9, 2
        // Predicated region
        $region82: #{ms_image_discriminator.11} parent=80 // pred_check
          %p672 = pneg %p106
        $region83: #{ms_image_discriminator.11} parent=80 // pred_check_branch
          %674 = sbr.rel (%p672) target = $region85
        $region84: #{ms_image_discriminator.11} parent=80 // pred_region
          %p675 = scmp.lt.s32.totalorder %s15, 1
          %s676 = scalar_select %p675, %s15, 1
          %s677 = smul.addr %s676, 4
          %s678 = scalar_lea.vmem %s3, %s677
        $region85: #{ms_image_discriminator.11} parent=80 // pred_fallthru
          _
      $region81: #{ms_image_discriminator.11} parent=5 // pred_fallthru
        _
    $region6: #{ms_image_discriminator.11} parent=1 // loop_footer
      %s13 = sadd.s32 1, %s9
    $region7: #{ms_image_discriminator.11} parent=1 // loop_footer_branch
      %8 = sbr.rel target = $region3
    $region8: #{ms_image_discriminator.11} parent=1 // loop_exit
      _

// kernel: ms_image_discriminator.12
$region0: #{ms_image_discriminator.12}
  #allocation0 [shape = 'u32[]', space=smem, size = 0x4, offset = 0x4, fixed_abs, tag = 'smem constant byte address 0x4 - core index']
  #allocation1 [shape = 'u32[72,128]{1,0:T(1,128)}', space=vmem, size = 0x9000, scoped, tag = 'internal scratch']
  #allocation2 [shape = 'f32[1,1]{1,0:T(1,128)S(1)}', space=vmem, size = 0x200, scoped, tag = 'scoped memory for ms_image_discriminator.12']
  %s0 = inlined_call_operand.vmem [shape: bf16[8,2,8,20], index: 0, kind: input, shape index: {}]
  %s1 = inlined_call_operand.vmem [shape: bf16[16,16,8], index: 1, kind: input, shape index: {}]
  %s2 = inlined_call_operand.vmem [shape: f32[16,1], index: 2, kind: input, shape index: {}]
  %s3 = inlined_call_operand.vmem [shape: f32[1,16], index: 3, kind: input, shape index: {}]
  %s4 = inlined_call_operand.<no memory space> [shape: f32[1,1], index: 4, kind: input, shape index: {}]
  %s5 = inlined_call_operand.vmem [shape: f32[2,1,16], index: 5, kind: output, shape index: {}]
  %s6 = sld [smem:[#allocation0]]
  $region94: #{ms_image_discriminator.12} parent=0
    _
  %s8 = ssub.s32 1, %s6
  %s9 = scalar_select 0, %s8, %s6
  %v10 = vstv %s4
  %11 = vst [vmem:[#allocation2] sm:$0x1] %v10
  $region1: #{ms_image_discriminator.12} parent=0
    #allocation3 [shape = 'u8[32768]{0}', space=vmem, size = 0x8000, scoped, tag = 'input window, operand 0']
    loop: start=0, step=1, limit=4
    $region2: #{ms_image_discriminator.12} parent=1 // loop_pre_header
      _
    $region3: #{ms_image_discriminator.12} parent=1 // loop_header
      %s13 = sphi 0, %s17
      %p14 = scmp.ge.s32.totalorder %s13, 4
      %s23 = sphi 0, %s25
      %s26 = sphi 0, %s23
      %s27 = sphi 0, %s26
      %s43 = sphi 0, %s27
      %s47 = sphi 0, %s47
      %s49 = sphi 0, %s47
      %s50 = sphi 0, %s49
      %s64 = sphi 0, %s50
      %s68 = sphi 0, %s68
      %s70 = sphi 0, %s68
      %s71 = sphi 0, %s70
      %s85 = sphi 0, %s71
      %s89 = sphi 0, %s89
      %s91 = sphi 0, %s89
      %s92 = sphi 0, %s91
      %s106 = sphi 0, %s92
      %s110 = sphi 0, %s110
      %s112 = sphi 0, %s110
      %s113 = sphi 0, %s112
      %s127 = sphi 0, %s113
      %s133 = sphi 0, %s135
      %s136 = sphi 0, %s133
      %s137 = sphi 0, %s136
      %s153 = sphi 0, %s137
    $region4: #{ms_image_discriminator.12} parent=1 // loop_header_branch
      %16 = sbr.rel (%p14) target = $region8
    $region5: #{ms_image_discriminator.12} parent=1 // loop_body
      %s18 = ssub.s32 %s13, 1
      %s19 = ssub.s32 %s13, 2
      %s20 = sadd.s32 %s13, 1
      %s21 = ssub.s32 %s13, %s20
      %p22 = scmp.eq.s32.totalorder %s21, 0
      %s24 = sadd.s32 %s23, 1
      %s25 = scalar_select %p22, %s23, %s24
      %p28 = pneg %p22
      %p29 = scmp.eq.s32.totalorder %s13, 1
      %p30 = por %p28, %p29
      %p31 = scmp.ne.s32.totalorder %s23, %s26
      %p32 = scmp.eq.s32.totalorder %s13, 0
      %p33 = por %p31, %p32
      %p34 = scmp.ne.s32.totalorder %s23, %s26
      %p35 = scmp.eq.s32.totalorder %s18, 1
      %p36 = por %p34, %p35
      %p37 = scmp.ne.s32.totalorder %s26, %s27
      %p38 = scmp.eq.s32.totalorder %s18, 0
      %p39 = por %p37, %p38
      %p40 = scmp.ne.s32.totalorder %s26, %s27
      %p41 = scmp.eq.s32.totalorder %s19, 1
      %p42 = por %p40, %p41
      %p44 = scmp.ne.s32.totalorder %s27, %s43
      %p45 = scmp.eq.s32.totalorder %s19, 0
      %p46 = por %p44, %p45
      %s48 = sadd.s32 %s47, 1
      %p51 = scmp.eq.s32.totalorder %s13, 1
      %p52 = scmp.ne.s32.totalorder %s47, %s49
      %p53 = scmp.eq.s32.totalorder %s13, 0
      %p54 = por %p52, %p53
      %p55 = scmp.ne.s32.totalorder %s47, %s49
      %p56 = scmp.eq.s32.totalorder %s18, 1
      %p57 = por %p55, %p56
      %p58 = scmp.ne.s32.totalorder %s49, %s50
      %p59 = scmp.eq.s32.totalorder %s18, 0
      %p60 = por %p58, %p59
      %p61 = scmp.ne.s32.totalorder %s49, %s50
      %p62 = scmp.eq.s32.totalorder %s19, 1
      %p63 = por %p61, %p62
      %p65 = scmp.ne.s32.totalorder %s50, %s64
      %p66 = scmp.eq.s32.totalorder %s19, 0
      %p67 = por %p65, %p66
      %s69 = sadd.s32 %s68, 1
      %p72 = scmp.eq.s32.totalorder %s13, 1
      %p73 = scmp.ne.s32.totalorder %s68, %s70
      %p74 = scmp.eq.s32.totalorder %s13, 0
      %p75 = por %p73, %p74
      %p76 = scmp.ne.s32.totalorder %s68, %s70
      %p77 = scmp.eq.s32.totalorder %s18, 1
      %p78 = por %p76, %p77
      %p79 = scmp.ne.s32.totalorder %s70, %s71
      %p80 = scmp.eq.s32.totalorder %s18, 0
      %p81 = por %p79, %p80
      %p82 = scmp.ne.s32.totalorder %s70, %s71
      %p83 = scmp.eq.s32.totalorder %s19, 1
      %p84 = por %p82, %p83
      %p86 = scmp.ne.s32.totalorder %s71, %s85
      %p87 = scmp.eq.s32.totalorder %s19, 0
      %p88 = por %p86, %p87
      %s90 = sadd.s32 %s89, 1
      %p93 = scmp.eq.s32.totalorder %s13, 1
      %p94 = scmp.ne.s32.totalorder %s89, %s91
      %p95 = scmp.eq.s32.totalorder %s13, 0
      %p96 = por %p94, %p95
      %p97 = scmp.ne.s32.totalorder %s89, %s91
      %p98 = scmp.eq.s32.totalorder %s18, 1
      %p99 = por %p97, %p98
      %p100 = scmp.ne.s32.totalorder %s91, %s92
      %p101 = scmp.eq.s32.totalorder %s18, 0
      %p102 = por %p100, %p101
      %p103 = scmp.ne.s32.totalorder %s91, %s92
      %p104 = scmp.eq.s32.totalorder %s19, 1
      %p105 = por %p103, %p104
      %p107 = scmp.ne.s32.totalorder %s92, %s106
      %p108 = scmp.eq.s32.totalorder %s19, 0
      %p109 = por %p107, %p108
      %s111 = sadd.s32 %s110, 1
      %p114 = scmp.eq.s32.totalorder %s13, 1
      %p115 = scmp.ne.s32.totalorder %s110, %s112
      %p116 = scmp.eq.s32.totalorder %s13, 0
      %p117 = por %p115, %p116
      %p118 = scmp.ne.s32.totalorder %s110, %s112
      %p119 = scmp.eq.s32.totalorder %s18, 1
      %p120 = por %p118, %p119
      %p121 = scmp.ne.s32.totalorder %s112, %s113
      %p122 = scmp.eq.s32.totalorder %s18, 0
      %p123 = por %p121, %p122
      %p124 = scmp.ne.s32.totalorder %s112, %s113
      %p125 = scmp.eq.s32.totalorder %s19, 1
      %p126 = por %p124, %p125
      %p128 = scmp.ne.s32.totalorder %s113, %s127
      %p129 = scmp.eq.s32.totalorder %s19, 0
      %p130 = por %p128, %p129
      %s131 = ssub.s32 %s13, %s20
      %p132 = scmp.eq.s32.totalorder %s131, 0
      %s134 = sadd.s32 %s133, 1
      %s135 = scalar_select %p132, %s133, %s134
      %p138 = pneg %p132
      %p139 = scmp.eq.s32.totalorder %s13, 1
      %p140 = por %p138, %p139
      %p141 = scmp.ne.s32.totalorder %s133, %s136
      %p142 = scmp.eq.s32.totalorder %s13, 0
      %p143 = por %p141, %p142
      %p144 = scmp.ne.s32.totalorder %s133, %s136
      %p145 = scmp.eq.s32.totalorder %s18, 1
      %p146 = por %p144, %p145
      %p147 = scmp.ne.s32.totalorder %s136, %s137
      %p148 = scmp.eq.s32.totalorder %s18, 0
      %p149 = por %p147, %p148
      %p150 = scmp.ne.s32.totalorder %s136, %s137
      %p151 = scmp.eq.s32.totalorder %s19, 1
      %p152 = por %p150, %p151
      %p154 = scmp.ne.s32.totalorder %s137, %s153
      %p155 = scmp.eq.s32.totalorder %s19, 0
      %p156 = por %p154, %p155
      %p157 = scmp.le.s32.totalorder 1, %s13
      %p158 = scmp.lt.s32.totalorder %s13, 3
      %p159 = pnand %p157, %p158
      %p160 = pneg %p159
      // Predicated region
      $region9: #{ms_image_discriminator.12} parent=5 // pred_check
        _
      $region10: #{ms_image_discriminator.12} parent=5 // pred_check_branch
        %162 = sbr.rel (%p159) target = $region12
      $region11: #{ms_image_discriminator.12} parent=5 // pred_region
        %s163 = ssub.s32 %s13, 1
        // Predicated region
        $region13: #{ms_image_discriminator.12} parent=11 // pred_check
          %p164 = pneg %p60
        $region14: #{ms_image_discriminator.12} parent=11 // pred_check_branch
          %166 = sbr.rel (%p164) target = $region16
        $region15: #{ms_image_discriminator.12} parent=11 // pred_region
          _
        $region16: #{ms_image_discriminator.12} parent=11 // pred_fallthru
          _
        // Predicated region
        $region17: #{ms_image_discriminator.12} parent=11 // pred_check
          %p167 = pneg %p81
        $region18: #{ms_image_discriminator.12} parent=11 // pred_check_branch
          %169 = sbr.rel (%p167) target = $region20
        $region19: #{ms_image_discriminator.12} parent=11 // pred_region
          _
        $region20: #{ms_image_discriminator.12} parent=11 // pred_fallthru
          _
        // Predicated region
        $region21: #{ms_image_discriminator.12} parent=11 // pred_check
          %p170 = pneg %p102
        $region22: #{ms_image_discriminator.12} parent=11 // pred_check_branch
          %172 = sbr.rel (%p170) target = $region24
        $region23: #{ms_image_discriminator.12} parent=11 // pred_region
          _
        $region24: #{ms_image_discriminator.12} parent=11 // pred_fallthru
          _
        // Predicated region
        $region25: #{ms_image_discriminator.12} parent=11 // pred_check
          %p173 = pneg %p123
        $region26: #{ms_image_discriminator.12} parent=11 // pred_check_branch
          %175 = sbr.rel (%p173) target = $region28
        $region27: #{ms_image_discriminator.12} parent=11 // pred_region
          _
        $region28: #{ms_image_discriminator.12} parent=11 // pred_fallthru
          _
      $region12: #{ms_image_discriminator.12} parent=5 // pred_fallthru
        _
      %p176 = scmp.lt.s32.totalorder %s13, 2
      // Predicated region
      $region29: #{ms_image_discriminator.12} parent=5 // pred_check
        %p177 = pneg %p176
      $region30: #{ms_image_discriminator.12} parent=5 // pred_check_branch
        %179 = sbr.rel (%p177) target = $region32
      $region31: #{ms_image_discriminator.12} parent=5 // pred_region
        // Predicated region
        $region33: #{ms_image_discriminator.12} parent=31 // pred_check
          %p180 = pneg %p33
        $region34: #{ms_image_discriminator.12} parent=31 // pred_check_branch
          %182 = sbr.rel (%p180) target = $region36
        $region35: #{ms_image_discriminator.12} parent=31 // pred_region
          %s183 = sand.u32 %s23, 1
          %s184 = sand.u32 %s23, 1
          %s185 = smul.addr %s184, 32
          %s186 = scalar_lea.vmem [#allocation3], %s185
          %s187 = smul.addr %s13, 4
          %s188 = scalar_lea.vmem %s0, %s187
          // Predicated region
          $region37: #{ms_image_discriminator.12} parent=35 // pred_check
            _
          $region38: #{ms_image_discriminator.12} parent=35 // pred_check_branch
            %190 = sbr.rel (0) target = $region40
          $region39: #{ms_image_discriminator.12} parent=35 // pred_region
            // Predicated region
            $region41: #{ms_image_discriminator.12} parent=39 // pred_check
              _
            $region42: #{ms_image_discriminator.12} parent=39 // pred_check_branch
              %192 = sbr.rel target = $region44
            $region43: #{ms_image_discriminator.12} parent=39 // pred_region
              // Predicated region
              $region56: #{ms_image_discriminator.12} parent=43 // pred_check
                _
              $region57: #{ms_image_discriminator.12} parent=43 // pred_check_branch
                %222 = sbr.rel (0) target = $region59
              $region58: #{ms_image_discriminator.12} parent=43 // pred_region
                loop: start=0, step=1, limit=1
                $region60: #{ms_image_discriminator.12} parent=58 // loop_pre_header
                  _
                $region61: #{ms_image_discriminator.12} parent=58 // loop_header
                  %s224 = sphi 0, %s228
                  %p225 = scmp.ge.s32.totalorder %s224, 1
                  %s229 = sphi %s188, %s188
                  %s230 = sphi %s186, %s186
                $region62: #{ms_image_discriminator.12} parent=58 // loop_header_branch
                  %227 = sbr.rel (%p225) target = $region66
                $region63: #{ms_image_discriminator.12} parent=58 // loop_body
                  _
                $region64: #{ms_image_discriminator.12} parent=58 // loop_footer
                  %s228 = sadd.s32 1, %s224
                $region65: #{ms_image_discriminator.12} parent=58 // loop_footer_branch
                  %223 = sbr.rel target = $region61
                $region66: #{ms_image_discriminator.12} parent=58 // loop_exit
                  _
                %s232 = ssub.s32 16, 1
                loop: start=0, step=1, limit=1
                $region67: #{ms_image_discriminator.12} parent=58 // loop_pre_header
                  _
                $region68: #{ms_image_discriminator.12} parent=58 // loop_header
                  %s234 = sphi 0, %s238
                  %p235 = scmp.ge.s32.totalorder %s234, 1
                  %s239 = sphi %s188, %s188
                  %s240 = sphi %s186, %s186
                $region69: #{ms_image_discriminator.12} parent=58 // loop_header_branch
                  %237 = sbr.rel (%p235) target = $region73
                $region70: #{ms_image_discriminator.12} parent=58 // loop_body
                  %v241 = vld [vmem:[%s239] sm:%s232]
                  %242 = vst [vmem:[%s240] sm:%s232] %v241
                  %v243 = vld [vmem:[%s239 + $0x8] sm:%s232]
                  %244 = vst [vmem:[%s240 + $0x4] sm:%s232] %v243
                  %v245 = vld [vmem:[%s239 + $0x10] sm:%s232]
                  %246 = vst [vmem:[%s240 + $0x8] sm:%s232] %v245
                  %v247 = vld [vmem:[%s239 + $0x18] sm:%s232]
                  %248 = vst [vmem:[%s240 + $0xc] sm:%s232] %v247
                  %v249 = vld [vmem:[%s239 + $0x20] sm:%s232]
                  %250 = vst [vmem:[%s240 + $0x10] sm:%s232] %v249
                  %v251 = vld [vmem:[%s239 + $0x28] sm:%s232]
                  %252 = vst [vmem:[%s240 + $0x14] sm:%s232] %v251
                  %v253 = vld [vmem:[%s239 + $0x30] sm:%s232]
                  %254 = vst [vmem:[%s240 + $0x18] sm:%s232] %v253
                  %v255 = vld [vmem:[%s239 + $0x38] sm:%s232]
                  %256 = vst [vmem:[%s240 + $0x1c] sm:%s232] %v255
                $region71: #{ms_image_discriminator.12} parent=58 // loop_footer
                  %s238 = sadd.s32 1, %s234
                $region72: #{ms_image_discriminator.12} parent=58 // loop_footer_branch
                  %233 = sbr.rel target = $region68
                $region73: #{ms_image_discriminator.12} parent=58 // loop_exit
                  _
              $region59: #{ms_image_discriminator.12} parent=43 // pred_fallthru
                _
            $region44: #{ms_image_discriminator.12} parent=39 // pred_fallthru
              _
            // Predicated region
            $region45: #{ms_image_discriminator.12} parent=39 // pred_check
              _
            $region46: #{ms_image_discriminator.12} parent=39 // pred_check_branch
              %194 = sbr.rel (0) target = $region48
            $region47: #{ms_image_discriminator.12} parent=39 // pred_region
              %s196 = ssub.s32 16, 1
              loop: start=0, step=1, limit=1
              $region49: #{ms_image_discriminator.12} parent=47 // loop_pre_header
                _
              $region50: #{ms_image_discriminator.12} parent=47 // loop_header
                %s198 = sphi 0, %s202
                %p199 = scmp.ge.s32.totalorder %s198, 1
                %s203 = sphi %s188, %s188
                %s204 = sphi %s186, %s186
              $region51: #{ms_image_discriminator.12} parent=47 // loop_header_branch
                %201 = sbr.rel (%p199) target = $region55
              $region52: #{ms_image_discriminator.12} parent=47 // loop_body
                %v205 = vld [vmem:[%s203] sm:%s196]
                %206 = vst [vmem:[%s204] sm:%s196] %v205
                %v207 = vld [vmem:[%s203 + $0x8] sm:%s196]
                %208 = vst [vmem:[%s204 + $0x4] sm:%s196] %v207
                %v209 = vld [vmem:[%s203 + $0x10] sm:%s196]
                %210 = vst [vmem:[%s204 + $0x8] sm:%s196] %v209
                %v211 = vld [vmem:[%s203 + $0x18] sm:%s196]
                %212 = vst [vmem:[%s204 + $0xc] sm:%s196] %v211
                %v213 = vld [vmem:[%s203 + $0x20] sm:%s196]
                %214 = vst [vmem:[%s204 + $0x10] sm:%s196] %v213
                %v215 = vld [vmem:[%s203 + $0x28] sm:%s196]
                %216 = vst [vmem:[%s204 + $0x14] sm:%s196] %v215
                %v217 = vld [vmem:[%s203 + $0x30] sm:%s196]
                %218 = vst [vmem:[%s204 + $0x18] sm:%s196] %v217
                %v219 = vld [vmem:[%s203 + $0x38] sm:%s196]
                %220 = vst [vmem:[%s204 + $0x1c] sm:%s196] %v219
              $region53: #{ms_image_discriminator.12} parent=47 // loop_footer
                %s202 = sadd.s32 1, %s198
              $region54: #{ms_image_discriminator.12} parent=47 // loop_footer_branch
                %197 = sbr.rel target = $region50
              $region55: #{ms_image_discriminator.12} parent=47 // loop_exit
                _
            $region48: #{ms_image_discriminator.12} parent=39 // pred_fallthru
              _
          $region40: #{ms_image_discriminator.12} parent=35 // pred_fallthru
            _
          %257 = vnop
        $region36: #{ms_image_discriminator.12} parent=31 // pred_fallthru
          _
      $region32: #{ms_image_discriminator.12} parent=5 // pred_fallthru
        _
      %p258 = scmp.le.s32.totalorder 1, %s13
      %p259 = scmp.lt.s32.totalorder %s13, 3
      %p260 = pnand %p258, %p259
      %p261 = pneg %p260
      // Predicated region
      $region74: #{ms_image_discriminator.12} parent=5 // pred_check
        _
      $region75: #{ms_image_discriminator.12} parent=5 // pred_check_branch
        %263 = sbr.rel (%p260) target = $region77
      $region76: #{ms_image_discriminator.12} parent=5 // pred_region
        %s264 = ssub.s32 %s13, 1
        %s265 = sand.u32 %s26, 1
        %s266 = sand.u32 %s26, 1
        %s267 = smul.addr %s266, 32
        %s268 = scalar_lea.vmem [#allocation3], %s267
        // Predicated region
        $region78: #{ms_image_discriminator.12} parent=76 // pred_check
          %p269 = pneg %p39
        $region79: #{ms_image_discriminator.12} parent=76 // pred_check_branch
          %271 = sbr.rel (%p269) target = $region81
        $region80: #{ms_image_discriminator.12} parent=76 // pred_region
          _
        $region81: #{ms_image_discriminator.12} parent=76 // pred_fallthru
          _
        %s272 = sand.u32 %s26, 1
        %s273 = sand.u32 %s26, 1
        %s274 = smul.addr %s273, 32
        %s275 = scalar_lea.vmem [#allocation3], %s274
        %p276 = pneg %p39
        %p277 = pneg %p36
        %p278 = pneg %p60
        %p279 = pneg %p57
        %p280 = pneg %p81
        %p281 = pneg %p78
        %p282 = pneg %p102
        %p283 = pneg %p99
        %p284 = pneg %p123
        %p285 = pneg %p120
        %p286 = pneg %p149
        %p287 = pneg %p146
        %p288 = scmp.lt.s32.totalorder %s18, 1
        %s289 = scalar_select %p288, %s18, 1
        %s290 = scalar_lea.vmem %s5, %s289
        %p291 = scmp.lt.s32.totalorder %s18, 1
        %s292 = scalar_select %p291, %s18, 1
        %s293 = scalar_lea.vmem %s5, %s292
        %v295 = vld [vmem:[%s268] sm:$0xf]
        %v296 = vld [vmem:[%s1] sm:$0xf]
        %v297 = vld [vmem:[%s1 + $0x4] sm:$0xf]
        %s298 = scalar_lea.vmem %s1, 8
        %v299 = vld [vmem:[%s298] sm:$0xf]
        %v300 = vld [vmem:[%s298 + $0x4] sm:$0xf]
        %v303 = vunpack.c.l.b16 %v299
        %v304 = vunpack.c.l.b16 %v300
        %v305 = vpack.c.b16 %v304, %v303
        %v307 = vunpack.c.l.b16 %v295
        %v308 = vpack.c.b16 %v307, %v307
        %309 = vrot.lane.b32.xlu0 %v308, 124
        %v310 = vpop.permute.xlu0 %309
        %vm311 = vcmask 64512
        %v313 = vsel %vm311, %v305, 0
        %vm315 = vcmask 1043456
        %v317 = vsel %vm315, %v310, 0
        %319 = vmatpush.bf16.msra.mxu0 0
        %320 = vmatpush.bf16.msra.mxu0 0
        %321 = vmatpush.bf16.msra.mxu0 0
        %322 = vmatpush.bf16.msra.mxu0 0
        %323 = vmatpush.bf16.msra.mxu0 0
        %324 = vmatpush.bf16.msra.mxu0 0
        %325 = vmatpush.bf16.msra.mxu0 0
        %326 = vmatpush.bf16.msra.mxu0 %v317
        %327 = vmatmul.bf16.gmra.mxu0 %v313
        %v328 = vpop.f32.mrf.mxu0
        %v329 = vadd.f32 0.0, %v328
        %v330 = vpop.f32.mrf.mxu0
        %v331 = vadd.f32 0.0, %v330
        %332 = vdwg.mxu0
        %v335 = vunpack.c.l.b16 %v296
        %v336 = vunpack.c.l.b16 %v297
        %v337 = vpack.c.b16 %v336, %v335
        %v339 = vsel %vm311, %v337, 0
        %v342 = vsel %vm315, %v295, 0
        %344 = vmatpush.bf16.msra.mxu0 0
        %345 = vmatpush.bf16.msra.mxu0 0
        %346 = vmatpush.bf16.msra.mxu0 0
        %347 = vmatpush.bf16.msra.mxu0 0
        %348 = vmatpush.bf16.msra.mxu0 0
        %349 = vmatpush.bf16.msra.mxu0 0
        %350 = vmatpush.bf16.msra.mxu0 0
        %351 = vmatpush.bf16.msra.mxu0 %v342
        %352 = vmatmul.bf16.gmra.mxu0 %v339
        %v353 = vpop.f32.mrf.mxu0
        %v354 = vadd.f32 %v329, %v353
        %v355 = vpop.f32.mrf.mxu0
        %v356 = vadd.f32 %v331, %v355
        %357 = vdwg.mxu0
        %s358 = scalar_lea.vmem %s268, 4 [#allocation3]
        %v359 = vld [vmem:[%s358] sm:$0xf]
        %s360 = scalar_lea.vmem %s1, 16
        %v361 = vld [vmem:[%s360] sm:$0xf]
        %v362 = vld [vmem:[%s360 + $0x4] sm:$0xf]
        %v365 = vunpack.c.l.b16 %v361
        %v366 = vunpack.c.l.b16 %v362
        %v367 = vpack.c.b16 %v366, %v365
        %v369 = vsel %vm311, %v367, 0
        %v372 = vsel %vm315, %v359, 0
        %374 = vmatpush.bf16.msra.mxu0 0
        %375 = vmatpush.bf16.msra.mxu0 0
        %376 = vmatpush.bf16.msra.mxu0 0
        %377 = vmatpush.bf16.msra.mxu0 0
        %378 = vmatpush.bf16.msra.mxu0 0
        %379 = vmatpush.bf16.msra.mxu0 0
        %380 = vmatpush.bf16.msra.mxu0 0
        %381 = vmatpush.bf16.msra.mxu0 %v372
        %382 = vmatmul.bf16.gmra.mxu0 %v369
        %v383 = vpop.f32.mrf.mxu0
        %v384 = vadd.f32 0.0, %v383
        %v385 = vpop.f32.mrf.mxu0
        %v386 = vadd.f32 0.0, %v385
        %387 = vdwg.mxu0
        %v388 = vadd.f32 %v354, %v384
        %v389 = vadd.f32 %v356, %v386
        %s390 = scalar_lea.vmem %s1, 24
        %v391 = vld [vmem:[%s390] sm:$0xf]
        %v392 = vld [vmem:[%s390 + $0x4] sm:$0xf]
        %v395 = vunpack.c.l.b16 %v391
        %v396 = vunpack.c.l.b16 %v392
        %v397 = vpack.c.b16 %v396, %v395
        %v399 = vunpack.c.l.b16 %v359
        %v400 = vpack.c.b16 %v399, %v399
        %401 = vrot.lane.b32.xlu0 %v400, 124
        %v402 = vpop.permute.xlu0 %401
        %v404 = vsel %vm311, %v397, 0
        %v407 = vsel %vm315, %v402, 0
        %409 = vmatpush.bf16.msra.mxu0 0
        %410 = vmatpush.bf16.msra.mxu0 0
        %411 = vmatpush.bf16.msra.mxu0 0
        %412 = vmatpush.bf16.msra.mxu0 0
        %413 = vmatpush.bf16.msra.mxu0 0
        %414 = vmatpush.bf16.msra.mxu0 0
        %415 = vmatpush.bf16.msra.mxu0 0
        %416 = vmatpush.bf16.msra.mxu0 %v407
        %417 = vmatmul.bf16.gmra.mxu0 %v404
        %v418 = vpop.f32.mrf.mxu0
        %v419 = vadd.f32 0.0, %v418
        %v420 = vpop.f32.mrf.mxu0
        %v421 = vadd.f32 0.0, %v420
        %422 = vdwg.mxu0
        %v423 = vadd.f32 %v388, %v419
        %v424 = vadd.f32 %v389, %v421
        %s425 = scalar_lea.vmem %s268, 8 [#allocation3]
        %v426 = vld [vmem:[%s425] sm:$0xf]
        %s427 = scalar_lea.vmem %s1, 32
        %v428 = vld [vmem:[%s427] sm:$0xf]
        %v429 = vld [vmem:[%s427 + $0x4] sm:$0xf]
        %v432 = vunpack.c.l.b16 %v428
        %v433 = vunpack.c.l.b16 %v429
        %v434 = vpack.c.b16 %v433, %v432
        %v436 = vsel %vm311, %v434, 0
        %v439 = vsel %vm315, %v426, 0
        %441 = vmatpush.bf16.msra.mxu0 0
        %442 = vmatpush.bf16.msra.mxu0 0
        %443 = vmatpush.bf16.msra.mxu0 0
        %444 = vmatpush.bf16.msra.mxu0 0
        %445 = vmatpush.bf16.msra.mxu0 0
        %446 = vmatpush.bf16.msra.mxu0 0
        %447 = vmatpush.bf16.msra.mxu0 0
        %448 = vmatpush.bf16.msra.mxu0 %v439
        %449 = vmatmul.bf16.gmra.mxu0 %v436
        %v450 = vpop.f32.mrf.mxu0
        %v451 = vadd.f32 0.0, %v450
        %v452 = vpop.f32.mrf.mxu0
        %v453 = vadd.f32 0.0, %v452
        %454 = vdwg.mxu0
        %v455 = vadd.f32 %v423, %v451
        %v456 = vadd.f32 %v424, %v453
        %s457 = scalar_lea.vmem %s1, 40
        %v458 = vld [vmem:[%s457] sm:$0xf]
        %v459 = vld [vmem:[%s457 + $0x4] sm:$0xf]
        %v462 = vunpack.c.l.b16 %v458
        %v463 = vunpack.c.l.b16 %v459
        %v464 = vpack.c.b16 %v463, %v462
        %v466 = vunpack.c.l.b16 %v426
        %v467 = vpack.c.b16 %v466, %v466
        %468 = vrot.lane.b32.xlu0 %v467, 124
        %v469 = vpop.permute.xlu0 %468
        %v471 = vsel %vm311, %v464, 0
        %v474 = vsel %vm315, %v469, 0
        %476 = vmatpush.bf16.msra.mxu0 0
        %477 = vmatpush.bf16.msra.mxu0 0
        %478 = vmatpush.bf16.msra.mxu0 0
        %479 = vmatpush.bf16.msra.mxu0 0
        %480 = vmatpush.bf16.msra.mxu0 0
        %481 = vmatpush.bf16.msra.mxu0 0
        %482 = vmatpush.bf16.msra.mxu0 0
        %483 = vmatpush.bf16.msra.mxu0 %v474
        %484 = vmatmul.bf16.gmra.mxu0 %v471
        %v485 = vpop.f32.mrf.mxu0
        %v486 = vadd.f32 0.0, %v485
        %v487 = vpop.f32.mrf.mxu0
        %v488 = vadd.f32 0.0, %v487
        %489 = vdwg.mxu0
        %v490 = vadd.f32 %v455, %v486
        %v491 = vadd.f32 %v456, %v488
        %s492 = scalar_lea.vmem %s268, 12 [#allocation3]
        %v493 = vld [vmem:[%s492] sm:$0xf]
        %s494 = scalar_lea.vmem %s1, 48
        %v495 = vld [vmem:[%s494] sm:$0xf]
        %v496 = vld [vmem:[%s494 + $0x4] sm:$0xf]
        %v499 = vunpack.c.l.b16 %v495
        %v500 = vunpack.c.l.b16 %v496
        %v501 = vpack.c.b16 %v500, %v499
        %v503 = vsel %vm311, %v501, 0
        %v506 = vsel %vm315, %v493, 0
        %508 = vmatpush.bf16.msra.mxu0 0
        %509 = vmatpush.bf16.msra.mxu0 0
        %510 = vmatpush.bf16.msra.mxu0 0
        %511 = vmatpush.bf16.msra.mxu0 0
        %512 = vmatpush.bf16.msra.mxu0 0
        %513 = vmatpush.bf16.msra.mxu0 0
        %514 = vmatpush.bf16.msra.mxu0 0
        %515 = vmatpush.bf16.msra.mxu0 %v506
        %516 = vmatmul.bf16.gmra.mxu0 %v503
        %v517 = vpop.f32.mrf.mxu0
        %v518 = vadd.f32 0.0, %v517
        %v519 = vpop.f32.mrf.mxu0
        %v520 = vadd.f32 0.0, %v519
        %521 = vdwg.mxu0
        %v522 = vadd.f32 %v490, %v518
        %v523 = vadd.f32 %v491, %v520
        %s524 = scalar_lea.vmem %s1, 56
        %v525 = vld [vmem:[%s524] sm:$0xf]
        %v526 = vld [vmem:[%s524 + $0x4] sm:$0xf]
        %v529 = vunpack.c.l.b16 %v525
        %v530 = vunpack.c.l.b16 %v526
        %v531 = vpack.c.b16 %v530, %v529
        %v533 = vunpack.c.l.b16 %v493
        %v534 = vpack.c.b16 %v533, %v533
        %535 = vrot.lane.b32.xlu0 %v534, 124
        %v536 = vpop.permute.xlu0 %535
        %v538 = vsel %vm311, %v531, 0
        %v541 = vsel %vm315, %v536, 0
        %543 = vmatpush.bf16.msra.mxu0 0
        %544 = vmatpush.bf16.msra.mxu0 0
        %545 = vmatpush.bf16.msra.mxu0 0
        %546 = vmatpush.bf16.msra.mxu0 0
        %547 = vmatpush.bf16.msra.mxu0 0
        %548 = vmatpush.bf16.msra.mxu0 0
        %549 = vmatpush.bf16.msra.mxu0 0
        %550 = vmatpush.bf16.msra.mxu0 %v541
        %551 = vmatmul.bf16.gmra.mxu0 %v538
        %v552 = vpop.f32.mrf.mxu0
        %v553 = vadd.f32 0.0, %v552
        %v554 = vpop.f32.mrf.mxu0
        %v555 = vadd.f32 0.0, %v554
        %556 = vdwg.mxu0
        %v557 = vadd.f32 %v522, %v553
        %v558 = vadd.f32 %v523, %v555
        %s559 = scalar_lea.vmem %s268, 16 [#allocation3]
        %v560 = vld [vmem:[%s559] sm:$0xf]
        %s561 = scalar_lea.vmem %s1, 64
        %v562 = vld [vmem:[%s561] sm:$0xf]
        %v563 = vld [vmem:[%s561 + $0x4] sm:$0xf]
        %v566 = vunpack.c.l.b16 %v562
        %v567 = vunpack.c.l.b16 %v563
        %v568 = vpack.c.b16 %v567, %v566
        %v570 = vsel %vm311, %v568, 0
        %v573 = vsel %vm315, %v560, 0
        %575 = vmatpush.bf16.msra.mxu0 0
        %576 = vmatpush.bf16.msra.mxu0 0
        %577 = vmatpush.bf16.msra.mxu0 0
        %578 = vmatpush.bf16.msra.mxu0 0
        %579 = vmatpush.bf16.msra.mxu0 0
        %580 = vmatpush.bf16.msra.mxu0 0
        %581 = vmatpush.bf16.msra.mxu0 0
        %582 = vmatpush.bf16.msra.mxu0 %v573
        %583 = vmatmul.bf16.gmra.mxu0 %v570
        %v584 = vpop.f32.mrf.mxu0
        %v585 = vadd.f32 0.0, %v584
        %v586 = vpop.f32.mrf.mxu0
        %v587 = vadd.f32 0.0, %v586
        %588 = vdwg.mxu0
        %v589 = vadd.f32 %v557, %v585
        %v590 = vadd.f32 %v558, %v587
        %s591 = scalar_lea.vmem %s1, 72
        %v592 = vld [vmem:[%s591] sm:$0xf]
        %v593 = vld [vmem:[%s591 + $0x4] sm:$0xf]
        %v596 = vunpack.c.l.b16 %v592
        %v597 = vunpack.c.l.b16 %v593
        %v598 = vpack.c.b16 %v597, %v596
        %v600 = vunpack.c.l.b16 %v560
        %v601 = vpack.c.b16 %v600, %v600
        %602 = vrot.lane.b32.xlu0 %v601, 124
        %v603 = vpop.permute.xlu0 %602
        %v605 = vsel %vm311, %v598, 0
        %v608 = vsel %vm315, %v603, 0
        %610 = vmatpush.bf16.msra.mxu0 0
        %611 = vmatpush.bf16.msra.mxu0 0
        %612 = vmatpush.bf16.msra.mxu0 0
        %613 = vmatpush.bf16.msra.mxu0 0
        %614 = vmatpush.bf16.msra.mxu0 0
        %615 = vmatpush.bf16.msra.mxu0 0
        %616 = vmatpush.bf16.msra.mxu0 0
        %617 = vmatpush.bf16.msra.mxu0 %v608
        %618 = vmatmul.bf16.gmra.mxu0 %v605
        %v619 = vpop.f32.mrf.mxu0
        %v620 = vadd.f32 0.0, %v619
        %v621 = vpop.f32.mrf.mxu0
        %v622 = vadd.f32 0.0, %v621
        %623 = vdwg.mxu0
        %v624 = vadd.f32 %v589, %v620
        %v625 = vadd.f32 %v590, %v622
        %s626 = scalar_lea.vmem %s268, 20 [#allocation3]
        %v627 = vld [vmem:[%s626] sm:$0xf]
        %s628 = scalar_lea.vmem %s1, 80
        %v629 = vld [vmem:[%s628] sm:$0xf]
        %v630 = vld [vmem:[%s628 + $0x4] sm:$0xf]
        %v633 = vunpack.c.l.b16 %v629
        %v634 = vunpack.c.l.b16 %v630
        %v635 = vpack.c.b16 %v634, %v633
        %v637 = vsel %vm311, %v635, 0
        %v640 = vsel %vm315, %v627, 0
        %642 = vmatpush.bf16.msra.mxu0 0
        %643 = vmatpush.bf16.msra.mxu0 0
        %644 = vmatpush.bf16.msra.mxu0 0
        %645 = vmatpush.bf16.msra.mxu0 0
        %646 = vmatpush.bf16.msra.mxu0 0
        %647 = vmatpush.bf16.msra.mxu0 0
        %648 = vmatpush.bf16.msra.mxu0 0
        %649 = vmatpush.bf16.msra.mxu0 %v640
        %650 = vmatmul.bf16.gmra.mxu0 %v637
        %v651 = vpop.f32.mrf.mxu0
        %v652 = vadd.f32 0.0, %v651
        %v653 = vpop.f32.mrf.mxu0
        %v654 = vadd.f32 0.0, %v653
        %655 = vdwg.mxu0
        %v656 = vadd.f32 %v624, %v652
        %v657 = vadd.f32 %v625, %v654
        %s658 = scalar_lea.vmem %s1, 88
        %v659 = vld [vmem:[%s658] sm:$0xf]
        %v660 = vld [vmem:[%s658 + $0x4] sm:$0xf]
        %v663 = vunpack.c.l.b16 %v659
        %v664 = vunpack.c.l.b16 %v660
        %v665 = vpack.c.b16 %v664, %v663
        %v667 = vunpack.c.l.b16 %v627
        %v668 = vpack.c.b16 %v667, %v667
        %669 = vrot.lane.b32.xlu0 %v668, 124
        %v670 = vpop.permute.xlu0 %669
        %v672 = vsel %vm311, %v665, 0
        %v675 = vsel %vm315, %v670, 0
        %677 = vmatpush.bf16.msra.mxu0 0
        %678 = vmatpush.bf16.msra.mxu0 0
        %679 = vmatpush.bf16.msra.mxu0 0
        %680 = vmatpush.bf16.msra.mxu0 0
        %681 = vmatpush.bf16.msra.mxu0 0
        %682 = vmatpush.bf16.msra.mxu0 0
        %683 = vmatpush.bf16.msra.mxu0 0
        %684 = vmatpush.bf16.msra.mxu0 %v675
        %685 = vmatmul.bf16.gmra.mxu0 %v672
        %v686 = vpop.f32.mrf.mxu0
        %v687 = vadd.f32 0.0, %v686
        %v688 = vpop.f32.mrf.mxu0
        %v689 = vadd.f32 0.0, %v688
        %690 = vdwg.mxu0
        %v691 = vadd.f32 %v656, %v687
        %v692 = vadd.f32 %v657, %v689
        %s693 = scalar_lea.vmem %s268, 24 [#allocation3]
        %v694 = vld [vmem:[%s693] sm:$0xf]
        %s695 = scalar_lea.vmem %s1, 96
        %v696 = vld [vmem:[%s695] sm:$0xf]
        %v697 = vld [vmem:[%s695 + $0x4] sm:$0xf]
        %v700 = vunpack.c.l.b16 %v696
        %v701 = vunpack.c.l.b16 %v697
        %v702 = vpack.c.b16 %v701, %v700
        %v704 = vsel %vm311, %v702, 0
        %v707 = vsel %vm315, %v694, 0
        %709 = vmatpush.bf16.msra.mxu0 0
        %710 = vmatpush.bf16.msra.mxu0 0
        %711 = vmatpush.bf16.msra.mxu0 0
        %712 = vmatpush.bf16.msra.mxu0 0
        %713 = vmatpush.bf16.msra.mxu0 0
        %714 = vmatpush.bf16.msra.mxu0 0
        %715 = vmatpush.bf16.msra.mxu0 0
        %716 = vmatpush.bf16.msra.mxu0 %v707
        %717 = vmatmul.bf16.gmra.mxu0 %v704
        %v718 = vpop.f32.mrf.mxu0
        %v719 = vadd.f32 0.0, %v718
        %v720 = vpop.f32.mrf.mxu0
        %v721 = vadd.f32 0.0, %v720
        %722 = vdwg.mxu0
        %v723 = vadd.f32 %v691, %v719
        %v724 = vadd.f32 %v692, %v721
        %s725 = scalar_lea.vmem %s1, 104
        %v726 = vld [vmem:[%s725] sm:$0xf]
        %v727 = vld [vmem:[%s725 + $0x4] sm:$0xf]
        %v730 = vunpack.c.l.b16 %v726
        %v731 = vunpack.c.l.b16 %v727
        %v732 = vpack.c.b16 %v731, %v730
        %v734 = vunpack.c.l.b16 %v694
        %v735 = vpack.c.b16 %v734, %v734
        %736 = vrot.lane.b32.xlu0 %v735, 124
        %v737 = vpop.permute.xlu0 %736
        %v739 = vsel %vm311, %v732, 0
        %v742 = vsel %vm315, %v737, 0
        %744 = vmatpush.bf16.msra.mxu0 0
        %745 = vmatpush.bf16.msra.mxu0 0
        %746 = vmatpush.bf16.msra.mxu0 0
        %747 = vmatpush.bf16.msra.mxu0 0
        %748 = vmatpush.bf16.msra.mxu0 0
        %749 = vmatpush.bf16.msra.mxu0 0
        %750 = vmatpush.bf16.msra.mxu0 0
        %751 = vmatpush.bf16.msra.mxu0 %v742
        %752 = vmatmul.bf16.gmra.mxu0 %v739
        %v753 = vpop.f32.mrf.mxu0
        %v754 = vadd.f32 0.0, %v753
        %v755 = vpop.f32.mrf.mxu0
        %v756 = vadd.f32 0.0, %v755
        %757 = vdwg.mxu0
        %v758 = vadd.f32 %v723, %v754
        %v759 = vadd.f32 %v724, %v756
        %s760 = scalar_lea.vmem %s268, 28 [#allocation3]
        %v761 = vld [vmem:[%s760] sm:$0xf]
        %s762 = scalar_lea.vmem %s1, 112
        %v763 = vld [vmem:[%s762] sm:$0xf]
        %v764 = vld [vmem:[%s762 + $0x4] sm:$0xf]
        %v767 = vunpack.c.l.b16 %v763
        %v768 = vunpack.c.l.b16 %v764
        %v769 = vpack.c.b16 %v768, %v767
        %v771 = vsel %vm311, %v769, 0
        %v774 = vsel %vm315, %v761, 0
        %776 = vmatpush.bf16.msra.mxu0 0
        %777 = vmatpush.bf16.msra.mxu0 0
        %778 = vmatpush.bf16.msra.mxu0 0
        %779 = vmatpush.bf16.msra.mxu0 0
        %780 = vmatpush.bf16.msra.mxu0 0
        %781 = vmatpush.bf16.msra.mxu0 0
        %782 = vmatpush.bf16.msra.mxu0 0
        %783 = vmatpush.bf16.msra.mxu0 %v774
        %784 = vmatmul.bf16.gmra.mxu0 %v771
        %v785 = vpop.f32.mrf.mxu0
        %v786 = vadd.f32 0.0, %v785
        %v787 = vpop.f32.mrf.mxu0
        %v788 = vadd.f32 0.0, %v787
        %789 = vdwg.mxu0
        %v790 = vadd.f32 %v758, %v786
        %v791 = vadd.f32 %v759, %v788
        %s792 = scalar_lea.vmem %s1, 120
        %v793 = vld [vmem:[%s792] sm:$0xf]
        %v794 = vld [vmem:[%s792 + $0x4] sm:$0xf]
        %v797 = vunpack.c.l.b16 %v793
        %v798 = vunpack.c.l.b16 %v794
        %v799 = vpack.c.b16 %v798, %v797
        %v801 = vunpack.c.l.b16 %v761
        %v802 = vpack.c.b16 %v801, %v801
        %803 = vrot.lane.b32.xlu0 %v802, 124
        %v804 = vpop.permute.xlu0 %803
        %v806 = vsel %vm311, %v799, 0
        %v809 = vsel %vm315, %v804, 0
        %811 = vmatpush.bf16.msra.mxu0 0
        %812 = vmatpush.bf16.msra.mxu0 0
        %813 = vmatpush.bf16.msra.mxu0 0
        %814 = vmatpush.bf16.msra.mxu0 0
        %815 = vmatpush.bf16.msra.mxu0 0
        %816 = vmatpush.bf16.msra.mxu0 0
        %817 = vmatpush.bf16.msra.mxu0 0
        %818 = vmatpush.bf16.msra.mxu0 %v809
        %819 = vmatmul.bf16.gmra.mxu0 %v806
        %v820 = vpop.f32.mrf.mxu0
        %v821 = vadd.f32 0.0, %v820
        %v822 = vpop.f32.mrf.mxu0
        %v823 = vadd.f32 0.0, %v822
        %824 = vdwg.mxu0
        %v825 = vadd.f32 %v790, %v821
        %v826 = vadd.f32 %v791, %v823
        %v827 = vld [vmem:[%s2] sm:$0xff]
        %v828 = vld [vmem:[%s2 + $0x8] sm:$0xff]
        %830 = vset.pattern.permute.xlu0 0
        %831 = vperm.xlu0 %830, %v827
        %v832 = vpop.permute.xlu0 %831
        %835 = vset.pattern.permute.xlu0 0
        %836 = vperm.xlu0 %835, %v828
        %v837 = vpop.permute.xlu0 %836
        %v839 = vadd.f32 %v825, %v832
        %v840 = vadd.f32 %v826, %v837
        %vm841 = vcmp.ge.f32.partialorder %v839, 0.0
        %vm842 = vcmp.ge.f32.partialorder %v840, 0.0
        %v843 = vmul.f32 %v839, 0.2
        %v844 = vmul.f32 %v840, 0.2
        %v845 = vsel %vm841, %v839, %v843
        %v846 = vsel %vm842, %v840, %v844
        %v847 = vld [vmem:[%s3] sm:$0x1]
        %v848 = vld [vmem:[#allocation2] sm:$0x1]
        %850 = vset.pattern.permute.xlu0 0
        %851 = vperm.xlu0 %850, %v848
        %v852 = vpop.permute.xlu0 %851
        %v854 = vperm.slane %v852, 0
        %vm855 = vcmask 130048
        %v857 = vsel %vm855, %v847, 0
        %859 = vmatpush.msra.mxu0 0.0
        %860 = vmatpush.msra.mxu0 0.0
        %861 = vmatpush.msra.mxu0 0.0
        %862 = vmatpush.msra.mxu0 0.0
        %863 = vmatpush.msra.mxu0 0.0
        %864 = vmatpush.msra.mxu0 0.0
        %865 = vmatpush.msra.mxu0 0.0
        %866 = vmatpush.msra.mxu0 0.0
        %867 = vmatpush.msra.mxu0 0.0
        %868 = vmatpush.msra.mxu0 0.0
        %869 = vmatpush.msra.mxu0 0.0
        %870 = vmatpush.msra.mxu0 0.0
        %871 = vmatpush.msra.mxu0 0.0
        %872 = vmatpush.msra.mxu0 0.0
        %873 = vmatpush.msra.mxu0 %v846
        %874 = vmatpush.msra.mxu0 %v845
        %875 = vmatmul.f32.gmra.mxu0 %v857
        %v876 = vpop.f32.mrf.mxu0
        %v877 = vadd.f32 %v854, %v876
        %878 = vdwg.mxu0
        %vm879 = vcmask 122880
        %880 = vst.msk [vmem:[%s293] sm:$0x1] %vm879, %v877
        %p881 = scmp.lt.s32.totalorder %s18, 1
        %s882 = scalar_select %p881, %s18, 1
        %s883 = scalar_lea.vmem %s5, %s882
        // Predicated region
        $region82: #{ms_image_discriminator.12} parent=76 // pred_check
          %p884 = pneg %p146
        $region83: #{ms_image_discriminator.12} parent=76 // pred_check_branch
          %886 = sbr.rel (%p884) target = $region85
        $region84: #{ms_image_discriminator.12} parent=76 // pred_region
          _
        $region85: #{ms_image_discriminator.12} parent=76 // pred_fallthru
          _
      $region77: #{ms_image_discriminator.12} parent=5 // pred_fallthru
        _
      %p887 = scmp.le.s32.totalorder 2, %s13
      // Predicated region
      $region86: #{ms_image_discriminator.12} parent=5 // pred_check
        %p888 = pneg %p887
      $region87: #{ms_image_discriminator.12} parent=5 // pred_check_branch
        %890 = sbr.rel (%p888) target = $region89
      $region88: #{ms_image_discriminator.12} parent=5 // pred_region
        %s891 = ssub.s32 %s13, 2
        // Predicated region
        $region90: #{ms_image_discriminator.12} parent=88 // pred_check
          %p892 = pneg %p152
        $region91: #{ms_image_discriminator.12} parent=88 // pred_check_branch
          %894 = sbr.rel (%p892) target = $region93
        $region92: #{ms_image_discriminator.12} parent=88 // pred_region
          %p895 = scmp.lt.s32.totalorder %s19, 1
          %s896 = scalar_select %p895, %s19, 1
          %s897 = scalar_lea.vmem %s5, %s896
        $region93: #{ms_image_discriminator.12} parent=88 // pred_fallthru
          _
      $region89: #{ms_image_discriminator.12} parent=5 // pred_fallthru
        _
    $region6: #{ms_image_discriminator.12} parent=1 // loop_footer
      %s17 = sadd.s32 1, %s13
    $region7: #{ms_image_discriminator.12} parent=1 // loop_footer_branch
      %12 = sbr.rel target = $region3
    $region8: #{ms_image_discriminator.12} parent=1 // loop_exit
      _

// kernel: ms_image_discriminator.13
$region0: #{ms_image_discriminator.13}
  #allocation0 [shape = 'u32[]', space=smem, size = 0x4, offset = 0x4, fixed_abs, tag = 'smem constant byte address 0x4 - core index']
  #allocation1 [shape = 'u32[72,128]{1,0:T(1,128)}', space=vmem, size = 0x9000, scoped, tag = 'internal scratch']
  %s0 = inlined_call_operand.vmem [shape: bf16[6,8,72], index: 0, kind: input, shape index: {}]
  %s1 = inlined_call_operand.vmem [shape: f32[1,64], index: 1, kind: input, shape index: {}]
  %s2 = inlined_call_operand.vmem [shape: bf16[8,64], index: 2, kind: output, shape index: {}]
  %s3 = sld [smem:[#allocation0]]
  $region18: #{ms_image_discriminator.13} parent=0
    _
  %s5 = ssub.s32 1, %s3
  %s6 = scalar_select 0, %s5, %s3
  // Predicated region
  $region2: #{ms_image_discriminator.13} parent=0 // pred_check
    _
  $region3: #{ms_image_discriminator.13} parent=0 // pred_check_branch
    %8 = sbr.rel (0) target = $region5
  $region4: #{ms_image_discriminator.13} parent=0 // pred_region
    _
  $region5: #{ms_image_discriminator.13} parent=0 // pred_fallthru
    _
  // Predicated region
  $region6: #{ms_image_discriminator.13} parent=0 // pred_check
    _
  $region7: #{ms_image_discriminator.13} parent=0 // pred_check_branch
    %10 = sbr.rel (0) target = $region9
  $region8: #{ms_image_discriminator.13} parent=0 // pred_region
    _
  $region9: #{ms_image_discriminator.13} parent=0 // pred_fallthru
    _
  %v11 = vld [vmem:[%s0] sm:$0xf]
  %v12 = vunpack.c.l.bf16 %v11
  %14 = vrot.lane.b32.xlu0 %v12, 120
  %v15 = vpop.permute.xlu0 %14
  %v17 = vadd.f32 %v12, %v15
  %s18 = scalar_lea.vmem %s0, 4
  %v19 = vld [vmem:[%s18] sm:$0xf]
  %v20 = vunpack.c.l.bf16 %v19
  %v21 = vadd.f32 %v17, %v20
  %23 = vrot.lane.b32.xlu0 %v20, 120
  %v24 = vpop.permute.xlu0 %23
  %v26 = vadd.f32 %v21, %v24
  %s27 = scalar_lea.vmem %s0, 8
  %v28 = vld [vmem:[%s27] sm:$0xf]
  %v29 = vunpack.c.l.bf16 %v28
  %v30 = vadd.f32 %v26, %v29
  %32 = vrot.lane.b32.xlu0 %v29, 120
  %v33 = vpop.permute.xlu0 %32
  %v35 = vadd.f32 %v30, %v33
  %s36 = scalar_lea.vmem %s0, 12
  %v37 = vld [vmem:[%s36] sm:$0xf]
  %v38 = vunpack.c.l.bf16 %v37
  %v39 = vadd.f32 %v35, %v38
  %s40 = scalar_lea.vmem %s0, 16
  %v41 = vld [vmem:[%s40] sm:$0xf]
  %v42 = vunpack.c.l.bf16 %v41
  %v43 = vadd.f32 %v39, %v42
  %s44 = scalar_lea.vmem %s0, 20
  %v45 = vld [vmem:[%s44] sm:$0xf]
  %v46 = vunpack.c.l.bf16 %v45
  %v47 = vadd.f32 %v43, %v46
  %v48 = vld [vmem:[%s1] sm:$0x1]
  %v50 = vperm.slane %v48, 0
  %v52 = vmul.f32 %v47, %v50
  %v53 = vpack.c.bf16 %v52, %v52
  %vm54 = vcmask 519168
  %55 = vst.msk [vmem:[%s2] sm:$0xf] %vm54, %v53
  // Predicated region
  $region10: #{ms_image_discriminator.13} parent=0 // pred_check
    _
  $region11: #{ms_image_discriminator.13} parent=0 // pred_check_branch
    %57 = sbr.rel (0) target = $region13
  $region12: #{ms_image_discriminator.13} parent=0 // pred_region
    _
  $region13: #{ms_image_discriminator.13} parent=0 // pred_fallthru
    _
  // Predicated region
  $region14: #{ms_image_discriminator.13} parent=0 // pred_check
    _
  $region15: #{ms_image_discriminator.13} parent=0 // pred_check_branch
    %59 = sbr.rel (0) target = $region17
  $region16: #{ms_image_discriminator.13} parent=0 // pred_region
    _
  $region17: #{ms_image_discriminator.13} parent=0 // pred_fallthru
    _

// kernel: ms_image_discriminator.14
$region0: #{ms_image_discriminator.14}
  #allocation0 [shape = 'u32[]', space=smem, size = 0x4, offset = 0x4, fixed_abs, tag = 'smem constant byte address 0x4 - core index']
  #allocation1 [shape = 'u32[72,128]{1,0:T(1,128)}', space=vmem, size = 0x9000, scoped, tag = 'internal scratch']
  %s0 = inlined_call_operand.vmem [shape: bf16[8,2,4,20], index: 0, kind: input, shape index: {}]
  %s1 = inlined_call_operand.vmem [shape: bf16[16,8,4], index: 1, kind: input, shape index: {}]
  %s2 = inlined_call_operand.vmem [shape: f32[8,1], index: 2, kind: input, shape index: {}]
  %s3 = inlined_call_operand.vmem [shape: bf16[2,8,16], index: 3, kind: output, shape index: {}]
  %s4 = sld [smem:[#allocation0]]
  $region86: #{ms_image_discriminator.14} parent=0
    _
  %s6 = ssub.s32 1, %s4
  %s7 = scalar_select 0, %s6, %s4
  $region1: #{ms_image_discriminator.14} parent=0
    #allocation2 [shape = 'u8[16384]{0}', space=vmem, size = 0x4000, scoped, tag = 'input window, operand 0']
    loop: start=0, step=1, limit=4
    $region2: #{ms_image_discriminator.14} parent=1 // loop_pre_header
      _
    $region3: #{ms_image_discriminator.14} parent=1 // loop_header
      %s9 = sphi 0, %s13
      %p10 = scmp.ge.s32.totalorder %s9, 4
      %s19 = sphi 0, %s21
      %s22 = sphi 0, %s19
      %s23 = sphi 0, %s22
      %s39 = sphi 0, %s23
      %s43 = sphi 0, %s43
      %s45 = sphi 0, %s43
      %s46 = sphi 0, %s45
      %s60 = sphi 0, %s46
      %s64 = sphi 0, %s64
      %s66 = sphi 0, %s64
      %s67 = sphi 0, %s66
      %s81 = sphi 0, %s67
      %s87 = sphi 0, %s89
      %s90 = sphi 0, %s87
      %s91 = sphi 0, %s90
      %s107 = sphi 0, %s91
    $region4: #{ms_image_discriminator.14} parent=1 // loop_header_branch
      %12 = sbr.rel (%p10) target = $region8
    $region5: #{ms_image_discriminator.14} parent=1 // loop_body
      %s14 = ssub.s32 %s9, 1
      %s15 = ssub.s32 %s9, 2
      %s16 = sadd.s32 %s9, 1
      %s17 = ssub.s32 %s9, %s16
      %p18 = scmp.eq.s32.totalorder %s17, 0
      %s20 = sadd.s32 %s19, 1
      %s21 = scalar_select %p18, %s19, %s20
      %p24 = pneg %p18
      %p25 = scmp.eq.s32.totalorder %s9, 1
      %p26 = por %p24, %p25
      %p27 = scmp.ne.s32.totalorder %s19, %s22
      %p28 = scmp.eq.s32.totalorder %s9, 0
      %p29 = por %p27, %p28
      %p30 = scmp.ne.s32.totalorder %s19, %s22
      %p31 = scmp.eq.s32.totalorder %s14, 1
      %p32 = por %p30, %p31
      %p33 = scmp.ne.s32.totalorder %s22, %s23
      %p34 = scmp.eq.s32.totalorder %s14, 0
      %p35 = por %p33, %p34
      %p36 = scmp.ne.s32.totalorder %s22, %s23
      %p37 = scmp.eq.s32.totalorder %s15, 1
      %p38 = por %p36, %p37
      %p40 = scmp.ne.s32.totalorder %s23, %s39
      %p41 = scmp.eq.s32.totalorder %s15, 0
      %p42 = por %p40, %p41
      %s44 = sadd.s32 %s43, 1
      %p47 = scmp.eq.s32.totalorder %s9, 1
      %p48 = scmp.ne.s32.totalorder %s43, %s45
      %p49 = scmp.eq.s32.totalorder %s9, 0
      %p50 = por %p48, %p49
      %p51 = scmp.ne.s32.totalorder %s43, %s45
      %p52 = scmp.eq.s32.totalorder %s14, 1
      %p53 = por %p51, %p52
      %p54 = scmp.ne.s32.totalorder %s45, %s46
      %p55 = scmp.eq.s32.totalorder %s14, 0
      %p56 = por %p54, %p55
      %p57 = scmp.ne.s32.totalorder %s45, %s46
      %p58 = scmp.eq.s32.totalorder %s15, 1
      %p59 = por %p57, %p58
      %p61 = scmp.ne.s32.totalorder %s46, %s60
      %p62 = scmp.eq.s32.totalorder %s15, 0
      %p63 = por %p61, %p62
      %s65 = sadd.s32 %s64, 1
      %p68 = scmp.eq.s32.totalorder %s9, 1
      %p69 = scmp.ne.s32.totalorder %s64, %s66
      %p70 = scmp.eq.s32.totalorder %s9, 0
      %p71 = por %p69, %p70
      %p72 = scmp.ne.s32.totalorder %s64, %s66
      %p73 = scmp.eq.s32.totalorder %s14, 1
      %p74 = por %p72, %p73
      %p75 = scmp.ne.s32.totalorder %s66, %s67
      %p76 = scmp.eq.s32.totalorder %s14, 0
      %p77 = por %p75, %p76
      %p78 = scmp.ne.s32.totalorder %s66, %s67
      %p79 = scmp.eq.s32.totalorder %s15, 1
      %p80 = por %p78, %p79
      %p82 = scmp.ne.s32.totalorder %s67, %s81
      %p83 = scmp.eq.s32.totalorder %s15, 0
      %p84 = por %p82, %p83
      %s85 = ssub.s32 %s9, %s16
      %p86 = scmp.eq.s32.totalorder %s85, 0
      %s88 = sadd.s32 %s87, 1
      %s89 = scalar_select %p86, %s87, %s88
      %p92 = pneg %p86
      %p93 = scmp.eq.s32.totalorder %s9, 1
      %p94 = por %p92, %p93
      %p95 = scmp.ne.s32.totalorder %s87, %s90
      %p96 = scmp.eq.s32.totalorder %s9, 0
      %p97 = por %p95, %p96
      %p98 = scmp.ne.s32.totalorder %s87, %s90
      %p99 = scmp.eq.s32.totalorder %s14, 1
      %p100 = por %p98, %p99
      %p101 = scmp.ne.s32.totalorder %s90, %s91
      %p102 = scmp.eq.s32.totalorder %s14, 0
      %p103 = por %p101, %p102
      %p104 = scmp.ne.s32.totalorder %s90, %s91
      %p105 = scmp.eq.s32.totalorder %s15, 1
      %p106 = por %p104, %p105
      %p108 = scmp.ne.s32.totalorder %s91, %s107
      %p109 = scmp.eq.s32.totalorder %s15, 0
      %p110 = por %p108, %p109
      %p111 = scmp.le.s32.totalorder 1, %s9
      %p112 = scmp.lt.s32.totalorder %s9, 3
      %p113 = pnand %p111, %p112
      %p114 = pneg %p113
      // Predicated region
      $region9: #{ms_image_discriminator.14} parent=5 // pred_check
        _
      $region10: #{ms_image_discriminator.14} parent=5 // pred_check_branch
        %116 = sbr.rel (%p113) target = $region12
      $region11: #{ms_image_discriminator.14} parent=5 // pred_region
        %s117 = ssub.s32 %s9, 1
        // Predicated region
        $region13: #{ms_image_discriminator.14} parent=11 // pred_check
          %p118 = pneg %p56
        $region14: #{ms_image_discriminator.14} parent=11 // pred_check_branch
          %120 = sbr.rel (%p118) target = $region16
        $region15: #{ms_image_discriminator.14} parent=11 // pred_region
          _
        $region16: #{ms_image_discriminator.14} parent=11 // pred_fallthru
          _
        // Predicated region
        $region17: #{ms_image_discriminator.14} parent=11 // pred_check
          %p121 = pneg %p77
        $region18: #{ms_image_discriminator.14} parent=11 // pred_check_branch
          %123 = sbr.rel (%p121) target = $region20
        $region19: #{ms_image_discriminator.14} parent=11 // pred_region
          _
        $region20: #{ms_image_discriminator.14} parent=11 // pred_fallthru
          _
      $region12: #{ms_image_discriminator.14} parent=5 // pred_fallthru
        _
      %p124 = scmp.lt.s32.totalorder %s9, 2
      // Predicated region
      $region21: #{ms_image_discriminator.14} parent=5 // pred_check
        %p125 = pneg %p124
      $region22: #{ms_image_discriminator.14} parent=5 // pred_check_branch
        %127 = sbr.rel (%p125) target = $region24
      $region23: #{ms_image_discriminator.14} parent=5 // pred_region
        // Predicated region
        $region25: #{ms_image_discriminator.14} parent=23 // pred_check
          %p128 = pneg %p29
        $region26: #{ms_image_discriminator.14} parent=23 // pred_check_branch
          %130 = sbr.rel (%p128) target = $region28
        $region27: #{ms_image_discriminator.14} parent=23 // pred_region
          %s131 = sand.u32 %s19, 1
          %s132 = sand.u32 %s19, 1
          %s133 = smul.addr %s132, 16
          %s134 = scalar_lea.vmem [#allocation2], %s133
          %s135 = smul.addr %s9, 2
          %s136 = scalar_lea.vmem %s0, %s135
          // Predicated region
          $region29: #{ms_image_discriminator.14} parent=27 // pred_check
            _
          $region30: #{ms_image_discriminator.14} parent=27 // pred_check_branch
            %138 = sbr.rel (0) target = $region32
          $region31: #{ms_image_discriminator.14} parent=27 // pred_region
            // Predicated region
            $region33: #{ms_image_discriminator.14} parent=31 // pred_check
              _
            $region34: #{ms_image_discriminator.14} parent=31 // pred_check_branch
              %140 = sbr.rel target = $region36
            $region35: #{ms_image_discriminator.14} parent=31 // pred_region
              // Predicated region
              $region48: #{ms_image_discriminator.14} parent=35 // pred_check
                _
              $region49: #{ms_image_discriminator.14} parent=35 // pred_check_branch
                %170 = sbr.rel (0) target = $region51
              $region50: #{ms_image_discriminator.14} parent=35 // pred_region
                loop: start=0, step=1, limit=1
                $region52: #{ms_image_discriminator.14} parent=50 // loop_pre_header
                  _
                $region53: #{ms_image_discriminator.14} parent=50 // loop_header
                  %s172 = sphi 0, %s176
                  %p173 = scmp.ge.s32.totalorder %s172, 1
                  %s177 = sphi %s136, %s136
                  %s178 = sphi %s134, %s134
                $region54: #{ms_image_discriminator.14} parent=50 // loop_header_branch
                  %175 = sbr.rel (%p173) target = $region58
                $region55: #{ms_image_discriminator.14} parent=50 // loop_body
                  _
                $region56: #{ms_image_discriminator.14} parent=50 // loop_footer
                  %s176 = sadd.s32 1, %s172
                $region57: #{ms_image_discriminator.14} parent=50 // loop_footer_branch
                  %171 = sbr.rel target = $region53
                $region58: #{ms_image_discriminator.14} parent=50 // loop_exit
                  _
                %s180 = ssub.s32 4, 1
                loop: start=0, step=1, limit=1
                $region59: #{ms_image_discriminator.14} parent=50 // loop_pre_header
                  _
                $region60: #{ms_image_discriminator.14} parent=50 // loop_header
                  %s182 = sphi 0, %s186
                  %p183 = scmp.ge.s32.totalorder %s182, 1
                  %s187 = sphi %s136, %s136
                  %s188 = sphi %s134, %s134
                $region61: #{ms_image_discriminator.14} parent=50 // loop_header_branch
                  %185 = sbr.rel (%p183) target = $region65
                $region62: #{ms_image_discriminator.14} parent=50 // loop_body
                  %v189 = vld [vmem:[%s187] sm:%s180]
                  %190 = vst [vmem:[%s188] sm:%s180] %v189
                  %v191 = vld [vmem:[%s187 + $0x4] sm:%s180]
                  %192 = vst [vmem:[%s188 + $0x2] sm:%s180] %v191
                  %v193 = vld [vmem:[%s187 + $0x8] sm:%s180]
                  %194 = vst [vmem:[%s188 + $0x4] sm:%s180] %v193
                  %v195 = vld [vmem:[%s187 + $0xc] sm:%s180]
                  %196 = vst [vmem:[%s188 + $0x6] sm:%s180] %v195
                  %v197 = vld [vmem:[%s187 + $0x10] sm:%s180]
                  %198 = vst [vmem:[%s188 + $0x8] sm:%s180] %v197
                  %v199 = vld [vmem:[%s187 + $0x14] sm:%s180]
                  %200 = vst [vmem:[%s188 + $0xa] sm:%s180] %v199
                  %v201 = vld [vmem:[%s187 + $0x18] sm:%s180]
                  %202 = vst [vmem:[%s188 + $0xc] sm:%s180] %v201
                  %v203 = vld [vmem:[%s187 + $0x1c] sm:%s180]
                  %204 = vst [vmem:[%s188 + $0xe] sm:%s180] %v203
                $region63: #{ms_image_discriminator.14} parent=50 // loop_footer
                  %s186 = sadd.s32 1, %s182
                $region64: #{ms_image_discriminator.14} parent=50 // loop_footer_branch
                  %181 = sbr.rel target = $region60
                $region65: #{ms_image_discriminator.14} parent=50 // loop_exit
                  _
              $region51: #{ms_image_discriminator.14} parent=35 // pred_fallthru
                _
            $region36: #{ms_image_discriminator.14} parent=31 // pred_fallthru
              _
            // Predicated region
            $region37: #{ms_image_discriminator.14} parent=31 // pred_check
              _
            $region38: #{ms_image_discriminator.14} parent=31 // pred_check_branch
              %142 = sbr.rel (0) target = $region40
            $region39: #{ms_image_discriminator.14} parent=31 // pred_region
              %s144 = ssub.s32 4, 1
              loop: start=0, step=1, limit=1
              $region41: #{ms_image_discriminator.14} parent=39 // loop_pre_header
                _
              $region42: #{ms_image_discriminator.14} parent=39 // loop_header
                %s146 = sphi 0, %s150
                %p147 = scmp.ge.s32.totalorder %s146, 1
                %s151 = sphi %s136, %s136
                %s152 = sphi %s134, %s134
              $region43: #{ms_image_discriminator.14} parent=39 // loop_header_branch
                %149 = sbr.rel (%p147) target = $region47
              $region44: #{ms_image_discriminator.14} parent=39 // loop_body
                %v153 = vld [vmem:[%s151] sm:%s144]
                %154 = vst [vmem:[%s152] sm:%s144] %v153
                %v155 = vld [vmem:[%s151 + $0x4] sm:%s144]
                %156 = vst [vmem:[%s152 + $0x2] sm:%s144] %v155
                %v157 = vld [vmem:[%s151 + $0x8] sm:%s144]
                %158 = vst [vmem:[%s152 + $0x4] sm:%s144] %v157
                %v159 = vld [vmem:[%s151 + $0xc] sm:%s144]
                %160 = vst [vmem:[%s152 + $0x6] sm:%s144] %v159
                %v161 = vld [vmem:[%s151 + $0x10] sm:%s144]
                %162 = vst [vmem:[%s152 + $0x8] sm:%s144] %v161
                %v163 = vld [vmem:[%s151 + $0x14] sm:%s144]
                %164 = vst [vmem:[%s152 + $0xa] sm:%s144] %v163
                %v165 = vld [vmem:[%s151 + $0x18] sm:%s144]
                %166 = vst [vmem:[%s152 + $0xc] sm:%s144] %v165
                %v167 = vld [vmem:[%s151 + $0x1c] sm:%s144]
                %168 = vst [vmem:[%s152 + $0xe] sm:%s144] %v167
              $region45: #{ms_image_discriminator.14} parent=39 // loop_footer
                %s150 = sadd.s32 1, %s146
              $region46: #{ms_image_discriminator.14} parent=39 // loop_footer_branch
                %145 = sbr.rel target = $region42
              $region47: #{ms_image_discriminator.14} parent=39 // loop_exit
                _
            $region40: #{ms_image_discriminator.14} parent=31 // pred_fallthru
              _
          $region32: #{ms_image_discriminator.14} parent=27 // pred_fallthru
            _
          %205 = vnop
        $region28: #{ms_image_discriminator.14} parent=23 // pred_fallthru
          _
      $region24: #{ms_image_discriminator.14} parent=5 // pred_fallthru
        _
      %p206 = scmp.le.s32.totalorder 1, %s9
      %p207 = scmp.lt.s32.totalorder %s9, 3
      %p208 = pnand %p206, %p207
      %p209 = pneg %p208
      // Predicated region
      $region66: #{ms_image_discriminator.14} parent=5 // pred_check
        _
      $region67: #{ms_image_discriminator.14} parent=5 // pred_check_branch
        %211 = sbr.rel (%p208) target = $region69
      $region68: #{ms_image_discriminator.14} parent=5 // pred_region
        %s212 = ssub.s32 %s9, 1
        %s213 = sand.u32 %s22, 1
        %s214 = sand.u32 %s22, 1
        %s215 = smul.addr %s214, 16
        %s216 = scalar_lea.vmem [#allocation2], %s215
        // Predicated region
        $region70: #{ms_image_discriminator.14} parent=68 // pred_check
          %p217 = pneg %p35
        $region71: #{ms_image_discriminator.14} parent=68 // pred_check_branch
          %219 = sbr.rel (%p217) target = $region73
        $region72: #{ms_image_discriminator.14} parent=68 // pred_region
          _
        $region73: #{ms_image_discriminator.14} parent=68 // pred_fallthru
          _
        %s220 = sand.u32 %s22, 1
        %s221 = sand.u32 %s22, 1
        %s222 = smul.addr %s221, 16
        %s223 = scalar_lea.vmem [#allocation2], %s222
        %p224 = pneg %p35
        %p225 = pneg %p32
        %p226 = pneg %p56
        %p227 = pneg %p53
        %p228 = pneg %p77
        %p229 = pneg %p74
        %p230 = pneg %p103
        %p231 = pneg %p100
        %p232 = scmp.lt.s32.totalorder %s14, 1
        %s233 = scalar_select %p232, %s14, 1
        %s234 = smul.addr %s233, 4
        %s235 = scalar_lea.vmem %s3, %s234
        %p236 = scmp.lt.s32.totalorder %s14, 1
        %s237 = scalar_select %p236, %s14, 1
        %s238 = smul.addr %s237, 4
        %s239 = scalar_lea.vmem %s3, %s238
        %v241 = vld [vmem:[%s216] sm:$0x3]
        %v242 = vld [vmem:[%s1] sm:$0xf]
        %s243 = scalar_lea.vmem %s1, 4
        %v244 = vld [vmem:[%s243] sm:$0xf]
        %246 = vst [vmem:[#allocation1] ss:$4 sm:$0xff] %v241
        %v247 = vld.sshfl [vmem:[#allocation1] sm:$0xff pattern:$0x73625140]
        %249 = vrot.lane.b32.xlu0 %v247, 124
        %v250 = vpop.permute.xlu0 %249
        %vm251 = vcmask 31744
        %v253 = vsel %vm251, %v244, 0
        %vm255 = vcmask 1041408
        %v257 = vsel %vm255, %v250, 0
        %259 = vmatpush.bf16.msra.mxu0 0
        %260 = vmatpush.bf16.msra.mxu0 0
        %261 = vmatpush.bf16.msra.mxu0 0
        %262 = vmatpush.bf16.msra.mxu0 0
        %263 = vmatpush.bf16.msra.mxu0 0
        %264 = vmatpush.bf16.msra.mxu0 0
        %265 = vmatpush.bf16.msra.mxu0 0
        %266 = vmatpush.bf16.msra.mxu0 %v257
        %267 = vmatmul.bf16.gmra.mxu0 %v253
        %v268 = vpop.f32.mrf.mxu0
        %v269 = vadd.f32 0.0, %v268
        %v270 = vpop.f32.mrf.mxu0
        %271 = vdwg.mxu0
        %v273 = vsel %vm251, %v242, 0
        %v275 = vsel %vm255, %v241, 0
        %277 = vmatpush.bf16.msra.mxu0 0
        %278 = vmatpush.bf16.msra.mxu0 0
        %279 = vmatpush.bf16.msra.mxu0 0
        %280 = vmatpush.bf16.msra.mxu0 0
        %281 = vmatpush.bf16.msra.mxu0 0
        %282 = vmatpush.bf16.msra.mxu0 0
        %283 = vmatpush.bf16.msra.mxu0 0
        %284 = vmatpush.bf16.msra.mxu0 %v275
        %285 = vmatmul.bf16.gmra.mxu0 %v273
        %v286 = vpop.f32.mrf.mxu0
        %v287 = vadd.f32 %v269, %v286
        %v288 = vpop.f32.mrf.mxu0
        %289 = vdwg.mxu0
        %s290 = scalar_lea.vmem %s216, 2 [#allocation2]
        %v291 = vld [vmem:[%s290] sm:$0x3]
        %s292 = scalar_lea.vmem %s1, 8
        %v293 = vld [vmem:[%s292] sm:$0xf]
        %v295 = vsel %vm251, %v293, 0
        %v298 = vsel %vm255, %v291, 0
        %300 = vmatpush.bf16.msra.mxu0 0
        %301 = vmatpush.bf16.msra.mxu0 0
        %302 = vmatpush.bf16.msra.mxu0 0
        %303 = vmatpush.bf16.msra.mxu0 0
        %304 = vmatpush.bf16.msra.mxu0 0
        %305 = vmatpush.bf16.msra.mxu0 0
        %306 = vmatpush.bf16.msra.mxu0 0
        %307 = vmatpush.bf16.msra.mxu0 %v298
        %308 = vmatmul.bf16.gmra.mxu0 %v295
        %v309 = vpop.f32.mrf.mxu0
        %v310 = vadd.f32 0.0, %v309
        %v311 = vpop.f32.mrf.mxu0
        %312 = vdwg.mxu0
        %v313 = vadd.f32 %v287, %v310
        %s314 = scalar_lea.vmem %s1, 12
        %v315 = vld [vmem:[%s314] sm:$0xf]
        %316 = vst [vmem:[#allocation1] ss:$4 sm:$0xff] %v291
        %v317 = vld.sshfl [vmem:[#allocation1] sm:$0xff pattern:$0x73625140]
        %319 = vrot.lane.b32.xlu0 %v317, 124
        %v320 = vpop.permute.xlu0 %319
        %v322 = vsel %vm251, %v315, 0
        %v325 = vsel %vm255, %v320, 0
        %327 = vmatpush.bf16.msra.mxu0 0
        %328 = vmatpush.bf16.msra.mxu0 0
        %329 = vmatpush.bf16.msra.mxu0 0
        %330 = vmatpush.bf16.msra.mxu0 0
        %331 = vmatpush.bf16.msra.mxu0 0
        %332 = vmatpush.bf16.msra.mxu0 0
        %333 = vmatpush.bf16.msra.mxu0 0
        %334 = vmatpush.bf16.msra.mxu0 %v325
        %335 = vmatmul.bf16.gmra.mxu0 %v322
        %v336 = vpop.f32.mrf.mxu0
        %v337 = vadd.f32 0.0, %v336
        %v338 = vpop.f32.mrf.mxu0
        %339 = vdwg.mxu0
        %v340 = vadd.f32 %v313, %v337
        %s341 = scalar_lea.vmem %s216, 4 [#allocation2]
        %v342 = vld [vmem:[%s341] sm:$0x3]
        %s343 = scalar_lea.vmem %s1, 16
        %v344 = vld [vmem:[%s343] sm:$0xf]
        %v346 = vsel %vm251, %v344, 0
        %v349 = vsel %vm255, %v342, 0
        %351 = vmatpush.bf16.msra.mxu0 0
        %352 = vmatpush.bf16.msra.mxu0 0
        %353 = vmatpush.bf16.msra.mxu0 0
        %354 = vmatpush.bf16.msra.mxu0 0
        %355 = vmatpush.bf16.msra.mxu0 0
        %356 = vmatpush.bf16.msra.mxu0 0
        %357 = vmatpush.bf16.msra.mxu0 0
        %358 = vmatpush.bf16.msra.mxu0 %v349
        %359 = vmatmul.bf16.gmra.mxu0 %v346
        %v360 = vpop.f32.mrf.mxu0
        %v361 = vadd.f32 0.0, %v360
        %v362 = vpop.f32.mrf.mxu0
        %363 = vdwg.mxu0
        %v364 = vadd.f32 %v340, %v361
        %s365 = scalar_lea.vmem %s1, 20
        %v366 = vld [vmem:[%s365] sm:$0xf]
        %367 = vst [vmem:[#allocation1] ss:$4 sm:$0xff] %v342
        %v368 = vld.sshfl [vmem:[#allocation1] sm:$0xff pattern:$0x73625140]
        %370 = vrot.lane.b32.xlu0 %v368, 124
        %v371 = vpop.permute.xlu0 %370
        %v373 = vsel %vm251, %v366, 0
        %v376 = vsel %vm255, %v371, 0
        %378 = vmatpush.bf16.msra.mxu0 0
        %379 = vmatpush.bf16.msra.mxu0 0
        %380 = vmatpush.bf16.msra.mxu0 0
        %381 = vmatpush.bf16.msra.mxu0 0
        %382 = vmatpush.bf16.msra.mxu0 0
        %383 = vmatpush.bf16.msra.mxu0 0
        %384 = vmatpush.bf16.msra.mxu0 0
        %385 = vmatpush.bf16.msra.mxu0 %v376
        %386 = vmatmul.bf16.gmra.mxu0 %v373
        %v387 = vpop.f32.mrf.mxu0
        %v388 = vadd.f32 0.0, %v387
        %v389 = vpop.f32.mrf.mxu0
        %390 = vdwg.mxu0
        %v391 = vadd.f32 %v364, %v388
        %s392 = scalar_lea.vmem %s216, 6 [#allocation2]
        %v393 = vld [vmem:[%s392] sm:$0x3]
        %s394 = scalar_lea.vmem %s1, 24
        %v395 = vld [vmem:[%s394] sm:$0xf]
        %v397 = vsel %vm251, %v395, 0
        %v400 = vsel %vm255, %v393, 0
        %402 = vmatpush.bf16.msra.mxu0 0
        %403 = vmatpush.bf16.msra.mxu0 0
        %404 = vmatpush.bf16.msra.mxu0 0
        %405 = vmatpush.bf16.msra.mxu0 0
        %406 = vmatpush.bf16.msra.mxu0 0
        %407 = vmatpush.bf16.msra.mxu0 0
        %408 = vmatpush.bf16.msra.mxu0 0
        %409 = vmatpush.bf16.msra.mxu0 %v400
        %410 = vmatmul.bf16.gmra.mxu0 %v397
        %v411 = vpop.f32.mrf.mxu0
        %v412 = vadd.f32 0.0, %v411
        %v413 = vpop.f32.mrf.mxu0
        %414 = vdwg.mxu0
        %v415 = vadd.f32 %v391, %v412
        %s416 = scalar_lea.vmem %s1, 28
        %v417 = vld [vmem:[%s416] sm:$0xf]
        %418 = vst [vmem:[#allocation1] ss:$4 sm:$0xff] %v393
        %v419 = vld.sshfl [vmem:[#allocation1] sm:$0xff pattern:$0x73625140]
        %421 = vrot.lane.b32.xlu0 %v419, 124
        %v422 = vpop.permute.xlu0 %421
        %v424 = vsel %vm251, %v417, 0
        %v427 = vsel %vm255, %v422, 0
        %429 = vmatpush.bf16.msra.mxu0 0
        %430 = vmatpush.bf16.msra.mxu0 0
        %431 = vmatpush.bf16.msra.mxu0 0
        %432 = vmatpush.bf16.msra.mxu0 0
        %433 = vmatpush.bf16.msra.mxu0 0
        %434 = vmatpush.bf16.msra.mxu0 0
        %435 = vmatpush.bf16.msra.mxu0 0
        %436 = vmatpush.bf16.msra.mxu0 %v427
        %437 = vmatmul.bf16.gmra.mxu0 %v424
        %v438 = vpop.f32.mrf.mxu0
        %v439 = vadd.f32 0.0, %v438
        %v440 = vpop.f32.mrf.mxu0
        %441 = vdwg.mxu0
        %v442 = vadd.f32 %v415, %v439
        %s443 = scalar_lea.vmem %s216, 8 [#allocation2]
        %v444 = vld [vmem:[%s443] sm:$0x3]
        %s445 = scalar_lea.vmem %s1, 32
        %v446 = vld [vmem:[%s445] sm:$0xf]
        %v448 = vsel %vm251, %v446, 0
        %v451 = vsel %vm255, %v444, 0
        %453 = vmatpush.bf16.msra.mxu0 0
        %454 = vmatpush.bf16.msra.mxu0 0
        %455 = vmatpush.bf16.msra.mxu0 0
        %456 = vmatpush.bf16.msra.mxu0 0
        %457 = vmatpush.bf16.msra.mxu0 0
        %458 = vmatpush.bf16.msra.mxu0 0
        %459 = vmatpush.bf16.msra.mxu0 0
        %460 = vmatpush.bf16.msra.mxu0 %v451
        %461 = vmatmul.bf16.gmra.mxu0 %v448
        %v462 = vpop.f32.mrf.mxu0
        %v463 = vadd.f32 0.0, %v462
        %v464 = vpop.f32.mrf.mxu0
        %465 = vdwg.mxu0
        %v466 = vadd.f32 %v442, %v463
        %s467 = scalar_lea.vmem %s1, 36
        %v468 = vld [vmem:[%s467] sm:$0xf]
        %469 = vst [vmem:[#allocation1] ss:$4 sm:$0xff] %v444
        %v470 = vld.sshfl [vmem:[#allocation1] sm:$0xff pattern:$0x73625140]
        %472 = vrot.lane.b32.xlu0 %v470, 124
        %v473 = vpop.permute.xlu0 %472
        %v475 = vsel %vm251, %v468, 0
        %v478 = vsel %vm255, %v473, 0
        %480 = vmatpush.bf16.msra.mxu0 0
        %481 = vmatpush.bf16.msra.mxu0 0
        %482 = vmatpush.bf16.msra.mxu0 0
        %483 = vmatpush.bf16.msra.mxu0 0
        %484 = vmatpush.bf16.msra.mxu0 0
        %485 = vmatpush.bf16.msra.mxu0 0
        %486 = vmatpush.bf16.msra.mxu0 0
        %487 = vmatpush.bf16.msra.mxu0 %v478
        %488 = vmatmul.bf16.gmra.mxu0 %v475
        %v489 = vpop.f32.mrf.mxu0
        %v490 = vadd.f32 0.0, %v489
        %v491 = vpop.f32.mrf.mxu0
        %492 = vdwg.mxu0
        %v493 = vadd.f32 %v466, %v490
        %s494 = scalar_lea.vmem %s216, 10 [#allocation2]
        %v495 = vld [vmem:[%s494] sm:$0x3]
        %s496 = scalar_lea.vmem %s1, 40
        %v497 = vld [vmem:[%s496] sm:$0xf]
        %v499 = vsel %vm251, %v497, 0
        %v502 = vsel %vm255, %v495, 0
        %504 = vmatpush.bf16.msra.mxu0 0
        %505 = vmatpush.bf16.msra.mxu0 0
        %506 = vmatpush.bf16.msra.mxu0 0
        %507 = vmatpush.bf16.msra.mxu0 0
        %508 = vmatpush.bf16.msra.mxu0 0
        %509 = vmatpush.bf16.msra.mxu0 0
        %510 = vmatpush.bf16.msra.mxu0 0
        %511 = vmatpush.bf16.msra.mxu0 %v502
        %512 = vmatmul.bf16.gmra.mxu0 %v499
        %v513 = vpop.f32.mrf.mxu0
        %v514 = vadd.f32 0.0, %v513
        %v515 = vpop.f32.mrf.mxu0
        %516 = vdwg.mxu0
        %v517 = vadd.f32 %v493, %v514
        %s518 = scalar_lea.vmem %s1, 44
        %v519 = vld [vmem:[%s518] sm:$0xf]
        %520 = vst [vmem:[#allocation1] ss:$4 sm:$0xff] %v495
        %v521 = vld.sshfl [vmem:[#allocation1] sm:$0xff pattern:$0x73625140]
        %523 = vrot.lane.b32.xlu0 %v521, 124
        %v524 = vpop.permute.xlu0 %523
        %v526 = vsel %vm251, %v519, 0
        %v529 = vsel %vm255, %v524, 0
        %531 = vmatpush.bf16.msra.mxu0 0
        %532 = vmatpush.bf16.msra.mxu0 0
        %533 = vmatpush.bf16.msra.mxu0 0
        %534 = vmatpush.bf16.msra.mxu0 0
        %535 = vmatpush.bf16.msra.mxu0 0
        %536 = vmatpush.bf16.msra.mxu0 0
        %537 = vmatpush.bf16.msra.mxu0 0
        %538 = vmatpush.bf16.msra.mxu0 %v529
        %539 = vmatmul.bf16.gmra.mxu0 %v526
        %v540 = vpop.f32.mrf.mxu0
        %v541 = vadd.f32 0.0, %v540
        %v542 = vpop.f32.mrf.mxu0
        %543 = vdwg.mxu0
        %v544 = vadd.f32 %v517, %v541
        %s545 = scalar_lea.vmem %s216, 12 [#allocation2]
        %v546 = vld [vmem:[%s545] sm:$0x3]
        %s547 = scalar_lea.vmem %s1, 48
        %v548 = vld [vmem:[%s547] sm:$0xf]
        %v550 = vsel %vm251, %v548, 0
        %v553 = vsel %vm255, %v546, 0
        %555 = vmatpush.bf16.msra.mxu0 0
        %556 = vmatpush.bf16.msra.mxu0 0
        %557 = vmatpush.bf16.msra.mxu0 0
        %558 = vmatpush.bf16.msra.mxu0 0
        %559 = vmatpush.bf16.msra.mxu0 0
        %560 = vmatpush.bf16.msra.mxu0 0
        %561 = vmatpush.bf16.msra.mxu0 0
        %562 = vmatpush.bf16.msra.mxu0 %v553
        %563 = vmatmul.bf16.gmra.mxu0 %v550
        %v564 = vpop.f32.mrf.mxu0
        %v565 = vadd.f32 0.0, %v564
        %v566 = vpop.f32.mrf.mxu0
        %567 = vdwg.mxu0
        %v568 = vadd.f32 %v544, %v565
        %s569 = scalar_lea.vmem %s1, 52
        %v570 = vld [vmem:[%s569] sm:$0xf]
        %571 = vst [vmem:[#allocation1] ss:$4 sm:$0xff] %v546
        %v572 = vld.sshfl [vmem:[#allocation1] sm:$0xff pattern:$0x73625140]
        %574 = vrot.lane.b32.xlu0 %v572, 124
        %v575 = vpop.permute.xlu0 %574
        %v577 = vsel %vm251, %v570, 0
        %v580 = vsel %vm255, %v575, 0
        %582 = vmatpush.bf16.msra.mxu0 0
        %583 = vmatpush.bf16.msra.mxu0 0
        %584 = vmatpush.bf16.msra.mxu0 0
        %585 = vmatpush.bf16.msra.mxu0 0
        %586 = vmatpush.bf16.msra.mxu0 0
        %587 = vmatpush.bf16.msra.mxu0 0
        %588 = vmatpush.bf16.msra.mxu0 0
        %589 = vmatpush.bf16.msra.mxu0 %v580
        %590 = vmatmul.bf16.gmra.mxu0 %v577
        %v591 = vpop.f32.mrf.mxu0
        %v592 = vadd.f32 0.0, %v591
        %v593 = vpop.f32.mrf.mxu0
        %594 = vdwg.mxu0
        %v595 = vadd.f32 %v568, %v592
        %s596 = scalar_lea.vmem %s216, 14 [#allocation2]
        %v597 = vld [vmem:[%s596] sm:$0x3]
        %s598 = scalar_lea.vmem %s1, 56
        %v599 = vld [vmem:[%s598] sm:$0xf]
        %v601 = vsel %vm251, %v599, 0
        %v604 = vsel %vm255, %v597, 0
        %606 = vmatpush.bf16.msra.mxu0 0
        %607 = vmatpush.bf16.msra.mxu0 0
        %608 = vmatpush.bf16.msra.mxu0 0
        %609 = vmatpush.bf16.msra.mxu0 0
        %610 = vmatpush.bf16.msra.mxu0 0
        %611 = vmatpush.bf16.msra.mxu0 0
        %612 = vmatpush.bf16.msra.mxu0 0
        %613 = vmatpush.bf16.msra.mxu0 %v604
        %614 = vmatmul.bf16.gmra.mxu0 %v601
        %v615 = vpop.f32.mrf.mxu0
        %v616 = vadd.f32 0.0, %v615
        %v617 = vpop.f32.mrf.mxu0
        %618 = vdwg.mxu0
        %v619 = vadd.f32 %v595, %v616
        %s620 = scalar_lea.vmem %s1, 60
        %v621 = vld [vmem:[%s620] sm:$0xf]
        %622 = vst [vmem:[#allocation1] ss:$4 sm:$0xff] %v597
        %v623 = vld.sshfl [vmem:[#allocation1] sm:$0xff pattern:$0x73625140]
        %625 = vrot.lane.b32.xlu0 %v623, 124
        %v626 = vpop.permute.xlu0 %625
        %v628 = vsel %vm251, %v621, 0
        %v631 = vsel %vm255, %v626, 0
        %633 = vmatpush.bf16.msra.mxu0 0
        %634 = vmatpush.bf16.msra.mxu0 0
        %635 = vmatpush.bf16.msra.mxu0 0
        %636 = vmatpush.bf16.msra.mxu0 0
        %637 = vmatpush.bf16.msra.mxu0 0
        %638 = vmatpush.bf16.msra.mxu0 0
        %639 = vmatpush.bf16.msra.mxu0 0
        %640 = vmatpush.bf16.msra.mxu0 %v631
        %641 = vmatmul.bf16.gmra.mxu0 %v628
        %v642 = vpop.f32.mrf.mxu0
        %v643 = vadd.f32 0.0, %v642
        %v644 = vpop.f32.mrf.mxu0
        %645 = vdwg.mxu0
        %v646 = vadd.f32 %v619, %v643
        %v647 = vld [vmem:[%s2] sm:$0xff]
        %649 = vset.pattern.permute.xlu0 0
        %650 = vperm.xlu0 %649, %v647
        %v651 = vpop.permute.xlu0 %650
        %v653 = vadd.f32 %v646, %v651
        %vm654 = vcmp.ge.f32.partialorder %v653, 0.0
        %v655 = vmul.f32 %v653, 0.2
        %v656 = vsel %vm654, %v653, %v655
        %v657 = vpack.c.bf16 %v656, %v656
        %vm658 = vcmask 125952
        %659 = vst.msk [vmem:[%s239] sm:$0xf] %vm658, %v657
        %p660 = scmp.lt.s32.totalorder %s14, 1
        %s661 = scalar_select %p660, %s14, 1
        %s662 = smul.addr %s661, 4
        %s663 = scalar_lea.vmem %s3, %s662
        // Predicated region
        $region74: #{ms_image_discriminator.14} parent=68 // pred_check
          %p664 = pneg %p100
        $region75: #{ms_image_discriminator.14} parent=68 // pred_check_branch
          %666 = sbr.rel (%p664) target = $region77
        $region76: #{ms_image_discriminator.14} parent=68 // pred_region
          _
        $region77: #{ms_image_discriminator.14} parent=68 // pred_fallthru
          _
      $region69: #{ms_image_discriminator.14} parent=5 // pred_fallthru
        _
      %p667 = scmp.le.s32.totalorder 2, %s9
      // Predicated region
      $region78: #{ms_image_discriminator.14} parent=5 // pred_check
        %p668 = pneg %p667
      $region79: #{ms_image_discriminator.14} parent=5 // pred_check_branch
        %670 = sbr.rel (%p668) target = $region81
      $region80: #{ms_image_discriminator.14} parent=5 // pred_region
        %s671 = ssub.s32 %s9, 2
        // Predicated region
        $region82: #{ms_image_discriminator.14} parent=80 // pred_check
          %p672 = pneg %p106
        $region83: #{ms_image_discriminator.14} parent=80 // pred_check_branch
          %674 = sbr.rel (%p672) target = $region85
        $region84: #{ms_image_discriminator.14} parent=80 // pred_region
          %p675 = scmp.lt.s32.totalorder %s15, 1
          %s676 = scalar_select %p675, %s15, 1
          %s677 = smul.addr %s676, 4
          %s678 = scalar_lea.vmem %s3, %s677
        $region85: #{ms_image_discriminator.14} parent=80 // pred_fallthru
          _
      $region81: #{ms_image_discriminator.14} parent=5 // pred_fallthru
        _
    $region6: #{ms_image_discriminator.14} parent=1 // loop_footer
      %s13 = sadd.s32 1, %s9
    $region7: #{ms_image_discriminator.14} parent=1 // loop_footer_branch
      %8 = sbr.rel target = $region3
    $region8: #{ms_image_discriminator.14} parent=1 // loop_exit
      _

// kernel: ms_image_discriminator.15
$region0: #{ms_image_discriminator.15}
  #allocation0 [shape = 'u32[]', space=smem, size = 0x4, offset = 0x4, fixed_abs, tag = 'smem constant byte address 0x4 - core index']
  #allocation1 [shape = 'u32[72,128]{1,0:T(1,128)}', space=vmem, size = 0x9000, scoped, tag = 'internal scratch']
  #allocation2 [shape = 'f32[1,1]{1,0:T(1,128)S(1)}', space=vmem, size = 0x200, scoped, tag = 'scoped memory for ms_image_discriminator.15']
  %s0 = inlined_call_operand.vmem [shape: bf16[8,2,8,6], index: 0, kind: input, shape index: {}]
  %s1 = inlined_call_operand.vmem [shape: bf16[16,16,8], index: 1, kind: input, shape index: {}]
  %s2 = inlined_call_operand.vmem [shape: f32[16,1], index: 2, kind: input, shape index: {}]
  %s3 = inlined_call_operand.vmem [shape: f32[1,16], index: 3, kind: input, shape index: {}]
  %s4 = inlined_call_operand.<no memory space> [shape: f32[1,1], index: 4, kind: input, shape index: {}]
  %s5 = inlined_call_operand.vmem [shape: f32[2,1,4], index: 5, kind: output, shape index: {}]
  %s6 = sld [smem:[#allocation0]]
  $region94: #{ms_image_discriminator.15} parent=0
    _
  %s8 = ssub.s32 1, %s6
  %s9 = scalar_select 0, %s8, %s6
  %v10 = vstv %s4
  %11 = vst [vmem:[#allocation2] sm:$0x1] %v10
  $region1: #{ms_image_discriminator.15} parent=0
    #allocation3 [shape = 'u8[32768]{0}', space=vmem, size = 0x8000, scoped, tag = 'input window, operand 0']
    loop: start=0, step=1, limit=4
    $region2: #{ms_image_discriminator.15} parent=1 // loop_pre_header
      _
    $region3: #{ms_image_discriminator.15} parent=1 // loop_header
      %s13 = sphi 0, %s17
      %p14 = scmp.ge.s32.totalorder %s13, 4
      %s23 = sphi 0, %s25
      %s26 = sphi 0, %s23
      %s27 = sphi 0, %s26
      %s43 = sphi 0, %s27
      %s47 = sphi 0, %s47
      %s49 = sphi 0, %s47
      %s50 = sphi 0, %s49
      %s64 = sphi 0, %s50
      %s68 = sphi 0, %s68
      %s70 = sphi 0, %s68
      %s71 = sphi 0, %s70
      %s85 = sphi 0, %s71
      %s89 = sphi 0, %s89
      %s91 = sphi 0, %s89
      %s92 = sphi 0, %s91
      %s106 = sphi 0, %s92
      %s110 = sphi 0, %s110
      %s112 = sphi 0, %s110
      %s113 = sphi 0, %s112
      %s127 = sphi 0, %s113
      %s133 = sphi 0, %s135
      %s136 = sphi 0, %s133
      %s137 = sphi 0, %s136
      %s153 = sphi 0, %s137
    $region4: #{ms_image_discriminator.15} parent=1 // loop_header_branch
      %16 = sbr.rel (%p14) target = $region8
    $region5: #{ms_image_discriminator.15} parent=1 // loop_body
      %s18 = ssub.s32 %s13, 1
      %s19 = ssub.s32 %s13, 2
      %s20 = sadd.s32 %s13, 1
      %s21 = ssub.s32 %s13, %s20
      %p22 = scmp.eq.s32.totalorder %s21, 0
      %s24 = sadd.s32 %s23, 1
      %s25 = scalar_select %p22, %s23, %s24
      %p28 = pneg %p22
      %p29 = scmp.eq.s32.totalorder %s13, 1
      %p30 = por %p28, %p29
      %p31 = scmp.ne.s32.totalorder %s23, %s26
      %p32 = scmp.eq.s32.totalorder %s13, 0
      %p33 = por %p31, %p32
      %p34 = scmp.ne.s32.totalorder %s23, %s26
      %p35 = scmp.eq.s32.totalorder %s18, 1
      %p36 = por %p34, %p35
      %p37 = scmp.ne.s32.totalorder %s26, %s27
      %p38 = scmp.eq.s32.totalorder %s18, 0
      %p39 = por %p37, %p38
      %p40 = scmp.ne.s32.totalorder %s26, %s27
      %p41 = scmp.eq.s32.totalorder %s19, 1
      %p42 = por %p40, %p41
      %p44 = scmp.ne.s32.totalorder %s27, %s43
      %p45 = scmp.eq.s32.totalorder %s19, 0
      %p46 = por %p44, %p45
      %s48 = sadd.s32 %s47, 1
      %p51 = scmp.eq.s32.totalorder %s13, 1
      %p52 = scmp.ne.s32.totalorder %s47, %s49
      %p53 = scmp.eq.s32.totalorder %s13, 0
      %p54 = por %p52, %p53
      %p55 = scmp.ne.s32.totalorder %s47, %s49
      %p56 = scmp.eq.s32.totalorder %s18, 1
      %p57 = por %p55, %p56
      %p58 = scmp.ne.s32.totalorder %s49, %s50
      %p59 = scmp.eq.s32.totalorder %s18, 0
      %p60 = por %p58, %p59
      %p61 = scmp.ne.s32.totalorder %s49, %s50
      %p62 = scmp.eq.s32.totalorder %s19, 1
      %p63 = por %p61, %p62
      %p65 = scmp.ne.s32.totalorder %s50, %s64
      %p66 = scmp.eq.s32.totalorder %s19, 0
      %p67 = por %p65, %p66
      %s69 = sadd.s32 %s68, 1
      %p72 = scmp.eq.s32.totalorder %s13, 1
      %p73 = scmp.ne.s32.totalorder %s68, %s70
      %p74 = scmp.eq.s32.totalorder %s13, 0
      %p75 = por %p73, %p74
      %p76 = scmp.ne.s32.totalorder %s68, %s70
      %p77 = scmp.eq.s32.totalorder %s18, 1
      %p78 = por %p76, %p77
      %p79 = scmp.ne.s32.totalorder %s70, %s71
      %p80 = scmp.eq.s32.totalorder %s18, 0
      %p81 = por %p79, %p80
      %p82 = scmp.ne.s32.totalorder %s70, %s71
      %p83 = scmp.eq.s32.totalorder %s19, 1
      %p84 = por %p82, %p83
      %p86 = scmp.ne.s32.totalorder %s71, %s85
      %p87 = scmp.eq.s32.totalorder %s19, 0
      %p88 = por %p86, %p87
      %s90 = sadd.s32 %s89, 1
      %p93 = scmp.eq.s32.totalorder %s13, 1
      %p94 = scmp.ne.s32.totalorder %s89, %s91
      %p95 = scmp.eq.s32.totalorder %s13, 0
      %p96 = por %p94, %p95
      %p97 = scmp.ne.s32.totalorder %s89, %s91
      %p98 = scmp.eq.s32.totalorder %s18, 1
      %p99 = por %p97, %p98
      %p100 = scmp.ne.s32.totalorder %s91, %s92
      %p101 = scmp.eq.s32.totalorder %s18, 0
      %p102 = por %p100, %p101
      %p103 = scmp.ne.s32.totalorder %s91, %s92
      %p104 = scmp.eq.s32.totalorder %s19, 1
      %p105 = por %p103, %p104
      %p107 = scmp.ne.s32.totalorder %s92, %s106
      %p108 = scmp.eq.s32.totalorder %s19, 0
      %p109 = por %p107, %p108
      %s111 = sadd.s32 %s110, 1
      %p114 = scmp.eq.s32.totalorder %s13, 1
      %p115 = scmp.ne.s32.totalorder %s110, %s112
      %p116 = scmp.eq.s32.totalorder %s13, 0
      %p117 = por %p115, %p116
      %p118 = scmp.ne.s32.totalorder %s110, %s112
      %p119 = scmp.eq.s32.totalorder %s18, 1
      %p120 = por %p118, %p119
      %p121 = scmp.ne.s32.totalorder %s112, %s113
      %p122 = scmp.eq.s32.totalorder %s18, 0
      %p123 = por %p121, %p122
      %p124 = scmp.ne.s32.totalorder %s112, %s113
      %p125 = scmp.eq.s32.totalorder %s19, 1
      %p126 = por %p124, %p125
      %p128 = scmp.ne.s32.totalorder %s113, %s127
      %p129 = scmp.eq.s32.totalorder %s19, 0
      %p130 = por %p128, %p129
      %s131 = ssub.s32 %s13, %s20
      %p132 = scmp.eq.s32.totalorder %s131, 0
      %s134 = sadd.s32 %s133, 1
      %s135 = scalar_select %p132, %s133, %s134
      %p138 = pneg %p132
      %p139 = scmp.eq.s32.totalorder %s13, 1
      %p140 = por %p138, %p139
      %p141 = scmp.ne.s32.totalorder %s133, %s136
      %p142 = scmp.eq.s32.totalorder %s13, 0
      %p143 = por %p141, %p142
      %p144 = scmp.ne.s32.totalorder %s133, %s136
      %p145 = scmp.eq.s32.totalorder %s18, 1
      %p146 = por %p144, %p145
      %p147 = scmp.ne.s32.totalorder %s136, %s137
      %p148 = scmp.eq.s32.totalorder %s18, 0
      %p149 = por %p147, %p148
      %p150 = scmp.ne.s32.totalorder %s136, %s137
      %p151 = scmp.eq.s32.totalorder %s19, 1
      %p152 = por %p150, %p151
      %p154 = scmp.ne.s32.totalorder %s137, %s153
      %p155 = scmp.eq.s32.totalorder %s19, 0
      %p156 = por %p154, %p155
      %p157 = scmp.le.s32.totalorder 1, %s13
      %p158 = scmp.lt.s32.totalorder %s13, 3
      %p159 = pnand %p157, %p158
      %p160 = pneg %p159
      // Predicated region
      $region9: #{ms_image_discriminator.15} parent=5 // pred_check
        _
      $region10: #{ms_image_discriminator.15} parent=5 // pred_check_branch
        %162 = sbr.rel (%p159) target = $region12
      $region11: #{ms_image_discriminator.15} parent=5 // pred_region
        %s163 = ssub.s32 %s13, 1
        // Predicated region
        $region13: #{ms_image_discriminator.15} parent=11 // pred_check
          %p164 = pneg %p60
        $region14: #{ms_image_discriminator.15} parent=11 // pred_check_branch
          %166 = sbr.rel (%p164) target = $region16
        $region15: #{ms_image_discriminator.15} parent=11 // pred_region
          _
        $region16: #{ms_image_discriminator.15} parent=11 // pred_fallthru
          _
        // Predicated region
        $region17: #{ms_image_discriminator.15} parent=11 // pred_check
          %p167 = pneg %p81
        $region18: #{ms_image_discriminator.15} parent=11 // pred_check_branch
          %169 = sbr.rel (%p167) target = $region20
        $region19: #{ms_image_discriminator.15} parent=11 // pred_region
          _
        $region20: #{ms_image_discriminator.15} parent=11 // pred_fallthru
          _
        // Predicated region
        $region21: #{ms_image_discriminator.15} parent=11 // pred_check
          %p170 = pneg %p102
        $region22: #{ms_image_discriminator.15} parent=11 // pred_check_branch
          %172 = sbr.rel (%p170) target = $region24
        $region23: #{ms_image_discriminator.15} parent=11 // pred_region
          _
        $region24: #{ms_image_discriminator.15} parent=11 // pred_fallthru
          _
        // Predicated region
        $region25: #{ms_image_discriminator.15} parent=11 // pred_check
          %p173 = pneg %p123
        $region26: #{ms_image_discriminator.15} parent=11 // pred_check_branch
          %175 = sbr.rel (%p173) target = $region28
        $region27: #{ms_image_discriminator.15} parent=11 // pred_region
          _
        $region28: #{ms_image_discriminator.15} parent=11 // pred_fallthru
          _
      $region12: #{ms_image_discriminator.15} parent=5 // pred_fallthru
        _
      %p176 = scmp.lt.s32.totalorder %s13, 2
      // Predicated region
      $region29: #{ms_image_discriminator.15} parent=5 // pred_check
        %p177 = pneg %p176
      $region30: #{ms_image_discriminator.15} parent=5 // pred_check_branch
        %179 = sbr.rel (%p177) target = $region32
      $region31: #{ms_image_discriminator.15} parent=5 // pred_region
        // Predicated region
        $region33: #{ms_image_discriminator.15} parent=31 // pred_check
          %p180 = pneg %p33
        $region34: #{ms_image_discriminator.15} parent=31 // pred_check_branch
          %182 = sbr.rel (%p180) target = $region36
        $region35: #{ms_image_discriminator.15} parent=31 // pred_region
          %s183 = sand.u32 %s23, 1
          %s184 = sand.u32 %s23, 1
          %s185 = smul.addr %s184, 32
          %s186 = scalar_lea.vmem [#allocation3], %s185
          %s187 = smul.addr %s13, 4
          %s188 = scalar_lea.vmem %s0, %s187
          // Predicated region
          $region37: #{ms_image_discriminator.15} parent=35 // pred_check
            _
          $region38: #{ms_image_discriminator.15} parent=35 // pred_check_branch
            %190 = sbr.rel (0) target = $region40
          $region39: #{ms_image_discriminator.15} parent=35 // pred_region
            // Predicated region
            $region41: #{ms_image_discriminator.15} parent=39 // pred_check
              _
            $region42: #{ms_image_discriminator.15} parent=39 // pred_check_branch
              %192 = sbr.rel target = $region44
            $region43: #{ms_image_discriminator.15} parent=39 // pred_region
              // Predicated region
              $region56: #{ms_image_discriminator.15} parent=43 // pred_check
                _
              $region57: #{ms_image_discriminator.15} parent=43 // pred_check_branch
                %222 = sbr.rel (0) target = $region59
              $region58: #{ms_image_discriminator.15} parent=43 // pred_region
                loop: start=0, step=1, limit=1
                $region60: #{ms_image_discriminator.15} parent=58 // loop_pre_header
                  _
                $region61: #{ms_image_discriminator.15} parent=58 // loop_header
                  %s224 = sphi 0, %s228
                  %p225 = scmp.ge.s32.totalorder %s224, 1
                  %s229 = sphi %s188, %s188
                  %s230 = sphi %s186, %s186
                $region62: #{ms_image_discriminator.15} parent=58 // loop_header_branch
                  %227 = sbr.rel (%p225) target = $region66
                $region63: #{ms_image_discriminator.15} parent=58 // loop_body
                  _
                $region64: #{ms_image_discriminator.15} parent=58 // loop_footer
                  %s228 = sadd.s32 1, %s224
                $region65: #{ms_image_discriminator.15} parent=58 // loop_footer_branch
                  %223 = sbr.rel target = $region61
                $region66: #{ms_image_discriminator.15} parent=58 // loop_exit
                  _
                %s232 = ssub.s32 16, 1
                loop: start=0, step=1, limit=1
                $region67: #{ms_image_discriminator.15} parent=58 // loop_pre_header
                  _
                $region68: #{ms_image_discriminator.15} parent=58 // loop_header
                  %s234 = sphi 0, %s238
                  %p235 = scmp.ge.s32.totalorder %s234, 1
                  %s239 = sphi %s188, %s188
                  %s240 = sphi %s186, %s186
                $region69: #{ms_image_discriminator.15} parent=58 // loop_header_branch
                  %237 = sbr.rel (%p235) target = $region73
                $region70: #{ms_image_discriminator.15} parent=58 // loop_body
                  %v241 = vld [vmem:[%s239] sm:%s232]
                  %242 = vst [vmem:[%s240] sm:%s232] %v241
                  %v243 = vld [vmem:[%s239 + $0x8] sm:%s232]
                  %244 = vst [vmem:[%s240 + $0x4] sm:%s232] %v243
                  %v245 = vld [vmem:[%s239 + $0x10] sm:%s232]
                  %246 = vst [vmem:[%s240 + $0x8] sm:%s232] %v245
                  %v247 = vld [vmem:[%s239 + $0x18] sm:%s232]
                  %248 = vst [vmem:[%s240 + $0xc] sm:%s232] %v247
                  %v249 = vld [vmem:[%s239 + $0x20] sm:%s232]
                  %250 = vst [vmem:[%s240 + $0x10] sm:%s232] %v249
                  %v251 = vld [vmem:[%s239 + $0x28] sm:%s232]
                  %252 = vst [vmem:[%s240 + $0x14] sm:%s232] %v251
                  %v253 = vld [vmem:[%s239 + $0x30] sm:%s232]
                  %254 = vst [vmem:[%s240 + $0x18] sm:%s232] %v253
                  %v255 = vld [vmem:[%s239 + $0x38] sm:%s232]
                  %256 = vst [vmem:[%s240 + $0x1c] sm:%s232] %v255
                $region71: #{ms_image_discriminator.15} parent=58 // loop_footer
                  %s238 = sadd.s32 1, %s234
                $region72: #{ms_image_discriminator.15} parent=58 // loop_footer_branch
                  %233 = sbr.rel target = $region68
                $region73: #{ms_image_discriminator.15} parent=58 // loop_exit
                  _
              $region59: #{ms_image_discriminator.15} parent=43 // pred_fallthru
                _
            $region44: #{ms_image_discriminator.15} parent=39 // pred_fallthru
              _
            // Predicated region
            $region45: #{ms_image_discriminator.15} parent=39 // pred_check
              _
            $region46: #{ms_image_discriminator.15} parent=39 // pred_check_branch
              %194 = sbr.rel (0) target = $region48
            $region47: #{ms_image_discriminator.15} parent=39 // pred_region
              %s196 = ssub.s32 16, 1
              loop: start=0, step=1, limit=1
              $region49: #{ms_image_discriminator.15} parent=47 // loop_pre_header
                _
              $region50: #{ms_image_discriminator.15} parent=47 // loop_header
                %s198 = sphi 0, %s202
                %p199 = scmp.ge.s32.totalorder %s198, 1
                %s203 = sphi %s188, %s188
                %s204 = sphi %s186, %s186
              $region51: #{ms_image_discriminator.15} parent=47 // loop_header_branch
                %201 = sbr.rel (%p199) target = $region55
              $region52: #{ms_image_discriminator.15} parent=47 // loop_body
                %v205 = vld [vmem:[%s203] sm:%s196]
                %206 = vst [vmem:[%s204] sm:%s196] %v205
                %v207 = vld [vmem:[%s203 + $0x8] sm:%s196]
                %208 = vst [vmem:[%s204 + $0x4] sm:%s196] %v207
                %v209 = vld [vmem:[%s203 + $0x10] sm:%s196]
                %210 = vst [vmem:[%s204 + $0x8] sm:%s196] %v209
                %v211 = vld [vmem:[%s203 + $0x18] sm:%s196]
                %212 = vst [vmem:[%s204 + $0xc] sm:%s196] %v211
                %v213 = vld [vmem:[%s203 + $0x20] sm:%s196]
                %214 = vst [vmem:[%s204 + $0x10] sm:%s196] %v213
                %v215 = vld [vmem:[%s203 + $0x28] sm:%s196]
                %216 = vst [vmem:[%s204 + $0x14] sm:%s196] %v215
                %v217 = vld [vmem:[%s203 + $0x30] sm:%s196]
                %218 = vst [vmem:[%s204 + $0x18] sm:%s196] %v217
                %v219 = vld [vmem:[%s203 + $0x38] sm:%s196]
                %220 = vst [vmem:[%s204 + $0x1c] sm:%s196] %v219
              $region53: #{ms_image_discriminator.15} parent=47 // loop_footer
                %s202 = sadd.s32 1, %s198
              $region54: #{ms_image_discriminator.15} parent=47 // loop_footer_branch
                %197 = sbr.rel target = $region50
              $region55: #{ms_image_discriminator.15} parent=47 // loop_exit
                _
            $region48: #{ms_image_discriminator.15} parent=39 // pred_fallthru
              _
          $region40: #{ms_image_discriminator.15} parent=35 // pred_fallthru
            _
          %257 = vnop
        $region36: #{ms_image_discriminator.15} parent=31 // pred_fallthru
          _
      $region32: #{ms_image_discriminator.15} parent=5 // pred_fallthru
        _
      %p258 = scmp.le.s32.totalorder 1, %s13
      %p259 = scmp.lt.s32.totalorder %s13, 3
      %p260 = pnand %p258, %p259
      %p261 = pneg %p260
      // Predicated region
      $region74: #{ms_image_discriminator.15} parent=5 // pred_check
        _
      $region75: #{ms_image_discriminator.15} parent=5 // pred_check_branch
        %263 = sbr.rel (%p260) target = $region77
      $region76: #{ms_image_discriminator.15} parent=5 // pred_region
        %s264 = ssub.s32 %s13, 1
        %s265 = sand.u32 %s26, 1
        %s266 = sand.u32 %s26, 1
        %s267 = smul.addr %s266, 32
        %s268 = scalar_lea.vmem [#allocation3], %s267
        // Predicated region
        $region78: #{ms_image_discriminator.15} parent=76 // pred_check
          %p269 = pneg %p39
        $region79: #{ms_image_discriminator.15} parent=76 // pred_check_branch
          %271 = sbr.rel (%p269) target = $region81
        $region80: #{ms_image_discriminator.15} parent=76 // pred_region
          _
        $region81: #{ms_image_discriminator.15} parent=76 // pred_fallthru
          _
        %s272 = sand.u32 %s26, 1
        %s273 = sand.u32 %s26, 1
        %s274 = smul.addr %s273, 32
        %s275 = scalar_lea.vmem [#allocation3], %s274
        %p276 = pneg %p39
        %p277 = pneg %p36
        %p278 = pneg %p60
        %p279 = pneg %p57
        %p280 = pneg %p81
        %p281 = pneg %p78
        %p282 = pneg %p102
        %p283 = pneg %p99
        %p284 = pneg %p123
        %p285 = pneg %p120
        %p286 = pneg %p149
        %p287 = pneg %p146
        %p288 = scmp.lt.s32.totalorder %s18, 1
        %s289 = scalar_select %p288, %s18, 1
        %s290 = scalar_lea.vmem %s5, %s289
        %p291 = scmp.lt.s32.totalorder %s18, 1
        %s292 = scalar_select %p291, %s18, 1
        %s293 = scalar_lea.vmem %s5, %s292
        %v295 = vld [vmem:[%s268] sm:$0xf]
        %v296 = vld [vmem:[%s1] sm:$0xf]
        %v297 = vld [vmem:[%s1 + $0x4] sm:$0xf]
        %s298 = scalar_lea.vmem %s1, 8
        %v299 = vld [vmem:[%s298] sm:$0xf]
        %v300 = vld [vmem:[%s298 + $0x4] sm:$0xf]
        %v303 = vunpack.c.l.b16 %v299
        %v304 = vunpack.c.l.b16 %v300
        %v305 = vpack.c.b16 %v304, %v303
        %v307 = vunpack.c.l.b16 %v295
        %v308 = vpack.c.b16 %v307, %v307
        %309 = vrot.lane.b32.xlu0 %v308, 126
        %v310 = vpop.permute.xlu0 %309
        %vm311 = vcmask 64512
        %v313 = vsel %vm311, %v305, 0
        %vm315 = vcmask 1043456
        %v317 = vsel %vm315, %v310, 0
        %319 = vmatpush.bf16.msra.mxu0 0
        %320 = vmatpush.bf16.msra.mxu0 0
        %321 = vmatpush.bf16.msra.mxu0 0
        %322 = vmatpush.bf16.msra.mxu0 0
        %323 = vmatpush.bf16.msra.mxu0 0
        %324 = vmatpush.bf16.msra.mxu0 0
        %325 = vmatpush.bf16.msra.mxu0 0
        %326 = vmatpush.bf16.msra.mxu0 %v317
        %327 = vmatmul.bf16.gmra.mxu0 %v313
        %v328 = vpop.f32.mrf.mxu0
        %v329 = vadd.f32 0.0, %v328
        %v330 = vpop.f32.mrf.mxu0
        %v331 = vadd.f32 0.0, %v330
        %332 = vdwg.mxu0
        %v335 = vunpack.c.l.b16 %v296
        %v336 = vunpack.c.l.b16 %v297
        %v337 = vpack.c.b16 %v336, %v335
        %v339 = vsel %vm311, %v337, 0
        %v342 = vsel %vm315, %v295, 0
        %344 = vmatpush.bf16.msra.mxu0 0
        %345 = vmatpush.bf16.msra.mxu0 0
        %346 = vmatpush.bf16.msra.mxu0 0
        %347 = vmatpush.bf16.msra.mxu0 0
        %348 = vmatpush.bf16.msra.mxu0 0
        %349 = vmatpush.bf16.msra.mxu0 0
        %350 = vmatpush.bf16.msra.mxu0 0
        %351 = vmatpush.bf16.msra.mxu0 %v342
        %352 = vmatmul.bf16.gmra.mxu0 %v339
        %v353 = vpop.f32.mrf.mxu0
        %v354 = vadd.f32 %v329, %v353
        %v355 = vpop.f32.mrf.mxu0
        %v356 = vadd.f32 %v331, %v355
        %357 = vdwg.mxu0
        %s358 = scalar_lea.vmem %s268, 4 [#allocation3]
        %v359 = vld [vmem:[%s358] sm:$0xf]
        %s360 = scalar_lea.vmem %s1, 16
        %v361 = vld [vmem:[%s360] sm:$0xf]
        %v362 = vld [vmem:[%s360 + $0x4] sm:$0xf]
        %v365 = vunpack.c.l.b16 %v361
        %v366 = vunpack.c.l.b16 %v362
        %v367 = vpack.c.b16 %v366, %v365
        %v369 = vsel %vm311, %v367, 0
        %v372 = vsel %vm315, %v359, 0
        %374 = vmatpush.bf16.msra.mxu0 0
        %375 = vmatpush.bf16.msra.mxu0 0
        %376 = vmatpush.bf16.msra.mxu0 0
        %377 = vmatpush.bf16.msra.mxu0 0
        %378 = vmatpush.bf16.msra.mxu0 0
        %379 = vmatpush.bf16.msra.mxu0 0
        %380 = vmatpush.bf16.msra.mxu0 0
        %381 = vmatpush.bf16.msra.mxu0 %v372
        %382 = vmatmul.bf16.gmra.mxu0 %v369
        %v383 = vpop.f32.mrf.mxu0
        %v384 = vadd.f32 0.0, %v383
        %v385 = vpop.f32.mrf.mxu0
        %v386 = vadd.f32 0.0, %v385
        %387 = vdwg.mxu0
        %v388 = vadd.f32 %v354, %v384
        %v389 = vadd.f32 %v356, %v386
        %s390 = scalar_lea.vmem %s1, 24
        %v391 = vld [vmem:[%s390] sm:$0xf]
        %v392 = vld [vmem:[%s390 + $0x4] sm:$0xf]
        %v395 = vunpack.c.l.b16 %v391
        %v396 = vunpack.c.l.b16 %v392
        %v397 = vpack.c.b16 %v396, %v395
        %v399 = vunpack.c.l.b16 %v359
        %v400 = vpack.c.b16 %v399, %v399
        %401 = vrot.lane.b32.xlu0 %v400, 126
        %v402 = vpop.permute.xlu0 %401
        %v404 = vsel %vm311, %v397, 0
        %v407 = vsel %vm315, %v402, 0
        %409 = vmatpush.bf16.msra.mxu0 0
        %410 = vmatpush.bf16.msra.mxu0 0
        %411 = vmatpush.bf16.msra.mxu0 0
        %412 = vmatpush.bf16.msra.mxu0 0
        %413 = vmatpush.bf16.msra.mxu0 0
        %414 = vmatpush.bf16.msra.mxu0 0
        %415 = vmatpush.bf16.msra.mxu0 0
        %416 = vmatpush.bf16.msra.mxu0 %v407
        %417 = vmatmul.bf16.gmra.mxu0 %v404
        %v418 = vpop.f32.mrf.mxu0
        %v419 = vadd.f32 0.0, %v418
        %v420 = vpop.f32.mrf.mxu0
        %v421 = vadd.f32 0.0, %v420
        %422 = vdwg.mxu0
        %v423 = vadd.f32 %v388, %v419
        %v424 = vadd.f32 %v389, %v421
        %s425 = scalar_lea.vmem %s268, 8 [#allocation3]
        %v426 = vld [vmem:[%s425] sm:$0xf]
        %s427 = scalar_lea.vmem %s1, 32
        %v428 = vld [vmem:[%s427] sm:$0xf]
        %v429 = vld [vmem:[%s427 + $0x4] sm:$0xf]
        %v432 = vunpack.c.l.b16 %v428
        %v433 = vunpack.c.l.b16 %v429
        %v434 = vpack.c.b16 %v433, %v432
        %v436 = vsel %vm311, %v434, 0
        %v439 = vsel %vm315, %v426, 0
        %441 = vmatpush.bf16.msra.mxu0 0
        %442 = vmatpush.bf16.msra.mxu0 0
        %443 = vmatpush.bf16.msra.mxu0 0
        %444 = vmatpush.bf16.msra.mxu0 0
        %445 = vmatpush.bf16.msra.mxu0 0
        %446 = vmatpush.bf16.msra.mxu0 0
        %447 = vmatpush.bf16.msra.mxu0 0
        %448 = vmatpush.bf16.msra.mxu0 %v439
        %449 = vmatmul.bf16.gmra.mxu0 %v436
        %v450 = vpop.f32.mrf.mxu0
        %v451 = vadd.f32 0.0, %v450
        %v452 = vpop.f32.mrf.mxu0
        %v453 = vadd.f32 0.0, %v452
        %454 = vdwg.mxu0
        %v455 = vadd.f32 %v423, %v451
        %v456 = vadd.f32 %v424, %v453
        %s457 = scalar_lea.vmem %s1, 40
        %v458 = vld [vmem:[%s457] sm:$0xf]
        %v459 = vld [vmem:[%s457 + $0x4] sm:$0xf]
        %v462 = vunpack.c.l.b16 %v458
        %v463 = vunpack.c.l.b16 %v459
        %v464 = vpack.c.b16 %v463, %v462
        %v466 = vunpack.c.l.b16 %v426
        %v467 = vpack.c.b16 %v466, %v466
        %468 = vrot.lane.b32.xlu0 %v467, 126
        %v469 = vpop.permute.xlu0 %468
        %v471 = vsel %vm311, %v464, 0
        %v474 = vsel %vm315, %v469, 0
        %476 = vmatpush.bf16.msra.mxu0 0
        %477 = vmatpush.bf16.msra.mxu0 0
        %478 = vmatpush.bf16.msra.mxu0 0
        %479 = vmatpush.bf16.msra.mxu0 0
        %480 = vmatpush.bf16.msra.mxu0 0
        %481 = vmatpush.bf16.msra.mxu0 0
        %482 = vmatpush.bf16.msra.mxu0 0
        %483 = vmatpush.bf16.msra.mxu0 %v474
        %484 = vmatmul.bf16.gmra.mxu0 %v471
        %v485 = vpop.f32.mrf.mxu0
        %v486 = vadd.f32 0.0, %v485
        %v487 = vpop.f32.mrf.mxu0
        %v488 = vadd.f32 0.0, %v487
        %489 = vdwg.mxu0
        %v490 = vadd.f32 %v455, %v486
        %v491 = vadd.f32 %v456, %v488
        %s492 = scalar_lea.vmem %s268, 12 [#allocation3]
        %v493 = vld [vmem:[%s492] sm:$0xf]
        %s494 = scalar_lea.vmem %s1, 48
        %v495 = vld [vmem:[%s494] sm:$0xf]
        %v496 = vld [vmem:[%s494 + $0x4] sm:$0xf]
        %v499 = vunpack.c.l.b16 %v495
        %v500 = vunpack.c.l.b16 %v496
        %v501 = vpack.c.b16 %v500, %v499
        %v503 = vsel %vm311, %v501, 0
        %v506 = vsel %vm315, %v493, 0
        %508 = vmatpush.bf16.msra.mxu0 0
        %509 = vmatpush.bf16.msra.mxu0 0
        %510 = vmatpush.bf16.msra.mxu0 0
        %511 = vmatpush.bf16.msra.mxu0 0
        %512 = vmatpush.bf16.msra.mxu0 0
        %513 = vmatpush.bf16.msra.mxu0 0
        %514 = vmatpush.bf16.msra.mxu0 0
        %515 = vmatpush.bf16.msra.mxu0 %v506
        %516 = vmatmul.bf16.gmra.mxu0 %v503
        %v517 = vpop.f32.mrf.mxu0
        %v518 = vadd.f32 0.0, %v517
        %v519 = vpop.f32.mrf.mxu0
        %v520 = vadd.f32 0.0, %v519
        %521 = vdwg.mxu0
        %v522 = vadd.f32 %v490, %v518
        %v523 = vadd.f32 %v491, %v520
        %s524 = scalar_lea.vmem %s1, 56
        %v525 = vld [vmem:[%s524] sm:$0xf]
        %v526 = vld [vmem:[%s524 + $0x4] sm:$0xf]
        %v529 = vunpack.c.l.b16 %v525
        %v530 = vunpack.c.l.b16 %v526
        %v531 = vpack.c.b16 %v530, %v529
        %v533 = vunpack.c.l.b16 %v493
        %v534 = vpack.c.b16 %v533, %v533
        %535 = vrot.lane.b32.xlu0 %v534, 126
        %v536 = vpop.permute.xlu0 %535
        %v538 = vsel %vm311, %v531, 0
        %v541 = vsel %vm315, %v536, 0
        %543 = vmatpush.bf16.msra.mxu0 0
        %544 = vmatpush.bf16.msra.mxu0 0
        %545 = vmatpush.bf16.msra.mxu0 0
        %546 = vmatpush.bf16.msra.mxu0 0
        %547 = vmatpush.bf16.msra.mxu0 0
        %548 = vmatpush.bf16.msra.mxu0 0
        %549 = vmatpush.bf16.msra.mxu0 0
        %550 = vmatpush.bf16.msra.mxu0 %v541
        %551 = vmatmul.bf16.gmra.mxu0 %v538
        %v552 = vpop.f32.mrf.mxu0
        %v553 = vadd.f32 0.0, %v552
        %v554 = vpop.f32.mrf.mxu0
        %v555 = vadd.f32 0.0, %v554
        %556 = vdwg.mxu0
        %v557 = vadd.f32 %v522, %v553
        %v558 = vadd.f32 %v523, %v555
        %s559 = scalar_lea.vmem %s268, 16 [#allocation3]
        %v560 = vld [vmem:[%s559] sm:$0xf]
        %s561 = scalar_lea.vmem %s1, 64
        %v562 = vld [vmem:[%s561] sm:$0xf]
        %v563 = vld [vmem:[%s561 + $0x4] sm:$0xf]
        %v566 = vunpack.c.l.b16 %v562
        %v567 = vunpack.c.l.b16 %v563
        %v568 = vpack.c.b16 %v567, %v566
        %v570 = vsel %vm311, %v568, 0
        %v573 = vsel %vm315, %v560, 0
        %575 = vmatpush.bf16.msra.mxu0 0
        %576 = vmatpush.bf16.msra.mxu0 0
        %577 = vmatpush.bf16.msra.mxu0 0
        %578 = vmatpush.bf16.msra.mxu0 0
        %579 = vmatpush.bf16.msra.mxu0 0
        %580 = vmatpush.bf16.msra.mxu0 0
        %581 = vmatpush.bf16.msra.mxu0 0
        %582 = vmatpush.bf16.msra.mxu0 %v573
        %583 = vmatmul.bf16.gmra.mxu0 %v570
        %v584 = vpop.f32.mrf.mxu0
        %v585 = vadd.f32 0.0, %v584
        %v586 = vpop.f32.mrf.mxu0
        %v587 = vadd.f32 0.0, %v586
        %588 = vdwg.mxu0
        %v589 = vadd.f32 %v557, %v585
        %v590 = vadd.f32 %v558, %v587
        %s591 = scalar_lea.vmem %s1, 72
        %v592 = vld [vmem:[%s591] sm:$0xf]
        %v593 = vld [vmem:[%s591 + $0x4] sm:$0xf]
        %v596 = vunpack.c.l.b16 %v592
        %v597 = vunpack.c.l.b16 %v593
        %v598 = vpack.c.b16 %v597, %v596
        %v600 = vunpack.c.l.b16 %v560
        %v601 = vpack.c.b16 %v600, %v600
        %602 = vrot.lane.b32.xlu0 %v601, 126
        %v603 = vpop.permute.xlu0 %602
        %v605 = vsel %vm311, %v598, 0
        %v608 = vsel %vm315, %v603, 0
        %610 = vmatpush.bf16.msra.mxu0 0
        %611 = vmatpush.bf16.msra.mxu0 0
        %612 = vmatpush.bf16.msra.mxu0 0
        %613 = vmatpush.bf16.msra.mxu0 0
        %614 = vmatpush.bf16.msra.mxu0 0
        %615 = vmatpush.bf16.msra.mxu0 0
        %616 = vmatpush.bf16.msra.mxu0 0
        %617 = vmatpush.bf16.msra.mxu0 %v608
        %618 = vmatmul.bf16.gmra.mxu0 %v605
        %v619 = vpop.f32.mrf.mxu0
        %v620 = vadd.f32 0.0, %v619
        %v621 = vpop.f32.mrf.mxu0
        %v622 = vadd.f32 0.0, %v621
        %623 = vdwg.mxu0
        %v624 = vadd.f32 %v589, %v620
        %v625 = vadd.f32 %v590, %v622
        %s626 = scalar_lea.vmem %s268, 20 [#allocation3]
        %v627 = vld [vmem:[%s626] sm:$0xf]
        %s628 = scalar_lea.vmem %s1, 80
        %v629 = vld [vmem:[%s628] sm:$0xf]
        %v630 = vld [vmem:[%s628 + $0x4] sm:$0xf]
        %v633 = vunpack.c.l.b16 %v629
        %v634 = vunpack.c.l.b16 %v630
        %v635 = vpack.c.b16 %v634, %v633
        %v637 = vsel %vm311, %v635, 0
        %v640 = vsel %vm315, %v627, 0
        %642 = vmatpush.bf16.msra.mxu0 0
        %643 = vmatpush.bf16.msra.mxu0 0
        %644 = vmatpush.bf16.msra.mxu0 0
        %645 = vmatpush.bf16.msra.mxu0 0
        %646 = vmatpush.bf16.msra.mxu0 0
        %647 = vmatpush.bf16.msra.mxu0 0
        %648 = vmatpush.bf16.msra.mxu0 0
        %649 = vmatpush.bf16.msra.mxu0 %v640
        %650 = vmatmul.bf16.gmra.mxu0 %v637
        %v651 = vpop.f32.mrf.mxu0
        %v652 = vadd.f32 0.0, %v651
        %v653 = vpop.f32.mrf.mxu0
        %v654 = vadd.f32 0.0, %v653
        %655 = vdwg.mxu0
        %v656 = vadd.f32 %v624, %v652
        %v657 = vadd.f32 %v625, %v654
        %s658 = scalar_lea.vmem %s1, 88
        %v659 = vld [vmem:[%s658] sm:$0xf]
        %v660 = vld [vmem:[%s658 + $0x4] sm:$0xf]
        %v663 = vunpack.c.l.b16 %v659
        %v664 = vunpack.c.l.b16 %v660
        %v665 = vpack.c.b16 %v664, %v663
        %v667 = vunpack.c.l.b16 %v627
        %v668 = vpack.c.b16 %v667, %v667
        %669 = vrot.lane.b32.xlu0 %v668, 126
        %v670 = vpop.permute.xlu0 %669
        %v672 = vsel %vm311, %v665, 0
        %v675 = vsel %vm315, %v670, 0
        %677 = vmatpush.bf16.msra.mxu0 0
        %678 = vmatpush.bf16.msra.mxu0 0
        %679 = vmatpush.bf16.msra.mxu0 0
        %680 = vmatpush.bf16.msra.mxu0 0
        %681 = vmatpush.bf16.msra.mxu0 0
        %682 = vmatpush.bf16.msra.mxu0 0
        %683 = vmatpush.bf16.msra.mxu0 0
        %684 = vmatpush.bf16.msra.mxu0 %v675
        %685 = vmatmul.bf16.gmra.mxu0 %v672
        %v686 = vpop.f32.mrf.mxu0
        %v687 = vadd.f32 0.0, %v686
        %v688 = vpop.f32.mrf.mxu0
        %v689 = vadd.f32 0.0, %v688
        %690 = vdwg.mxu0
        %v691 = vadd.f32 %v656, %v687
        %v692 = vadd.f32 %v657, %v689
        %s693 = scalar_lea.vmem %s268, 24 [#allocation3]
        %v694 = vld [vmem:[%s693] sm:$0xf]
        %s695 = scalar_lea.vmem %s1, 96
        %v696 = vld [vmem:[%s695] sm:$0xf]
        %v697 = vld [vmem:[%s695 + $0x4] sm:$0xf]
        %v700 = vunpack.c.l.b16 %v696
        %v701 = vunpack.c.l.b16 %v697
        %v702 = vpack.c.b16 %v701, %v700
        %v704 = vsel %vm311, %v702, 0
        %v707 = vsel %vm315, %v694, 0
        %709 = vmatpush.bf16.msra.mxu0 0
        %710 = vmatpush.bf16.msra.mxu0 0
        %711 = vmatpush.bf16.msra.mxu0 0
        %712 = vmatpush.bf16.msra.mxu0 0
        %713 = vmatpush.bf16.msra.mxu0 0
        %714 = vmatpush.bf16.msra.mxu0 0
        %715 = vmatpush.bf16.msra.mxu0 0
        %716 = vmatpush.bf16.msra.mxu0 %v707
        %717 = vmatmul.bf16.gmra.mxu0 %v704
        %v718 = vpop.f32.mrf.mxu0
        %v719 = vadd.f32 0.0, %v718
        %v720 = vpop.f32.mrf.mxu0
        %v721 = vadd.f32 0.0, %v720
        %722 = vdwg.mxu0
        %v723 = vadd.f32 %v691, %v719
        %v724 = vadd.f32 %v692, %v721
        %s725 = scalar_lea.vmem %s1, 104
        %v726 = vld [vmem:[%s725] sm:$0xf]
        %v727 = vld [vmem:[%s725 + $0x4] sm:$0xf]
        %v730 = vunpack.c.l.b16 %v726
        %v731 = vunpack.c.l.b16 %v727
        %v732 = vpack.c.b16 %v731, %v730
        %v734 = vunpack.c.l.b16 %v694
        %v735 = vpack.c.b16 %v734, %v734
        %736 = vrot.lane.b32.xlu0 %v735, 126
        %v737 = vpop.permute.xlu0 %736
        %v739 = vsel %vm311, %v732, 0
        %v742 = vsel %vm315, %v737, 0
        %744 = vmatpush.bf16.msra.mxu0 0
        %745 = vmatpush.bf16.msra.mxu0 0
        %746 = vmatpush.bf16.msra.mxu0 0
        %747 = vmatpush.bf16.msra.mxu0 0
        %748 = vmatpush.bf16.msra.mxu0 0
        %749 = vmatpush.bf16.msra.mxu0 0
        %750 = vmatpush.bf16.msra.mxu0 0
        %751 = vmatpush.bf16.msra.mxu0 %v742
        %752 = vmatmul.bf16.gmra.mxu0 %v739
        %v753 = vpop.f32.mrf.mxu0
        %v754 = vadd.f32 0.0, %v753
        %v755 = vpop.f32.mrf.mxu0
        %v756 = vadd.f32 0.0, %v755
        %757 = vdwg.mxu0
        %v758 = vadd.f32 %v723, %v754
        %v759 = vadd.f32 %v724, %v756
        %s760 = scalar_lea.vmem %s268, 28 [#allocation3]
        %v761 = vld [vmem:[%s760] sm:$0xf]
        %s762 = scalar_lea.vmem %s1, 112
        %v763 = vld [vmem:[%s762] sm:$0xf]
        %v764 = vld [vmem:[%s762 + $0x4] sm:$0xf]
        %v767 = vunpack.c.l.b16 %v763
        %v768 = vunpack.c.l.b16 %v764
        %v769 = vpack.c.b16 %v768, %v767
        %v771 = vsel %vm311, %v769, 0
        %v774 = vsel %vm315, %v761, 0
        %776 = vmatpush.bf16.msra.mxu0 0
        %777 = vmatpush.bf16.msra.mxu0 0
        %778 = vmatpush.bf16.msra.mxu0 0
        %779 = vmatpush.bf16.msra.mxu0 0
        %780 = vmatpush.bf16.msra.mxu0 0
        %781 = vmatpush.bf16.msra.mxu0 0
        %782 = vmatpush.bf16.msra.mxu0 0
        %783 = vmatpush.bf16.msra.mxu0 %v774
        %784 = vmatmul.bf16.gmra.mxu0 %v771
        %v785 = vpop.f32.mrf.mxu0
        %v786 = vadd.f32 0.0, %v785
        %v787 = vpop.f32.mrf.mxu0
        %v788 = vadd.f32 0.0, %v787
        %789 = vdwg.mxu0
        %v790 = vadd.f32 %v758, %v786
        %v791 = vadd.f32 %v759, %v788
        %s792 = scalar_lea.vmem %s1, 120
        %v793 = vld [vmem:[%s792] sm:$0xf]
        %v794 = vld [vmem:[%s792 + $0x4] sm:$0xf]
        %v797 = vunpack.c.l.b16 %v793
        %v798 = vunpack.c.l.b16 %v794
        %v799 = vpack.c.b16 %v798, %v797
        %v801 = vunpack.c.l.b16 %v761
        %v802 = vpack.c.b16 %v801, %v801
        %803 = vrot.lane.b32.xlu0 %v802, 126
        %v804 = vpop.permute.xlu0 %803
        %v806 = vsel %vm311, %v799, 0
        %v809 = vsel %vm315, %v804, 0
        %811 = vmatpush.bf16.msra.mxu0 0
        %812 = vmatpush.bf16.msra.mxu0 0
        %813 = vmatpush.bf16.msra.mxu0 0
        %814 = vmatpush.bf16.msra.mxu0 0
        %815 = vmatpush.bf16.msra.mxu0 0
        %816 = vmatpush.bf16.msra.mxu0 0
        %817 = vmatpush.bf16.msra.mxu0 0
        %818 = vmatpush.bf16.msra.mxu0 %v809
        %819 = vmatmul.bf16.gmra.mxu0 %v806
        %v820 = vpop.f32.mrf.mxu0
        %v821 = vadd.f32 0.0, %v820
        %v822 = vpop.f32.mrf.mxu0
        %v823 = vadd.f32 0.0, %v822
        %824 = vdwg.mxu0
        %v825 = vadd.f32 %v790, %v821
        %v826 = vadd.f32 %v791, %v823
        %v827 = vld [vmem:[%s2] sm:$0xff]
        %v828 = vld [vmem:[%s2 + $0x8] sm:$0xff]
        %830 = vset.pattern.permute.xlu0 0
        %831 = vperm.xlu0 %830, %v827
        %v832 = vpop.permute.xlu0 %831
        %835 = vset.pattern.permute.xlu0 0
        %836 = vperm.xlu0 %835, %v828
        %v837 = vpop.permute.xlu0 %836
        %v839 = vadd.f32 %v825, %v832
        %v840 = vadd.f32 %v826, %v837
        %vm841 = vcmp.ge.f32.partialorder %v839, 0.0
        %vm842 = vcmp.ge.f32.partialorder %v840, 0.0
        %v843 = vmul.f32 %v839, 0.2
        %v844 = vmul.f32 %v840, 0.2
        %v845 = vsel %vm841, %v839, %v843
        %v846 = vsel %vm842, %v840, %v844
        %v847 = vld [vmem:[%s3] sm:$0x1]
        %v848 = vld [vmem:[#allocation2] sm:$0x1]
        %850 = vset.pattern.permute.xlu0 0
        %851 = vperm.xlu0 %850, %v848
        %v852 = vpop.permute.xlu0 %851
        %v854 = vperm.slane %v852, 0
        %vm855 = vcmask 130048
        %v857 = vsel %vm855, %v847, 0
        %859 = vmatpush.msra.mxu0 0.0
        %860 = vmatpush.msra.mxu0 0.0
        %861 = vmatpush.msra.mxu0 0.0
        %862 = vmatpush.msra.mxu0 0.0
        %863 = vmatpush.msra.mxu0 0.0
        %864 = vmatpush.msra.mxu0 0.0
        %865 = vmatpush.msra.mxu0 0.0
        %866 = vmatpush.msra.mxu0 0.0
        %867 = vmatpush.msra.mxu0 0.0
        %868 = vmatpush.msra.mxu0 0.0
        %869 = vmatpush.msra.mxu0 0.0
        %870 = vmatpush.msra.mxu0 0.0
        %871 = vmatpush.msra.mxu0 0.0
        %872 = vmatpush.msra.mxu0 0.0
        %873 = vmatpush.msra.mxu0 %v846
        %874 = vmatpush.msra.mxu0 %v845
        %875 = vmatmul.f32.gmra.mxu0 %v857
        %v876 = vpop.f32.mrf.mxu0
        %v877 = vadd.f32 %v854, %v876
        %878 = vdwg.mxu0
        %vm879 = vcmask 24576
        %880 = vst.msk [vmem:[%s293] sm:$0x1] %vm879, %v877
        %p881 = scmp.lt.s32.totalorder %s18, 1
        %s882 = scalar_select %p881, %s18, 1
        %s883 = scalar_lea.vmem %s5, %s882
        // Predicated region
        $region82: #{ms_image_discriminator.15} parent=76 // pred_check
          %p884 = pneg %p146
        $region83: #{ms_image_discriminator.15} parent=76 // pred_check_branch
          %886 = sbr.rel (%p884) target = $region85
        $region84: #{ms_image_discriminator.15} parent=76 // pred_region
          _
        $region85: #{ms_image_discriminator.15} parent=76 // pred_fallthru
          _
      $region77: #{ms_image_discriminator.15} parent=5 // pred_fallthru
        _
      %p887 = scmp.le.s32.totalorder 2, %s13
      // Predicated region
      $region86: #{ms_image_discriminator.15} parent=5 // pred_check
        %p888 = pneg %p887
      $region87: #{ms_image_discriminator.15} parent=5 // pred_check_branch
        %890 = sbr.rel (%p888) target = $region89
      $region88: #{ms_image_discriminator.15} parent=5 // pred_region
        %s891 = ssub.s32 %s13, 2
        // Predicated region
        $region90: #{ms_image_discriminator.15} parent=88 // pred_check
          %p892 = pneg %p152
        $region91: #{ms_image_discriminator.15} parent=88 // pred_check_branch
          %894 = sbr.rel (%p892) target = $region93
        $region92: #{ms_image_discriminator.15} parent=88 // pred_region
          %p895 = scmp.lt.s32.totalorder %s19, 1
          %s896 = scalar_select %p895, %s19, 1
          %s897 = scalar_lea.vmem %s5, %s896
        $region93: #{ms_image_discriminator.15} parent=88 // pred_fallthru
          _
      $region89: #{ms_image_discriminator.15} parent=5 // pred_fallthru
        _
    $region6: #{ms_image_discriminator.15} parent=1 // loop_footer
      %s17 = sadd.s32 1, %s13
    $region7: #{ms_image_discriminator.15} parent=1 // loop_footer_branch
      %12 = sbr.rel target = $region3
    $region8: #{ms_image_discriminator.15} parent=1 // loop_exit
      _

</llo_original>
